<compile_context>
chip_gen: v5e
topology: v5e:2x2
jax: 0.10.0
libtpu: 0.0.40
codegen_flags: <defaults>
</compile_context>

<pallas_src>
import functools

import jax
import jax.numpy as jnp
from jax.experimental import pallas as pl
from jax.experimental.pallas import tpu as pltpu

_EPS = 1e-6  # matches the attention-is-all-you-need-pytorch reference LayerNorm eps


# --------------------------------------------------------------------------
# In-kernel helpers (operate on loaded values; everything stays in VMEM/vregs)
# --------------------------------------------------------------------------

def _layernorm(y, g, b):
    mu = jnp.mean(y, axis=-1, keepdims=True)
    var = jnp.mean(jnp.square(y - mu), axis=-1, keepdims=True)
    return (y - mu) * jax.lax.rsqrt(var + _EPS) * g + b


def _mha(x_q, x_kv, wq, wk, wv, wo, g, b, ctx_ref, *, B, Lq, Lk, H, dk, dv):
    """Post-LN multi-head attention sublayer: LN(x_q + proj(attn(q,k,v)))."""
    xq16 = x_q.astype(jnp.bfloat16)
    xk16 = x_kv.astype(jnp.bfloat16)
    scale = float(dk) ** -0.5
    # Projections (MXU, bf16 inputs / f32 accumulation), heads packed along lanes.
    q = (jnp.dot(xq16, wq, preferred_element_type=jnp.float32) * scale).astype(jnp.bfloat16)
    k = jnp.dot(xk16, wk, preferred_element_type=jnp.float32).astype(jnp.bfloat16)
    v = jnp.dot(xk16, wv, preferred_element_type=jnp.float32).astype(jnp.bfloat16)

    # Per (batch, head) attention with static slices; context written lane-packed
    # into the shared VMEM scratch (B*Lq, H*dv) -- no transposes anywhere.
    for bb in range(B):
        for h in range(H):
            qh = q[bb * Lq:(bb + 1) * Lq, h * dk:(h + 1) * dk]
            kh = k[bb * Lk:(bb + 1) * Lk, h * dk:(h + 1) * dk]
            vh = v[bb * Lk:(bb + 1) * Lk, h * dv:(h + 1) * dv]
            # Contract d_k of q with d_k of k directly (no K transpose emitted).
            s = jax.lax.dot_general(qh, kh, (((1,), (1,)), ((), ())),
                                    preferred_element_type=jnp.float32)
            s = s - jnp.max(s, axis=-1, keepdims=True)
            p = jnp.exp(s)
            p = p * pl.reciprocal(jnp.sum(p, axis=-1, keepdims=True), approx=True)
            ctx_ref[bb * Lq:(bb + 1) * Lq, h * dv:(h + 1) * dv] = jnp.dot(
                p.astype(jnp.bfloat16), vh, preferred_element_type=jnp.float32)

    ctx = ctx_ref[...].astype(jnp.bfloat16)
    y = jnp.dot(ctx, wo, preferred_element_type=jnp.float32) + x_q
    return _layernorm(y, g, b)


def _ffn(x, w1, b1, w2, b2, g, b):
    """Post-LN position-wise FFN sublayer: LN(x + W2 relu(W1 x + b1) + b2)."""
    x16 = x.astype(jnp.bfloat16)
    h = jnp.maximum(jnp.dot(x16, w1, preferred_element_type=jnp.float32) + b1, 0.0)
    y = jnp.dot(h.astype(jnp.bfloat16), w2, preferred_element_type=jnp.float32) + b2 + x
    return _layernorm(y, g, b)


# --------------------------------------------------------------------------
# The single fused kernel: embedding-LN + n_layers encoder + n_layers decoder
# --------------------------------------------------------------------------

def _fused_transformer_kernel(*refs, n_layers, n_head, d_k, d_v, num_feature,
                              with_decoder):
    it = iter(refs)
    nx = lambda: next(it)

    # ---- unpack inputs (order must match the wrapper) ----
    enc_x_ref = nx()                         # (B*L, D) f32, pre-LN encoder embedding
    enc_g = nx()[...]
    enc_b = nx()[...]
    e_wq, e_wk, e_wv, e_wo, e_lng, e_lnb = [nx() for _ in range(6)]
    e_w1, e_b1, e_w2, e_b2, e_l2g, e_l2b = [nx() for _ in range(6)]
    if with_decoder:
        dec_x_ref = nx()                     # (B*L, D) f32, pre-LN decoder embedding
        dec_g = nx()[...]
        dec_b = nx()[...]
        ds_wq, ds_wk, ds_wv, ds_wo, ds_lng, ds_lnb = [nx() for _ in range(6)]
        de_wq, de_wk, de_wv, de_wo, de_lng, de_lnb = [nx() for _ in range(6)]
        d_w1, d_b1, d_w2, d_b2, d_l2g, d_l2b = [nx() for _ in range(6)]
    out_ref = nx()                           # (B*L, D) f32
    ctx_ref = nx()                           # (B*L, H*dv) f32 VMEM scratch

    L = num_feature
    BL = enc_x_ref.shape[0]
    B = BL // L
    H, dk, dv = n_head, d_k, d_v

    # ------------------------- encoder -------------------------
    x = _layernorm(enc_x_ref[...], enc_g, enc_b)
    for l in range(n_layers):
        x = _mha(x, x, e_wq[l], e_wk[l], e_wv[l], e_wo[l], e_lng[l], e_lnb[l],
                 ctx_ref, B=B, Lq=L, Lk=L, H=H, dk=dk, dv=dv)
        x = _ffn(x, e_w1[l], e_b1[l], e_w2[l], e_b2[l], e_l2g[l], e_l2b[l])
    enc_out = x

    # ------------------------- decoder -------------------------
    if with_decoder:
        y = _layernorm(dec_x_ref[...], dec_g, dec_b)
        for l in range(n_layers):
            y = _mha(y, y, ds_wq[l], ds_wk[l], ds_wv[l], ds_wo[l], ds_lng[l], ds_lnb[l],
                     ctx_ref, B=B, Lq=L, Lk=L, H=H, dk=dk, dv=dv)
            y = _mha(y, enc_out, de_wq[l], de_wk[l], de_wv[l], de_wo[l], de_lng[l],
                     de_lnb[l], ctx_ref, B=B, Lq=L, Lk=L, H=H, dk=dk, dv=dv)
            y = _ffn(y, d_w1[l], d_b1[l], d_w2[l], d_b2[l], d_l2g[l], d_l2b[l])
        out_ref[...] = y
    else:
        out_ref[...] = enc_out


# --------------------------------------------------------------------------
# Parameter initialization (xavier-uniform like the PyTorch init; matmul weights
# stored pre-transposed as [in, out] and in bf16, per-layer stacks with a leading
# n_layers axis so the kernel slices them with static indices)
# --------------------------------------------------------------------------

def _xavier(key, fan_in, fan_out):
    limit = (6.0 / (fan_in + fan_out)) ** 0.5
    return jax.random.uniform(key, (fan_in, fan_out), jnp.float32, -limit, limit)


def _stack_xavier(key, n, fan_in, fan_out, dtype):
    ks = jax.random.split(key, n)
    return jnp.stack([_xavier(ks[i], fan_in, fan_out) for i in range(n)]).astype(dtype)


def _init_mha_stack(key, n_layers, d_model, n_head, d_k, d_v):
    ks = jax.random.split(key, 4)
    return {
        "wq": _stack_xavier(ks[0], n_layers, d_model, n_head * d_k, jnp.bfloat16),
        "wk": _stack_xavier(ks[1], n_layers, d_model, n_head * d_k, jnp.bfloat16),
        "wv": _stack_xavier(ks[2], n_layers, d_model, n_head * d_v, jnp.bfloat16),
        "wo": _stack_xavier(ks[3], n_layers, n_head * d_v, d_model, jnp.bfloat16),
        "ln_g": jnp.ones((n_layers, 1, d_model), jnp.float32),
        "ln_b": jnp.zeros((n_layers, 1, d_model), jnp.float32),
    }


def _init_ffn_stack(key, n_layers, d_model, d_inner):
    ks = jax.random.split(key, 2)
    return {
        "w1": _stack_xavier(ks[0], n_layers, d_model, d_inner, jnp.bfloat16),
        "b1": jnp.zeros((n_layers, 1, d_inner), jnp.float32),
        "w2": _stack_xavier(ks[1], n_layers, d_inner, d_model, jnp.bfloat16),
        "b2": jnp.zeros((n_layers, 1, d_model), jnp.float32),
        "ln_g": jnp.ones((n_layers, 1, d_model), jnp.float32),
        "ln_b": jnp.zeros((n_layers, 1, d_model), jnp.float32),
    }


def init_transformer_params(key, cfg):
    d_model, d_inner = cfg["d_model"], cfg["d_inner"]
    n_head, d_k, d_v = cfg["n_head"], cfg["d_k"], cfg["d_v"]
    L, nl = cfg["num_feature"], cfg["n_layers"]
    ks = jax.random.split(key, 8)

    encoder = {
        "feature_abstract": _xavier(ks[0], cfg["src_num_inputs"], d_model * L),
        "ln_g": jnp.ones((1, d_model), jnp.float32),
        "ln_b": jnp.zeros((1, d_model), jnp.float32),
        "slf": _init_mha_stack(ks[1], nl, d_model, n_head, d_k, d_v),
        "ffn": _init_ffn_stack(ks[2], nl, d_model, d_inner),
    }
    trg_in = cfg["trg_num_inputs"] if cfg["trg_num_inputs"] > 0 else 1
    decoder = {
        "feature_abstract": _xavier(ks[3], trg_in, d_model * L),
        "ln_g": jnp.ones((1, d_model), jnp.float32),
        "ln_b": jnp.zeros((1, d_model), jnp.float32),
        "slf": _init_mha_stack(ks[4], nl, d_model, n_head, d_k, d_v),
        "enc": _init_mha_stack(ks[5], nl, d_model, n_head, d_k, d_v),
        "ffn": _init_ffn_stack(ks[6], nl, d_model, d_inner),
    }
    fc = _xavier(ks[7], d_model * L, cfg["num_outputs"])
    return {"encoder": encoder, "decoder": decoder, "fc": fc}


# --------------------------------------------------------------------------
# Forward wrapper: tiny edge matmuls in XLA, everything else in one pallas_call
# --------------------------------------------------------------------------

def transformer_forward(src_seq, trg_seq, params, cfg):
    B = src_seq.shape[0]
    L, D = cfg["num_feature"], cfg["d_model"]
    H, dk, dv = cfg["n_head"], cfg["d_k"], cfg["d_v"]
    with_dec = cfg["trg_num_inputs"] > 0

    enc = params["encoder"]
    # feature_abstract (e.g. 2x4 @ 4x256) is pure launch overhead as a kernel; XLA fuses it.
    enc_x0 = jnp.dot(src_seq, enc["feature_abstract"]).reshape(B * L, D)

    s, f = enc["slf"], enc["ffn"]
    args = [enc_x0, enc["ln_g"], enc["ln_b"],
            s["wq"], s["wk"], s["wv"], s["wo"], s["ln_g"], s["ln_b"],
            f["w1"], f["b1"], f["w2"], f["b2"], f["ln_g"], f["ln_b"]]

    if with_dec:
        dec = params["decoder"]
        dec_x0 = jnp.dot(trg_seq, dec["feature_abstract"]).reshape(B * L, D)
        ss, cc, ff = dec["slf"], dec["enc"], dec["ffn"]
        args += [dec_x0, dec["ln_g"], dec["ln_b"],
                 ss["wq"], ss["wk"], ss["wv"], ss["wo"], ss["ln_g"], ss["ln_b"],
                 cc["wq"], cc["wk"], cc["wv"], cc["wo"], cc["ln_g"], cc["ln_b"],
                 ff["w1"], ff["b1"], ff["w2"], ff["b2"], ff["ln_g"], ff["ln_b"]]

    kernel = functools.partial(
        _fused_transformer_kernel,
        n_layers=cfg["n_layers"], n_head=H, d_k=dk, d_v=dv,
        num_feature=L, with_decoder=with_dec)

    out = pl.pallas_call(
        kernel,
        out_shape=jax.ShapeDtypeStruct((B * L, D), jnp.float32),
        scratch_shapes=[pltpu.VMEM((B * L, H * dv), jnp.float32)],
    )(*args)

    # Final projection (output dim = num_outputs, e.g. 5): left to XLA (lane-sparse
    # output would be a masked-store-bound Pallas kernel).
    logits = jnp.dot(out.reshape(B, L * D), params["fc"])
    if cfg["scale_prj"]:
        logits = logits * (float(D) ** -0.5)
    return logits


# --------------------------------------------------------------------------
# Pure-JAX reference (same math, f32) for a correctness cross-check
# --------------------------------------------------------------------------

def reference_forward(src_seq, trg_seq, params, cfg):
    L, D = cfg["num_feature"], cfg["d_model"]
    H, dk, dv = cfg["n_head"], cfg["d_k"], cfg["d_v"]
    B = src_seq.shape[0]
    f32 = lambda a: a.astype(jnp.float32)

    def ln(x, g, b):
        mu = x.mean(-1, keepdims=True)
        var = ((x - mu) ** 2).mean(-1, keepdims=True)
        return (x - mu) / jnp.sqrt(var + _EPS) * g + b

    def mha(xq, xkv, wq, wk, wv, wo, g, b):
        q = (xq @ f32(wq)).reshape(B, -1, H, dk).transpose(0, 2, 1, 3)
        k = (xkv @ f32(wk)).reshape(B, -1, H, dk).transpose(0, 2, 1, 3)
        v = (xkv @ f32(wv)).reshape(B, -1, H, dv).transpose(0, 2, 1, 3)
        s = jnp.einsum("bhqd,bhkd->bhqk", q / (dk ** 0.5), k)
        p = jax.nn.softmax(s, axis=-1)
        o = jnp.einsum("bhqk,bhkd->bhqd", p, v).transpose(0, 2, 1, 3).reshape(B, -1, H * dv)
        return ln(o @ f32(wo) + xq, g, b)

    def ffn(x, w1, b1, w2, b2, g, b):
        h = jnp.maximum(x @ f32(w1) + b1, 0.0)
        return ln(h @ f32(w2) + b2 + x, g, b)

    enc = params["encoder"]
    x = (src_seq @ enc["feature_abstract"]).reshape(B, L, D)
    x = ln(x, enc["ln_g"], enc["ln_b"])
    for l in range(cfg["n_layers"]):
        s, f = enc["slf"], enc["ffn"]
        x = mha(x, x, s["wq"][l], s["wk"][l], s["wv"][l], s["wo"][l], s["ln_g"][l], s["ln_b"][l])
        x = ffn(x, f["w1"][l], f["b1"][l], f["w2"][l], f["b2"][l], f["ln_g"][l], f["ln_b"][l])
    out = x
    if cfg["trg_num_inputs"] > 0:
        dec = params["decoder"]
        y = (trg_seq @ dec["feature_abstract"]).reshape(B, L, D)
        y = ln(y, dec["ln_g"], dec["ln_b"])
        for l in range(cfg["n_layers"]):
            s, c, f = dec["slf"], dec["enc"], dec["ffn"]
            y = mha(y, y, s["wq"][l], s["wk"][l], s["wv"][l], s["wo"][l], s["ln_g"][l], s["ln_b"][l])
            y = mha(y, x, c["wq"][l], c["wk"][l], c["wv"][l], c["wo"][l], c["ln_g"][l], c["ln_b"][l])
            y = ffn(y, f["w1"][l], f["b1"][l], f["w2"][l], f["b2"][l], f["ln_g"][l], f["ln_b"][l])
        out = y
    logits = out.reshape(B, L * D) @ params["fc"]
    if cfg["scale_prj"]:
        logits = logits * (float(D) ** -0.5)
    return logits


# --------------------------------------------------------------------------
# Main
# --------------------------------------------------------------------------

if __name__ == "__main__":
    cfg = dict(
        src_num_inputs=4,
        trg_num_inputs=4,
        num_feature=8,      # sequence length after feature abstraction
        num_outputs=5,
        d_model=32,
        d_inner=64,
        n_layers=2,
        n_head=4,
        d_k=8,
        d_v=8,
        scale_prj=True,     # trg_emb_prj_weight_sharing=True, scale_emb_or_prj='prj'
    )
    B = 2

    key = jax.random.PRNGKey(0)
    k_params, k_src, k_trg = jax.random.split(key, 3)
    params = init_transformer_params(k_params, cfg)

    src_seq = jax.random.normal(k_src, (B, cfg["src_num_inputs"]), jnp.float32)
    trg_seq = jax.random.normal(k_trg, (B, cfg["trg_num_inputs"]), jnp.float32)

    fwd = jax.jit(lambda s, t, p: transformer_forward(s, t, p, cfg))
    logits = fwd(src_seq, trg_seq, params)
    jax.block_until_ready(logits)

    assert logits.shape == (B, cfg["num_outputs"])
    assert bool(jnp.all(jnp.isfinite(logits)))

    # Cross-check against the pure-JAX reference (bf16 matmul inputs + approx
    # reciprocal in the kernel -> loose tolerance).
    ref = reference_forward(src_seq, trg_seq, params, cfg)
    max_err = float(jnp.max(jnp.abs(logits - ref)))
    assert max_err < 5e-2, f"kernel/reference mismatch: max abs err = {max_err}"

    print("KERNEL_OK")
</pallas_src>

<mosaic_0001>
module attributes {stable_mosaic.version = 11 : i64} {
  func.func @_fused_transformer_kernel(%arg0: memref<16x32xf32, #tpu.memory_space<vmem>>, %arg1: memref<1x32xf32, #tpu.memory_space<vmem>>, %arg2: memref<1x32xf32, #tpu.memory_space<vmem>>, %arg3: memref<2x32x32xbf16, #tpu.memory_space<vmem>>, %arg4: memref<2x32x32xbf16, #tpu.memory_space<vmem>>, %arg5: memref<2x32x32xbf16, #tpu.memory_space<vmem>>, %arg6: memref<2x32x32xbf16, #tpu.memory_space<vmem>>, %arg7: memref<2x1x32xf32, #tpu.memory_space<vmem>>, %arg8: memref<2x1x32xf32, #tpu.memory_space<vmem>>, %arg9: memref<2x32x64xbf16, #tpu.memory_space<vmem>>, %arg10: memref<2x1x64xf32, #tpu.memory_space<vmem>>, %arg11: memref<2x64x32xbf16, #tpu.memory_space<vmem>>, %arg12: memref<2x1x32xf32, #tpu.memory_space<vmem>>, %arg13: memref<2x1x32xf32, #tpu.memory_space<vmem>>, %arg14: memref<2x1x32xf32, #tpu.memory_space<vmem>>, %arg15: memref<16x32xf32, #tpu.memory_space<vmem>>, %arg16: memref<1x32xf32, #tpu.memory_space<vmem>>, %arg17: memref<1x32xf32, #tpu.memory_space<vmem>>, %arg18: memref<2x32x32xbf16, #tpu.memory_space<vmem>>, %arg19: memref<2x32x32xbf16, #tpu.memory_space<vmem>>, %arg20: memref<2x32x32xbf16, #tpu.memory_space<vmem>>, %arg21: memref<2x32x32xbf16, #tpu.memory_space<vmem>>, %arg22: memref<2x1x32xf32, #tpu.memory_space<vmem>>, %arg23: memref<2x1x32xf32, #tpu.memory_space<vmem>>, %arg24: memref<2x32x32xbf16, #tpu.memory_space<vmem>>, %arg25: memref<2x32x32xbf16, #tpu.memory_space<vmem>>, %arg26: memref<2x32x32xbf16, #tpu.memory_space<vmem>>, %arg27: memref<2x32x32xbf16, #tpu.memory_space<vmem>>, %arg28: memref<2x1x32xf32, #tpu.memory_space<vmem>>, %arg29: memref<2x1x32xf32, #tpu.memory_space<vmem>>, %arg30: memref<2x32x64xbf16, #tpu.memory_space<vmem>>, %arg31: memref<2x1x64xf32, #tpu.memory_space<vmem>>, %arg32: memref<2x64x32xbf16, #tpu.memory_space<vmem>>, %arg33: memref<2x1x32xf32, #tpu.memory_space<vmem>>, %arg34: memref<2x1x32xf32, #tpu.memory_space<vmem>>, %arg35: memref<2x1x32xf32, #tpu.memory_space<vmem>>, %arg36: memref<16x32xf32, #tpu.memory_space<vmem>>, %arg37: memref<16x32xf32, #tpu.memory_space<vmem>>) attributes {dimension_semantics = [], scalar_prefetch = 0 : i64, scratch_operands = 1 : i64, tpu.core_type = #tpu.core_type<tc>} {
    %c0 = arith.constant 0 : index
    %c0_0 = arith.constant 0 : index
    %0 = vector.load %arg1[%c0, %c0_0] : memref<1x32xf32, #tpu.memory_space<vmem>>, vector<1x32xf32>
    %c0_1 = arith.constant 0 : index
    %c0_2 = arith.constant 0 : index
    %1 = vector.load %arg2[%c0_1, %c0_2] : memref<1x32xf32, #tpu.memory_space<vmem>>, vector<1x32xf32>
    %c0_3 = arith.constant 0 : index
    %c0_4 = arith.constant 0 : index
    %2 = vector.load %arg16[%c0_3, %c0_4] : memref<1x32xf32, #tpu.memory_space<vmem>>, vector<1x32xf32>
    %c0_5 = arith.constant 0 : index
    %c0_6 = arith.constant 0 : index
    %3 = vector.load %arg17[%c0_5, %c0_6] : memref<1x32xf32, #tpu.memory_space<vmem>>, vector<1x32xf32>
    %c0_7 = arith.constant 0 : index
    %c0_8 = arith.constant 0 : index
    %4 = vector.load %arg0[%c0_7, %c0_8] : memref<16x32xf32, #tpu.memory_space<vmem>>, vector<16x32xf32>
    %cst = arith.constant dense<0.000000e+00> : vector<16xf32>
    %5 = vector.multi_reduction <add>, %4, %cst [1] : vector<16x32xf32> to vector<16xf32>
    %6 = vector.shape_cast %5 : vector<16xf32> to vector<16x1xf32>
    %cst_9 = arith.constant 3.200000e+01 : f32
    %7 = vector.broadcast %cst_9 : f32 to vector<16x1xf32>
    %8 = arith.divf %6, %7 : vector<16x1xf32>
    %9 = vector.broadcast %8 : vector<16x1xf32> to vector<16x32xf32>
    %10 = arith.subf %4, %9 : vector<16x32xf32>
    %11 = arith.mulf %10, %10 : vector<16x32xf32>
    %cst_10 = arith.constant dense<0.000000e+00> : vector<16xf32>
    %12 = vector.multi_reduction <add>, %11, %cst_10 [1] : vector<16x32xf32> to vector<16xf32>
    %13 = vector.shape_cast %12 : vector<16xf32> to vector<16x1xf32>
    %cst_11 = arith.constant 3.200000e+01 : f32
    %14 = vector.broadcast %cst_11 : f32 to vector<16x1xf32>
    %15 = arith.divf %13, %14 : vector<16x1xf32>
    %16 = vector.broadcast %8 : vector<16x1xf32> to vector<16x32xf32>
    %17 = arith.subf %4, %16 : vector<16x32xf32>
    %cst_12 = arith.constant 9.99999997E-7 : f32
    %18 = vector.broadcast %cst_12 : f32 to vector<16x1xf32>
    %19 = arith.addf %15, %18 : vector<16x1xf32>
    %20 = math.rsqrt %19 : vector<16x1xf32>
    %21 = vector.broadcast %20 : vector<16x1xf32> to vector<16x32xf32>
    %22 = arith.mulf %17, %21 : vector<16x32xf32>
    %23 = vector.broadcast %0 : vector<1x32xf32> to vector<16x32xf32>
    %24 = arith.mulf %22, %23 : vector<16x32xf32>
    %25 = vector.broadcast %1 : vector<1x32xf32> to vector<16x32xf32>
    %26 = arith.addf %24, %25 : vector<16x32xf32>
    %c0_13 = arith.constant 0 : index
    %c0_14 = arith.constant 0 : index
    %c0_15 = arith.constant 0 : index
    %27 = vector.load %arg3[%c0_13, %c0_14, %c0_15] : memref<2x32x32xbf16, #tpu.memory_space<vmem>>, vector<1x32x32xbf16>
    %28 = vector.shape_cast %27 : vector<1x32x32xbf16> to vector<32x32xbf16>
    %c0_16 = arith.constant 0 : index
    %c0_17 = arith.constant 0 : index
    %c0_18 = arith.constant 0 : index
    %29 = vector.load %arg4[%c0_16, %c0_17, %c0_18] : memref<2x32x32xbf16, #tpu.memory_space<vmem>>, vector<1x32x32xbf16>
    %30 = vector.shape_cast %29 : vector<1x32x32xbf16> to vector<32x32xbf16>
    %c0_19 = arith.constant 0 : index
    %c0_20 = arith.constant 0 : index
    %c0_21 = arith.constant 0 : index
    %31 = vector.load %arg5[%c0_19, %c0_20, %c0_21] : memref<2x32x32xbf16, #tpu.memory_space<vmem>>, vector<1x32x32xbf16>
    %32 = vector.shape_cast %31 : vector<1x32x32xbf16> to vector<32x32xbf16>
    %c0_22 = arith.constant 0 : index
    %c0_23 = arith.constant 0 : index
    %c0_24 = arith.constant 0 : index
    %33 = vector.load %arg6[%c0_22, %c0_23, %c0_24] : memref<2x32x32xbf16, #tpu.memory_space<vmem>>, vector<1x32x32xbf16>
    %34 = vector.shape_cast %33 : vector<1x32x32xbf16> to vector<32x32xbf16>
    %c0_25 = arith.constant 0 : index
    %c0_26 = arith.constant 0 : index
    %c0_27 = arith.constant 0 : index
    %35 = vector.load %arg7[%c0_25, %c0_26, %c0_27] : memref<2x1x32xf32, #tpu.memory_space<vmem>>, vector<1x1x32xf32>
    %36 = vector.shape_cast %35 : vector<1x1x32xf32> to vector<1x32xf32>
    %c0_28 = arith.constant 0 : index
    %c0_29 = arith.constant 0 : index
    %c0_30 = arith.constant 0 : index
    %37 = vector.load %arg8[%c0_28, %c0_29, %c0_30] : memref<2x1x32xf32, #tpu.memory_space<vmem>>, vector<1x1x32xf32>
    %38 = vector.shape_cast %37 : vector<1x1x32xf32> to vector<1x32xf32>
    %39 = arith.truncf %26 : vector<16x32xf32> to vector<16x32xbf16>
    %40 = arith.truncf %26 : vector<16x32xf32> to vector<16x32xbf16>
    %cst_31 = arith.constant dense<0.000000e+00> : vector<16x32xf32>
    %41 = tpu.matmul %39, %28, %cst_31 {dimension_numbers = #tpu.dot_dimension_numbers<[1], [0], [0], [1], [0, 0, 1, 1], [], []>} : vector<16x32xbf16>, vector<32x32xbf16>, vector<16x32xf32> -> vector<16x32xf32>
    %cst_32 = arith.constant 0.353553385 : f32
    %42 = vector.broadcast %cst_32 : f32 to vector<16x32xf32>
    %43 = arith.mulf %41, %42 : vector<16x32xf32>
    %44 = arith.truncf %43 : vector<16x32xf32> to vector<16x32xbf16>
    %cst_33 = arith.constant dense<0.000000e+00> : vector<16x32xf32>
    %45 = tpu.matmul %40, %30, %cst_33 {dimension_numbers = #tpu.dot_dimension_numbers<[1], [0], [0], [1], [0, 0, 1, 1], [], []>} : vector<16x32xbf16>, vector<32x32xbf16>, vector<16x32xf32> -> vector<16x32xf32>
    %46 = arith.truncf %45 : vector<16x32xf32> to vector<16x32xbf16>
    %cst_34 = arith.constant dense<0.000000e+00> : vector<16x32xf32>
    %47 = tpu.matmul %40, %32, %cst_34 {dimension_numbers = #tpu.dot_dimension_numbers<[1], [0], [0], [1], [0, 0, 1, 1], [], []>} : vector<16x32xbf16>, vector<32x32xbf16>, vector<16x32xf32> -> vector<16x32xf32>
    %48 = arith.truncf %47 : vector<16x32xf32> to vector<16x32xbf16>
    %49 = vector.extract_strided_slice %44 {offsets = [0, 0], sizes = [8, 8], strides = [1, 1]} : vector<16x32xbf16> to vector<8x8xbf16>
    %50 = vector.extract_strided_slice %46 {offsets = [0, 0], sizes = [8, 8], strides = [1, 1]} : vector<16x32xbf16> to vector<8x8xbf16>
    %51 = vector.extract_strided_slice %48 {offsets = [0, 0], sizes = [8, 8], strides = [1, 1]} : vector<16x32xbf16> to vector<8x8xbf16>
    %cst_35 = arith.constant dense<0.000000e+00> : vector<8x8xf32>
    %52 = tpu.matmul %49, %50, %cst_35 {dimension_numbers = #tpu.dot_dimension_numbers<[1], [1], [0], [0], [0, 0, 1, 0], [], []>} : vector<8x8xbf16>, vector<8x8xbf16>, vector<8x8xf32> -> vector<8x8xf32>
    %cst_36 = arith.constant dense<0xFF800000> : vector<8xf32>
    %53 = vector.multi_reduction <maximumf>, %52, %cst_36 [1] : vector<8x8xf32> to vector<8xf32>
    %54 = vector.shape_cast %53 : vector<8xf32> to vector<8x1xf32>
    %55 = vector.broadcast %54 : vector<8x1xf32> to vector<8x8xf32>
    %56 = arith.subf %52, %55 : vector<8x8xf32>
    %57 = math.exp %56 : vector<8x8xf32>
    %cst_37 = arith.constant dense<0.000000e+00> : vector<8xf32>
    %58 = vector.multi_reduction <add>, %57, %cst_37 [1] : vector<8x8xf32> to vector<8xf32>
    %59 = vector.shape_cast %58 : vector<8xf32> to vector<8x1xf32>
    %60 = tpu.reciprocal %59 {approx = true} : vector<8x1xf32> -> vector<8x1xf32>
    %61 = vector.broadcast %60 : vector<8x1xf32> to vector<8x8xf32>
    %62 = arith.mulf %57, %61 : vector<8x8xf32>
    %63 = arith.truncf %62 : vector<8x8xf32> to vector<8x8xbf16>
    %cst_38 = arith.constant dense<0.000000e+00> : vector<8x8xf32>
    %64 = tpu.matmul %63, %51, %cst_38 {dimension_numbers = #tpu.dot_dimension_numbers<[1], [0], [0], [1], [0, 0, 1, 1], [], []>} : vector<8x8xbf16>, vector<8x8xbf16>, vector<8x8xf32> -> vector<8x8xf32>
    %c0_39 = arith.constant 0 : index
    %c0_40 = arith.constant 0 : index
    %65 = vector.load %arg37[%c0_39, %c0_40] : memref<16x32xf32, #tpu.memory_space<vmem>>, vector<8x8xf32>
    tpu.vector_store %arg37[%c0_39, %c0_40], %64 {strides = array<i32>} : memref<16x32xf32, #tpu.memory_space<vmem>>, vector<8x8xf32>,
    %66 = vector.extract_strided_slice %44 {offsets = [0, 8], sizes = [8, 8], strides = [1, 1]} : vector<16x32xbf16> to vector<8x8xbf16>
    %67 = vector.extract_strided_slice %46 {offsets = [0, 8], sizes = [8, 8], strides = [1, 1]} : vector<16x32xbf16> to vector<8x8xbf16>
    %68 = vector.extract_strided_slice %48 {offsets = [0, 8], sizes = [8, 8], strides = [1, 1]} : vector<16x32xbf16> to vector<8x8xbf16>
    %cst_41 = arith.constant dense<0.000000e+00> : vector<8x8xf32>
    %69 = tpu.matmul %66, %67, %cst_41 {dimension_numbers = #tpu.dot_dimension_numbers<[1], [1], [0], [0], [0, 0, 1, 0], [], []>} : vector<8x8xbf16>, vector<8x8xbf16>, vector<8x8xf32> -> vector<8x8xf32>
    %cst_42 = arith.constant dense<0xFF800000> : vector<8xf32>
    %70 = vector.multi_reduction <maximumf>, %69, %cst_42 [1] : vector<8x8xf32> to vector<8xf32>
    %71 = vector.shape_cast %70 : vector<8xf32> to vector<8x1xf32>
    %72 = vector.broadcast %71 : vector<8x1xf32> to vector<8x8xf32>
    %73 = arith.subf %69, %72 : vector<8x8xf32>
    %74 = math.exp %73 : vector<8x8xf32>
    %cst_43 = arith.constant dense<0.000000e+00> : vector<8xf32>
    %75 = vector.multi_reduction <add>, %74, %cst_43 [1] : vector<8x8xf32> to vector<8xf32>
    %76 = vector.shape_cast %75 : vector<8xf32> to vector<8x1xf32>
    %77 = tpu.reciprocal %76 {approx = true} : vector<8x1xf32> -> vector<8x1xf32>
    %78 = vector.broadcast %77 : vector<8x1xf32> to vector<8x8xf32>
    %79 = arith.mulf %74, %78 : vector<8x8xf32>
    %80 = arith.truncf %79 : vector<8x8xf32> to vector<8x8xbf16>
    %cst_44 = arith.constant dense<0.000000e+00> : vector<8x8xf32>
    %81 = tpu.matmul %80, %68, %cst_44 {dimension_numbers = #tpu.dot_dimension_numbers<[1], [0], [0], [1], [0, 0, 1, 1], [], []>} : vector<8x8xbf16>, vector<8x8xbf16>, vector<8x8xf32> -> vector<8x8xf32>
    %c0_45 = arith.constant 0 : index
    %c8 = arith.constant 8 : index
    %82 = vector.load %arg37[%c0_45, %c8] : memref<16x32xf32, #tpu.memory_space<vmem>>, vector<8x8xf32>
    tpu.vector_store %arg37[%c0_45, %c8], %81 {strides = array<i32>} : memref<16x32xf32, #tpu.memory_space<vmem>>, vector<8x8xf32>,
    %83 = vector.extract_strided_slice %44 {offsets = [0, 16], sizes = [8, 8], strides = [1, 1]} : vector<16x32xbf16> to vector<8x8xbf16>
    %84 = vector.extract_strided_slice %46 {offsets = [0, 16], sizes = [8, 8], strides = [1, 1]} : vector<16x32xbf16> to vector<8x8xbf16>
    %85 = vector.extract_strided_slice %48 {offsets = [0, 16], sizes = [8, 8], strides = [1, 1]} : vector<16x32xbf16> to vector<8x8xbf16>
    %cst_46 = arith.constant dense<0.000000e+00> : vector<8x8xf32>
    %86 = tpu.matmul %83, %84, %cst_46 {dimension_numbers = #tpu.dot_dimension_numbers<[1], [1], [0], [0], [0, 0, 1, 0], [], []>} : vector<8x8xbf16>, vector<8x8xbf16>, vector<8x8xf32> -> vector<8x8xf32>
    %cst_47 = arith.constant dense<0xFF800000> : vector<8xf32>
    %87 = vector.multi_reduction <maximumf>, %86, %cst_47 [1] : vector<8x8xf32> to vector<8xf32>
    %88 = vector.shape_cast %87 : vector<8xf32> to vector<8x1xf32>
    %89 = vector.broadcast %88 : vector<8x1xf32> to vector<8x8xf32>
    %90 = arith.subf %86, %89 : vector<8x8xf32>
    %91 = math.exp %90 : vector<8x8xf32>
    %cst_48 = arith.constant dense<0.000000e+00> : vector<8xf32>
    %92 = vector.multi_reduction <add>, %91, %cst_48 [1] : vector<8x8xf32> to vector<8xf32>
    %93 = vector.shape_cast %92 : vector<8xf32> to vector<8x1xf32>
    %94 = tpu.reciprocal %93 {approx = true} : vector<8x1xf32> -> vector<8x1xf32>
    %95 = vector.broadcast %94 : vector<8x1xf32> to vector<8x8xf32>
    %96 = arith.mulf %91, %95 : vector<8x8xf32>
    %97 = arith.truncf %96 : vector<8x8xf32> to vector<8x8xbf16>
    %cst_49 = arith.constant dense<0.000000e+00> : vector<8x8xf32>
    %98 = tpu.matmul %97, %85, %cst_49 {dimension_numbers = #tpu.dot_dimension_numbers<[1], [0], [0], [1], [0, 0, 1, 1], [], []>} : vector<8x8xbf16>, vector<8x8xbf16>, vector<8x8xf32> -> vector<8x8xf32>
    %c0_50 = arith.constant 0 : index
    %c16 = arith.constant 16 : index
    %99 = vector.load %arg37[%c0_50, %c16] : memref<16x32xf32, #tpu.memory_space<vmem>>, vector<8x8xf32>
    tpu.vector_store %arg37[%c0_50, %c16], %98 {strides = array<i32>} : memref<16x32xf32, #tpu.memory_space<vmem>>, vector<8x8xf32>,
    %100 = vector.extract_strided_slice %44 {offsets = [0, 24], sizes = [8, 8], strides = [1, 1]} : vector<16x32xbf16> to vector<8x8xbf16>
    %101 = vector.extract_strided_slice %46 {offsets = [0, 24], sizes = [8, 8], strides = [1, 1]} : vector<16x32xbf16> to vector<8x8xbf16>
    %102 = vector.extract_strided_slice %48 {offsets = [0, 24], sizes = [8, 8], strides = [1, 1]} : vector<16x32xbf16> to vector<8x8xbf16>
    %cst_51 = arith.constant dense<0.000000e+00> : vector<8x8xf32>
    %103 = tpu.matmul %100, %101, %cst_51 {dimension_numbers = #tpu.dot_dimension_numbers<[1], [1], [0], [0], [0, 0, 1, 0], [], []>} : vector<8x8xbf16>, vector<8x8xbf16>, vector<8x8xf32> -> vector<8x8xf32>
    %cst_52 = arith.constant dense<0xFF800000> : vector<8xf32>
    %104 = vector.multi_reduction <maximumf>, %103, %cst_52 [1] : vector<8x8xf32> to vector<8xf32>
    %105 = vector.shape_cast %104 : vector<8xf32> to vector<8x1xf32>
    %106 = vector.broadcast %105 : vector<8x1xf32> to vector<8x8xf32>
    %107 = arith.subf %103, %106 : vector<8x8xf32>
    %108 = math.exp %107 : vector<8x8xf32>
    %cst_53 = arith.constant dense<0.000000e+00> : vector<8xf32>
    %109 = vector.multi_reduction <add>, %108, %cst_53 [1] : vector<8x8xf32> to vector<8xf32>
    %110 = vector.shape_cast %109 : vector<8xf32> to vector<8x1xf32>
    %111 = tpu.reciprocal %110 {approx = true} : vector<8x1xf32> -> vector<8x1xf32>
    %112 = vector.broadcast %111 : vector<8x1xf32> to vector<8x8xf32>
    %113 = arith.mulf %108, %112 : vector<8x8xf32>
    %114 = arith.truncf %113 : vector<8x8xf32> to vector<8x8xbf16>
    %cst_54 = arith.constant dense<0.000000e+00> : vector<8x8xf32>
    %115 = tpu.matmul %114, %102, %cst_54 {dimension_numbers = #tpu.dot_dimension_numbers<[1], [0], [0], [1], [0, 0, 1, 1], [], []>} : vector<8x8xbf16>, vector<8x8xbf16>, vector<8x8xf32> -> vector<8x8xf32>
    %c0_55 = arith.constant 0 : index
    %c24 = arith.constant 24 : index
    %116 = vector.load %arg37[%c0_55, %c24] : memref<16x32xf32, #tpu.memory_space<vmem>>, vector<8x8xf32>
    tpu.vector_store %arg37[%c0_55, %c24], %115 {strides = array<i32>} : memref<16x32xf32, #tpu.memory_space<vmem>>, vector<8x8xf32>,
    %117 = vector.extract_strided_slice %44 {offsets = [8, 0], sizes = [8, 8], strides = [1, 1]} : vector<16x32xbf16> to vector<8x8xbf16>
    %118 = vector.extract_strided_slice %46 {offsets = [8, 0], sizes = [8, 8], strides = [1, 1]} : vector<16x32xbf16> to vector<8x8xbf16>
    %119 = vector.extract_strided_slice %48 {offsets = [8, 0], sizes = [8, 8], strides = [1, 1]} : vector<16x32xbf16> to vector<8x8xbf16>
    %cst_56 = arith.constant dense<0.000000e+00> : vector<8x8xf32>
    %120 = tpu.matmul %117, %118, %cst_56 {dimension_numbers = #tpu.dot_dimension_numbers<[1], [1], [0], [0], [0, 0, 1, 0], [], []>} : vector<8x8xbf16>, vector<8x8xbf16>, vector<8x8xf32> -> vector<8x8xf32>
    %cst_57 = arith.constant dense<0xFF800000> : vector<8xf32>
    %121 = vector.multi_reduction <maximumf>, %120, %cst_57 [1] : vector<8x8xf32> to vector<8xf32>
    %122 = vector.shape_cast %121 : vector<8xf32> to vector<8x1xf32>
    %123 = vector.broadcast %122 : vector<8x1xf32> to vector<8x8xf32>
    %124 = arith.subf %120, %123 : vector<8x8xf32>
    %125 = math.exp %124 : vector<8x8xf32>
    %cst_58 = arith.constant dense<0.000000e+00> : vector<8xf32>
    %126 = vector.multi_reduction <add>, %125, %cst_58 [1] : vector<8x8xf32> to vector<8xf32>
    %127 = vector.shape_cast %126 : vector<8xf32> to vector<8x1xf32>
    %128 = tpu.reciprocal %127 {approx = true} : vector<8x1xf32> -> vector<8x1xf32>
    %129 = vector.broadcast %128 : vector<8x1xf32> to vector<8x8xf32>
    %130 = arith.mulf %125, %129 : vector<8x8xf32>
    %131 = arith.truncf %130 : vector<8x8xf32> to vector<8x8xbf16>
    %cst_59 = arith.constant dense<0.000000e+00> : vector<8x8xf32>
    %132 = tpu.matmul %131, %119, %cst_59 {dimension_numbers = #tpu.dot_dimension_numbers<[1], [0], [0], [1], [0, 0, 1, 1], [], []>} : vector<8x8xbf16>, vector<8x8xbf16>, vector<8x8xf32> -> vector<8x8xf32>
    %c8_60 = arith.constant 8 : index
    %c0_61 = arith.constant 0 : index
    %133 = vector.load %arg37[%c8_60, %c0_61] : memref<16x32xf32, #tpu.memory_space<vmem>>, vector<8x8xf32>
    tpu.vector_store %arg37[%c8_60, %c0_61], %132 {strides = array<i32>} : memref<16x32xf32, #tpu.memory_space<vmem>>, vector<8x8xf32>,
    %134 = vector.extract_strided_slice %44 {offsets = [8, 8], sizes = [8, 8], strides = [1, 1]} : vector<16x32xbf16> to vector<8x8xbf16>
    %135 = vector.extract_strided_slice %46 {offsets = [8, 8], sizes = [8, 8], strides = [1, 1]} : vector<16x32xbf16> to vector<8x8xbf16>
    %136 = vector.extract_strided_slice %48 {offsets = [8, 8], sizes = [8, 8], strides = [1, 1]} : vector<16x32xbf16> to vector<8x8xbf16>
    %cst_62 = arith.constant dense<0.000000e+00> : vector<8x8xf32>
    %137 = tpu.matmul %134, %135, %cst_62 {dimension_numbers = #tpu.dot_dimension_numbers<[1], [1], [0], [0], [0, 0, 1, 0], [], []>} : vector<8x8xbf16>, vector<8x8xbf16>, vector<8x8xf32> -> vector<8x8xf32>
    %cst_63 = arith.constant dense<0xFF800000> : vector<8xf32>
    %138 = vector.multi_reduction <maximumf>, %137, %cst_63 [1] : vector<8x8xf32> to vector<8xf32>
    %139 = vector.shape_cast %138 : vector<8xf32> to vector<8x1xf32>
    %140 = vector.broadcast %139 : vector<8x1xf32> to vector<8x8xf32>
    %141 = arith.subf %137, %140 : vector<8x8xf32>
    %142 = math.exp %141 : vector<8x8xf32>
    %cst_64 = arith.constant dense<0.000000e+00> : vector<8xf32>
    %143 = vector.multi_reduction <add>, %142, %cst_64 [1] : vector<8x8xf32> to vector<8xf32>
    %144 = vector.shape_cast %143 : vector<8xf32> to vector<8x1xf32>
    %145 = tpu.reciprocal %144 {approx = true} : vector<8x1xf32> -> vector<8x1xf32>
    %146 = vector.broadcast %145 : vector<8x1xf32> to vector<8x8xf32>
    %147 = arith.mulf %142, %146 : vector<8x8xf32>
    %148 = arith.truncf %147 : vector<8x8xf32> to vector<8x8xbf16>
    %cst_65 = arith.constant dense<0.000000e+00> : vector<8x8xf32>
    %149 = tpu.matmul %148, %136, %cst_65 {dimension_numbers = #tpu.dot_dimension_numbers<[1], [0], [0], [1], [0, 0, 1, 1], [], []>} : vector<8x8xbf16>, vector<8x8xbf16>, vector<8x8xf32> -> vector<8x8xf32>
    %c8_66 = arith.constant 8 : index
    %c8_67 = arith.constant 8 : index
    %150 = vector.load %arg37[%c8_66, %c8_67] : memref<16x32xf32, #tpu.memory_space<vmem>>, vector<8x8xf32>
    tpu.vector_store %arg37[%c8_66, %c8_67], %149 {strides = array<i32>} : memref<16x32xf32, #tpu.memory_space<vmem>>, vector<8x8xf32>,
    %151 = vector.extract_strided_slice %44 {offsets = [8, 16], sizes = [8, 8], strides = [1, 1]} : vector<16x32xbf16> to vector<8x8xbf16>
    %152 = vector.extract_strided_slice %46 {offsets = [8, 16], sizes = [8, 8], strides = [1, 1]} : vector<16x32xbf16> to vector<8x8xbf16>
    %153 = vector.extract_strided_slice %48 {offsets = [8, 16], sizes = [8, 8], strides = [1, 1]} : vector<16x32xbf16> to vector<8x8xbf16>
    %cst_68 = arith.constant dense<0.000000e+00> : vector<8x8xf32>
    %154 = tpu.matmul %151, %152, %cst_68 {dimension_numbers = #tpu.dot_dimension_numbers<[1], [1], [0], [0], [0, 0, 1, 0], [], []>} : vector<8x8xbf16>, vector<8x8xbf16>, vector<8x8xf32> -> vector<8x8xf32>
    %cst_69 = arith.constant dense<0xFF800000> : vector<8xf32>
    %155 = vector.multi_reduction <maximumf>, %154, %cst_69 [1] : vector<8x8xf32> to vector<8xf32>
    %156 = vector.shape_cast %155 : vector<8xf32> to vector<8x1xf32>
    %157 = vector.broadcast %156 : vector<8x1xf32> to vector<8x8xf32>
    %158 = arith.subf %154, %157 : vector<8x8xf32>
    %159 = math.exp %158 : vector<8x8xf32>
    %cst_70 = arith.constant dense<0.000000e+00> : vector<8xf32>
    %160 = vector.multi_reduction <add>, %159, %cst_70 [1] : vector<8x8xf32> to vector<8xf32>
    %161 = vector.shape_cast %160 : vector<8xf32> to vector<8x1xf32>
    %162 = tpu.reciprocal %161 {approx = true} : vector<8x1xf32> -> vector<8x1xf32>
    %163 = vector.broadcast %162 : vector<8x1xf32> to vector<8x8xf32>
    %164 = arith.mulf %159, %163 : vector<8x8xf32>
    %165 = arith.truncf %164 : vector<8x8xf32> to vector<8x8xbf16>
    %cst_71 = arith.constant dense<0.000000e+00> : vector<8x8xf32>
    %166 = tpu.matmul %165, %153, %cst_71 {dimension_numbers = #tpu.dot_dimension_numbers<[1], [0], [0], [1], [0, 0, 1, 1], [], []>} : vector<8x8xbf16>, vector<8x8xbf16>, vector<8x8xf32> -> vector<8x8xf32>
    %c8_72 = arith.constant 8 : index
    %c16_73 = arith.constant 16 : index
    %167 = vector.load %arg37[%c8_72, %c16_73] : memref<16x32xf32, #tpu.memory_space<vmem>>, vector<8x8xf32>
    tpu.vector_store %arg37[%c8_72, %c16_73], %166 {strides = array<i32>} : memref<16x32xf32, #tpu.memory_space<vmem>>, vector<8x8xf32>,
    %168 = vector.extract_strided_slice %44 {offsets = [8, 24], sizes = [8, 8], strides = [1, 1]} : vector<16x32xbf16> to vector<8x8xbf16>
    %169 = vector.extract_strided_slice %46 {offsets = [8, 24], sizes = [8, 8], strides = [1, 1]} : vector<16x32xbf16> to vector<8x8xbf16>
    %170 = vector.extract_strided_slice %48 {offsets = [8, 24], sizes = [8, 8], strides = [1, 1]} : vector<16x32xbf16> to vector<8x8xbf16>
    %cst_74 = arith.constant dense<0.000000e+00> : vector<8x8xf32>
    %171 = tpu.matmul %168, %169, %cst_74 {dimension_numbers = #tpu.dot_dimension_numbers<[1], [1], [0], [0], [0, 0, 1, 0], [], []>} : vector<8x8xbf16>, vector<8x8xbf16>, vector<8x8xf32> -> vector<8x8xf32>
    %cst_75 = arith.constant dense<0xFF800000> : vector<8xf32>
    %172 = vector.multi_reduction <maximumf>, %171, %cst_75 [1] : vector<8x8xf32> to vector<8xf32>
    %173 = vector.shape_cast %172 : vector<8xf32> to vector<8x1xf32>
    %174 = vector.broadcast %173 : vector<8x1xf32> to vector<8x8xf32>
    %175 = arith.subf %171, %174 : vector<8x8xf32>
    %176 = math.exp %175 : vector<8x8xf32>
    %cst_76 = arith.constant dense<0.000000e+00> : vector<8xf32>
    %177 = vector.multi_reduction <add>, %176, %cst_76 [1] : vector<8x8xf32> to vector<8xf32>
    %178 = vector.shape_cast %177 : vector<8xf32> to vector<8x1xf32>
    %179 = tpu.reciprocal %178 {approx = true} : vector<8x1xf32> -> vector<8x1xf32>
    %180 = vector.broadcast %179 : vector<8x1xf32> to vector<8x8xf32>
    %181 = arith.mulf %176, %180 : vector<8x8xf32>
    %182 = arith.truncf %181 : vector<8x8xf32> to vector<8x8xbf16>
    %cst_77 = arith.constant dense<0.000000e+00> : vector<8x8xf32>
    %183 = tpu.matmul %182, %170, %cst_77 {dimension_numbers = #tpu.dot_dimension_numbers<[1], [0], [0], [1], [0, 0, 1, 1], [], []>} : vector<8x8xbf16>, vector<8x8xbf16>, vector<8x8xf32> -> vector<8x8xf32>
    %c8_78 = arith.constant 8 : index
    %c24_79 = arith.constant 24 : index
    %184 = vector.load %arg37[%c8_78, %c24_79] : memref<16x32xf32, #tpu.memory_space<vmem>>, vector<8x8xf32>
    tpu.vector_store %arg37[%c8_78, %c24_79], %183 {strides = array<i32>} : memref<16x32xf32, #tpu.memory_space<vmem>>, vector<8x8xf32>,
    %c0_80 = arith.constant 0 : index
    %c0_81 = arith.constant 0 : index
    %185 = vector.load %arg37[%c0_80, %c0_81] : memref<16x32xf32, #tpu.memory_space<vmem>>, vector<16x32xf32>
    %186 = arith.truncf %185 : vector<16x32xf32> to vector<16x32xbf16>
    %cst_82 = arith.constant dense<0.000000e+00> : vector<16x32xf32>
    %187 = tpu.matmul %186, %34, %cst_82 {dimension_numbers = #tpu.dot_dimension_numbers<[1], [0], [0], [1], [0, 0, 1, 1], [], []>} : vector<16x32xbf16>, vector<32x32xbf16>, vector<16x32xf32> -> vector<16x32xf32>
    %188 = arith.addf %187, %26 : vector<16x32xf32>
    %cst_83 = arith.constant dense<0.000000e+00> : vector<16xf32>
    %189 = vector.multi_reduction <add>, %188, %cst_83 [1] : vector<16x32xf32> to vector<16xf32>
    %190 = vector.shape_cast %189 : vector<16xf32> to vector<16x1xf32>
    %cst_84 = arith.constant 3.200000e+01 : f32
    %191 = vector.broadcast %cst_84 : f32 to vector<16x1xf32>
    %192 = arith.divf %190, %191 : vector<16x1xf32>
    %193 = vector.broadcast %192 : vector<16x1xf32> to vector<16x32xf32>
    %194 = arith.subf %188, %193 : vector<16x32xf32>
    %195 = arith.mulf %194, %194 : vector<16x32xf32>
    %cst_85 = arith.constant dense<0.000000e+00> : vector<16xf32>
    %196 = vector.multi_reduction <add>, %195, %cst_85 [1] : vector<16x32xf32> to vector<16xf32>
    %197 = vector.shape_cast %196 : vector<16xf32> to vector<16x1xf32>
    %cst_86 = arith.constant 3.200000e+01 : f32
    %198 = vector.broadcast %cst_86 : f32 to vector<16x1xf32>
    %199 = arith.divf %197, %198 : vector<16x1xf32>
    %200 = vector.broadcast %192 : vector<16x1xf32> to vector<16x32xf32>
    %201 = arith.subf %188, %200 : vector<16x32xf32>
    %cst_87 = arith.constant 9.99999997E-7 : f32
    %202 = vector.broadcast %cst_87 : f32 to vector<16x1xf32>
    %203 = arith.addf %199, %202 : vector<16x1xf32>
    %204 = math.rsqrt %203 : vector<16x1xf32>
    %205 = vector.broadcast %204 : vector<16x1xf32> to vector<16x32xf32>
    %206 = arith.mulf %201, %205 : vector<16x32xf32>
    %207 = vector.broadcast %36 : vector<1x32xf32> to vector<16x32xf32>
    %208 = arith.mulf %206, %207 : vector<16x32xf32>
    %209 = vector.broadcast %38 : vector<1x32xf32> to vector<16x32xf32>
    %210 = arith.addf %208, %209 : vector<16x32xf32>
    %c0_88 = arith.constant 0 : index
    %c0_89 = arith.constant 0 : index
    %c0_90 = arith.constant 0 : index
    %211 = vector.load %arg9[%c0_88, %c0_89, %c0_90] : memref<2x32x64xbf16, #tpu.memory_space<vmem>>, vector<1x32x64xbf16>
    %212 = vector.shape_cast %211 : vector<1x32x64xbf16> to vector<32x64xbf16>
    %c0_91 = arith.constant 0 : index
    %c0_92 = arith.constant 0 : index
    %c0_93 = arith.constant 0 : index
    %213 = vector.load %arg10[%c0_91, %c0_92, %c0_93] : memref<2x1x64xf32, #tpu.memory_space<vmem>>, vector<1x1x64xf32>
    %214 = vector.shape_cast %213 : vector<1x1x64xf32> to vector<1x64xf32>
    %c0_94 = arith.constant 0 : index
    %c0_95 = arith.constant 0 : index
    %c0_96 = arith.constant 0 : index
    %215 = vector.load %arg11[%c0_94, %c0_95, %c0_96] : memref<2x64x32xbf16, #tpu.memory_space<vmem>>, vector<1x64x32xbf16>
    %216 = vector.shape_cast %215 : vector<1x64x32xbf16> to vector<64x32xbf16>
    %c0_97 = arith.constant 0 : index
    %c0_98 = arith.constant 0 : index
    %c0_99 = arith.constant 0 : index
    %217 = vector.load %arg12[%c0_97, %c0_98, %c0_99] : memref<2x1x32xf32, #tpu.memory_space<vmem>>, vector<1x1x32xf32>
    %218 = vector.shape_cast %217 : vector<1x1x32xf32> to vector<1x32xf32>
    %c0_100 = arith.constant 0 : index
    %c0_101 = arith.constant 0 : index
    %c0_102 = arith.constant 0 : index
    %219 = vector.load %arg13[%c0_100, %c0_101, %c0_102] : memref<2x1x32xf32, #tpu.memory_space<vmem>>, vector<1x1x32xf32>
    %220 = vector.shape_cast %219 : vector<1x1x32xf32> to vector<1x32xf32>
    %c0_103 = arith.constant 0 : index
    %c0_104 = arith.constant 0 : index
    %c0_105 = arith.constant 0 : index
    %221 = vector.load %arg14[%c0_103, %c0_104, %c0_105] : memref<2x1x32xf32, #tpu.memory_space<vmem>>, vector<1x1x32xf32>
    %222 = vector.shape_cast %221 : vector<1x1x32xf32> to vector<1x32xf32>
    %223 = arith.truncf %210 : vector<16x32xf32> to vector<16x32xbf16>
    %cst_106 = arith.constant dense<0.000000e+00> : vector<16x64xf32>
    %224 = tpu.matmul %223, %212, %cst_106 {dimension_numbers = #tpu.dot_dimension_numbers<[1], [0], [0], [1], [0, 0, 1, 1], [], []>} : vector<16x32xbf16>, vector<32x64xbf16>, vector<16x64xf32> -> vector<16x64xf32>
    %225 = vector.broadcast %214 : vector<1x64xf32> to vector<16x64xf32>
    %226 = arith.addf %224, %225 : vector<16x64xf32>
    %cst_107 = arith.constant 0.000000e+00 : f32
    %227 = vector.broadcast %cst_107 : f32 to vector<16x64xf32>
    %228 = arith.maximumf %226, %227 : vector<16x64xf32>
    %229 = arith.truncf %228 : vector<16x64xf32> to vector<16x64xbf16>
    %cst_108 = arith.constant dense<0.000000e+00> : vector<16x32xf32>
    %230 = tpu.matmul %229, %216, %cst_108 {dimension_numbers = #tpu.dot_dimension_numbers<[1], [0], [0], [1], [0, 0, 1, 1], [], []>} : vector<16x64xbf16>, vector<64x32xbf16>, vector<16x32xf32> -> vector<16x32xf32>
    %231 = vector.broadcast %218 : vector<1x32xf32> to vector<16x32xf32>
    %232 = arith.addf %230, %231 : vector<16x32xf32>
    %233 = arith.addf %232, %210 : vector<16x32xf32>
    %cst_109 = arith.constant dense<0.000000e+00> : vector<16xf32>
    %234 = vector.multi_reduction <add>, %233, %cst_109 [1] : vector<16x32xf32> to vector<16xf32>
    %235 = vector.shape_cast %234 : vector<16xf32> to vector<16x1xf32>
    %cst_110 = arith.constant 3.200000e+01 : f32
    %236 = vector.broadcast %cst_110 : f32 to vector<16x1xf32>
    %237 = arith.divf %235, %236 : vector<16x1xf32>
    %238 = vector.broadcast %237 : vector<16x1xf32> to vector<16x32xf32>
    %239 = arith.subf %233, %238 : vector<16x32xf32>
    %240 = arith.mulf %239, %239 : vector<16x32xf32>
    %cst_111 = arith.constant dense<0.000000e+00> : vector<16xf32>
    %241 = vector.multi_reduction <add>, %240, %cst_111 [1] : vector<16x32xf32> to vector<16xf32>
    %242 = vector.shape_cast %241 : vector<16xf32> to vector<16x1xf32>
    %cst_112 = arith.constant 3.200000e+01 : f32
    %243 = vector.broadcast %cst_112 : f32 to vector<16x1xf32>
    %244 = arith.divf %242, %243 : vector<16x1xf32>
    %245 = vector.broadcast %237 : vector<16x1xf32> to vector<16x32xf32>
    %246 = arith.subf %233, %245 : vector<16x32xf32>
    %cst_113 = arith.constant 9.99999997E-7 : f32
    %247 = vector.broadcast %cst_113 : f32 to vector<16x1xf32>
    %248 = arith.addf %244, %247 : vector<16x1xf32>
    %249 = math.rsqrt %248 : vector<16x1xf32>
    %250 = vector.broadcast %249 : vector<16x1xf32> to vector<16x32xf32>
    %251 = arith.mulf %246, %250 : vector<16x32xf32>
    %252 = vector.broadcast %220 : vector<1x32xf32> to vector<16x32xf32>
    %253 = arith.mulf %251, %252 : vector<16x32xf32>
    %254 = vector.broadcast %222 : vector<1x32xf32> to vector<16x32xf32>
    %255 = arith.addf %253, %254 : vector<16x32xf32>
    %c1 = arith.constant 1 : index
    %c0_114 = arith.constant 0 : index
    %c0_115 = arith.constant 0 : index
    %256 = vector.load %arg3[%c1, %c0_114, %c0_115] : memref<2x32x32xbf16, #tpu.memory_space<vmem>>, vector<1x32x32xbf16>
    %257 = vector.shape_cast %256 : vector<1x32x32xbf16> to vector<32x32xbf16>
    %c1_116 = arith.constant 1 : index
    %c0_117 = arith.constant 0 : index
    %c0_118 = arith.constant 0 : index
    %258 = vector.load %arg4[%c1_116, %c0_117, %c0_118] : memref<2x32x32xbf16, #tpu.memory_space<vmem>>, vector<1x32x32xbf16>
    %259 = vector.shape_cast %258 : vector<1x32x32xbf16> to vector<32x32xbf16>
    %c1_119 = arith.constant 1 : index
    %c0_120 = arith.constant 0 : index
    %c0_121 = arith.constant 0 : index
    %260 = vector.load %arg5[%c1_119, %c0_120, %c0_121] : memref<2x32x32xbf16, #tpu.memory_space<vmem>>, vector<1x32x32xbf16>
    %261 = vector.shape_cast %260 : vector<1x32x32xbf16> to vector<32x32xbf16>
    %c1_122 = arith.constant 1 : index
    %c0_123 = arith.constant 0 : index
    %c0_124 = arith.constant 0 : index
    %262 = vector.load %arg6[%c1_122, %c0_123, %c0_124] : memref<2x32x32xbf16, #tpu.memory_space<vmem>>, vector<1x32x32xbf16>
    %263 = vector.shape_cast %262 : vector<1x32x32xbf16> to vector<32x32xbf16>
    %c1_125 = arith.constant 1 : index
    %c0_126 = arith.constant 0 : index
    %c0_127 = arith.constant 0 : index
    %264 = vector.load %arg7[%c1_125, %c0_126, %c0_127] : memref<2x1x32xf32, #tpu.memory_space<vmem>>, vector<1x1x32xf32>
    %265 = vector.shape_cast %264 : vector<1x1x32xf32> to vector<1x32xf32>
    %c1_128 = arith.constant 1 : index
    %c0_129 = arith.constant 0 : index
    %c0_130 = arith.constant 0 : index
    %266 = vector.load %arg8[%c1_128, %c0_129, %c0_130] : memref<2x1x32xf32, #tpu.memory_space<vmem>>, vector<1x1x32xf32>
    %267 = vector.shape_cast %266 : vector<1x1x32xf32> to vector<1x32xf32>
    %268 = arith.truncf %255 : vector<16x32xf32> to vector<16x32xbf16>
    %269 = arith.truncf %255 : vector<16x32xf32> to vector<16x32xbf16>
    %cst_131 = arith.constant dense<0.000000e+00> : vector<16x32xf32>
    %270 = tpu.matmul %268, %257, %cst_131 {dimension_numbers = #tpu.dot_dimension_numbers<[1], [0], [0], [1], [0, 0, 1, 1], [], []>} : vector<16x32xbf16>, vector<32x32xbf16>, vector<16x32xf32> -> vector<16x32xf32>
    %cst_132 = arith.constant 0.353553385 : f32
    %271 = vector.broadcast %cst_132 : f32 to vector<16x32xf32>
    %272 = arith.mulf %270, %271 : vector<16x32xf32>
    %273 = arith.truncf %272 : vector<16x32xf32> to vector<16x32xbf16>
    %cst_133 = arith.constant dense<0.000000e+00> : vector<16x32xf32>
    %274 = tpu.matmul %269, %259, %cst_133 {dimension_numbers = #tpu.dot_dimension_numbers<[1], [0], [0], [1], [0, 0, 1, 1], [], []>} : vector<16x32xbf16>, vector<32x32xbf16>, vector<16x32xf32> -> vector<16x32xf32>
    %275 = arith.truncf %274 : vector<16x32xf32> to vector<16x32xbf16>
    %cst_134 = arith.constant dense<0.000000e+00> : vector<16x32xf32>
    %276 = tpu.matmul %269, %261, %cst_134 {dimension_numbers = #tpu.dot_dimension_numbers<[1], [0], [0], [1], [0, 0, 1, 1], [], []>} : vector<16x32xbf16>, vector<32x32xbf16>, vector<16x32xf32> -> vector<16x32xf32>
    %277 = arith.truncf %276 : vector<16x32xf32> to vector<16x32xbf16>
    %278 = vector.extract_strided_slice %273 {offsets = [0, 0], sizes = [8, 8], strides = [1, 1]} : vector<16x32xbf16> to vector<8x8xbf16>
    %279 = vector.extract_strided_slice %275 {offsets = [0, 0], sizes = [8, 8], strides = [1, 1]} : vector<16x32xbf16> to vector<8x8xbf16>
    %280 = vector.extract_strided_slice %277 {offsets = [0, 0], sizes = [8, 8], strides = [1, 1]} : vector<16x32xbf16> to vector<8x8xbf16>
    %cst_135 = arith.constant dense<0.000000e+00> : vector<8x8xf32>
    %281 = tpu.matmul %278, %279, %cst_135 {dimension_numbers = #tpu.dot_dimension_numbers<[1], [1], [0], [0], [0, 0, 1, 0], [], []>} : vector<8x8xbf16>, vector<8x8xbf16>, vector<8x8xf32> -> vector<8x8xf32>
    %cst_136 = arith.constant dense<0xFF800000> : vector<8xf32>
    %282 = vector.multi_reduction <maximumf>, %281, %cst_136 [1] : vector<8x8xf32> to vector<8xf32>
    %283 = vector.shape_cast %282 : vector<8xf32> to vector<8x1xf32>
    %284 = vector.broadcast %283 : vector<8x1xf32> to vector<8x8xf32>
    %285 = arith.subf %281, %284 : vector<8x8xf32>
    %286 = math.exp %285 : vector<8x8xf32>
    %cst_137 = arith.constant dense<0.000000e+00> : vector<8xf32>
    %287 = vector.multi_reduction <add>, %286, %cst_137 [1] : vector<8x8xf32> to vector<8xf32>
    %288 = vector.shape_cast %287 : vector<8xf32> to vector<8x1xf32>
    %289 = tpu.reciprocal %288 {approx = true} : vector<8x1xf32> -> vector<8x1xf32>
    %290 = vector.broadcast %289 : vector<8x1xf32> to vector<8x8xf32>
    %291 = arith.mulf %286, %290 : vector<8x8xf32>
    %292 = arith.truncf %291 : vector<8x8xf32> to vector<8x8xbf16>
    %cst_138 = arith.constant dense<0.000000e+00> : vector<8x8xf32>
    %293 = tpu.matmul %292, %280, %cst_138 {dimension_numbers = #tpu.dot_dimension_numbers<[1], [0], [0], [1], [0, 0, 1, 1], [], []>} : vector<8x8xbf16>, vector<8x8xbf16>, vector<8x8xf32> -> vector<8x8xf32>
    %c0_139 = arith.constant 0 : index
    %c0_140 = arith.constant 0 : index
    %294 = vector.load %arg37[%c0_139, %c0_140] : memref<16x32xf32, #tpu.memory_space<vmem>>, vector<8x8xf32>
    tpu.vector_store %arg37[%c0_139, %c0_140], %293 {strides = array<i32>} : memref<16x32xf32, #tpu.memory_space<vmem>>, vector<8x8xf32>,
    %295 = vector.extract_strided_slice %273 {offsets = [0, 8], sizes = [8, 8], strides = [1, 1]} : vector<16x32xbf16> to vector<8x8xbf16>
    %296 = vector.extract_strided_slice %275 {offsets = [0, 8], sizes = [8, 8], strides = [1, 1]} : vector<16x32xbf16> to vector<8x8xbf16>
    %297 = vector.extract_strided_slice %277 {offsets = [0, 8], sizes = [8, 8], strides = [1, 1]} : vector<16x32xbf16> to vector<8x8xbf16>
    %cst_141 = arith.constant dense<0.000000e+00> : vector<8x8xf32>
    %298 = tpu.matmul %295, %296, %cst_141 {dimension_numbers = #tpu.dot_dimension_numbers<[1], [1], [0], [0], [0, 0, 1, 0], [], []>} : vector<8x8xbf16>, vector<8x8xbf16>, vector<8x8xf32> -> vector<8x8xf32>
    %cst_142 = arith.constant dense<0xFF800000> : vector<8xf32>
    %299 = vector.multi_reduction <maximumf>, %298, %cst_142 [1] : vector<8x8xf32> to vector<8xf32>
    %300 = vector.shape_cast %299 : vector<8xf32> to vector<8x1xf32>
    %301 = vector.broadcast %300 : vector<8x1xf32> to vector<8x8xf32>
    %302 = arith.subf %298, %301 : vector<8x8xf32>
    %303 = math.exp %302 : vector<8x8xf32>
    %cst_143 = arith.constant dense<0.000000e+00> : vector<8xf32>
    %304 = vector.multi_reduction <add>, %303, %cst_143 [1] : vector<8x8xf32> to vector<8xf32>
    %305 = vector.shape_cast %304 : vector<8xf32> to vector<8x1xf32>
    %306 = tpu.reciprocal %305 {approx = true} : vector<8x1xf32> -> vector<8x1xf32>
    %307 = vector.broadcast %306 : vector<8x1xf32> to vector<8x8xf32>
    %308 = arith.mulf %303, %307 : vector<8x8xf32>
    %309 = arith.truncf %308 : vector<8x8xf32> to vector<8x8xbf16>
    %cst_144 = arith.constant dense<0.000000e+00> : vector<8x8xf32>
    %310 = tpu.matmul %309, %297, %cst_144 {dimension_numbers = #tpu.dot_dimension_numbers<[1], [0], [0], [1], [0, 0, 1, 1], [], []>} : vector<8x8xbf16>, vector<8x8xbf16>, vector<8x8xf32> -> vector<8x8xf32>
    %c0_145 = arith.constant 0 : index
    %c8_146 = arith.constant 8 : index
    %311 = vector.load %arg37[%c0_145, %c8_146] : memref<16x32xf32, #tpu.memory_space<vmem>>, vector<8x8xf32>
    tpu.vector_store %arg37[%c0_145, %c8_146], %310 {strides = array<i32>} : memref<16x32xf32, #tpu.memory_space<vmem>>, vector<8x8xf32>,
    %312 = vector.extract_strided_slice %273 {offsets = [0, 16], sizes = [8, 8], strides = [1, 1]} : vector<16x32xbf16> to vector<8x8xbf16>
    %313 = vector.extract_strided_slice %275 {offsets = [0, 16], sizes = [8, 8], strides = [1, 1]} : vector<16x32xbf16> to vector<8x8xbf16>
    %314 = vector.extract_strided_slice %277 {offsets = [0, 16], sizes = [8, 8], strides = [1, 1]} : vector<16x32xbf16> to vector<8x8xbf16>
    %cst_147 = arith.constant dense<0.000000e+00> : vector<8x8xf32>
    %315 = tpu.matmul %312, %313, %cst_147 {dimension_numbers = #tpu.dot_dimension_numbers<[1], [1], [0], [0], [0, 0, 1, 0], [], []>} : vector<8x8xbf16>, vector<8x8xbf16>, vector<8x8xf32> -> vector<8x8xf32>
    %cst_148 = arith.constant dense<0xFF800000> : vector<8xf32>
    %316 = vector.multi_reduction <maximumf>, %315, %cst_148 [1] : vector<8x8xf32> to vector<8xf32>
    %317 = vector.shape_cast %316 : vector<8xf32> to vector<8x1xf32>
    %318 = vector.broadcast %317 : vector<8x1xf32> to vector<8x8xf32>
    %319 = arith.subf %315, %318 : vector<8x8xf32>
    %320 = math.exp %319 : vector<8x8xf32>
    %cst_149 = arith.constant dense<0.000000e+00> : vector<8xf32>
    %321 = vector.multi_reduction <add>, %320, %cst_149 [1] : vector<8x8xf32> to vector<8xf32>
    %322 = vector.shape_cast %321 : vector<8xf32> to vector<8x1xf32>
    %323 = tpu.reciprocal %322 {approx = true} : vector<8x1xf32> -> vector<8x1xf32>
    %324 = vector.broadcast %323 : vector<8x1xf32> to vector<8x8xf32>
    %325 = arith.mulf %320, %324 : vector<8x8xf32>
    %326 = arith.truncf %325 : vector<8x8xf32> to vector<8x8xbf16>
    %cst_150 = arith.constant dense<0.000000e+00> : vector<8x8xf32>
    %327 = tpu.matmul %326, %314, %cst_150 {dimension_numbers = #tpu.dot_dimension_numbers<[1], [0], [0], [1], [0, 0, 1, 1], [], []>} : vector<8x8xbf16>, vector<8x8xbf16>, vector<8x8xf32> -> vector<8x8xf32>
    %c0_151 = arith.constant 0 : index
    %c16_152 = arith.constant 16 : index
    %328 = vector.load %arg37[%c0_151, %c16_152] : memref<16x32xf32, #tpu.memory_space<vmem>>, vector<8x8xf32>
    tpu.vector_store %arg37[%c0_151, %c16_152], %327 {strides = array<i32>} : memref<16x32xf32, #tpu.memory_space<vmem>>, vector<8x8xf32>,
    %329 = vector.extract_strided_slice %273 {offsets = [0, 24], sizes = [8, 8], strides = [1, 1]} : vector<16x32xbf16> to vector<8x8xbf16>
    %330 = vector.extract_strided_slice %275 {offsets = [0, 24], sizes = [8, 8], strides = [1, 1]} : vector<16x32xbf16> to vector<8x8xbf16>
    %331 = vector.extract_strided_slice %277 {offsets = [0, 24], sizes = [8, 8], strides = [1, 1]} : vector<16x32xbf16> to vector<8x8xbf16>
    %cst_153 = arith.constant dense<0.000000e+00> : vector<8x8xf32>
    %332 = tpu.matmul %329, %330, %cst_153 {dimension_numbers = #tpu.dot_dimension_numbers<[1], [1], [0], [0], [0, 0, 1, 0], [], []>} : vector<8x8xbf16>, vector<8x8xbf16>, vector<8x8xf32> -> vector<8x8xf32>
    %cst_154 = arith.constant dense<0xFF800000> : vector<8xf32>
    %333 = vector.multi_reduction <maximumf>, %332, %cst_154 [1] : vector<8x8xf32> to vector<8xf32>
    %334 = vector.shape_cast %333 : vector<8xf32> to vector<8x1xf32>
    %335 = vector.broadcast %334 : vector<8x1xf32> to vector<8x8xf32>
    %336 = arith.subf %332, %335 : vector<8x8xf32>
    %337 = math.exp %336 : vector<8x8xf32>
    %cst_155 = arith.constant dense<0.000000e+00> : vector<8xf32>
    %338 = vector.multi_reduction <add>, %337, %cst_155 [1] : vector<8x8xf32> to vector<8xf32>
    %339 = vector.shape_cast %338 : vector<8xf32> to vector<8x1xf32>
    %340 = tpu.reciprocal %339 {approx = true} : vector<8x1xf32> -> vector<8x1xf32>
    %341 = vector.broadcast %340 : vector<8x1xf32> to vector<8x8xf32>
    %342 = arith.mulf %337, %341 : vector<8x8xf32>
    %343 = arith.truncf %342 : vector<8x8xf32> to vector<8x8xbf16>
    %cst_156 = arith.constant dense<0.000000e+00> : vector<8x8xf32>
    %344 = tpu.matmul %343, %331, %cst_156 {dimension_numbers = #tpu.dot_dimension_numbers<[1], [0], [0], [1], [0, 0, 1, 1], [], []>} : vector<8x8xbf16>, vector<8x8xbf16>, vector<8x8xf32> -> vector<8x8xf32>
    %c0_157 = arith.constant 0 : index
    %c24_158 = arith.constant 24 : index
    %345 = vector.load %arg37[%c0_157, %c24_158] : memref<16x32xf32, #tpu.memory_space<vmem>>, vector<8x8xf32>
    tpu.vector_store %arg37[%c0_157, %c24_158], %344 {strides = array<i32>} : memref<16x32xf32, #tpu.memory_space<vmem>>, vector<8x8xf32>,
    %346 = vector.extract_strided_slice %273 {offsets = [8, 0], sizes = [8, 8], strides = [1, 1]} : vector<16x32xbf16> to vector<8x8xbf16>
    %347 = vector.extract_strided_slice %275 {offsets = [8, 0], sizes = [8, 8], strides = [1, 1]} : vector<16x32xbf16> to vector<8x8xbf16>
    %348 = vector.extract_strided_slice %277 {offsets = [8, 0], sizes = [8, 8], strides = [1, 1]} : vector<16x32xbf16> to vector<8x8xbf16>
    %cst_159 = arith.constant dense<0.000000e+00> : vector<8x8xf32>
    %349 = tpu.matmul %346, %347, %cst_159 {dimension_numbers = #tpu.dot_dimension_numbers<[1], [1], [0], [0], [0, 0, 1, 0], [], []>} : vector<8x8xbf16>, vector<8x8xbf16>, vector<8x8xf32> -> vector<8x8xf32>
    %cst_160 = arith.constant dense<0xFF800000> : vector<8xf32>
    %350 = vector.multi_reduction <maximumf>, %349, %cst_160 [1] : vector<8x8xf32> to vector<8xf32>
    %351 = vector.shape_cast %350 : vector<8xf32> to vector<8x1xf32>
    %352 = vector.broadcast %351 : vector<8x1xf32> to vector<8x8xf32>
    %353 = arith.subf %349, %352 : vector<8x8xf32>
    %354 = math.exp %353 : vector<8x8xf32>
    %cst_161 = arith.constant dense<0.000000e+00> : vector<8xf32>
    %355 = vector.multi_reduction <add>, %354, %cst_161 [1] : vector<8x8xf32> to vector<8xf32>
    %356 = vector.shape_cast %355 : vector<8xf32> to vector<8x1xf32>
    %357 = tpu.reciprocal %356 {approx = true} : vector<8x1xf32> -> vector<8x1xf32>
    %358 = vector.broadcast %357 : vector<8x1xf32> to vector<8x8xf32>
    %359 = arith.mulf %354, %358 : vector<8x8xf32>
    %360 = arith.truncf %359 : vector<8x8xf32> to vector<8x8xbf16>
    %cst_162 = arith.constant dense<0.000000e+00> : vector<8x8xf32>
    %361 = tpu.matmul %360, %348, %cst_162 {dimension_numbers = #tpu.dot_dimension_numbers<[1], [0], [0], [1], [0, 0, 1, 1], [], []>} : vector<8x8xbf16>, vector<8x8xbf16>, vector<8x8xf32> -> vector<8x8xf32>
    %c8_163 = arith.constant 8 : index
    %c0_164 = arith.constant 0 : index
    %362 = vector.load %arg37[%c8_163, %c0_164] : memref<16x32xf32, #tpu.memory_space<vmem>>, vector<8x8xf32>
    tpu.vector_store %arg37[%c8_163, %c0_164], %361 {strides = array<i32>} : memref<16x32xf32, #tpu.memory_space<vmem>>, vector<8x8xf32>,
    %363 = vector.extract_strided_slice %273 {offsets = [8, 8], sizes = [8, 8], strides = [1, 1]} : vector<16x32xbf16> to vector<8x8xbf16>
    %364 = vector.extract_strided_slice %275 {offsets = [8, 8], sizes = [8, 8], strides = [1, 1]} : vector<16x32xbf16> to vector<8x8xbf16>
    %365 = vector.extract_strided_slice %277 {offsets = [8, 8], sizes = [8, 8], strides = [1, 1]} : vector<16x32xbf16> to vector<8x8xbf16>
    %cst_165 = arith.constant dense<0.000000e+00> : vector<8x8xf32>
    %366 = tpu.matmul %363, %364, %cst_165 {dimension_numbers = #tpu.dot_dimension_numbers<[1], [1], [0], [0], [0, 0, 1, 0], [], []>} : vector<8x8xbf16>, vector<8x8xbf16>, vector<8x8xf32> -> vector<8x8xf32>
    %cst_166 = arith.constant dense<0xFF800000> : vector<8xf32>
    %367 = vector.multi_reduction <maximumf>, %366, %cst_166 [1] : vector<8x8xf32> to vector<8xf32>
    %368 = vector.shape_cast %367 : vector<8xf32> to vector<8x1xf32>
    %369 = vector.broadcast %368 : vector<8x1xf32> to vector<8x8xf32>
    %370 = arith.subf %366, %369 : vector<8x8xf32>
    %371 = math.exp %370 : vector<8x8xf32>
    %cst_167 = arith.constant dense<0.000000e+00> : vector<8xf32>
    %372 = vector.multi_reduction <add>, %371, %cst_167 [1] : vector<8x8xf32> to vector<8xf32>
    %373 = vector.shape_cast %372 : vector<8xf32> to vector<8x1xf32>
    %374 = tpu.reciprocal %373 {approx = true} : vector<8x1xf32> -> vector<8x1xf32>
    %375 = vector.broadcast %374 : vector<8x1xf32> to vector<8x8xf32>
    %376 = arith.mulf %371, %375 : vector<8x8xf32>
    %377 = arith.truncf %376 : vector<8x8xf32> to vector<8x8xbf16>
    %cst_168 = arith.constant dense<0.000000e+00> : vector<8x8xf32>
    %378 = tpu.matmul %377, %365, %cst_168 {dimension_numbers = #tpu.dot_dimension_numbers<[1], [0], [0], [1], [0, 0, 1, 1], [], []>} : vector<8x8xbf16>, vector<8x8xbf16>, vector<8x8xf32> -> vector<8x8xf32>
    %c8_169 = arith.constant 8 : index
    %c8_170 = arith.constant 8 : index
    %379 = vector.load %arg37[%c8_169, %c8_170] : memref<16x32xf32, #tpu.memory_space<vmem>>, vector<8x8xf32>
    tpu.vector_store %arg37[%c8_169, %c8_170], %378 {strides = array<i32>} : memref<16x32xf32, #tpu.memory_space<vmem>>, vector<8x8xf32>,
    %380 = vector.extract_strided_slice %273 {offsets = [8, 16], sizes = [8, 8], strides = [1, 1]} : vector<16x32xbf16> to vector<8x8xbf16>
    %381 = vector.extract_strided_slice %275 {offsets = [8, 16], sizes = [8, 8], strides = [1, 1]} : vector<16x32xbf16> to vector<8x8xbf16>
    %382 = vector.extract_strided_slice %277 {offsets = [8, 16], sizes = [8, 8], strides = [1, 1]} : vector<16x32xbf16> to vector<8x8xbf16>
    %cst_171 = arith.constant dense<0.000000e+00> : vector<8x8xf32>
    %383 = tpu.matmul %380, %381, %cst_171 {dimension_numbers = #tpu.dot_dimension_numbers<[1], [1], [0], [0], [0, 0, 1, 0], [], []>} : vector<8x8xbf16>, vector<8x8xbf16>, vector<8x8xf32> -> vector<8x8xf32>
    %cst_172 = arith.constant dense<0xFF800000> : vector<8xf32>
    %384 = vector.multi_reduction <maximumf>, %383, %cst_172 [1] : vector<8x8xf32> to vector<8xf32>
    %385 = vector.shape_cast %384 : vector<8xf32> to vector<8x1xf32>
    %386 = vector.broadcast %385 : vector<8x1xf32> to vector<8x8xf32>
    %387 = arith.subf %383, %386 : vector<8x8xf32>
    %388 = math.exp %387 : vector<8x8xf32>
    %cst_173 = arith.constant dense<0.000000e+00> : vector<8xf32>
    %389 = vector.multi_reduction <add>, %388, %cst_173 [1] : vector<8x8xf32> to vector<8xf32>
    %390 = vector.shape_cast %389 : vector<8xf32> to vector<8x1xf32>
    %391 = tpu.reciprocal %390 {approx = true} : vector<8x1xf32> -> vector<8x1xf32>
    %392 = vector.broadcast %391 : vector<8x1xf32> to vector<8x8xf32>
    %393 = arith.mulf %388, %392 : vector<8x8xf32>
    %394 = arith.truncf %393 : vector<8x8xf32> to vector<8x8xbf16>
    %cst_174 = arith.constant dense<0.000000e+00> : vector<8x8xf32>
    %395 = tpu.matmul %394, %382, %cst_174 {dimension_numbers = #tpu.dot_dimension_numbers<[1], [0], [0], [1], [0, 0, 1, 1], [], []>} : vector<8x8xbf16>, vector<8x8xbf16>, vector<8x8xf32> -> vector<8x8xf32>
    %c8_175 = arith.constant 8 : index
    %c16_176 = arith.constant 16 : index
    %396 = vector.load %arg37[%c8_175, %c16_176] : memref<16x32xf32, #tpu.memory_space<vmem>>, vector<8x8xf32>
    tpu.vector_store %arg37[%c8_175, %c16_176], %395 {strides = array<i32>} : memref<16x32xf32, #tpu.memory_space<vmem>>, vector<8x8xf32>,
    %397 = vector.extract_strided_slice %273 {offsets = [8, 24], sizes = [8, 8], strides = [1, 1]} : vector<16x32xbf16> to vector<8x8xbf16>
    %398 = vector.extract_strided_slice %275 {offsets = [8, 24], sizes = [8, 8], strides = [1, 1]} : vector<16x32xbf16> to vector<8x8xbf16>
    %399 = vector.extract_strided_slice %277 {offsets = [8, 24], sizes = [8, 8], strides = [1, 1]} : vector<16x32xbf16> to vector<8x8xbf16>
    %cst_177 = arith.constant dense<0.000000e+00> : vector<8x8xf32>
    %400 = tpu.matmul %397, %398, %cst_177 {dimension_numbers = #tpu.dot_dimension_numbers<[1], [1], [0], [0], [0, 0, 1, 0], [], []>} : vector<8x8xbf16>, vector<8x8xbf16>, vector<8x8xf32> -> vector<8x8xf32>
    %cst_178 = arith.constant dense<0xFF800000> : vector<8xf32>
    %401 = vector.multi_reduction <maximumf>, %400, %cst_178 [1] : vector<8x8xf32> to vector<8xf32>
    %402 = vector.shape_cast %401 : vector<8xf32> to vector<8x1xf32>
    %403 = vector.broadcast %402 : vector<8x1xf32> to vector<8x8xf32>
    %404 = arith.subf %400, %403 : vector<8x8xf32>
    %405 = math.exp %404 : vector<8x8xf32>
    %cst_179 = arith.constant dense<0.000000e+00> : vector<8xf32>
    %406 = vector.multi_reduction <add>, %405, %cst_179 [1] : vector<8x8xf32> to vector<8xf32>
    %407 = vector.shape_cast %406 : vector<8xf32> to vector<8x1xf32>
    %408 = tpu.reciprocal %407 {approx = true} : vector<8x1xf32> -> vector<8x1xf32>
    %409 = vector.broadcast %408 : vector<8x1xf32> to vector<8x8xf32>
    %410 = arith.mulf %405, %409 : vector<8x8xf32>
    %411 = arith.truncf %410 : vector<8x8xf32> to vector<8x8xbf16>
    %cst_180 = arith.constant dense<0.000000e+00> : vector<8x8xf32>
    %412 = tpu.matmul %411, %399, %cst_180 {dimension_numbers = #tpu.dot_dimension_numbers<[1], [0], [0], [1], [0, 0, 1, 1], [], []>} : vector<8x8xbf16>, vector<8x8xbf16>, vector<8x8xf32> -> vector<8x8xf32>
    %c8_181 = arith.constant 8 : index
    %c24_182 = arith.constant 24 : index
    %413 = vector.load %arg37[%c8_181, %c24_182] : memref<16x32xf32, #tpu.memory_space<vmem>>, vector<8x8xf32>
    tpu.vector_store %arg37[%c8_181, %c24_182], %412 {strides = array<i32>} : memref<16x32xf32, #tpu.memory_space<vmem>>, vector<8x8xf32>,
    %c0_183 = arith.constant 0 : index
    %c0_184 = arith.constant 0 : index
    %414 = vector.load %arg37[%c0_183, %c0_184] : memref<16x32xf32, #tpu.memory_space<vmem>>, vector<16x32xf32>
    %415 = arith.truncf %414 : vector<16x32xf32> to vector<16x32xbf16>
    %cst_185 = arith.constant dense<0.000000e+00> : vector<16x32xf32>
    %416 = tpu.matmul %415, %263, %cst_185 {dimension_numbers = #tpu.dot_dimension_numbers<[1], [0], [0], [1], [0, 0, 1, 1], [], []>} : vector<16x32xbf16>, vector<32x32xbf16>, vector<16x32xf32> -> vector<16x32xf32>
    %417 = arith.addf %416, %255 : vector<16x32xf32>
    %cst_186 = arith.constant dense<0.000000e+00> : vector<16xf32>
    %418 = vector.multi_reduction <add>, %417, %cst_186 [1] : vector<16x32xf32> to vector<16xf32>
    %419 = vector.shape_cast %418 : vector<16xf32> to vector<16x1xf32>
    %cst_187 = arith.constant 3.200000e+01 : f32
    %420 = vector.broadcast %cst_187 : f32 to vector<16x1xf32>
    %421 = arith.divf %419, %420 : vector<16x1xf32>
    %422 = vector.broadcast %421 : vector<16x1xf32> to vector<16x32xf32>
    %423 = arith.subf %417, %422 : vector<16x32xf32>
    %424 = arith.mulf %423, %423 : vector<16x32xf32>
    %cst_188 = arith.constant dense<0.000000e+00> : vector<16xf32>
    %425 = vector.multi_reduction <add>, %424, %cst_188 [1] : vector<16x32xf32> to vector<16xf32>
    %426 = vector.shape_cast %425 : vector<16xf32> to vector<16x1xf32>
    %cst_189 = arith.constant 3.200000e+01 : f32
    %427 = vector.broadcast %cst_189 : f32 to vector<16x1xf32>
    %428 = arith.divf %426, %427 : vector<16x1xf32>
    %429 = vector.broadcast %421 : vector<16x1xf32> to vector<16x32xf32>
    %430 = arith.subf %417, %429 : vector<16x32xf32>
    %cst_190 = arith.constant 9.99999997E-7 : f32
    %431 = vector.broadcast %cst_190 : f32 to vector<16x1xf32>
    %432 = arith.addf %428, %431 : vector<16x1xf32>
    %433 = math.rsqrt %432 : vector<16x1xf32>
    %434 = vector.broadcast %433 : vector<16x1xf32> to vector<16x32xf32>
    %435 = arith.mulf %430, %434 : vector<16x32xf32>
    %436 = vector.broadcast %265 : vector<1x32xf32> to vector<16x32xf32>
    %437 = arith.mulf %435, %436 : vector<16x32xf32>
    %438 = vector.broadcast %267 : vector<1x32xf32> to vector<16x32xf32>
    %439 = arith.addf %437, %438 : vector<16x32xf32>
    %c1_191 = arith.constant 1 : index
    %c0_192 = arith.constant 0 : index
    %c0_193 = arith.constant 0 : index
    %440 = vector.load %arg9[%c1_191, %c0_192, %c0_193] : memref<2x32x64xbf16, #tpu.memory_space<vmem>>, vector<1x32x64xbf16>
    %441 = vector.shape_cast %440 : vector<1x32x64xbf16> to vector<32x64xbf16>
    %c1_194 = arith.constant 1 : index
    %c0_195 = arith.constant 0 : index
    %c0_196 = arith.constant 0 : index
    %442 = vector.load %arg10[%c1_194, %c0_195, %c0_196] : memref<2x1x64xf32, #tpu.memory_space<vmem>>, vector<1x1x64xf32>
    %443 = vector.shape_cast %442 : vector<1x1x64xf32> to vector<1x64xf32>
    %c1_197 = arith.constant 1 : index
    %c0_198 = arith.constant 0 : index
    %c0_199 = arith.constant 0 : index
    %444 = vector.load %arg11[%c1_197, %c0_198, %c0_199] : memref<2x64x32xbf16, #tpu.memory_space<vmem>>, vector<1x64x32xbf16>
    %445 = vector.shape_cast %444 : vector<1x64x32xbf16> to vector<64x32xbf16>
    %c1_200 = arith.constant 1 : index
    %c0_201 = arith.constant 0 : index
    %c0_202 = arith.constant 0 : index
    %446 = vector.load %arg12[%c1_200, %c0_201, %c0_202] : memref<2x1x32xf32, #tpu.memory_space<vmem>>, vector<1x1x32xf32>
    %447 = vector.shape_cast %446 : vector<1x1x32xf32> to vector<1x32xf32>
    %c1_203 = arith.constant 1 : index
    %c0_204 = arith.constant 0 : index
    %c0_205 = arith.constant 0 : index
    %448 = vector.load %arg13[%c1_203, %c0_204, %c0_205] : memref<2x1x32xf32, #tpu.memory_space<vmem>>, vector<1x1x32xf32>
    %449 = vector.shape_cast %448 : vector<1x1x32xf32> to vector<1x32xf32>
    %c1_206 = arith.constant 1 : index
    %c0_207 = arith.constant 0 : index
    %c0_208 = arith.constant 0 : index
    %450 = vector.load %arg14[%c1_206, %c0_207, %c0_208] : memref<2x1x32xf32, #tpu.memory_space<vmem>>, vector<1x1x32xf32>
    %451 = vector.shape_cast %450 : vector<1x1x32xf32> to vector<1x32xf32>
    %452 = arith.truncf %439 : vector<16x32xf32> to vector<16x32xbf16>
    %cst_209 = arith.constant dense<0.000000e+00> : vector<16x64xf32>
    %453 = tpu.matmul %452, %441, %cst_209 {dimension_numbers = #tpu.dot_dimension_numbers<[1], [0], [0], [1], [0, 0, 1, 1], [], []>} : vector<16x32xbf16>, vector<32x64xbf16>, vector<16x64xf32> -> vector<16x64xf32>
    %454 = vector.broadcast %443 : vector<1x64xf32> to vector<16x64xf32>
    %455 = arith.addf %453, %454 : vector<16x64xf32>
    %cst_210 = arith.constant 0.000000e+00 : f32
    %456 = vector.broadcast %cst_210 : f32 to vector<16x64xf32>
    %457 = arith.maximumf %455, %456 : vector<16x64xf32>
    %458 = arith.truncf %457 : vector<16x64xf32> to vector<16x64xbf16>
    %cst_211 = arith.constant dense<0.000000e+00> : vector<16x32xf32>
    %459 = tpu.matmul %458, %445, %cst_211 {dimension_numbers = #tpu.dot_dimension_numbers<[1], [0], [0], [1], [0, 0, 1, 1], [], []>} : vector<16x64xbf16>, vector<64x32xbf16>, vector<16x32xf32> -> vector<16x32xf32>
    %460 = vector.broadcast %447 : vector<1x32xf32> to vector<16x32xf32>
    %461 = arith.addf %459, %460 : vector<16x32xf32>
    %462 = arith.addf %461, %439 : vector<16x32xf32>
    %cst_212 = arith.constant dense<0.000000e+00> : vector<16xf32>
    %463 = vector.multi_reduction <add>, %462, %cst_212 [1] : vector<16x32xf32> to vector<16xf32>
    %464 = vector.shape_cast %463 : vector<16xf32> to vector<16x1xf32>
    %cst_213 = arith.constant 3.200000e+01 : f32
    %465 = vector.broadcast %cst_213 : f32 to vector<16x1xf32>
    %466 = arith.divf %464, %465 : vector<16x1xf32>
    %467 = vector.broadcast %466 : vector<16x1xf32> to vector<16x32xf32>
    %468 = arith.subf %462, %467 : vector<16x32xf32>
    %469 = arith.mulf %468, %468 : vector<16x32xf32>
    %cst_214 = arith.constant dense<0.000000e+00> : vector<16xf32>
    %470 = vector.multi_reduction <add>, %469, %cst_214 [1] : vector<16x32xf32> to vector<16xf32>
    %471 = vector.shape_cast %470 : vector<16xf32> to vector<16x1xf32>
    %cst_215 = arith.constant 3.200000e+01 : f32
    %472 = vector.broadcast %cst_215 : f32 to vector<16x1xf32>
    %473 = arith.divf %471, %472 : vector<16x1xf32>
    %474 = vector.broadcast %466 : vector<16x1xf32> to vector<16x32xf32>
    %475 = arith.subf %462, %474 : vector<16x32xf32>
    %cst_216 = arith.constant 9.99999997E-7 : f32
    %476 = vector.broadcast %cst_216 : f32 to vector<16x1xf32>
    %477 = arith.addf %473, %476 : vector<16x1xf32>
    %478 = math.rsqrt %477 : vector<16x1xf32>
    %479 = vector.broadcast %478 : vector<16x1xf32> to vector<16x32xf32>
    %480 = arith.mulf %475, %479 : vector<16x32xf32>
    %481 = vector.broadcast %449 : vector<1x32xf32> to vector<16x32xf32>
    %482 = arith.mulf %480, %481 : vector<16x32xf32>
    %483 = vector.broadcast %451 : vector<1x32xf32> to vector<16x32xf32>
    %484 = arith.addf %482, %483 : vector<16x32xf32>
    %c0_217 = arith.constant 0 : index
    %c0_218 = arith.constant 0 : index
    %485 = vector.load %arg15[%c0_217, %c0_218] : memref<16x32xf32, #tpu.memory_space<vmem>>, vector<16x32xf32>
    %cst_219 = arith.constant dense<0.000000e+00> : vector<16xf32>
    %486 = vector.multi_reduction <add>, %485, %cst_219 [1] : vector<16x32xf32> to vector<16xf32>
    %487 = vector.shape_cast %486 : vector<16xf32> to vector<16x1xf32>
    %cst_220 = arith.constant 3.200000e+01 : f32
    %488 = vector.broadcast %cst_220 : f32 to vector<16x1xf32>
    %489 = arith.divf %487, %488 : vector<16x1xf32>
    %490 = vector.broadcast %489 : vector<16x1xf32> to vector<16x32xf32>
    %491 = arith.subf %485, %490 : vector<16x32xf32>
    %492 = arith.mulf %491, %491 : vector<16x32xf32>
    %cst_221 = arith.constant dense<0.000000e+00> : vector<16xf32>
    %493 = vector.multi_reduction <add>, %492, %cst_221 [1] : vector<16x32xf32> to vector<16xf32>
    %494 = vector.shape_cast %493 : vector<16xf32> to vector<16x1xf32>
    %cst_222 = arith.constant 3.200000e+01 : f32
    %495 = vector.broadcast %cst_222 : f32 to vector<16x1xf32>
    %496 = arith.divf %494, %495 : vector<16x1xf32>
    %497 = vector.broadcast %489 : vector<16x1xf32> to vector<16x32xf32>
    %498 = arith.subf %485, %497 : vector<16x32xf32>
    %cst_223 = arith.constant 9.99999997E-7 : f32
    %499 = vector.broadcast %cst_223 : f32 to vector<16x1xf32>
    %500 = arith.addf %496, %499 : vector<16x1xf32>
    %501 = math.rsqrt %500 : vector<16x1xf32>
    %502 = vector.broadcast %501 : vector<16x1xf32> to vector<16x32xf32>
    %503 = arith.mulf %498, %502 : vector<16x32xf32>
    %504 = vector.broadcast %2 : vector<1x32xf32> to vector<16x32xf32>
    %505 = arith.mulf %503, %504 : vector<16x32xf32>
    %506 = vector.broadcast %3 : vector<1x32xf32> to vector<16x32xf32>
    %507 = arith.addf %505, %506 : vector<16x32xf32>
    %c0_224 = arith.constant 0 : index
    %c0_225 = arith.constant 0 : index
    %c0_226 = arith.constant 0 : index
    %508 = vector.load %arg18[%c0_224, %c0_225, %c0_226] : memref<2x32x32xbf16, #tpu.memory_space<vmem>>, vector<1x32x32xbf16>
    %509 = vector.shape_cast %508 : vector<1x32x32xbf16> to vector<32x32xbf16>
    %c0_227 = arith.constant 0 : index
    %c0_228 = arith.constant 0 : index
    %c0_229 = arith.constant 0 : index
    %510 = vector.load %arg19[%c0_227, %c0_228, %c0_229] : memref<2x32x32xbf16, #tpu.memory_space<vmem>>, vector<1x32x32xbf16>
    %511 = vector.shape_cast %510 : vector<1x32x32xbf16> to vector<32x32xbf16>
    %c0_230 = arith.constant 0 : index
    %c0_231 = arith.constant 0 : index
    %c0_232 = arith.constant 0 : index
    %512 = vector.load %arg20[%c0_230, %c0_231, %c0_232] : memref<2x32x32xbf16, #tpu.memory_space<vmem>>, vector<1x32x32xbf16>
    %513 = vector.shape_cast %512 : vector<1x32x32xbf16> to vector<32x32xbf16>
    %c0_233 = arith.constant 0 : index
    %c0_234 = arith.constant 0 : index
    %c0_235 = arith.constant 0 : index
    %514 = vector.load %arg21[%c0_233, %c0_234, %c0_235] : memref<2x32x32xbf16, #tpu.memory_space<vmem>>, vector<1x32x32xbf16>
    %515 = vector.shape_cast %514 : vector<1x32x32xbf16> to vector<32x32xbf16>
    %c0_236 = arith.constant 0 : index
    %c0_237 = arith.constant 0 : index
    %c0_238 = arith.constant 0 : index
    %516 = vector.load %arg22[%c0_236, %c0_237, %c0_238] : memref<2x1x32xf32, #tpu.memory_space<vmem>>, vector<1x1x32xf32>
    %517 = vector.shape_cast %516 : vector<1x1x32xf32> to vector<1x32xf32>
    %c0_239 = arith.constant 0 : index
    %c0_240 = arith.constant 0 : index
    %c0_241 = arith.constant 0 : index
    %518 = vector.load %arg23[%c0_239, %c0_240, %c0_241] : memref<2x1x32xf32, #tpu.memory_space<vmem>>, vector<1x1x32xf32>
    %519 = vector.shape_cast %518 : vector<1x1x32xf32> to vector<1x32xf32>
    %520 = arith.truncf %507 : vector<16x32xf32> to vector<16x32xbf16>
    %521 = arith.truncf %507 : vector<16x32xf32> to vector<16x32xbf16>
    %cst_242 = arith.constant dense<0.000000e+00> : vector<16x32xf32>
    %522 = tpu.matmul %520, %509, %cst_242 {dimension_numbers = #tpu.dot_dimension_numbers<[1], [0], [0], [1], [0, 0, 1, 1], [], []>} : vector<16x32xbf16>, vector<32x32xbf16>, vector<16x32xf32> -> vector<16x32xf32>
    %cst_243 = arith.constant 0.353553385 : f32
    %523 = vector.broadcast %cst_243 : f32 to vector<16x32xf32>
    %524 = arith.mulf %522, %523 : vector<16x32xf32>
    %525 = arith.truncf %524 : vector<16x32xf32> to vector<16x32xbf16>
    %cst_244 = arith.constant dense<0.000000e+00> : vector<16x32xf32>
    %526 = tpu.matmul %521, %511, %cst_244 {dimension_numbers = #tpu.dot_dimension_numbers<[1], [0], [0], [1], [0, 0, 1, 1], [], []>} : vector<16x32xbf16>, vector<32x32xbf16>, vector<16x32xf32> -> vector<16x32xf32>
    %527 = arith.truncf %526 : vector<16x32xf32> to vector<16x32xbf16>
    %cst_245 = arith.constant dense<0.000000e+00> : vector<16x32xf32>
    %528 = tpu.matmul %521, %513, %cst_245 {dimension_numbers = #tpu.dot_dimension_numbers<[1], [0], [0], [1], [0, 0, 1, 1], [], []>} : vector<16x32xbf16>, vector<32x32xbf16>, vector<16x32xf32> -> vector<16x32xf32>
    %529 = arith.truncf %528 : vector<16x32xf32> to vector<16x32xbf16>
    %530 = vector.extract_strided_slice %525 {offsets = [0, 0], sizes = [8, 8], strides = [1, 1]} : vector<16x32xbf16> to vector<8x8xbf16>
    %531 = vector.extract_strided_slice %527 {offsets = [0, 0], sizes = [8, 8], strides = [1, 1]} : vector<16x32xbf16> to vector<8x8xbf16>
    %532 = vector.extract_strided_slice %529 {offsets = [0, 0], sizes = [8, 8], strides = [1, 1]} : vector<16x32xbf16> to vector<8x8xbf16>
    %cst_246 = arith.constant dense<0.000000e+00> : vector<8x8xf32>
    %533 = tpu.matmul %530, %531, %cst_246 {dimension_numbers = #tpu.dot_dimension_numbers<[1], [1], [0], [0], [0, 0, 1, 0], [], []>} : vector<8x8xbf16>, vector<8x8xbf16>, vector<8x8xf32> -> vector<8x8xf32>
    %cst_247 = arith.constant dense<0xFF800000> : vector<8xf32>
    %534 = vector.multi_reduction <maximumf>, %533, %cst_247 [1] : vector<8x8xf32> to vector<8xf32>
    %535 = vector.shape_cast %534 : vector<8xf32> to vector<8x1xf32>
    %536 = vector.broadcast %535 : vector<8x1xf32> to vector<8x8xf32>
    %537 = arith.subf %533, %536 : vector<8x8xf32>
    %538 = math.exp %537 : vector<8x8xf32>
    %cst_248 = arith.constant dense<0.000000e+00> : vector<8xf32>
    %539 = vector.multi_reduction <add>, %538, %cst_248 [1] : vector<8x8xf32> to vector<8xf32>
    %540 = vector.shape_cast %539 : vector<8xf32> to vector<8x1xf32>
    %541 = tpu.reciprocal %540 {approx = true} : vector<8x1xf32> -> vector<8x1xf32>
    %542 = vector.broadcast %541 : vector<8x1xf32> to vector<8x8xf32>
    %543 = arith.mulf %538, %542 : vector<8x8xf32>
    %544 = arith.truncf %543 : vector<8x8xf32> to vector<8x8xbf16>
    %cst_249 = arith.constant dense<0.000000e+00> : vector<8x8xf32>
    %545 = tpu.matmul %544, %532, %cst_249 {dimension_numbers = #tpu.dot_dimension_numbers<[1], [0], [0], [1], [0, 0, 1, 1], [], []>} : vector<8x8xbf16>, vector<8x8xbf16>, vector<8x8xf32> -> vector<8x8xf32>
    %c0_250 = arith.constant 0 : index
    %c0_251 = arith.constant 0 : index
    %546 = vector.load %arg37[%c0_250, %c0_251] : memref<16x32xf32, #tpu.memory_space<vmem>>, vector<8x8xf32>
    tpu.vector_store %arg37[%c0_250, %c0_251], %545 {strides = array<i32>} : memref<16x32xf32, #tpu.memory_space<vmem>>, vector<8x8xf32>,
    %547 = vector.extract_strided_slice %525 {offsets = [0, 8], sizes = [8, 8], strides = [1, 1]} : vector<16x32xbf16> to vector<8x8xbf16>
    %548 = vector.extract_strided_slice %527 {offsets = [0, 8], sizes = [8, 8], strides = [1, 1]} : vector<16x32xbf16> to vector<8x8xbf16>
    %549 = vector.extract_strided_slice %529 {offsets = [0, 8], sizes = [8, 8], strides = [1, 1]} : vector<16x32xbf16> to vector<8x8xbf16>
    %cst_252 = arith.constant dense<0.000000e+00> : vector<8x8xf32>
    %550 = tpu.matmul %547, %548, %cst_252 {dimension_numbers = #tpu.dot_dimension_numbers<[1], [1], [0], [0], [0, 0, 1, 0], [], []>} : vector<8x8xbf16>, vector<8x8xbf16>, vector<8x8xf32> -> vector<8x8xf32>
    %cst_253 = arith.constant dense<0xFF800000> : vector<8xf32>
    %551 = vector.multi_reduction <maximumf>, %550, %cst_253 [1] : vector<8x8xf32> to vector<8xf32>
    %552 = vector.shape_cast %551 : vector<8xf32> to vector<8x1xf32>
    %553 = vector.broadcast %552 : vector<8x1xf32> to vector<8x8xf32>
    %554 = arith.subf %550, %553 : vector<8x8xf32>
    %555 = math.exp %554 : vector<8x8xf32>
    %cst_254 = arith.constant dense<0.000000e+00> : vector<8xf32>
    %556 = vector.multi_reduction <add>, %555, %cst_254 [1] : vector<8x8xf32> to vector<8xf32>
    %557 = vector.shape_cast %556 : vector<8xf32> to vector<8x1xf32>
    %558 = tpu.reciprocal %557 {approx = true} : vector<8x1xf32> -> vector<8x1xf32>
    %559 = vector.broadcast %558 : vector<8x1xf32> to vector<8x8xf32>
    %560 = arith.mulf %555, %559 : vector<8x8xf32>
    %561 = arith.truncf %560 : vector<8x8xf32> to vector<8x8xbf16>
    %cst_255 = arith.constant dense<0.000000e+00> : vector<8x8xf32>
    %562 = tpu.matmul %561, %549, %cst_255 {dimension_numbers = #tpu.dot_dimension_numbers<[1], [0], [0], [1], [0, 0, 1, 1], [], []>} : vector<8x8xbf16>, vector<8x8xbf16>, vector<8x8xf32> -> vector<8x8xf32>
    %c0_256 = arith.constant 0 : index
    %c8_257 = arith.constant 8 : index
    %563 = vector.load %arg37[%c0_256, %c8_257] : memref<16x32xf32, #tpu.memory_space<vmem>>, vector<8x8xf32>
    tpu.vector_store %arg37[%c0_256, %c8_257], %562 {strides = array<i32>} : memref<16x32xf32, #tpu.memory_space<vmem>>, vector<8x8xf32>,
    %564 = vector.extract_strided_slice %525 {offsets = [0, 16], sizes = [8, 8], strides = [1, 1]} : vector<16x32xbf16> to vector<8x8xbf16>
    %565 = vector.extract_strided_slice %527 {offsets = [0, 16], sizes = [8, 8], strides = [1, 1]} : vector<16x32xbf16> to vector<8x8xbf16>
    %566 = vector.extract_strided_slice %529 {offsets = [0, 16], sizes = [8, 8], strides = [1, 1]} : vector<16x32xbf16> to vector<8x8xbf16>
    %cst_258 = arith.constant dense<0.000000e+00> : vector<8x8xf32>
    %567 = tpu.matmul %564, %565, %cst_258 {dimension_numbers = #tpu.dot_dimension_numbers<[1], [1], [0], [0], [0, 0, 1, 0], [], []>} : vector<8x8xbf16>, vector<8x8xbf16>, vector<8x8xf32> -> vector<8x8xf32>
    %cst_259 = arith.constant dense<0xFF800000> : vector<8xf32>
    %568 = vector.multi_reduction <maximumf>, %567, %cst_259 [1] : vector<8x8xf32> to vector<8xf32>
    %569 = vector.shape_cast %568 : vector<8xf32> to vector<8x1xf32>
    %570 = vector.broadcast %569 : vector<8x1xf32> to vector<8x8xf32>
    %571 = arith.subf %567, %570 : vector<8x8xf32>
    %572 = math.exp %571 : vector<8x8xf32>
    %cst_260 = arith.constant dense<0.000000e+00> : vector<8xf32>
    %573 = vector.multi_reduction <add>, %572, %cst_260 [1] : vector<8x8xf32> to vector<8xf32>
    %574 = vector.shape_cast %573 : vector<8xf32> to vector<8x1xf32>
    %575 = tpu.reciprocal %574 {approx = true} : vector<8x1xf32> -> vector<8x1xf32>
    %576 = vector.broadcast %575 : vector<8x1xf32> to vector<8x8xf32>
    %577 = arith.mulf %572, %576 : vector<8x8xf32>
    %578 = arith.truncf %577 : vector<8x8xf32> to vector<8x8xbf16>
    %cst_261 = arith.constant dense<0.000000e+00> : vector<8x8xf32>
    %579 = tpu.matmul %578, %566, %cst_261 {dimension_numbers = #tpu.dot_dimension_numbers<[1], [0], [0], [1], [0, 0, 1, 1], [], []>} : vector<8x8xbf16>, vector<8x8xbf16>, vector<8x8xf32> -> vector<8x8xf32>
    %c0_262 = arith.constant 0 : index
    %c16_263 = arith.constant 16 : index
    %580 = vector.load %arg37[%c0_262, %c16_263] : memref<16x32xf32, #tpu.memory_space<vmem>>, vector<8x8xf32>
    tpu.vector_store %arg37[%c0_262, %c16_263], %579 {strides = array<i32>} : memref<16x32xf32, #tpu.memory_space<vmem>>, vector<8x8xf32>,
    %581 = vector.extract_strided_slice %525 {offsets = [0, 24], sizes = [8, 8], strides = [1, 1]} : vector<16x32xbf16> to vector<8x8xbf16>
    %582 = vector.extract_strided_slice %527 {offsets = [0, 24], sizes = [8, 8], strides = [1, 1]} : vector<16x32xbf16> to vector<8x8xbf16>
    %583 = vector.extract_strided_slice %529 {offsets = [0, 24], sizes = [8, 8], strides = [1, 1]} : vector<16x32xbf16> to vector<8x8xbf16>
    %cst_264 = arith.constant dense<0.000000e+00> : vector<8x8xf32>
    %584 = tpu.matmul %581, %582, %cst_264 {dimension_numbers = #tpu.dot_dimension_numbers<[1], [1], [0], [0], [0, 0, 1, 0], [], []>} : vector<8x8xbf16>, vector<8x8xbf16>, vector<8x8xf32> -> vector<8x8xf32>
    %cst_265 = arith.constant dense<0xFF800000> : vector<8xf32>
    %585 = vector.multi_reduction <maximumf>, %584, %cst_265 [1] : vector<8x8xf32> to vector<8xf32>
    %586 = vector.shape_cast %585 : vector<8xf32> to vector<8x1xf32>
    %587 = vector.broadcast %586 : vector<8x1xf32> to vector<8x8xf32>
    %588 = arith.subf %584, %587 : vector<8x8xf32>
    %589 = math.exp %588 : vector<8x8xf32>
    %cst_266 = arith.constant dense<0.000000e+00> : vector<8xf32>
    %590 = vector.multi_reduction <add>, %589, %cst_266 [1] : vector<8x8xf32> to vector<8xf32>
    %591 = vector.shape_cast %590 : vector<8xf32> to vector<8x1xf32>
    %592 = tpu.reciprocal %591 {approx = true} : vector<8x1xf32> -> vector<8x1xf32>
    %593 = vector.broadcast %592 : vector<8x1xf32> to vector<8x8xf32>
    %594 = arith.mulf %589, %593 : vector<8x8xf32>
    %595 = arith.truncf %594 : vector<8x8xf32> to vector<8x8xbf16>
    %cst_267 = arith.constant dense<0.000000e+00> : vector<8x8xf32>
    %596 = tpu.matmul %595, %583, %cst_267 {dimension_numbers = #tpu.dot_dimension_numbers<[1], [0], [0], [1], [0, 0, 1, 1], [], []>} : vector<8x8xbf16>, vector<8x8xbf16>, vector<8x8xf32> -> vector<8x8xf32>
    %c0_268 = arith.constant 0 : index
    %c24_269 = arith.constant 24 : index
    %597 = vector.load %arg37[%c0_268, %c24_269] : memref<16x32xf32, #tpu.memory_space<vmem>>, vector<8x8xf32>
    tpu.vector_store %arg37[%c0_268, %c24_269], %596 {strides = array<i32>} : memref<16x32xf32, #tpu.memory_space<vmem>>, vector<8x8xf32>,
    %598 = vector.extract_strided_slice %525 {offsets = [8, 0], sizes = [8, 8], strides = [1, 1]} : vector<16x32xbf16> to vector<8x8xbf16>
    %599 = vector.extract_strided_slice %527 {offsets = [8, 0], sizes = [8, 8], strides = [1, 1]} : vector<16x32xbf16> to vector<8x8xbf16>
    %600 = vector.extract_strided_slice %529 {offsets = [8, 0], sizes = [8, 8], strides = [1, 1]} : vector<16x32xbf16> to vector<8x8xbf16>
    %cst_270 = arith.constant dense<0.000000e+00> : vector<8x8xf32>
    %601 = tpu.matmul %598, %599, %cst_270 {dimension_numbers = #tpu.dot_dimension_numbers<[1], [1], [0], [0], [0, 0, 1, 0], [], []>} : vector<8x8xbf16>, vector<8x8xbf16>, vector<8x8xf32> -> vector<8x8xf32>
    %cst_271 = arith.constant dense<0xFF800000> : vector<8xf32>
    %602 = vector.multi_reduction <maximumf>, %601, %cst_271 [1] : vector<8x8xf32> to vector<8xf32>
    %603 = vector.shape_cast %602 : vector<8xf32> to vector<8x1xf32>
    %604 = vector.broadcast %603 : vector<8x1xf32> to vector<8x8xf32>
    %605 = arith.subf %601, %604 : vector<8x8xf32>
    %606 = math.exp %605 : vector<8x8xf32>
    %cst_272 = arith.constant dense<0.000000e+00> : vector<8xf32>
    %607 = vector.multi_reduction <add>, %606, %cst_272 [1] : vector<8x8xf32> to vector<8xf32>
    %608 = vector.shape_cast %607 : vector<8xf32> to vector<8x1xf32>
    %609 = tpu.reciprocal %608 {approx = true} : vector<8x1xf32> -> vector<8x1xf32>
    %610 = vector.broadcast %609 : vector<8x1xf32> to vector<8x8xf32>
    %611 = arith.mulf %606, %610 : vector<8x8xf32>
    %612 = arith.truncf %611 : vector<8x8xf32> to vector<8x8xbf16>
    %cst_273 = arith.constant dense<0.000000e+00> : vector<8x8xf32>
    %613 = tpu.matmul %612, %600, %cst_273 {dimension_numbers = #tpu.dot_dimension_numbers<[1], [0], [0], [1], [0, 0, 1, 1], [], []>} : vector<8x8xbf16>, vector<8x8xbf16>, vector<8x8xf32> -> vector<8x8xf32>
    %c8_274 = arith.constant 8 : index
    %c0_275 = arith.constant 0 : index
    %614 = vector.load %arg37[%c8_274, %c0_275] : memref<16x32xf32, #tpu.memory_space<vmem>>, vector<8x8xf32>
    tpu.vector_store %arg37[%c8_274, %c0_275], %613 {strides = array<i32>} : memref<16x32xf32, #tpu.memory_space<vmem>>, vector<8x8xf32>,
    %615 = vector.extract_strided_slice %525 {offsets = [8, 8], sizes = [8, 8], strides = [1, 1]} : vector<16x32xbf16> to vector<8x8xbf16>
    %616 = vector.extract_strided_slice %527 {offsets = [8, 8], sizes = [8, 8], strides = [1, 1]} : vector<16x32xbf16> to vector<8x8xbf16>
    %617 = vector.extract_strided_slice %529 {offsets = [8, 8], sizes = [8, 8], strides = [1, 1]} : vector<16x32xbf16> to vector<8x8xbf16>
    %cst_276 = arith.constant dense<0.000000e+00> : vector<8x8xf32>
    %618 = tpu.matmul %615, %616, %cst_276 {dimension_numbers = #tpu.dot_dimension_numbers<[1], [1], [0], [0], [0, 0, 1, 0], [], []>} : vector<8x8xbf16>, vector<8x8xbf16>, vector<8x8xf32> -> vector<8x8xf32>
    %cst_277 = arith.constant dense<0xFF800000> : vector<8xf32>
    %619 = vector.multi_reduction <maximumf>, %618, %cst_277 [1] : vector<8x8xf32> to vector<8xf32>
    %620 = vector.shape_cast %619 : vector<8xf32> to vector<8x1xf32>
    %621 = vector.broadcast %620 : vector<8x1xf32> to vector<8x8xf32>
    %622 = arith.subf %618, %621 : vector<8x8xf32>
    %623 = math.exp %622 : vector<8x8xf32>
    %cst_278 = arith.constant dense<0.000000e+00> : vector<8xf32>
    %624 = vector.multi_reduction <add>, %623, %cst_278 [1] : vector<8x8xf32> to vector<8xf32>
    %625 = vector.shape_cast %624 : vector<8xf32> to vector<8x1xf32>
    %626 = tpu.reciprocal %625 {approx = true} : vector<8x1xf32> -> vector<8x1xf32>
    %627 = vector.broadcast %626 : vector<8x1xf32> to vector<8x8xf32>
    %628 = arith.mulf %623, %627 : vector<8x8xf32>
    %629 = arith.truncf %628 : vector<8x8xf32> to vector<8x8xbf16>
    %cst_279 = arith.constant dense<0.000000e+00> : vector<8x8xf32>
    %630 = tpu.matmul %629, %617, %cst_279 {dimension_numbers = #tpu.dot_dimension_numbers<[1], [0], [0], [1], [0, 0, 1, 1], [], []>} : vector<8x8xbf16>, vector<8x8xbf16>, vector<8x8xf32> -> vector<8x8xf32>
    %c8_280 = arith.constant 8 : index
    %c8_281 = arith.constant 8 : index
    %631 = vector.load %arg37[%c8_280, %c8_281] : memref<16x32xf32, #tpu.memory_space<vmem>>, vector<8x8xf32>
    tpu.vector_store %arg37[%c8_280, %c8_281], %630 {strides = array<i32>} : memref<16x32xf32, #tpu.memory_space<vmem>>, vector<8x8xf32>,
    %632 = vector.extract_strided_slice %525 {offsets = [8, 16], sizes = [8, 8], strides = [1, 1]} : vector<16x32xbf16> to vector<8x8xbf16>
    %633 = vector.extract_strided_slice %527 {offsets = [8, 16], sizes = [8, 8], strides = [1, 1]} : vector<16x32xbf16> to vector<8x8xbf16>
    %634 = vector.extract_strided_slice %529 {offsets = [8, 16], sizes = [8, 8], strides = [1, 1]} : vector<16x32xbf16> to vector<8x8xbf16>
    %cst_282 = arith.constant dense<0.000000e+00> : vector<8x8xf32>
    %635 = tpu.matmul %632, %633, %cst_282 {dimension_numbers = #tpu.dot_dimension_numbers<[1], [1], [0], [0], [0, 0, 1, 0], [], []>} : vector<8x8xbf16>, vector<8x8xbf16>, vector<8x8xf32> -> vector<8x8xf32>
    %cst_283 = arith.constant dense<0xFF800000> : vector<8xf32>
    %636 = vector.multi_reduction <maximumf>, %635, %cst_283 [1] : vector<8x8xf32> to vector<8xf32>
    %637 = vector.shape_cast %636 : vector<8xf32> to vector<8x1xf32>
    %638 = vector.broadcast %637 : vector<8x1xf32> to vector<8x8xf32>
    %639 = arith.subf %635, %638 : vector<8x8xf32>
    %640 = math.exp %639 : vector<8x8xf32>
    %cst_284 = arith.constant dense<0.000000e+00> : vector<8xf32>
    %641 = vector.multi_reduction <add>, %640, %cst_284 [1] : vector<8x8xf32> to vector<8xf32>
    %642 = vector.shape_cast %641 : vector<8xf32> to vector<8x1xf32>
    %643 = tpu.reciprocal %642 {approx = true} : vector<8x1xf32> -> vector<8x1xf32>
    %644 = vector.broadcast %643 : vector<8x1xf32> to vector<8x8xf32>
    %645 = arith.mulf %640, %644 : vector<8x8xf32>
    %646 = arith.truncf %645 : vector<8x8xf32> to vector<8x8xbf16>
    %cst_285 = arith.constant dense<0.000000e+00> : vector<8x8xf32>
    %647 = tpu.matmul %646, %634, %cst_285 {dimension_numbers = #tpu.dot_dimension_numbers<[1], [0], [0], [1], [0, 0, 1, 1], [], []>} : vector<8x8xbf16>, vector<8x8xbf16>, vector<8x8xf32> -> vector<8x8xf32>
    %c8_286 = arith.constant 8 : index
    %c16_287 = arith.constant 16 : index
    %648 = vector.load %arg37[%c8_286, %c16_287] : memref<16x32xf32, #tpu.memory_space<vmem>>, vector<8x8xf32>
    tpu.vector_store %arg37[%c8_286, %c16_287], %647 {strides = array<i32>} : memref<16x32xf32, #tpu.memory_space<vmem>>, vector<8x8xf32>,
    %649 = vector.extract_strided_slice %525 {offsets = [8, 24], sizes = [8, 8], strides = [1, 1]} : vector<16x32xbf16> to vector<8x8xbf16>
    %650 = vector.extract_strided_slice %527 {offsets = [8, 24], sizes = [8, 8], strides = [1, 1]} : vector<16x32xbf16> to vector<8x8xbf16>
    %651 = vector.extract_strided_slice %529 {offsets = [8, 24], sizes = [8, 8], strides = [1, 1]} : vector<16x32xbf16> to vector<8x8xbf16>
    %cst_288 = arith.constant dense<0.000000e+00> : vector<8x8xf32>
    %652 = tpu.matmul %649, %650, %cst_288 {dimension_numbers = #tpu.dot_dimension_numbers<[1], [1], [0], [0], [0, 0, 1, 0], [], []>} : vector<8x8xbf16>, vector<8x8xbf16>, vector<8x8xf32> -> vector<8x8xf32>
    %cst_289 = arith.constant dense<0xFF800000> : vector<8xf32>
    %653 = vector.multi_reduction <maximumf>, %652, %cst_289 [1] : vector<8x8xf32> to vector<8xf32>
    %654 = vector.shape_cast %653 : vector<8xf32> to vector<8x1xf32>
    %655 = vector.broadcast %654 : vector<8x1xf32> to vector<8x8xf32>
    %656 = arith.subf %652, %655 : vector<8x8xf32>
    %657 = math.exp %656 : vector<8x8xf32>
    %cst_290 = arith.constant dense<0.000000e+00> : vector<8xf32>
    %658 = vector.multi_reduction <add>, %657, %cst_290 [1] : vector<8x8xf32> to vector<8xf32>
    %659 = vector.shape_cast %658 : vector<8xf32> to vector<8x1xf32>
    %660 = tpu.reciprocal %659 {approx = true} : vector<8x1xf32> -> vector<8x1xf32>
    %661 = vector.broadcast %660 : vector<8x1xf32> to vector<8x8xf32>
    %662 = arith.mulf %657, %661 : vector<8x8xf32>
    %663 = arith.truncf %662 : vector<8x8xf32> to vector<8x8xbf16>
    %cst_291 = arith.constant dense<0.000000e+00> : vector<8x8xf32>
    %664 = tpu.matmul %663, %651, %cst_291 {dimension_numbers = #tpu.dot_dimension_numbers<[1], [0], [0], [1], [0, 0, 1, 1], [], []>} : vector<8x8xbf16>, vector<8x8xbf16>, vector<8x8xf32> -> vector<8x8xf32>
    %c8_292 = arith.constant 8 : index
    %c24_293 = arith.constant 24 : index
    %665 = vector.load %arg37[%c8_292, %c24_293] : memref<16x32xf32, #tpu.memory_space<vmem>>, vector<8x8xf32>
    tpu.vector_store %arg37[%c8_292, %c24_293], %664 {strides = array<i32>} : memref<16x32xf32, #tpu.memory_space<vmem>>, vector<8x8xf32>,
    %c0_294 = arith.constant 0 : index
    %c0_295 = arith.constant 0 : index
    %666 = vector.load %arg37[%c0_294, %c0_295] : memref<16x32xf32, #tpu.memory_space<vmem>>, vector<16x32xf32>
    %667 = arith.truncf %666 : vector<16x32xf32> to vector<16x32xbf16>
    %cst_296 = arith.constant dense<0.000000e+00> : vector<16x32xf32>
    %668 = tpu.matmul %667, %515, %cst_296 {dimension_numbers = #tpu.dot_dimension_numbers<[1], [0], [0], [1], [0, 0, 1, 1], [], []>} : vector<16x32xbf16>, vector<32x32xbf16>, vector<16x32xf32> -> vector<16x32xf32>
    %669 = arith.addf %668, %507 : vector<16x32xf32>
    %cst_297 = arith.constant dense<0.000000e+00> : vector<16xf32>
    %670 = vector.multi_reduction <add>, %669, %cst_297 [1] : vector<16x32xf32> to vector<16xf32>
    %671 = vector.shape_cast %670 : vector<16xf32> to vector<16x1xf32>
    %cst_298 = arith.constant 3.200000e+01 : f32
    %672 = vector.broadcast %cst_298 : f32 to vector<16x1xf32>
    %673 = arith.divf %671, %672 : vector<16x1xf32>
    %674 = vector.broadcast %673 : vector<16x1xf32> to vector<16x32xf32>
    %675 = arith.subf %669, %674 : vector<16x32xf32>
    %676 = arith.mulf %675, %675 : vector<16x32xf32>
    %cst_299 = arith.constant dense<0.000000e+00> : vector<16xf32>
    %677 = vector.multi_reduction <add>, %676, %cst_299 [1] : vector<16x32xf32> to vector<16xf32>
    %678 = vector.shape_cast %677 : vector<16xf32> to vector<16x1xf32>
    %cst_300 = arith.constant 3.200000e+01 : f32
    %679 = vector.broadcast %cst_300 : f32 to vector<16x1xf32>
    %680 = arith.divf %678, %679 : vector<16x1xf32>
    %681 = vector.broadcast %673 : vector<16x1xf32> to vector<16x32xf32>
    %682 = arith.subf %669, %681 : vector<16x32xf32>
    %cst_301 = arith.constant 9.99999997E-7 : f32
    %683 = vector.broadcast %cst_301 : f32 to vector<16x1xf32>
    %684 = arith.addf %680, %683 : vector<16x1xf32>
    %685 = math.rsqrt %684 : vector<16x1xf32>
    %686 = vector.broadcast %685 : vector<16x1xf32> to vector<16x32xf32>
    %687 = arith.mulf %682, %686 : vector<16x32xf32>
    %688 = vector.broadcast %517 : vector<1x32xf32> to vector<16x32xf32>
    %689 = arith.mulf %687, %688 : vector<16x32xf32>
    %690 = vector.broadcast %519 : vector<1x32xf32> to vector<16x32xf32>
    %691 = arith.addf %689, %690 : vector<16x32xf32>
    %c0_302 = arith.constant 0 : index
    %c0_303 = arith.constant 0 : index
    %c0_304 = arith.constant 0 : index
    %692 = vector.load %arg24[%c0_302, %c0_303, %c0_304] : memref<2x32x32xbf16, #tpu.memory_space<vmem>>, vector<1x32x32xbf16>
    %693 = vector.shape_cast %692 : vector<1x32x32xbf16> to vector<32x32xbf16>
    %c0_305 = arith.constant 0 : index
    %c0_306 = arith.constant 0 : index
    %c0_307 = arith.constant 0 : index
    %694 = vector.load %arg25[%c0_305, %c0_306, %c0_307] : memref<2x32x32xbf16, #tpu.memory_space<vmem>>, vector<1x32x32xbf16>
    %695 = vector.shape_cast %694 : vector<1x32x32xbf16> to vector<32x32xbf16>
    %c0_308 = arith.constant 0 : index
    %c0_309 = arith.constant 0 : index
    %c0_310 = arith.constant 0 : index
    %696 = vector.load %arg26[%c0_308, %c0_309, %c0_310] : memref<2x32x32xbf16, #tpu.memory_space<vmem>>, vector<1x32x32xbf16>
    %697 = vector.shape_cast %696 : vector<1x32x32xbf16> to vector<32x32xbf16>
    %c0_311 = arith.constant 0 : index
    %c0_312 = arith.constant 0 : index
    %c0_313 = arith.constant 0 : index
    %698 = vector.load %arg27[%c0_311, %c0_312, %c0_313] : memref<2x32x32xbf16, #tpu.memory_space<vmem>>, vector<1x32x32xbf16>
    %699 = vector.shape_cast %698 : vector<1x32x32xbf16> to vector<32x32xbf16>
    %c0_314 = arith.constant 0 : index
    %c0_315 = arith.constant 0 : index
    %c0_316 = arith.constant 0 : index
    %700 = vector.load %arg28[%c0_314, %c0_315, %c0_316] : memref<2x1x32xf32, #tpu.memory_space<vmem>>, vector<1x1x32xf32>
    %701 = vector.shape_cast %700 : vector<1x1x32xf32> to vector<1x32xf32>
    %c0_317 = arith.constant 0 : index
    %c0_318 = arith.constant 0 : index
    %c0_319 = arith.constant 0 : index
    %702 = vector.load %arg29[%c0_317, %c0_318, %c0_319] : memref<2x1x32xf32, #tpu.memory_space<vmem>>, vector<1x1x32xf32>
    %703 = vector.shape_cast %702 : vector<1x1x32xf32> to vector<1x32xf32>
    %704 = arith.truncf %691 : vector<16x32xf32> to vector<16x32xbf16>
    %705 = arith.truncf %484 : vector<16x32xf32> to vector<16x32xbf16>
    %cst_320 = arith.constant dense<0.000000e+00> : vector<16x32xf32>
    %706 = tpu.matmul %704, %693, %cst_320 {dimension_numbers = #tpu.dot_dimension_numbers<[1], [0], [0], [1], [0, 0, 1, 1], [], []>} : vector<16x32xbf16>, vector<32x32xbf16>, vector<16x32xf32> -> vector<16x32xf32>
    %cst_321 = arith.constant 0.353553385 : f32
    %707 = vector.broadcast %cst_321 : f32 to vector<16x32xf32>
    %708 = arith.mulf %706, %707 : vector<16x32xf32>
    %709 = arith.truncf %708 : vector<16x32xf32> to vector<16x32xbf16>
    %cst_322 = arith.constant dense<0.000000e+00> : vector<16x32xf32>
    %710 = tpu.matmul %705, %695, %cst_322 {dimension_numbers = #tpu.dot_dimension_numbers<[1], [0], [0], [1], [0, 0, 1, 1], [], []>} : vector<16x32xbf16>, vector<32x32xbf16>, vector<16x32xf32> -> vector<16x32xf32>
    %711 = arith.truncf %710 : vector<16x32xf32> to vector<16x32xbf16>
    %cst_323 = arith.constant dense<0.000000e+00> : vector<16x32xf32>
    %712 = tpu.matmul %705, %697, %cst_323 {dimension_numbers = #tpu.dot_dimension_numbers<[1], [0], [0], [1], [0, 0, 1, 1], [], []>} : vector<16x32xbf16>, vector<32x32xbf16>, vector<16x32xf32> -> vector<16x32xf32>
    %713 = arith.truncf %712 : vector<16x32xf32> to vector<16x32xbf16>
    %714 = vector.extract_strided_slice %709 {offsets = [0, 0], sizes = [8, 8], strides = [1, 1]} : vector<16x32xbf16> to vector<8x8xbf16>
    %715 = vector.extract_strided_slice %711 {offsets = [0, 0], sizes = [8, 8], strides = [1, 1]} : vector<16x32xbf16> to vector<8x8xbf16>
    %716 = vector.extract_strided_slice %713 {offsets = [0, 0], sizes = [8, 8], strides = [1, 1]} : vector<16x32xbf16> to vector<8x8xbf16>
    %cst_324 = arith.constant dense<0.000000e+00> : vector<8x8xf32>
    %717 = tpu.matmul %714, %715, %cst_324 {dimension_numbers = #tpu.dot_dimension_numbers<[1], [1], [0], [0], [0, 0, 1, 0], [], []>} : vector<8x8xbf16>, vector<8x8xbf16>, vector<8x8xf32> -> vector<8x8xf32>
    %cst_325 = arith.constant dense<0xFF800000> : vector<8xf32>
    %718 = vector.multi_reduction <maximumf>, %717, %cst_325 [1] : vector<8x8xf32> to vector<8xf32>
    %719 = vector.shape_cast %718 : vector<8xf32> to vector<8x1xf32>
    %720 = vector.broadcast %719 : vector<8x1xf32> to vector<8x8xf32>
    %721 = arith.subf %717, %720 : vector<8x8xf32>
    %722 = math.exp %721 : vector<8x8xf32>
    %cst_326 = arith.constant dense<0.000000e+00> : vector<8xf32>
    %723 = vector.multi_reduction <add>, %722, %cst_326 [1] : vector<8x8xf32> to vector<8xf32>
    %724 = vector.shape_cast %723 : vector<8xf32> to vector<8x1xf32>
    %725 = tpu.reciprocal %724 {approx = true} : vector<8x1xf32> -> vector<8x1xf32>
    %726 = vector.broadcast %725 : vector<8x1xf32> to vector<8x8xf32>
    %727 = arith.mulf %722, %726 : vector<8x8xf32>
    %728 = arith.truncf %727 : vector<8x8xf32> to vector<8x8xbf16>
    %cst_327 = arith.constant dense<0.000000e+00> : vector<8x8xf32>
    %729 = tpu.matmul %728, %716, %cst_327 {dimension_numbers = #tpu.dot_dimension_numbers<[1], [0], [0], [1], [0, 0, 1, 1], [], []>} : vector<8x8xbf16>, vector<8x8xbf16>, vector<8x8xf32> -> vector<8x8xf32>
    %c0_328 = arith.constant 0 : index
    %c0_329 = arith.constant 0 : index
    %730 = vector.load %arg37[%c0_328, %c0_329] : memref<16x32xf32, #tpu.memory_space<vmem>>, vector<8x8xf32>
    tpu.vector_store %arg37[%c0_328, %c0_329], %729 {strides = array<i32>} : memref<16x32xf32, #tpu.memory_space<vmem>>, vector<8x8xf32>,
    %731 = vector.extract_strided_slice %709 {offsets = [0, 8], sizes = [8, 8], strides = [1, 1]} : vector<16x32xbf16> to vector<8x8xbf16>
    %732 = vector.extract_strided_slice %711 {offsets = [0, 8], sizes = [8, 8], strides = [1, 1]} : vector<16x32xbf16> to vector<8x8xbf16>
    %733 = vector.extract_strided_slice %713 {offsets = [0, 8], sizes = [8, 8], strides = [1, 1]} : vector<16x32xbf16> to vector<8x8xbf16>
    %cst_330 = arith.constant dense<0.000000e+00> : vector<8x8xf32>
    %734 = tpu.matmul %731, %732, %cst_330 {dimension_numbers = #tpu.dot_dimension_numbers<[1], [1], [0], [0], [0, 0, 1, 0], [], []>} : vector<8x8xbf16>, vector<8x8xbf16>, vector<8x8xf32> -> vector<8x8xf32>
    %cst_331 = arith.constant dense<0xFF800000> : vector<8xf32>
    %735 = vector.multi_reduction <maximumf>, %734, %cst_331 [1] : vector<8x8xf32> to vector<8xf32>
    %736 = vector.shape_cast %735 : vector<8xf32> to vector<8x1xf32>
    %737 = vector.broadcast %736 : vector<8x1xf32> to vector<8x8xf32>
    %738 = arith.subf %734, %737 : vector<8x8xf32>
    %739 = math.exp %738 : vector<8x8xf32>
    %cst_332 = arith.constant dense<0.000000e+00> : vector<8xf32>
    %740 = vector.multi_reduction <add>, %739, %cst_332 [1] : vector<8x8xf32> to vector<8xf32>
    %741 = vector.shape_cast %740 : vector<8xf32> to vector<8x1xf32>
    %742 = tpu.reciprocal %741 {approx = true} : vector<8x1xf32> -> vector<8x1xf32>
    %743 = vector.broadcast %742 : vector<8x1xf32> to vector<8x8xf32>
    %744 = arith.mulf %739, %743 : vector<8x8xf32>
    %745 = arith.truncf %744 : vector<8x8xf32> to vector<8x8xbf16>
    %cst_333 = arith.constant dense<0.000000e+00> : vector<8x8xf32>
    %746 = tpu.matmul %745, %733, %cst_333 {dimension_numbers = #tpu.dot_dimension_numbers<[1], [0], [0], [1], [0, 0, 1, 1], [], []>} : vector<8x8xbf16>, vector<8x8xbf16>, vector<8x8xf32> -> vector<8x8xf32>
    %c0_334 = arith.constant 0 : index
    %c8_335 = arith.constant 8 : index
    %747 = vector.load %arg37[%c0_334, %c8_335] : memref<16x32xf32, #tpu.memory_space<vmem>>, vector<8x8xf32>
    tpu.vector_store %arg37[%c0_334, %c8_335], %746 {strides = array<i32>} : memref<16x32xf32, #tpu.memory_space<vmem>>, vector<8x8xf32>,
    %748 = vector.extract_strided_slice %709 {offsets = [0, 16], sizes = [8, 8], strides = [1, 1]} : vector<16x32xbf16> to vector<8x8xbf16>
    %749 = vector.extract_strided_slice %711 {offsets = [0, 16], sizes = [8, 8], strides = [1, 1]} : vector<16x32xbf16> to vector<8x8xbf16>
    %750 = vector.extract_strided_slice %713 {offsets = [0, 16], sizes = [8, 8], strides = [1, 1]} : vector<16x32xbf16> to vector<8x8xbf16>
    %cst_336 = arith.constant dense<0.000000e+00> : vector<8x8xf32>
    %751 = tpu.matmul %748, %749, %cst_336 {dimension_numbers = #tpu.dot_dimension_numbers<[1], [1], [0], [0], [0, 0, 1, 0], [], []>} : vector<8x8xbf16>, vector<8x8xbf16>, vector<8x8xf32> -> vector<8x8xf32>
    %cst_337 = arith.constant dense<0xFF800000> : vector<8xf32>
    %752 = vector.multi_reduction <maximumf>, %751, %cst_337 [1] : vector<8x8xf32> to vector<8xf32>
    %753 = vector.shape_cast %752 : vector<8xf32> to vector<8x1xf32>
    %754 = vector.broadcast %753 : vector<8x1xf32> to vector<8x8xf32>
    %755 = arith.subf %751, %754 : vector<8x8xf32>
    %756 = math.exp %755 : vector<8x8xf32>
    %cst_338 = arith.constant dense<0.000000e+00> : vector<8xf32>
    %757 = vector.multi_reduction <add>, %756, %cst_338 [1] : vector<8x8xf32> to vector<8xf32>
    %758 = vector.shape_cast %757 : vector<8xf32> to vector<8x1xf32>
    %759 = tpu.reciprocal %758 {approx = true} : vector<8x1xf32> -> vector<8x1xf32>
    %760 = vector.broadcast %759 : vector<8x1xf32> to vector<8x8xf32>
    %761 = arith.mulf %756, %760 : vector<8x8xf32>
    %762 = arith.truncf %761 : vector<8x8xf32> to vector<8x8xbf16>
    %cst_339 = arith.constant dense<0.000000e+00> : vector<8x8xf32>
    %763 = tpu.matmul %762, %750, %cst_339 {dimension_numbers = #tpu.dot_dimension_numbers<[1], [0], [0], [1], [0, 0, 1, 1], [], []>} : vector<8x8xbf16>, vector<8x8xbf16>, vector<8x8xf32> -> vector<8x8xf32>
    %c0_340 = arith.constant 0 : index
    %c16_341 = arith.constant 16 : index
    %764 = vector.load %arg37[%c0_340, %c16_341] : memref<16x32xf32, #tpu.memory_space<vmem>>, vector<8x8xf32>
    tpu.vector_store %arg37[%c0_340, %c16_341], %763 {strides = array<i32>} : memref<16x32xf32, #tpu.memory_space<vmem>>, vector<8x8xf32>,
    %765 = vector.extract_strided_slice %709 {offsets = [0, 24], sizes = [8, 8], strides = [1, 1]} : vector<16x32xbf16> to vector<8x8xbf16>
    %766 = vector.extract_strided_slice %711 {offsets = [0, 24], sizes = [8, 8], strides = [1, 1]} : vector<16x32xbf16> to vector<8x8xbf16>
    %767 = vector.extract_strided_slice %713 {offsets = [0, 24], sizes = [8, 8], strides = [1, 1]} : vector<16x32xbf16> to vector<8x8xbf16>
    %cst_342 = arith.constant dense<0.000000e+00> : vector<8x8xf32>
    %768 = tpu.matmul %765, %766, %cst_342 {dimension_numbers = #tpu.dot_dimension_numbers<[1], [1], [0], [0], [0, 0, 1, 0], [], []>} : vector<8x8xbf16>, vector<8x8xbf16>, vector<8x8xf32> -> vector<8x8xf32>
    %cst_343 = arith.constant dense<0xFF800000> : vector<8xf32>
    %769 = vector.multi_reduction <maximumf>, %768, %cst_343 [1] : vector<8x8xf32> to vector<8xf32>
    %770 = vector.shape_cast %769 : vector<8xf32> to vector<8x1xf32>
    %771 = vector.broadcast %770 : vector<8x1xf32> to vector<8x8xf32>
    %772 = arith.subf %768, %771 : vector<8x8xf32>
    %773 = math.exp %772 : vector<8x8xf32>
    %cst_344 = arith.constant dense<0.000000e+00> : vector<8xf32>
    %774 = vector.multi_reduction <add>, %773, %cst_344 [1] : vector<8x8xf32> to vector<8xf32>
    %775 = vector.shape_cast %774 : vector<8xf32> to vector<8x1xf32>
    %776 = tpu.reciprocal %775 {approx = true} : vector<8x1xf32> -> vector<8x1xf32>
    %777 = vector.broadcast %776 : vector<8x1xf32> to vector<8x8xf32>
    %778 = arith.mulf %773, %777 : vector<8x8xf32>
    %779 = arith.truncf %778 : vector<8x8xf32> to vector<8x8xbf16>
    %cst_345 = arith.constant dense<0.000000e+00> : vector<8x8xf32>
    %780 = tpu.matmul %779, %767, %cst_345 {dimension_numbers = #tpu.dot_dimension_numbers<[1], [0], [0], [1], [0, 0, 1, 1], [], []>} : vector<8x8xbf16>, vector<8x8xbf16>, vector<8x8xf32> -> vector<8x8xf32>
    %c0_346 = arith.constant 0 : index
    %c24_347 = arith.constant 24 : index
    %781 = vector.load %arg37[%c0_346, %c24_347] : memref<16x32xf32, #tpu.memory_space<vmem>>, vector<8x8xf32>
    tpu.vector_store %arg37[%c0_346, %c24_347], %780 {strides = array<i32>} : memref<16x32xf32, #tpu.memory_space<vmem>>, vector<8x8xf32>,
    %782 = vector.extract_strided_slice %709 {offsets = [8, 0], sizes = [8, 8], strides = [1, 1]} : vector<16x32xbf16> to vector<8x8xbf16>
    %783 = vector.extract_strided_slice %711 {offsets = [8, 0], sizes = [8, 8], strides = [1, 1]} : vector<16x32xbf16> to vector<8x8xbf16>
    %784 = vector.extract_strided_slice %713 {offsets = [8, 0], sizes = [8, 8], strides = [1, 1]} : vector<16x32xbf16> to vector<8x8xbf16>
    %cst_348 = arith.constant dense<0.000000e+00> : vector<8x8xf32>
    %785 = tpu.matmul %782, %783, %cst_348 {dimension_numbers = #tpu.dot_dimension_numbers<[1], [1], [0], [0], [0, 0, 1, 0], [], []>} : vector<8x8xbf16>, vector<8x8xbf16>, vector<8x8xf32> -> vector<8x8xf32>
    %cst_349 = arith.constant dense<0xFF800000> : vector<8xf32>
    %786 = vector.multi_reduction <maximumf>, %785, %cst_349 [1] : vector<8x8xf32> to vector<8xf32>
    %787 = vector.shape_cast %786 : vector<8xf32> to vector<8x1xf32>
    %788 = vector.broadcast %787 : vector<8x1xf32> to vector<8x8xf32>
    %789 = arith.subf %785, %788 : vector<8x8xf32>
    %790 = math.exp %789 : vector<8x8xf32>
    %cst_350 = arith.constant dense<0.000000e+00> : vector<8xf32>
    %791 = vector.multi_reduction <add>, %790, %cst_350 [1] : vector<8x8xf32> to vector<8xf32>
    %792 = vector.shape_cast %791 : vector<8xf32> to vector<8x1xf32>
    %793 = tpu.reciprocal %792 {approx = true} : vector<8x1xf32> -> vector<8x1xf32>
    %794 = vector.broadcast %793 : vector<8x1xf32> to vector<8x8xf32>
    %795 = arith.mulf %790, %794 : vector<8x8xf32>
    %796 = arith.truncf %795 : vector<8x8xf32> to vector<8x8xbf16>
    %cst_351 = arith.constant dense<0.000000e+00> : vector<8x8xf32>
    %797 = tpu.matmul %796, %784, %cst_351 {dimension_numbers = #tpu.dot_dimension_numbers<[1], [0], [0], [1], [0, 0, 1, 1], [], []>} : vector<8x8xbf16>, vector<8x8xbf16>, vector<8x8xf32> -> vector<8x8xf32>
    %c8_352 = arith.constant 8 : index
    %c0_353 = arith.constant 0 : index
    %798 = vector.load %arg37[%c8_352, %c0_353] : memref<16x32xf32, #tpu.memory_space<vmem>>, vector<8x8xf32>
    tpu.vector_store %arg37[%c8_352, %c0_353], %797 {strides = array<i32>} : memref<16x32xf32, #tpu.memory_space<vmem>>, vector<8x8xf32>,
    %799 = vector.extract_strided_slice %709 {offsets = [8, 8], sizes = [8, 8], strides = [1, 1]} : vector<16x32xbf16> to vector<8x8xbf16>
    %800 = vector.extract_strided_slice %711 {offsets = [8, 8], sizes = [8, 8], strides = [1, 1]} : vector<16x32xbf16> to vector<8x8xbf16>
    %801 = vector.extract_strided_slice %713 {offsets = [8, 8], sizes = [8, 8], strides = [1, 1]} : vector<16x32xbf16> to vector<8x8xbf16>
    %cst_354 = arith.constant dense<0.000000e+00> : vector<8x8xf32>
    %802 = tpu.matmul %799, %800, %cst_354 {dimension_numbers = #tpu.dot_dimension_numbers<[1], [1], [0], [0], [0, 0, 1, 0], [], []>} : vector<8x8xbf16>, vector<8x8xbf16>, vector<8x8xf32> -> vector<8x8xf32>
    %cst_355 = arith.constant dense<0xFF800000> : vector<8xf32>
    %803 = vector.multi_reduction <maximumf>, %802, %cst_355 [1] : vector<8x8xf32> to vector<8xf32>
    %804 = vector.shape_cast %803 : vector<8xf32> to vector<8x1xf32>
    %805 = vector.broadcast %804 : vector<8x1xf32> to vector<8x8xf32>
    %806 = arith.subf %802, %805 : vector<8x8xf32>
    %807 = math.exp %806 : vector<8x8xf32>
    %cst_356 = arith.constant dense<0.000000e+00> : vector<8xf32>
    %808 = vector.multi_reduction <add>, %807, %cst_356 [1] : vector<8x8xf32> to vector<8xf32>
    %809 = vector.shape_cast %808 : vector<8xf32> to vector<8x1xf32>
    %810 = tpu.reciprocal %809 {approx = true} : vector<8x1xf32> -> vector<8x1xf32>
    %811 = vector.broadcast %810 : vector<8x1xf32> to vector<8x8xf32>
    %812 = arith.mulf %807, %811 : vector<8x8xf32>
    %813 = arith.truncf %812 : vector<8x8xf32> to vector<8x8xbf16>
    %cst_357 = arith.constant dense<0.000000e+00> : vector<8x8xf32>
    %814 = tpu.matmul %813, %801, %cst_357 {dimension_numbers = #tpu.dot_dimension_numbers<[1], [0], [0], [1], [0, 0, 1, 1], [], []>} : vector<8x8xbf16>, vector<8x8xbf16>, vector<8x8xf32> -> vector<8x8xf32>
    %c8_358 = arith.constant 8 : index
    %c8_359 = arith.constant 8 : index
    %815 = vector.load %arg37[%c8_358, %c8_359] : memref<16x32xf32, #tpu.memory_space<vmem>>, vector<8x8xf32>
    tpu.vector_store %arg37[%c8_358, %c8_359], %814 {strides = array<i32>} : memref<16x32xf32, #tpu.memory_space<vmem>>, vector<8x8xf32>,
    %816 = vector.extract_strided_slice %709 {offsets = [8, 16], sizes = [8, 8], strides = [1, 1]} : vector<16x32xbf16> to vector<8x8xbf16>
    %817 = vector.extract_strided_slice %711 {offsets = [8, 16], sizes = [8, 8], strides = [1, 1]} : vector<16x32xbf16> to vector<8x8xbf16>
    %818 = vector.extract_strided_slice %713 {offsets = [8, 16], sizes = [8, 8], strides = [1, 1]} : vector<16x32xbf16> to vector<8x8xbf16>
    %cst_360 = arith.constant dense<0.000000e+00> : vector<8x8xf32>
    %819 = tpu.matmul %816, %817, %cst_360 {dimension_numbers = #tpu.dot_dimension_numbers<[1], [1], [0], [0], [0, 0, 1, 0], [], []>} : vector<8x8xbf16>, vector<8x8xbf16>, vector<8x8xf32> -> vector<8x8xf32>
    %cst_361 = arith.constant dense<0xFF800000> : vector<8xf32>
    %820 = vector.multi_reduction <maximumf>, %819, %cst_361 [1] : vector<8x8xf32> to vector<8xf32>
    %821 = vector.shape_cast %820 : vector<8xf32> to vector<8x1xf32>
    %822 = vector.broadcast %821 : vector<8x1xf32> to vector<8x8xf32>
    %823 = arith.subf %819, %822 : vector<8x8xf32>
    %824 = math.exp %823 : vector<8x8xf32>
    %cst_362 = arith.constant dense<0.000000e+00> : vector<8xf32>
    %825 = vector.multi_reduction <add>, %824, %cst_362 [1] : vector<8x8xf32> to vector<8xf32>
    %826 = vector.shape_cast %825 : vector<8xf32> to vector<8x1xf32>
    %827 = tpu.reciprocal %826 {approx = true} : vector<8x1xf32> -> vector<8x1xf32>
    %828 = vector.broadcast %827 : vector<8x1xf32> to vector<8x8xf32>
    %829 = arith.mulf %824, %828 : vector<8x8xf32>
    %830 = arith.truncf %829 : vector<8x8xf32> to vector<8x8xbf16>
    %cst_363 = arith.constant dense<0.000000e+00> : vector<8x8xf32>
    %831 = tpu.matmul %830, %818, %cst_363 {dimension_numbers = #tpu.dot_dimension_numbers<[1], [0], [0], [1], [0, 0, 1, 1], [], []>} : vector<8x8xbf16>, vector<8x8xbf16>, vector<8x8xf32> -> vector<8x8xf32>
    %c8_364 = arith.constant 8 : index
    %c16_365 = arith.constant 16 : index
    %832 = vector.load %arg37[%c8_364, %c16_365] : memref<16x32xf32, #tpu.memory_space<vmem>>, vector<8x8xf32>
    tpu.vector_store %arg37[%c8_364, %c16_365], %831 {strides = array<i32>} : memref<16x32xf32, #tpu.memory_space<vmem>>, vector<8x8xf32>,
    %833 = vector.extract_strided_slice %709 {offsets = [8, 24], sizes = [8, 8], strides = [1, 1]} : vector<16x32xbf16> to vector<8x8xbf16>
    %834 = vector.extract_strided_slice %711 {offsets = [8, 24], sizes = [8, 8], strides = [1, 1]} : vector<16x32xbf16> to vector<8x8xbf16>
    %835 = vector.extract_strided_slice %713 {offsets = [8, 24], sizes = [8, 8], strides = [1, 1]} : vector<16x32xbf16> to vector<8x8xbf16>
    %cst_366 = arith.constant dense<0.000000e+00> : vector<8x8xf32>
    %836 = tpu.matmul %833, %834, %cst_366 {dimension_numbers = #tpu.dot_dimension_numbers<[1], [1], [0], [0], [0, 0, 1, 0], [], []>} : vector<8x8xbf16>, vector<8x8xbf16>, vector<8x8xf32> -> vector<8x8xf32>
    %cst_367 = arith.constant dense<0xFF800000> : vector<8xf32>
    %837 = vector.multi_reduction <maximumf>, %836, %cst_367 [1] : vector<8x8xf32> to vector<8xf32>
    %838 = vector.shape_cast %837 : vector<8xf32> to vector<8x1xf32>
    %839 = vector.broadcast %838 : vector<8x1xf32> to vector<8x8xf32>
    %840 = arith.subf %836, %839 : vector<8x8xf32>
    %841 = math.exp %840 : vector<8x8xf32>
    %cst_368 = arith.constant dense<0.000000e+00> : vector<8xf32>
    %842 = vector.multi_reduction <add>, %841, %cst_368 [1] : vector<8x8xf32> to vector<8xf32>
    %843 = vector.shape_cast %842 : vector<8xf32> to vector<8x1xf32>
    %844 = tpu.reciprocal %843 {approx = true} : vector<8x1xf32> -> vector<8x1xf32>
    %845 = vector.broadcast %844 : vector<8x1xf32> to vector<8x8xf32>
    %846 = arith.mulf %841, %845 : vector<8x8xf32>
    %847 = arith.truncf %846 : vector<8x8xf32> to vector<8x8xbf16>
    %cst_369 = arith.constant dense<0.000000e+00> : vector<8x8xf32>
    %848 = tpu.matmul %847, %835, %cst_369 {dimension_numbers = #tpu.dot_dimension_numbers<[1], [0], [0], [1], [0, 0, 1, 1], [], []>} : vector<8x8xbf16>, vector<8x8xbf16>, vector<8x8xf32> -> vector<8x8xf32>
    %c8_370 = arith.constant 8 : index
    %c24_371 = arith.constant 24 : index
    %849 = vector.load %arg37[%c8_370, %c24_371] : memref<16x32xf32, #tpu.memory_space<vmem>>, vector<8x8xf32>
    tpu.vector_store %arg37[%c8_370, %c24_371], %848 {strides = array<i32>} : memref<16x32xf32, #tpu.memory_space<vmem>>, vector<8x8xf32>,
    %c0_372 = arith.constant 0 : index
    %c0_373 = arith.constant 0 : index
    %850 = vector.load %arg37[%c0_372, %c0_373] : memref<16x32xf32, #tpu.memory_space<vmem>>, vector<16x32xf32>
    %851 = arith.truncf %850 : vector<16x32xf32> to vector<16x32xbf16>
    %cst_374 = arith.constant dense<0.000000e+00> : vector<16x32xf32>
    %852 = tpu.matmul %851, %699, %cst_374 {dimension_numbers = #tpu.dot_dimension_numbers<[1], [0], [0], [1], [0, 0, 1, 1], [], []>} : vector<16x32xbf16>, vector<32x32xbf16>, vector<16x32xf32> -> vector<16x32xf32>
    %853 = arith.addf %852, %691 : vector<16x32xf32>
    %cst_375 = arith.constant dense<0.000000e+00> : vector<16xf32>
    %854 = vector.multi_reduction <add>, %853, %cst_375 [1] : vector<16x32xf32> to vector<16xf32>
    %855 = vector.shape_cast %854 : vector<16xf32> to vector<16x1xf32>
    %cst_376 = arith.constant 3.200000e+01 : f32
    %856 = vector.broadcast %cst_376 : f32 to vector<16x1xf32>
    %857 = arith.divf %855, %856 : vector<16x1xf32>
    %858 = vector.broadcast %857 : vector<16x1xf32> to vector<16x32xf32>
    %859 = arith.subf %853, %858 : vector<16x32xf32>
    %860 = arith.mulf %859, %859 : vector<16x32xf32>
    %cst_377 = arith.constant dense<0.000000e+00> : vector<16xf32>
    %861 = vector.multi_reduction <add>, %860, %cst_377 [1] : vector<16x32xf32> to vector<16xf32>
    %862 = vector.shape_cast %861 : vector<16xf32> to vector<16x1xf32>
    %cst_378 = arith.constant 3.200000e+01 : f32
    %863 = vector.broadcast %cst_378 : f32 to vector<16x1xf32>
    %864 = arith.divf %862, %863 : vector<16x1xf32>
    %865 = vector.broadcast %857 : vector<16x1xf32> to vector<16x32xf32>
    %866 = arith.subf %853, %865 : vector<16x32xf32>
    %cst_379 = arith.constant 9.99999997E-7 : f32
    %867 = vector.broadcast %cst_379 : f32 to vector<16x1xf32>
    %868 = arith.addf %864, %867 : vector<16x1xf32>
    %869 = math.rsqrt %868 : vector<16x1xf32>
    %870 = vector.broadcast %869 : vector<16x1xf32> to vector<16x32xf32>
    %871 = arith.mulf %866, %870 : vector<16x32xf32>
    %872 = vector.broadcast %701 : vector<1x32xf32> to vector<16x32xf32>
    %873 = arith.mulf %871, %872 : vector<16x32xf32>
    %874 = vector.broadcast %703 : vector<1x32xf32> to vector<16x32xf32>
    %875 = arith.addf %873, %874 : vector<16x32xf32>
    %c0_380 = arith.constant 0 : index
    %c0_381 = arith.constant 0 : index
    %c0_382 = arith.constant 0 : index
    %876 = vector.load %arg30[%c0_380, %c0_381, %c0_382] : memref<2x32x64xbf16, #tpu.memory_space<vmem>>, vector<1x32x64xbf16>
    %877 = vector.shape_cast %876 : vector<1x32x64xbf16> to vector<32x64xbf16>
    %c0_383 = arith.constant 0 : index
    %c0_384 = arith.constant 0 : index
    %c0_385 = arith.constant 0 : index
    %878 = vector.load %arg31[%c0_383, %c0_384, %c0_385] : memref<2x1x64xf32, #tpu.memory_space<vmem>>, vector<1x1x64xf32>
    %879 = vector.shape_cast %878 : vector<1x1x64xf32> to vector<1x64xf32>
    %c0_386 = arith.constant 0 : index
    %c0_387 = arith.constant 0 : index
    %c0_388 = arith.constant 0 : index
    %880 = vector.load %arg32[%c0_386, %c0_387, %c0_388] : memref<2x64x32xbf16, #tpu.memory_space<vmem>>, vector<1x64x32xbf16>
    %881 = vector.shape_cast %880 : vector<1x64x32xbf16> to vector<64x32xbf16>
    %c0_389 = arith.constant 0 : index
    %c0_390 = arith.constant 0 : index
    %c0_391 = arith.constant 0 : index
    %882 = vector.load %arg33[%c0_389, %c0_390, %c0_391] : memref<2x1x32xf32, #tpu.memory_space<vmem>>, vector<1x1x32xf32>
    %883 = vector.shape_cast %882 : vector<1x1x32xf32> to vector<1x32xf32>
    %c0_392 = arith.constant 0 : index
    %c0_393 = arith.constant 0 : index
    %c0_394 = arith.constant 0 : index
    %884 = vector.load %arg34[%c0_392, %c0_393, %c0_394] : memref<2x1x32xf32, #tpu.memory_space<vmem>>, vector<1x1x32xf32>
    %885 = vector.shape_cast %884 : vector<1x1x32xf32> to vector<1x32xf32>
    %c0_395 = arith.constant 0 : index
    %c0_396 = arith.constant 0 : index
    %c0_397 = arith.constant 0 : index
    %886 = vector.load %arg35[%c0_395, %c0_396, %c0_397] : memref<2x1x32xf32, #tpu.memory_space<vmem>>, vector<1x1x32xf32>
    %887 = vector.shape_cast %886 : vector<1x1x32xf32> to vector<1x32xf32>
    %888 = arith.truncf %875 : vector<16x32xf32> to vector<16x32xbf16>
    %cst_398 = arith.constant dense<0.000000e+00> : vector<16x64xf32>
    %889 = tpu.matmul %888, %877, %cst_398 {dimension_numbers = #tpu.dot_dimension_numbers<[1], [0], [0], [1], [0, 0, 1, 1], [], []>} : vector<16x32xbf16>, vector<32x64xbf16>, vector<16x64xf32> -> vector<16x64xf32>
    %890 = vector.broadcast %879 : vector<1x64xf32> to vector<16x64xf32>
    %891 = arith.addf %889, %890 : vector<16x64xf32>
    %cst_399 = arith.constant 0.000000e+00 : f32
    %892 = vector.broadcast %cst_399 : f32 to vector<16x64xf32>
    %893 = arith.maximumf %891, %892 : vector<16x64xf32>
    %894 = arith.truncf %893 : vector<16x64xf32> to vector<16x64xbf16>
    %cst_400 = arith.constant dense<0.000000e+00> : vector<16x32xf32>
    %895 = tpu.matmul %894, %881, %cst_400 {dimension_numbers = #tpu.dot_dimension_numbers<[1], [0], [0], [1], [0, 0, 1, 1], [], []>} : vector<16x64xbf16>, vector<64x32xbf16>, vector<16x32xf32> -> vector<16x32xf32>
    %896 = vector.broadcast %883 : vector<1x32xf32> to vector<16x32xf32>
    %897 = arith.addf %895, %896 : vector<16x32xf32>
    %898 = arith.addf %897, %875 : vector<16x32xf32>
    %cst_401 = arith.constant dense<0.000000e+00> : vector<16xf32>
    %899 = vector.multi_reduction <add>, %898, %cst_401 [1] : vector<16x32xf32> to vector<16xf32>
    %900 = vector.shape_cast %899 : vector<16xf32> to vector<16x1xf32>
    %cst_402 = arith.constant 3.200000e+01 : f32
    %901 = vector.broadcast %cst_402 : f32 to vector<16x1xf32>
    %902 = arith.divf %900, %901 : vector<16x1xf32>
    %903 = vector.broadcast %902 : vector<16x1xf32> to vector<16x32xf32>
    %904 = arith.subf %898, %903 : vector<16x32xf32>
    %905 = arith.mulf %904, %904 : vector<16x32xf32>
    %cst_403 = arith.constant dense<0.000000e+00> : vector<16xf32>
    %906 = vector.multi_reduction <add>, %905, %cst_403 [1] : vector<16x32xf32> to vector<16xf32>
    %907 = vector.shape_cast %906 : vector<16xf32> to vector<16x1xf32>
    %cst_404 = arith.constant 3.200000e+01 : f32
    %908 = vector.broadcast %cst_404 : f32 to vector<16x1xf32>
    %909 = arith.divf %907, %908 : vector<16x1xf32>
    %910 = vector.broadcast %902 : vector<16x1xf32> to vector<16x32xf32>
    %911 = arith.subf %898, %910 : vector<16x32xf32>
    %cst_405 = arith.constant 9.99999997E-7 : f32
    %912 = vector.broadcast %cst_405 : f32 to vector<16x1xf32>
    %913 = arith.addf %909, %912 : vector<16x1xf32>
    %914 = math.rsqrt %913 : vector<16x1xf32>
    %915 = vector.broadcast %914 : vector<16x1xf32> to vector<16x32xf32>
    %916 = arith.mulf %911, %915 : vector<16x32xf32>
    %917 = vector.broadcast %885 : vector<1x32xf32> to vector<16x32xf32>
    %918 = arith.mulf %916, %917 : vector<16x32xf32>
    %919 = vector.broadcast %887 : vector<1x32xf32> to vector<16x32xf32>
    %920 = arith.addf %918, %919 : vector<16x32xf32>
    %c1_406 = arith.constant 1 : index
    %c0_407 = arith.constant 0 : index
    %c0_408 = arith.constant 0 : index
    %921 = vector.load %arg18[%c1_406, %c0_407, %c0_408] : memref<2x32x32xbf16, #tpu.memory_space<vmem>>, vector<1x32x32xbf16>
    %922 = vector.shape_cast %921 : vector<1x32x32xbf16> to vector<32x32xbf16>
    %c1_409 = arith.constant 1 : index
    %c0_410 = arith.constant 0 : index
    %c0_411 = arith.constant 0 : index
    %923 = vector.load %arg19[%c1_409, %c0_410, %c0_411] : memref<2x32x32xbf16, #tpu.memory_space<vmem>>, vector<1x32x32xbf16>
    %924 = vector.shape_cast %923 : vector<1x32x32xbf16> to vector<32x32xbf16>
    %c1_412 = arith.constant 1 : index
    %c0_413 = arith.constant 0 : index
    %c0_414 = arith.constant 0 : index
    %925 = vector.load %arg20[%c1_412, %c0_413, %c0_414] : memref<2x32x32xbf16, #tpu.memory_space<vmem>>, vector<1x32x32xbf16>
    %926 = vector.shape_cast %925 : vector<1x32x32xbf16> to vector<32x32xbf16>
    %c1_415 = arith.constant 1 : index
    %c0_416 = arith.constant 0 : index
    %c0_417 = arith.constant 0 : index
    %927 = vector.load %arg21[%c1_415, %c0_416, %c0_417] : memref<2x32x32xbf16, #tpu.memory_space<vmem>>, vector<1x32x32xbf16>
    %928 = vector.shape_cast %927 : vector<1x32x32xbf16> to vector<32x32xbf16>
    %c1_418 = arith.constant 1 : index
    %c0_419 = arith.constant 0 : index
    %c0_420 = arith.constant 0 : index
    %929 = vector.load %arg22[%c1_418, %c0_419, %c0_420] : memref<2x1x32xf32, #tpu.memory_space<vmem>>, vector<1x1x32xf32>
    %930 = vector.shape_cast %929 : vector<1x1x32xf32> to vector<1x32xf32>
    %c1_421 = arith.constant 1 : index
    %c0_422 = arith.constant 0 : index
    %c0_423 = arith.constant 0 : index
    %931 = vector.load %arg23[%c1_421, %c0_422, %c0_423] : memref<2x1x32xf32, #tpu.memory_space<vmem>>, vector<1x1x32xf32>
    %932 = vector.shape_cast %931 : vector<1x1x32xf32> to vector<1x32xf32>
    %933 = arith.truncf %920 : vector<16x32xf32> to vector<16x32xbf16>
    %934 = arith.truncf %920 : vector<16x32xf32> to vector<16x32xbf16>
    %cst_424 = arith.constant dense<0.000000e+00> : vector<16x32xf32>
    %935 = tpu.matmul %933, %922, %cst_424 {dimension_numbers = #tpu.dot_dimension_numbers<[1], [0], [0], [1], [0, 0, 1, 1], [], []>} : vector<16x32xbf16>, vector<32x32xbf16>, vector<16x32xf32> -> vector<16x32xf32>
    %cst_425 = arith.constant 0.353553385 : f32
    %936 = vector.broadcast %cst_425 : f32 to vector<16x32xf32>
    %937 = arith.mulf %935, %936 : vector<16x32xf32>
    %938 = arith.truncf %937 : vector<16x32xf32> to vector<16x32xbf16>
    %cst_426 = arith.constant dense<0.000000e+00> : vector<16x32xf32>
    %939 = tpu.matmul %934, %924, %cst_426 {dimension_numbers = #tpu.dot_dimension_numbers<[1], [0], [0], [1], [0, 0, 1, 1], [], []>} : vector<16x32xbf16>, vector<32x32xbf16>, vector<16x32xf32> -> vector<16x32xf32>
    %940 = arith.truncf %939 : vector<16x32xf32> to vector<16x32xbf16>
    %cst_427 = arith.constant dense<0.000000e+00> : vector<16x32xf32>
    %941 = tpu.matmul %934, %926, %cst_427 {dimension_numbers = #tpu.dot_dimension_numbers<[1], [0], [0], [1], [0, 0, 1, 1], [], []>} : vector<16x32xbf16>, vector<32x32xbf16>, vector<16x32xf32> -> vector<16x32xf32>
    %942 = arith.truncf %941 : vector<16x32xf32> to vector<16x32xbf16>
    %943 = vector.extract_strided_slice %938 {offsets = [0, 0], sizes = [8, 8], strides = [1, 1]} : vector<16x32xbf16> to vector<8x8xbf16>
    %944 = vector.extract_strided_slice %940 {offsets = [0, 0], sizes = [8, 8], strides = [1, 1]} : vector<16x32xbf16> to vector<8x8xbf16>
    %945 = vector.extract_strided_slice %942 {offsets = [0, 0], sizes = [8, 8], strides = [1, 1]} : vector<16x32xbf16> to vector<8x8xbf16>
    %cst_428 = arith.constant dense<0.000000e+00> : vector<8x8xf32>
    %946 = tpu.matmul %943, %944, %cst_428 {dimension_numbers = #tpu.dot_dimension_numbers<[1], [1], [0], [0], [0, 0, 1, 0], [], []>} : vector<8x8xbf16>, vector<8x8xbf16>, vector<8x8xf32> -> vector<8x8xf32>
    %cst_429 = arith.constant dense<0xFF800000> : vector<8xf32>
    %947 = vector.multi_reduction <maximumf>, %946, %cst_429 [1] : vector<8x8xf32> to vector<8xf32>
    %948 = vector.shape_cast %947 : vector<8xf32> to vector<8x1xf32>
    %949 = vector.broadcast %948 : vector<8x1xf32> to vector<8x8xf32>
    %950 = arith.subf %946, %949 : vector<8x8xf32>
    %951 = math.exp %950 : vector<8x8xf32>
    %cst_430 = arith.constant dense<0.000000e+00> : vector<8xf32>
    %952 = vector.multi_reduction <add>, %951, %cst_430 [1] : vector<8x8xf32> to vector<8xf32>
    %953 = vector.shape_cast %952 : vector<8xf32> to vector<8x1xf32>
    %954 = tpu.reciprocal %953 {approx = true} : vector<8x1xf32> -> vector<8x1xf32>
    %955 = vector.broadcast %954 : vector<8x1xf32> to vector<8x8xf32>
    %956 = arith.mulf %951, %955 : vector<8x8xf32>
    %957 = arith.truncf %956 : vector<8x8xf32> to vector<8x8xbf16>
    %cst_431 = arith.constant dense<0.000000e+00> : vector<8x8xf32>
    %958 = tpu.matmul %957, %945, %cst_431 {dimension_numbers = #tpu.dot_dimension_numbers<[1], [0], [0], [1], [0, 0, 1, 1], [], []>} : vector<8x8xbf16>, vector<8x8xbf16>, vector<8x8xf32> -> vector<8x8xf32>
    %c0_432 = arith.constant 0 : index
    %c0_433 = arith.constant 0 : index
    %959 = vector.load %arg37[%c0_432, %c0_433] : memref<16x32xf32, #tpu.memory_space<vmem>>, vector<8x8xf32>
    tpu.vector_store %arg37[%c0_432, %c0_433], %958 {strides = array<i32>} : memref<16x32xf32, #tpu.memory_space<vmem>>, vector<8x8xf32>,
    %960 = vector.extract_strided_slice %938 {offsets = [0, 8], sizes = [8, 8], strides = [1, 1]} : vector<16x32xbf16> to vector<8x8xbf16>
    %961 = vector.extract_strided_slice %940 {offsets = [0, 8], sizes = [8, 8], strides = [1, 1]} : vector<16x32xbf16> to vector<8x8xbf16>
    %962 = vector.extract_strided_slice %942 {offsets = [0, 8], sizes = [8, 8], strides = [1, 1]} : vector<16x32xbf16> to vector<8x8xbf16>
    %cst_434 = arith.constant dense<0.000000e+00> : vector<8x8xf32>
    %963 = tpu.matmul %960, %961, %cst_434 {dimension_numbers = #tpu.dot_dimension_numbers<[1], [1], [0], [0], [0, 0, 1, 0], [], []>} : vector<8x8xbf16>, vector<8x8xbf16>, vector<8x8xf32> -> vector<8x8xf32>
    %cst_435 = arith.constant dense<0xFF800000> : vector<8xf32>
    %964 = vector.multi_reduction <maximumf>, %963, %cst_435 [1] : vector<8x8xf32> to vector<8xf32>
    %965 = vector.shape_cast %964 : vector<8xf32> to vector<8x1xf32>
    %966 = vector.broadcast %965 : vector<8x1xf32> to vector<8x8xf32>
    %967 = arith.subf %963, %966 : vector<8x8xf32>
    %968 = math.exp %967 : vector<8x8xf32>
    %cst_436 = arith.constant dense<0.000000e+00> : vector<8xf32>
    %969 = vector.multi_reduction <add>, %968, %cst_436 [1] : vector<8x8xf32> to vector<8xf32>
    %970 = vector.shape_cast %969 : vector<8xf32> to vector<8x1xf32>
    %971 = tpu.reciprocal %970 {approx = true} : vector<8x1xf32> -> vector<8x1xf32>
    %972 = vector.broadcast %971 : vector<8x1xf32> to vector<8x8xf32>
    %973 = arith.mulf %968, %972 : vector<8x8xf32>
    %974 = arith.truncf %973 : vector<8x8xf32> to vector<8x8xbf16>
    %cst_437 = arith.constant dense<0.000000e+00> : vector<8x8xf32>
    %975 = tpu.matmul %974, %962, %cst_437 {dimension_numbers = #tpu.dot_dimension_numbers<[1], [0], [0], [1], [0, 0, 1, 1], [], []>} : vector<8x8xbf16>, vector<8x8xbf16>, vector<8x8xf32> -> vector<8x8xf32>
    %c0_438 = arith.constant 0 : index
    %c8_439 = arith.constant 8 : index
    %976 = vector.load %arg37[%c0_438, %c8_439] : memref<16x32xf32, #tpu.memory_space<vmem>>, vector<8x8xf32>
    tpu.vector_store %arg37[%c0_438, %c8_439], %975 {strides = array<i32>} : memref<16x32xf32, #tpu.memory_space<vmem>>, vector<8x8xf32>,
    %977 = vector.extract_strided_slice %938 {offsets = [0, 16], sizes = [8, 8], strides = [1, 1]} : vector<16x32xbf16> to vector<8x8xbf16>
    %978 = vector.extract_strided_slice %940 {offsets = [0, 16], sizes = [8, 8], strides = [1, 1]} : vector<16x32xbf16> to vector<8x8xbf16>
    %979 = vector.extract_strided_slice %942 {offsets = [0, 16], sizes = [8, 8], strides = [1, 1]} : vector<16x32xbf16> to vector<8x8xbf16>
    %cst_440 = arith.constant dense<0.000000e+00> : vector<8x8xf32>
    %980 = tpu.matmul %977, %978, %cst_440 {dimension_numbers = #tpu.dot_dimension_numbers<[1], [1], [0], [0], [0, 0, 1, 0], [], []>} : vector<8x8xbf16>, vector<8x8xbf16>, vector<8x8xf32> -> vector<8x8xf32>
    %cst_441 = arith.constant dense<0xFF800000> : vector<8xf32>
    %981 = vector.multi_reduction <maximumf>, %980, %cst_441 [1] : vector<8x8xf32> to vector<8xf32>
    %982 = vector.shape_cast %981 : vector<8xf32> to vector<8x1xf32>
    %983 = vector.broadcast %982 : vector<8x1xf32> to vector<8x8xf32>
    %984 = arith.subf %980, %983 : vector<8x8xf32>
    %985 = math.exp %984 : vector<8x8xf32>
    %cst_442 = arith.constant dense<0.000000e+00> : vector<8xf32>
    %986 = vector.multi_reduction <add>, %985, %cst_442 [1] : vector<8x8xf32> to vector<8xf32>
    %987 = vector.shape_cast %986 : vector<8xf32> to vector<8x1xf32>
    %988 = tpu.reciprocal %987 {approx = true} : vector<8x1xf32> -> vector<8x1xf32>
    %989 = vector.broadcast %988 : vector<8x1xf32> to vector<8x8xf32>
    %990 = arith.mulf %985, %989 : vector<8x8xf32>
    %991 = arith.truncf %990 : vector<8x8xf32> to vector<8x8xbf16>
    %cst_443 = arith.constant dense<0.000000e+00> : vector<8x8xf32>
    %992 = tpu.matmul %991, %979, %cst_443 {dimension_numbers = #tpu.dot_dimension_numbers<[1], [0], [0], [1], [0, 0, 1, 1], [], []>} : vector<8x8xbf16>, vector<8x8xbf16>, vector<8x8xf32> -> vector<8x8xf32>
    %c0_444 = arith.constant 0 : index
    %c16_445 = arith.constant 16 : index
    %993 = vector.load %arg37[%c0_444, %c16_445] : memref<16x32xf32, #tpu.memory_space<vmem>>, vector<8x8xf32>
    tpu.vector_store %arg37[%c0_444, %c16_445], %992 {strides = array<i32>} : memref<16x32xf32, #tpu.memory_space<vmem>>, vector<8x8xf32>,
    %994 = vector.extract_strided_slice %938 {offsets = [0, 24], sizes = [8, 8], strides = [1, 1]} : vector<16x32xbf16> to vector<8x8xbf16>
    %995 = vector.extract_strided_slice %940 {offsets = [0, 24], sizes = [8, 8], strides = [1, 1]} : vector<16x32xbf16> to vector<8x8xbf16>
    %996 = vector.extract_strided_slice %942 {offsets = [0, 24], sizes = [8, 8], strides = [1, 1]} : vector<16x32xbf16> to vector<8x8xbf16>
    %cst_446 = arith.constant dense<0.000000e+00> : vector<8x8xf32>
    %997 = tpu.matmul %994, %995, %cst_446 {dimension_numbers = #tpu.dot_dimension_numbers<[1], [1], [0], [0], [0, 0, 1, 0], [], []>} : vector<8x8xbf16>, vector<8x8xbf16>, vector<8x8xf32> -> vector<8x8xf32>
    %cst_447 = arith.constant dense<0xFF800000> : vector<8xf32>
    %998 = vector.multi_reduction <maximumf>, %997, %cst_447 [1] : vector<8x8xf32> to vector<8xf32>
    %999 = vector.shape_cast %998 : vector<8xf32> to vector<8x1xf32>
    %1000 = vector.broadcast %999 : vector<8x1xf32> to vector<8x8xf32>
    %1001 = arith.subf %997, %1000 : vector<8x8xf32>
    %1002 = math.exp %1001 : vector<8x8xf32>
    %cst_448 = arith.constant dense<0.000000e+00> : vector<8xf32>
    %1003 = vector.multi_reduction <add>, %1002, %cst_448 [1] : vector<8x8xf32> to vector<8xf32>
    %1004 = vector.shape_cast %1003 : vector<8xf32> to vector<8x1xf32>
    %1005 = tpu.reciprocal %1004 {approx = true} : vector<8x1xf32> -> vector<8x1xf32>
    %1006 = vector.broadcast %1005 : vector<8x1xf32> to vector<8x8xf32>
    %1007 = arith.mulf %1002, %1006 : vector<8x8xf32>
    %1008 = arith.truncf %1007 : vector<8x8xf32> to vector<8x8xbf16>
    %cst_449 = arith.constant dense<0.000000e+00> : vector<8x8xf32>
    %1009 = tpu.matmul %1008, %996, %cst_449 {dimension_numbers = #tpu.dot_dimension_numbers<[1], [0], [0], [1], [0, 0, 1, 1], [], []>} : vector<8x8xbf16>, vector<8x8xbf16>, vector<8x8xf32> -> vector<8x8xf32>
    %c0_450 = arith.constant 0 : index
    %c24_451 = arith.constant 24 : index
    %1010 = vector.load %arg37[%c0_450, %c24_451] : memref<16x32xf32, #tpu.memory_space<vmem>>, vector<8x8xf32>
    tpu.vector_store %arg37[%c0_450, %c24_451], %1009 {strides = array<i32>} : memref<16x32xf32, #tpu.memory_space<vmem>>, vector<8x8xf32>,
    %1011 = vector.extract_strided_slice %938 {offsets = [8, 0], sizes = [8, 8], strides = [1, 1]} : vector<16x32xbf16> to vector<8x8xbf16>
    %1012 = vector.extract_strided_slice %940 {offsets = [8, 0], sizes = [8, 8], strides = [1, 1]} : vector<16x32xbf16> to vector<8x8xbf16>
    %1013 = vector.extract_strided_slice %942 {offsets = [8, 0], sizes = [8, 8], strides = [1, 1]} : vector<16x32xbf16> to vector<8x8xbf16>
    %cst_452 = arith.constant dense<0.000000e+00> : vector<8x8xf32>
    %1014 = tpu.matmul %1011, %1012, %cst_452 {dimension_numbers = #tpu.dot_dimension_numbers<[1], [1], [0], [0], [0, 0, 1, 0], [], []>} : vector<8x8xbf16>, vector<8x8xbf16>, vector<8x8xf32> -> vector<8x8xf32>
    %cst_453 = arith.constant dense<0xFF800000> : vector<8xf32>
    %1015 = vector.multi_reduction <maximumf>, %1014, %cst_453 [1] : vector<8x8xf32> to vector<8xf32>
    %1016 = vector.shape_cast %1015 : vector<8xf32> to vector<8x1xf32>
    %1017 = vector.broadcast %1016 : vector<8x1xf32> to vector<8x8xf32>
    %1018 = arith.subf %1014, %1017 : vector<8x8xf32>
    %1019 = math.exp %1018 : vector<8x8xf32>
    %cst_454 = arith.constant dense<0.000000e+00> : vector<8xf32>
    %1020 = vector.multi_reduction <add>, %1019, %cst_454 [1] : vector<8x8xf32> to vector<8xf32>
    %1021 = vector.shape_cast %1020 : vector<8xf32> to vector<8x1xf32>
    %1022 = tpu.reciprocal %1021 {approx = true} : vector<8x1xf32> -> vector<8x1xf32>
    %1023 = vector.broadcast %1022 : vector<8x1xf32> to vector<8x8xf32>
    %1024 = arith.mulf %1019, %1023 : vector<8x8xf32>
    %1025 = arith.truncf %1024 : vector<8x8xf32> to vector<8x8xbf16>
    %cst_455 = arith.constant dense<0.000000e+00> : vector<8x8xf32>
    %1026 = tpu.matmul %1025, %1013, %cst_455 {dimension_numbers = #tpu.dot_dimension_numbers<[1], [0], [0], [1], [0, 0, 1, 1], [], []>} : vector<8x8xbf16>, vector<8x8xbf16>, vector<8x8xf32> -> vector<8x8xf32>
    %c8_456 = arith.constant 8 : index
    %c0_457 = arith.constant 0 : index
    %1027 = vector.load %arg37[%c8_456, %c0_457] : memref<16x32xf32, #tpu.memory_space<vmem>>, vector<8x8xf32>
    tpu.vector_store %arg37[%c8_456, %c0_457], %1026 {strides = array<i32>} : memref<16x32xf32, #tpu.memory_space<vmem>>, vector<8x8xf32>,
    %1028 = vector.extract_strided_slice %938 {offsets = [8, 8], sizes = [8, 8], strides = [1, 1]} : vector<16x32xbf16> to vector<8x8xbf16>
    %1029 = vector.extract_strided_slice %940 {offsets = [8, 8], sizes = [8, 8], strides = [1, 1]} : vector<16x32xbf16> to vector<8x8xbf16>
    %1030 = vector.extract_strided_slice %942 {offsets = [8, 8], sizes = [8, 8], strides = [1, 1]} : vector<16x32xbf16> to vector<8x8xbf16>
    %cst_458 = arith.constant dense<0.000000e+00> : vector<8x8xf32>
    %1031 = tpu.matmul %1028, %1029, %cst_458 {dimension_numbers = #tpu.dot_dimension_numbers<[1], [1], [0], [0], [0, 0, 1, 0], [], []>} : vector<8x8xbf16>, vector<8x8xbf16>, vector<8x8xf32> -> vector<8x8xf32>
    %cst_459 = arith.constant dense<0xFF800000> : vector<8xf32>
    %1032 = vector.multi_reduction <maximumf>, %1031, %cst_459 [1] : vector<8x8xf32> to vector<8xf32>
    %1033 = vector.shape_cast %1032 : vector<8xf32> to vector<8x1xf32>
    %1034 = vector.broadcast %1033 : vector<8x1xf32> to vector<8x8xf32>
    %1035 = arith.subf %1031, %1034 : vector<8x8xf32>
    %1036 = math.exp %1035 : vector<8x8xf32>
    %cst_460 = arith.constant dense<0.000000e+00> : vector<8xf32>
    %1037 = vector.multi_reduction <add>, %1036, %cst_460 [1] : vector<8x8xf32> to vector<8xf32>
    %1038 = vector.shape_cast %1037 : vector<8xf32> to vector<8x1xf32>
    %1039 = tpu.reciprocal %1038 {approx = true} : vector<8x1xf32> -> vector<8x1xf32>
    %1040 = vector.broadcast %1039 : vector<8x1xf32> to vector<8x8xf32>
    %1041 = arith.mulf %1036, %1040 : vector<8x8xf32>
    %1042 = arith.truncf %1041 : vector<8x8xf32> to vector<8x8xbf16>
    %cst_461 = arith.constant dense<0.000000e+00> : vector<8x8xf32>
    %1043 = tpu.matmul %1042, %1030, %cst_461 {dimension_numbers = #tpu.dot_dimension_numbers<[1], [0], [0], [1], [0, 0, 1, 1], [], []>} : vector<8x8xbf16>, vector<8x8xbf16>, vector<8x8xf32> -> vector<8x8xf32>
    %c8_462 = arith.constant 8 : index
    %c8_463 = arith.constant 8 : index
    %1044 = vector.load %arg37[%c8_462, %c8_463] : memref<16x32xf32, #tpu.memory_space<vmem>>, vector<8x8xf32>
    tpu.vector_store %arg37[%c8_462, %c8_463], %1043 {strides = array<i32>} : memref<16x32xf32, #tpu.memory_space<vmem>>, vector<8x8xf32>,
    %1045 = vector.extract_strided_slice %938 {offsets = [8, 16], sizes = [8, 8], strides = [1, 1]} : vector<16x32xbf16> to vector<8x8xbf16>
    %1046 = vector.extract_strided_slice %940 {offsets = [8, 16], sizes = [8, 8], strides = [1, 1]} : vector<16x32xbf16> to vector<8x8xbf16>
    %1047 = vector.extract_strided_slice %942 {offsets = [8, 16], sizes = [8, 8], strides = [1, 1]} : vector<16x32xbf16> to vector<8x8xbf16>
    %cst_464 = arith.constant dense<0.000000e+00> : vector<8x8xf32>
    %1048 = tpu.matmul %1045, %1046, %cst_464 {dimension_numbers = #tpu.dot_dimension_numbers<[1], [1], [0], [0], [0, 0, 1, 0], [], []>} : vector<8x8xbf16>, vector<8x8xbf16>, vector<8x8xf32> -> vector<8x8xf32>
    %cst_465 = arith.constant dense<0xFF800000> : vector<8xf32>
    %1049 = vector.multi_reduction <maximumf>, %1048, %cst_465 [1] : vector<8x8xf32> to vector<8xf32>
    %1050 = vector.shape_cast %1049 : vector<8xf32> to vector<8x1xf32>
    %1051 = vector.broadcast %1050 : vector<8x1xf32> to vector<8x8xf32>
    %1052 = arith.subf %1048, %1051 : vector<8x8xf32>
    %1053 = math.exp %1052 : vector<8x8xf32>
    %cst_466 = arith.constant dense<0.000000e+00> : vector<8xf32>
    %1054 = vector.multi_reduction <add>, %1053, %cst_466 [1] : vector<8x8xf32> to vector<8xf32>
    %1055 = vector.shape_cast %1054 : vector<8xf32> to vector<8x1xf32>
    %1056 = tpu.reciprocal %1055 {approx = true} : vector<8x1xf32> -> vector<8x1xf32>
    %1057 = vector.broadcast %1056 : vector<8x1xf32> to vector<8x8xf32>
    %1058 = arith.mulf %1053, %1057 : vector<8x8xf32>
    %1059 = arith.truncf %1058 : vector<8x8xf32> to vector<8x8xbf16>
    %cst_467 = arith.constant dense<0.000000e+00> : vector<8x8xf32>
    %1060 = tpu.matmul %1059, %1047, %cst_467 {dimension_numbers = #tpu.dot_dimension_numbers<[1], [0], [0], [1], [0, 0, 1, 1], [], []>} : vector<8x8xbf16>, vector<8x8xbf16>, vector<8x8xf32> -> vector<8x8xf32>
    %c8_468 = arith.constant 8 : index
    %c16_469 = arith.constant 16 : index
    %1061 = vector.load %arg37[%c8_468, %c16_469] : memref<16x32xf32, #tpu.memory_space<vmem>>, vector<8x8xf32>
    tpu.vector_store %arg37[%c8_468, %c16_469], %1060 {strides = array<i32>} : memref<16x32xf32, #tpu.memory_space<vmem>>, vector<8x8xf32>,
    %1062 = vector.extract_strided_slice %938 {offsets = [8, 24], sizes = [8, 8], strides = [1, 1]} : vector<16x32xbf16> to vector<8x8xbf16>
    %1063 = vector.extract_strided_slice %940 {offsets = [8, 24], sizes = [8, 8], strides = [1, 1]} : vector<16x32xbf16> to vector<8x8xbf16>
    %1064 = vector.extract_strided_slice %942 {offsets = [8, 24], sizes = [8, 8], strides = [1, 1]} : vector<16x32xbf16> to vector<8x8xbf16>
    %cst_470 = arith.constant dense<0.000000e+00> : vector<8x8xf32>
    %1065 = tpu.matmul %1062, %1063, %cst_470 {dimension_numbers = #tpu.dot_dimension_numbers<[1], [1], [0], [0], [0, 0, 1, 0], [], []>} : vector<8x8xbf16>, vector<8x8xbf16>, vector<8x8xf32> -> vector<8x8xf32>
    %cst_471 = arith.constant dense<0xFF800000> : vector<8xf32>
    %1066 = vector.multi_reduction <maximumf>, %1065, %cst_471 [1] : vector<8x8xf32> to vector<8xf32>
    %1067 = vector.shape_cast %1066 : vector<8xf32> to vector<8x1xf32>
    %1068 = vector.broadcast %1067 : vector<8x1xf32> to vector<8x8xf32>
    %1069 = arith.subf %1065, %1068 : vector<8x8xf32>
    %1070 = math.exp %1069 : vector<8x8xf32>
    %cst_472 = arith.constant dense<0.000000e+00> : vector<8xf32>
    %1071 = vector.multi_reduction <add>, %1070, %cst_472 [1] : vector<8x8xf32> to vector<8xf32>
    %1072 = vector.shape_cast %1071 : vector<8xf32> to vector<8x1xf32>
    %1073 = tpu.reciprocal %1072 {approx = true} : vector<8x1xf32> -> vector<8x1xf32>
    %1074 = vector.broadcast %1073 : vector<8x1xf32> to vector<8x8xf32>
    %1075 = arith.mulf %1070, %1074 : vector<8x8xf32>
    %1076 = arith.truncf %1075 : vector<8x8xf32> to vector<8x8xbf16>
    %cst_473 = arith.constant dense<0.000000e+00> : vector<8x8xf32>
    %1077 = tpu.matmul %1076, %1064, %cst_473 {dimension_numbers = #tpu.dot_dimension_numbers<[1], [0], [0], [1], [0, 0, 1, 1], [], []>} : vector<8x8xbf16>, vector<8x8xbf16>, vector<8x8xf32> -> vector<8x8xf32>
    %c8_474 = arith.constant 8 : index
    %c24_475 = arith.constant 24 : index
    %1078 = vector.load %arg37[%c8_474, %c24_475] : memref<16x32xf32, #tpu.memory_space<vmem>>, vector<8x8xf32>
    tpu.vector_store %arg37[%c8_474, %c24_475], %1077 {strides = array<i32>} : memref<16x32xf32, #tpu.memory_space<vmem>>, vector<8x8xf32>,
    %c0_476 = arith.constant 0 : index
    %c0_477 = arith.constant 0 : index
    %1079 = vector.load %arg37[%c0_476, %c0_477] : memref<16x32xf32, #tpu.memory_space<vmem>>, vector<16x32xf32>
    %1080 = arith.truncf %1079 : vector<16x32xf32> to vector<16x32xbf16>
    %cst_478 = arith.constant dense<0.000000e+00> : vector<16x32xf32>
    %1081 = tpu.matmul %1080, %928, %cst_478 {dimension_numbers = #tpu.dot_dimension_numbers<[1], [0], [0], [1], [0, 0, 1, 1], [], []>} : vector<16x32xbf16>, vector<32x32xbf16>, vector<16x32xf32> -> vector<16x32xf32>
    %1082 = arith.addf %1081, %920 : vector<16x32xf32>
    %cst_479 = arith.constant dense<0.000000e+00> : vector<16xf32>
    %1083 = vector.multi_reduction <add>, %1082, %cst_479 [1] : vector<16x32xf32> to vector<16xf32>
    %1084 = vector.shape_cast %1083 : vector<16xf32> to vector<16x1xf32>
    %cst_480 = arith.constant 3.200000e+01 : f32
    %1085 = vector.broadcast %cst_480 : f32 to vector<16x1xf32>
    %1086 = arith.divf %1084, %1085 : vector<16x1xf32>
    %1087 = vector.broadcast %1086 : vector<16x1xf32> to vector<16x32xf32>
    %1088 = arith.subf %1082, %1087 : vector<16x32xf32>
    %1089 = arith.mulf %1088, %1088 : vector<16x32xf32>
    %cst_481 = arith.constant dense<0.000000e+00> : vector<16xf32>
    %1090 = vector.multi_reduction <add>, %1089, %cst_481 [1] : vector<16x32xf32> to vector<16xf32>
    %1091 = vector.shape_cast %1090 : vector<16xf32> to vector<16x1xf32>
    %cst_482 = arith.constant 3.200000e+01 : f32
    %1092 = vector.broadcast %cst_482 : f32 to vector<16x1xf32>
    %1093 = arith.divf %1091, %1092 : vector<16x1xf32>
    %1094 = vector.broadcast %1086 : vector<16x1xf32> to vector<16x32xf32>
    %1095 = arith.subf %1082, %1094 : vector<16x32xf32>
    %cst_483 = arith.constant 9.99999997E-7 : f32
    %1096 = vector.broadcast %cst_483 : f32 to vector<16x1xf32>
    %1097 = arith.addf %1093, %1096 : vector<16x1xf32>
    %1098 = math.rsqrt %1097 : vector<16x1xf32>
    %1099 = vector.broadcast %1098 : vector<16x1xf32> to vector<16x32xf32>
    %1100 = arith.mulf %1095, %1099 : vector<16x32xf32>
    %1101 = vector.broadcast %930 : vector<1x32xf32> to vector<16x32xf32>
    %1102 = arith.mulf %1100, %1101 : vector<16x32xf32>
    %1103 = vector.broadcast %932 : vector<1x32xf32> to vector<16x32xf32>
    %1104 = arith.addf %1102, %1103 : vector<16x32xf32>
    %c1_484 = arith.constant 1 : index
    %c0_485 = arith.constant 0 : index
    %c0_486 = arith.constant 0 : index
    %1105 = vector.load %arg24[%c1_484, %c0_485, %c0_486] : memref<2x32x32xbf16, #tpu.memory_space<vmem>>, vector<1x32x32xbf16>
    %1106 = vector.shape_cast %1105 : vector<1x32x32xbf16> to vector<32x32xbf16>
    %c1_487 = arith.constant 1 : index
    %c0_488 = arith.constant 0 : index
    %c0_489 = arith.constant 0 : index
    %1107 = vector.load %arg25[%c1_487, %c0_488, %c0_489] : memref<2x32x32xbf16, #tpu.memory_space<vmem>>, vector<1x32x32xbf16>
    %1108 = vector.shape_cast %1107 : vector<1x32x32xbf16> to vector<32x32xbf16>
    %c1_490 = arith.constant 1 : index
    %c0_491 = arith.constant 0 : index
    %c0_492 = arith.constant 0 : index
    %1109 = vector.load %arg26[%c1_490, %c0_491, %c0_492] : memref<2x32x32xbf16, #tpu.memory_space<vmem>>, vector<1x32x32xbf16>
    %1110 = vector.shape_cast %1109 : vector<1x32x32xbf16> to vector<32x32xbf16>
    %c1_493 = arith.constant 1 : index
    %c0_494 = arith.constant 0 : index
    %c0_495 = arith.constant 0 : index
    %1111 = vector.load %arg27[%c1_493, %c0_494, %c0_495] : memref<2x32x32xbf16, #tpu.memory_space<vmem>>, vector<1x32x32xbf16>
    %1112 = vector.shape_cast %1111 : vector<1x32x32xbf16> to vector<32x32xbf16>
    %c1_496 = arith.constant 1 : index
    %c0_497 = arith.constant 0 : index
    %c0_498 = arith.constant 0 : index
    %1113 = vector.load %arg28[%c1_496, %c0_497, %c0_498] : memref<2x1x32xf32, #tpu.memory_space<vmem>>, vector<1x1x32xf32>
    %1114 = vector.shape_cast %1113 : vector<1x1x32xf32> to vector<1x32xf32>
    %c1_499 = arith.constant 1 : index
    %c0_500 = arith.constant 0 : index
    %c0_501 = arith.constant 0 : index
    %1115 = vector.load %arg29[%c1_499, %c0_500, %c0_501] : memref<2x1x32xf32, #tpu.memory_space<vmem>>, vector<1x1x32xf32>
    %1116 = vector.shape_cast %1115 : vector<1x1x32xf32> to vector<1x32xf32>
    %1117 = arith.truncf %1104 : vector<16x32xf32> to vector<16x32xbf16>
    %1118 = arith.truncf %484 : vector<16x32xf32> to vector<16x32xbf16>
    %cst_502 = arith.constant dense<0.000000e+00> : vector<16x32xf32>
    %1119 = tpu.matmul %1117, %1106, %cst_502 {dimension_numbers = #tpu.dot_dimension_numbers<[1], [0], [0], [1], [0, 0, 1, 1], [], []>} : vector<16x32xbf16>, vector<32x32xbf16>, vector<16x32xf32> -> vector<16x32xf32>
    %cst_503 = arith.constant 0.353553385 : f32
    %1120 = vector.broadcast %cst_503 : f32 to vector<16x32xf32>
    %1121 = arith.mulf %1119, %1120 : vector<16x32xf32>
    %1122 = arith.truncf %1121 : vector<16x32xf32> to vector<16x32xbf16>
    %cst_504 = arith.constant dense<0.000000e+00> : vector<16x32xf32>
    %1123 = tpu.matmul %1118, %1108, %cst_504 {dimension_numbers = #tpu.dot_dimension_numbers<[1], [0], [0], [1], [0, 0, 1, 1], [], []>} : vector<16x32xbf16>, vector<32x32xbf16>, vector<16x32xf32> -> vector<16x32xf32>
    %1124 = arith.truncf %1123 : vector<16x32xf32> to vector<16x32xbf16>
    %cst_505 = arith.constant dense<0.000000e+00> : vector<16x32xf32>
    %1125 = tpu.matmul %1118, %1110, %cst_505 {dimension_numbers = #tpu.dot_dimension_numbers<[1], [0], [0], [1], [0, 0, 1, 1], [], []>} : vector<16x32xbf16>, vector<32x32xbf16>, vector<16x32xf32> -> vector<16x32xf32>
    %1126 = arith.truncf %1125 : vector<16x32xf32> to vector<16x32xbf16>
    %1127 = vector.extract_strided_slice %1122 {offsets = [0, 0], sizes = [8, 8], strides = [1, 1]} : vector<16x32xbf16> to vector<8x8xbf16>
    %1128 = vector.extract_strided_slice %1124 {offsets = [0, 0], sizes = [8, 8], strides = [1, 1]} : vector<16x32xbf16> to vector<8x8xbf16>
    %1129 = vector.extract_strided_slice %1126 {offsets = [0, 0], sizes = [8, 8], strides = [1, 1]} : vector<16x32xbf16> to vector<8x8xbf16>
    %cst_506 = arith.constant dense<0.000000e+00> : vector<8x8xf32>
    %1130 = tpu.matmul %1127, %1128, %cst_506 {dimension_numbers = #tpu.dot_dimension_numbers<[1], [1], [0], [0], [0, 0, 1, 0], [], []>} : vector<8x8xbf16>, vector<8x8xbf16>, vector<8x8xf32> -> vector<8x8xf32>
    %cst_507 = arith.constant dense<0xFF800000> : vector<8xf32>
    %1131 = vector.multi_reduction <maximumf>, %1130, %cst_507 [1] : vector<8x8xf32> to vector<8xf32>
    %1132 = vector.shape_cast %1131 : vector<8xf32> to vector<8x1xf32>
    %1133 = vector.broadcast %1132 : vector<8x1xf32> to vector<8x8xf32>
    %1134 = arith.subf %1130, %1133 : vector<8x8xf32>
    %1135 = math.exp %1134 : vector<8x8xf32>
    %cst_508 = arith.constant dense<0.000000e+00> : vector<8xf32>
    %1136 = vector.multi_reduction <add>, %1135, %cst_508 [1] : vector<8x8xf32> to vector<8xf32>
    %1137 = vector.shape_cast %1136 : vector<8xf32> to vector<8x1xf32>
    %1138 = tpu.reciprocal %1137 {approx = true} : vector<8x1xf32> -> vector<8x1xf32>
    %1139 = vector.broadcast %1138 : vector<8x1xf32> to vector<8x8xf32>
    %1140 = arith.mulf %1135, %1139 : vector<8x8xf32>
    %1141 = arith.truncf %1140 : vector<8x8xf32> to vector<8x8xbf16>
    %cst_509 = arith.constant dense<0.000000e+00> : vector<8x8xf32>
    %1142 = tpu.matmul %1141, %1129, %cst_509 {dimension_numbers = #tpu.dot_dimension_numbers<[1], [0], [0], [1], [0, 0, 1, 1], [], []>} : vector<8x8xbf16>, vector<8x8xbf16>, vector<8x8xf32> -> vector<8x8xf32>
    %c0_510 = arith.constant 0 : index
    %c0_511 = arith.constant 0 : index
    %1143 = vector.load %arg37[%c0_510, %c0_511] : memref<16x32xf32, #tpu.memory_space<vmem>>, vector<8x8xf32>
    tpu.vector_store %arg37[%c0_510, %c0_511], %1142 {strides = array<i32>} : memref<16x32xf32, #tpu.memory_space<vmem>>, vector<8x8xf32>,
    %1144 = vector.extract_strided_slice %1122 {offsets = [0, 8], sizes = [8, 8], strides = [1, 1]} : vector<16x32xbf16> to vector<8x8xbf16>
    %1145 = vector.extract_strided_slice %1124 {offsets = [0, 8], sizes = [8, 8], strides = [1, 1]} : vector<16x32xbf16> to vector<8x8xbf16>
    %1146 = vector.extract_strided_slice %1126 {offsets = [0, 8], sizes = [8, 8], strides = [1, 1]} : vector<16x32xbf16> to vector<8x8xbf16>
    %cst_512 = arith.constant dense<0.000000e+00> : vector<8x8xf32>
    %1147 = tpu.matmul %1144, %1145, %cst_512 {dimension_numbers = #tpu.dot_dimension_numbers<[1], [1], [0], [0], [0, 0, 1, 0], [], []>} : vector<8x8xbf16>, vector<8x8xbf16>, vector<8x8xf32> -> vector<8x8xf32>
    %cst_513 = arith.constant dense<0xFF800000> : vector<8xf32>
    %1148 = vector.multi_reduction <maximumf>, %1147, %cst_513 [1] : vector<8x8xf32> to vector<8xf32>
    %1149 = vector.shape_cast %1148 : vector<8xf32> to vector<8x1xf32>
    %1150 = vector.broadcast %1149 : vector<8x1xf32> to vector<8x8xf32>
    %1151 = arith.subf %1147, %1150 : vector<8x8xf32>
    %1152 = math.exp %1151 : vector<8x8xf32>
    %cst_514 = arith.constant dense<0.000000e+00> : vector<8xf32>
    %1153 = vector.multi_reduction <add>, %1152, %cst_514 [1] : vector<8x8xf32> to vector<8xf32>
    %1154 = vector.shape_cast %1153 : vector<8xf32> to vector<8x1xf32>
    %1155 = tpu.reciprocal %1154 {approx = true} : vector<8x1xf32> -> vector<8x1xf32>
    %1156 = vector.broadcast %1155 : vector<8x1xf32> to vector<8x8xf32>
    %1157 = arith.mulf %1152, %1156 : vector<8x8xf32>
    %1158 = arith.truncf %1157 : vector<8x8xf32> to vector<8x8xbf16>
    %cst_515 = arith.constant dense<0.000000e+00> : vector<8x8xf32>
    %1159 = tpu.matmul %1158, %1146, %cst_515 {dimension_numbers = #tpu.dot_dimension_numbers<[1], [0], [0], [1], [0, 0, 1, 1], [], []>} : vector<8x8xbf16>, vector<8x8xbf16>, vector<8x8xf32> -> vector<8x8xf32>
    %c0_516 = arith.constant 0 : index
    %c8_517 = arith.constant 8 : index
    %1160 = vector.load %arg37[%c0_516, %c8_517] : memref<16x32xf32, #tpu.memory_space<vmem>>, vector<8x8xf32>
    tpu.vector_store %arg37[%c0_516, %c8_517], %1159 {strides = array<i32>} : memref<16x32xf32, #tpu.memory_space<vmem>>, vector<8x8xf32>,
    %1161 = vector.extract_strided_slice %1122 {offsets = [0, 16], sizes = [8, 8], strides = [1, 1]} : vector<16x32xbf16> to vector<8x8xbf16>
    %1162 = vector.extract_strided_slice %1124 {offsets = [0, 16], sizes = [8, 8], strides = [1, 1]} : vector<16x32xbf16> to vector<8x8xbf16>
    %1163 = vector.extract_strided_slice %1126 {offsets = [0, 16], sizes = [8, 8], strides = [1, 1]} : vector<16x32xbf16> to vector<8x8xbf16>
    %cst_518 = arith.constant dense<0.000000e+00> : vector<8x8xf32>
    %1164 = tpu.matmul %1161, %1162, %cst_518 {dimension_numbers = #tpu.dot_dimension_numbers<[1], [1], [0], [0], [0, 0, 1, 0], [], []>} : vector<8x8xbf16>, vector<8x8xbf16>, vector<8x8xf32> -> vector<8x8xf32>
    %cst_519 = arith.constant dense<0xFF800000> : vector<8xf32>
    %1165 = vector.multi_reduction <maximumf>, %1164, %cst_519 [1] : vector<8x8xf32> to vector<8xf32>
    %1166 = vector.shape_cast %1165 : vector<8xf32> to vector<8x1xf32>
    %1167 = vector.broadcast %1166 : vector<8x1xf32> to vector<8x8xf32>
    %1168 = arith.subf %1164, %1167 : vector<8x8xf32>
    %1169 = math.exp %1168 : vector<8x8xf32>
    %cst_520 = arith.constant dense<0.000000e+00> : vector<8xf32>
    %1170 = vector.multi_reduction <add>, %1169, %cst_520 [1] : vector<8x8xf32> to vector<8xf32>
    %1171 = vector.shape_cast %1170 : vector<8xf32> to vector<8x1xf32>
    %1172 = tpu.reciprocal %1171 {approx = true} : vector<8x1xf32> -> vector<8x1xf32>
    %1173 = vector.broadcast %1172 : vector<8x1xf32> to vector<8x8xf32>
    %1174 = arith.mulf %1169, %1173 : vector<8x8xf32>
    %1175 = arith.truncf %1174 : vector<8x8xf32> to vector<8x8xbf16>
    %cst_521 = arith.constant dense<0.000000e+00> : vector<8x8xf32>
    %1176 = tpu.matmul %1175, %1163, %cst_521 {dimension_numbers = #tpu.dot_dimension_numbers<[1], [0], [0], [1], [0, 0, 1, 1], [], []>} : vector<8x8xbf16>, vector<8x8xbf16>, vector<8x8xf32> -> vector<8x8xf32>
    %c0_522 = arith.constant 0 : index
    %c16_523 = arith.constant 16 : index
    %1177 = vector.load %arg37[%c0_522, %c16_523] : memref<16x32xf32, #tpu.memory_space<vmem>>, vector<8x8xf32>
    tpu.vector_store %arg37[%c0_522, %c16_523], %1176 {strides = array<i32>} : memref<16x32xf32, #tpu.memory_space<vmem>>, vector<8x8xf32>,
    %1178 = vector.extract_strided_slice %1122 {offsets = [0, 24], sizes = [8, 8], strides = [1, 1]} : vector<16x32xbf16> to vector<8x8xbf16>
    %1179 = vector.extract_strided_slice %1124 {offsets = [0, 24], sizes = [8, 8], strides = [1, 1]} : vector<16x32xbf16> to vector<8x8xbf16>
    %1180 = vector.extract_strided_slice %1126 {offsets = [0, 24], sizes = [8, 8], strides = [1, 1]} : vector<16x32xbf16> to vector<8x8xbf16>
    %cst_524 = arith.constant dense<0.000000e+00> : vector<8x8xf32>
    %1181 = tpu.matmul %1178, %1179, %cst_524 {dimension_numbers = #tpu.dot_dimension_numbers<[1], [1], [0], [0], [0, 0, 1, 0], [], []>} : vector<8x8xbf16>, vector<8x8xbf16>, vector<8x8xf32> -> vector<8x8xf32>
    %cst_525 = arith.constant dense<0xFF800000> : vector<8xf32>
    %1182 = vector.multi_reduction <maximumf>, %1181, %cst_525 [1] : vector<8x8xf32> to vector<8xf32>
    %1183 = vector.shape_cast %1182 : vector<8xf32> to vector<8x1xf32>
    %1184 = vector.broadcast %1183 : vector<8x1xf32> to vector<8x8xf32>
    %1185 = arith.subf %1181, %1184 : vector<8x8xf32>
    %1186 = math.exp %1185 : vector<8x8xf32>
    %cst_526 = arith.constant dense<0.000000e+00> : vector<8xf32>
    %1187 = vector.multi_reduction <add>, %1186, %cst_526 [1] : vector<8x8xf32> to vector<8xf32>
    %1188 = vector.shape_cast %1187 : vector<8xf32> to vector<8x1xf32>
    %1189 = tpu.reciprocal %1188 {approx = true} : vector<8x1xf32> -> vector<8x1xf32>
    %1190 = vector.broadcast %1189 : vector<8x1xf32> to vector<8x8xf32>
    %1191 = arith.mulf %1186, %1190 : vector<8x8xf32>
    %1192 = arith.truncf %1191 : vector<8x8xf32> to vector<8x8xbf16>
    %cst_527 = arith.constant dense<0.000000e+00> : vector<8x8xf32>
    %1193 = tpu.matmul %1192, %1180, %cst_527 {dimension_numbers = #tpu.dot_dimension_numbers<[1], [0], [0], [1], [0, 0, 1, 1], [], []>} : vector<8x8xbf16>, vector<8x8xbf16>, vector<8x8xf32> -> vector<8x8xf32>
    %c0_528 = arith.constant 0 : index
    %c24_529 = arith.constant 24 : index
    %1194 = vector.load %arg37[%c0_528, %c24_529] : memref<16x32xf32, #tpu.memory_space<vmem>>, vector<8x8xf32>
    tpu.vector_store %arg37[%c0_528, %c24_529], %1193 {strides = array<i32>} : memref<16x32xf32, #tpu.memory_space<vmem>>, vector<8x8xf32>,
    %1195 = vector.extract_strided_slice %1122 {offsets = [8, 0], sizes = [8, 8], strides = [1, 1]} : vector<16x32xbf16> to vector<8x8xbf16>
    %1196 = vector.extract_strided_slice %1124 {offsets = [8, 0], sizes = [8, 8], strides = [1, 1]} : vector<16x32xbf16> to vector<8x8xbf16>
    %1197 = vector.extract_strided_slice %1126 {offsets = [8, 0], sizes = [8, 8], strides = [1, 1]} : vector<16x32xbf16> to vector<8x8xbf16>
    %cst_530 = arith.constant dense<0.000000e+00> : vector<8x8xf32>
    %1198 = tpu.matmul %1195, %1196, %cst_530 {dimension_numbers = #tpu.dot_dimension_numbers<[1], [1], [0], [0], [0, 0, 1, 0], [], []>} : vector<8x8xbf16>, vector<8x8xbf16>, vector<8x8xf32> -> vector<8x8xf32>
    %cst_531 = arith.constant dense<0xFF800000> : vector<8xf32>
    %1199 = vector.multi_reduction <maximumf>, %1198, %cst_531 [1] : vector<8x8xf32> to vector<8xf32>
    %1200 = vector.shape_cast %1199 : vector<8xf32> to vector<8x1xf32>
    %1201 = vector.broadcast %1200 : vector<8x1xf32> to vector<8x8xf32>
    %1202 = arith.subf %1198, %1201 : vector<8x8xf32>
    %1203 = math.exp %1202 : vector<8x8xf32>
    %cst_532 = arith.constant dense<0.000000e+00> : vector<8xf32>
    %1204 = vector.multi_reduction <add>, %1203, %cst_532 [1] : vector<8x8xf32> to vector<8xf32>
    %1205 = vector.shape_cast %1204 : vector<8xf32> to vector<8x1xf32>
    %1206 = tpu.reciprocal %1205 {approx = true} : vector<8x1xf32> -> vector<8x1xf32>
    %1207 = vector.broadcast %1206 : vector<8x1xf32> to vector<8x8xf32>
    %1208 = arith.mulf %1203, %1207 : vector<8x8xf32>
    %1209 = arith.truncf %1208 : vector<8x8xf32> to vector<8x8xbf16>
    %cst_533 = arith.constant dense<0.000000e+00> : vector<8x8xf32>
    %1210 = tpu.matmul %1209, %1197, %cst_533 {dimension_numbers = #tpu.dot_dimension_numbers<[1], [0], [0], [1], [0, 0, 1, 1], [], []>} : vector<8x8xbf16>, vector<8x8xbf16>, vector<8x8xf32> -> vector<8x8xf32>
    %c8_534 = arith.constant 8 : index
    %c0_535 = arith.constant 0 : index
    %1211 = vector.load %arg37[%c8_534, %c0_535] : memref<16x32xf32, #tpu.memory_space<vmem>>, vector<8x8xf32>
    tpu.vector_store %arg37[%c8_534, %c0_535], %1210 {strides = array<i32>} : memref<16x32xf32, #tpu.memory_space<vmem>>, vector<8x8xf32>,
    %1212 = vector.extract_strided_slice %1122 {offsets = [8, 8], sizes = [8, 8], strides = [1, 1]} : vector<16x32xbf16> to vector<8x8xbf16>
    %1213 = vector.extract_strided_slice %1124 {offsets = [8, 8], sizes = [8, 8], strides = [1, 1]} : vector<16x32xbf16> to vector<8x8xbf16>
    %1214 = vector.extract_strided_slice %1126 {offsets = [8, 8], sizes = [8, 8], strides = [1, 1]} : vector<16x32xbf16> to vector<8x8xbf16>
    %cst_536 = arith.constant dense<0.000000e+00> : vector<8x8xf32>
    %1215 = tpu.matmul %1212, %1213, %cst_536 {dimension_numbers = #tpu.dot_dimension_numbers<[1], [1], [0], [0], [0, 0, 1, 0], [], []>} : vector<8x8xbf16>, vector<8x8xbf16>, vector<8x8xf32> -> vector<8x8xf32>
    %cst_537 = arith.constant dense<0xFF800000> : vector<8xf32>
    %1216 = vector.multi_reduction <maximumf>, %1215, %cst_537 [1] : vector<8x8xf32> to vector<8xf32>
    %1217 = vector.shape_cast %1216 : vector<8xf32> to vector<8x1xf32>
    %1218 = vector.broadcast %1217 : vector<8x1xf32> to vector<8x8xf32>
    %1219 = arith.subf %1215, %1218 : vector<8x8xf32>
    %1220 = math.exp %1219 : vector<8x8xf32>
    %cst_538 = arith.constant dense<0.000000e+00> : vector<8xf32>
    %1221 = vector.multi_reduction <add>, %1220, %cst_538 [1] : vector<8x8xf32> to vector<8xf32>
    %1222 = vector.shape_cast %1221 : vector<8xf32> to vector<8x1xf32>
    %1223 = tpu.reciprocal %1222 {approx = true} : vector<8x1xf32> -> vector<8x1xf32>
    %1224 = vector.broadcast %1223 : vector<8x1xf32> to vector<8x8xf32>
    %1225 = arith.mulf %1220, %1224 : vector<8x8xf32>
    %1226 = arith.truncf %1225 : vector<8x8xf32> to vector<8x8xbf16>
    %cst_539 = arith.constant dense<0.000000e+00> : vector<8x8xf32>
    %1227 = tpu.matmul %1226, %1214, %cst_539 {dimension_numbers = #tpu.dot_dimension_numbers<[1], [0], [0], [1], [0, 0, 1, 1], [], []>} : vector<8x8xbf16>, vector<8x8xbf16>, vector<8x8xf32> -> vector<8x8xf32>
    %c8_540 = arith.constant 8 : index
    %c8_541 = arith.constant 8 : index
    %1228 = vector.load %arg37[%c8_540, %c8_541] : memref<16x32xf32, #tpu.memory_space<vmem>>, vector<8x8xf32>
    tpu.vector_store %arg37[%c8_540, %c8_541], %1227 {strides = array<i32>} : memref<16x32xf32, #tpu.memory_space<vmem>>, vector<8x8xf32>,
    %1229 = vector.extract_strided_slice %1122 {offsets = [8, 16], sizes = [8, 8], strides = [1, 1]} : vector<16x32xbf16> to vector<8x8xbf16>
    %1230 = vector.extract_strided_slice %1124 {offsets = [8, 16], sizes = [8, 8], strides = [1, 1]} : vector<16x32xbf16> to vector<8x8xbf16>
    %1231 = vector.extract_strided_slice %1126 {offsets = [8, 16], sizes = [8, 8], strides = [1, 1]} : vector<16x32xbf16> to vector<8x8xbf16>
    %cst_542 = arith.constant dense<0.000000e+00> : vector<8x8xf32>
    %1232 = tpu.matmul %1229, %1230, %cst_542 {dimension_numbers = #tpu.dot_dimension_numbers<[1], [1], [0], [0], [0, 0, 1, 0], [], []>} : vector<8x8xbf16>, vector<8x8xbf16>, vector<8x8xf32> -> vector<8x8xf32>
    %cst_543 = arith.constant dense<0xFF800000> : vector<8xf32>
    %1233 = vector.multi_reduction <maximumf>, %1232, %cst_543 [1] : vector<8x8xf32> to vector<8xf32>
    %1234 = vector.shape_cast %1233 : vector<8xf32> to vector<8x1xf32>
    %1235 = vector.broadcast %1234 : vector<8x1xf32> to vector<8x8xf32>
    %1236 = arith.subf %1232, %1235 : vector<8x8xf32>
    %1237 = math.exp %1236 : vector<8x8xf32>
    %cst_544 = arith.constant dense<0.000000e+00> : vector<8xf32>
    %1238 = vector.multi_reduction <add>, %1237, %cst_544 [1] : vector<8x8xf32> to vector<8xf32>
    %1239 = vector.shape_cast %1238 : vector<8xf32> to vector<8x1xf32>
    %1240 = tpu.reciprocal %1239 {approx = true} : vector<8x1xf32> -> vector<8x1xf32>
    %1241 = vector.broadcast %1240 : vector<8x1xf32> to vector<8x8xf32>
    %1242 = arith.mulf %1237, %1241 : vector<8x8xf32>
    %1243 = arith.truncf %1242 : vector<8x8xf32> to vector<8x8xbf16>
    %cst_545 = arith.constant dense<0.000000e+00> : vector<8x8xf32>
    %1244 = tpu.matmul %1243, %1231, %cst_545 {dimension_numbers = #tpu.dot_dimension_numbers<[1], [0], [0], [1], [0, 0, 1, 1], [], []>} : vector<8x8xbf16>, vector<8x8xbf16>, vector<8x8xf32> -> vector<8x8xf32>
    %c8_546 = arith.constant 8 : index
    %c16_547 = arith.constant 16 : index
    %1245 = vector.load %arg37[%c8_546, %c16_547] : memref<16x32xf32, #tpu.memory_space<vmem>>, vector<8x8xf32>
    tpu.vector_store %arg37[%c8_546, %c16_547], %1244 {strides = array<i32>} : memref<16x32xf32, #tpu.memory_space<vmem>>, vector<8x8xf32>,
    %1246 = vector.extract_strided_slice %1122 {offsets = [8, 24], sizes = [8, 8], strides = [1, 1]} : vector<16x32xbf16> to vector<8x8xbf16>
    %1247 = vector.extract_strided_slice %1124 {offsets = [8, 24], sizes = [8, 8], strides = [1, 1]} : vector<16x32xbf16> to vector<8x8xbf16>
    %1248 = vector.extract_strided_slice %1126 {offsets = [8, 24], sizes = [8, 8], strides = [1, 1]} : vector<16x32xbf16> to vector<8x8xbf16>
    %cst_548 = arith.constant dense<0.000000e+00> : vector<8x8xf32>
    %1249 = tpu.matmul %1246, %1247, %cst_548 {dimension_numbers = #tpu.dot_dimension_numbers<[1], [1], [0], [0], [0, 0, 1, 0], [], []>} : vector<8x8xbf16>, vector<8x8xbf16>, vector<8x8xf32> -> vector<8x8xf32>
    %cst_549 = arith.constant dense<0xFF800000> : vector<8xf32>
    %1250 = vector.multi_reduction <maximumf>, %1249, %cst_549 [1] : vector<8x8xf32> to vector<8xf32>
    %1251 = vector.shape_cast %1250 : vector<8xf32> to vector<8x1xf32>
    %1252 = vector.broadcast %1251 : vector<8x1xf32> to vector<8x8xf32>
    %1253 = arith.subf %1249, %1252 : vector<8x8xf32>
    %1254 = math.exp %1253 : vector<8x8xf32>
    %cst_550 = arith.constant dense<0.000000e+00> : vector<8xf32>
    %1255 = vector.multi_reduction <add>, %1254, %cst_550 [1] : vector<8x8xf32> to vector<8xf32>
    %1256 = vector.shape_cast %1255 : vector<8xf32> to vector<8x1xf32>
    %1257 = tpu.reciprocal %1256 {approx = true} : vector<8x1xf32> -> vector<8x1xf32>
    %1258 = vector.broadcast %1257 : vector<8x1xf32> to vector<8x8xf32>
    %1259 = arith.mulf %1254, %1258 : vector<8x8xf32>
    %1260 = arith.truncf %1259 : vector<8x8xf32> to vector<8x8xbf16>
    %cst_551 = arith.constant dense<0.000000e+00> : vector<8x8xf32>
    %1261 = tpu.matmul %1260, %1248, %cst_551 {dimension_numbers = #tpu.dot_dimension_numbers<[1], [0], [0], [1], [0, 0, 1, 1], [], []>} : vector<8x8xbf16>, vector<8x8xbf16>, vector<8x8xf32> -> vector<8x8xf32>
    %c8_552 = arith.constant 8 : index
    %c24_553 = arith.constant 24 : index
    %1262 = vector.load %arg37[%c8_552, %c24_553] : memref<16x32xf32, #tpu.memory_space<vmem>>, vector<8x8xf32>
    tpu.vector_store %arg37[%c8_552, %c24_553], %1261 {strides = array<i32>} : memref<16x32xf32, #tpu.memory_space<vmem>>, vector<8x8xf32>,
    %c0_554 = arith.constant 0 : index
    %c0_555 = arith.constant 0 : index
    %1263 = vector.load %arg37[%c0_554, %c0_555] : memref<16x32xf32, #tpu.memory_space<vmem>>, vector<16x32xf32>
    %1264 = arith.truncf %1263 : vector<16x32xf32> to vector<16x32xbf16>
    %cst_556 = arith.constant dense<0.000000e+00> : vector<16x32xf32>
    %1265 = tpu.matmul %1264, %1112, %cst_556 {dimension_numbers = #tpu.dot_dimension_numbers<[1], [0], [0], [1], [0, 0, 1, 1], [], []>} : vector<16x32xbf16>, vector<32x32xbf16>, vector<16x32xf32> -> vector<16x32xf32>
    %1266 = arith.addf %1265, %1104 : vector<16x32xf32>
    %cst_557 = arith.constant dense<0.000000e+00> : vector<16xf32>
    %1267 = vector.multi_reduction <add>, %1266, %cst_557 [1] : vector<16x32xf32> to vector<16xf32>
    %1268 = vector.shape_cast %1267 : vector<16xf32> to vector<16x1xf32>
    %cst_558 = arith.constant 3.200000e+01 : f32
    %1269 = vector.broadcast %cst_558 : f32 to vector<16x1xf32>
    %1270 = arith.divf %1268, %1269 : vector<16x1xf32>
    %1271 = vector.broadcast %1270 : vector<16x1xf32> to vector<16x32xf32>
    %1272 = arith.subf %1266, %1271 : vector<16x32xf32>
    %1273 = arith.mulf %1272, %1272 : vector<16x32xf32>
    %cst_559 = arith.constant dense<0.000000e+00> : vector<16xf32>
    %1274 = vector.multi_reduction <add>, %1273, %cst_559 [1] : vector<16x32xf32> to vector<16xf32>
    %1275 = vector.shape_cast %1274 : vector<16xf32> to vector<16x1xf32>
    %cst_560 = arith.constant 3.200000e+01 : f32
    %1276 = vector.broadcast %cst_560 : f32 to vector<16x1xf32>
    %1277 = arith.divf %1275, %1276 : vector<16x1xf32>
    %1278 = vector.broadcast %1270 : vector<16x1xf32> to vector<16x32xf32>
    %1279 = arith.subf %1266, %1278 : vector<16x32xf32>
    %cst_561 = arith.constant 9.99999997E-7 : f32
    %1280 = vector.broadcast %cst_561 : f32 to vector<16x1xf32>
    %1281 = arith.addf %1277, %1280 : vector<16x1xf32>
    %1282 = math.rsqrt %1281 : vector<16x1xf32>
    %1283 = vector.broadcast %1282 : vector<16x1xf32> to vector<16x32xf32>
    %1284 = arith.mulf %1279, %1283 : vector<16x32xf32>
    %1285 = vector.broadcast %1114 : vector<1x32xf32> to vector<16x32xf32>
    %1286 = arith.mulf %1284, %1285 : vector<16x32xf32>
    %1287 = vector.broadcast %1116 : vector<1x32xf32> to vector<16x32xf32>
    %1288 = arith.addf %1286, %1287 : vector<16x32xf32>
    %c1_562 = arith.constant 1 : index
    %c0_563 = arith.constant 0 : index
    %c0_564 = arith.constant 0 : index
    %1289 = vector.load %arg30[%c1_562, %c0_563, %c0_564] : memref<2x32x64xbf16, #tpu.memory_space<vmem>>, vector<1x32x64xbf16>
    %1290 = vector.shape_cast %1289 : vector<1x32x64xbf16> to vector<32x64xbf16>
    %c1_565 = arith.constant 1 : index
    %c0_566 = arith.constant 0 : index
    %c0_567 = arith.constant 0 : index
    %1291 = vector.load %arg31[%c1_565, %c0_566, %c0_567] : memref<2x1x64xf32, #tpu.memory_space<vmem>>, vector<1x1x64xf32>
    %1292 = vector.shape_cast %1291 : vector<1x1x64xf32> to vector<1x64xf32>
    %c1_568 = arith.constant 1 : index
    %c0_569 = arith.constant 0 : index
    %c0_570 = arith.constant 0 : index
    %1293 = vector.load %arg32[%c1_568, %c0_569, %c0_570] : memref<2x64x32xbf16, #tpu.memory_space<vmem>>, vector<1x64x32xbf16>
    %1294 = vector.shape_cast %1293 : vector<1x64x32xbf16> to vector<64x32xbf16>
    %c1_571 = arith.constant 1 : index
    %c0_572 = arith.constant 0 : index
    %c0_573 = arith.constant 0 : index
    %1295 = vector.load %arg33[%c1_571, %c0_572, %c0_573] : memref<2x1x32xf32, #tpu.memory_space<vmem>>, vector<1x1x32xf32>
    %1296 = vector.shape_cast %1295 : vector<1x1x32xf32> to vector<1x32xf32>
    %c1_574 = arith.constant 1 : index
    %c0_575 = arith.constant 0 : index
    %c0_576 = arith.constant 0 : index
    %1297 = vector.load %arg34[%c1_574, %c0_575, %c0_576] : memref<2x1x32xf32, #tpu.memory_space<vmem>>, vector<1x1x32xf32>
    %1298 = vector.shape_cast %1297 : vector<1x1x32xf32> to vector<1x32xf32>
    %c1_577 = arith.constant 1 : index
    %c0_578 = arith.constant 0 : index
    %c0_579 = arith.constant 0 : index
    %1299 = vector.load %arg35[%c1_577, %c0_578, %c0_579] : memref<2x1x32xf32, #tpu.memory_space<vmem>>, vector<1x1x32xf32>
    %1300 = vector.shape_cast %1299 : vector<1x1x32xf32> to vector<1x32xf32>
    %1301 = arith.truncf %1288 : vector<16x32xf32> to vector<16x32xbf16>
    %cst_580 = arith.constant dense<0.000000e+00> : vector<16x64xf32>
    %1302 = tpu.matmul %1301, %1290, %cst_580 {dimension_numbers = #tpu.dot_dimension_numbers<[1], [0], [0], [1], [0, 0, 1, 1], [], []>} : vector<16x32xbf16>, vector<32x64xbf16>, vector<16x64xf32> -> vector<16x64xf32>
    %1303 = vector.broadcast %1292 : vector<1x64xf32> to vector<16x64xf32>
    %1304 = arith.addf %1302, %1303 : vector<16x64xf32>
    %cst_581 = arith.constant 0.000000e+00 : f32
    %1305 = vector.broadcast %cst_581 : f32 to vector<16x64xf32>
    %1306 = arith.maximumf %1304, %1305 : vector<16x64xf32>
    %1307 = arith.truncf %1306 : vector<16x64xf32> to vector<16x64xbf16>
    %cst_582 = arith.constant dense<0.000000e+00> : vector<16x32xf32>
    %1308 = tpu.matmul %1307, %1294, %cst_582 {dimension_numbers = #tpu.dot_dimension_numbers<[1], [0], [0], [1], [0, 0, 1, 1], [], []>} : vector<16x64xbf16>, vector<64x32xbf16>, vector<16x32xf32> -> vector<16x32xf32>
    %1309 = vector.broadcast %1296 : vector<1x32xf32> to vector<16x32xf32>
    %1310 = arith.addf %1308, %1309 : vector<16x32xf32>
    %1311 = arith.addf %1310, %1288 : vector<16x32xf32>
    %cst_583 = arith.constant dense<0.000000e+00> : vector<16xf32>
    %1312 = vector.multi_reduction <add>, %1311, %cst_583 [1] : vector<16x32xf32> to vector<16xf32>
    %1313 = vector.shape_cast %1312 : vector<16xf32> to vector<16x1xf32>
    %cst_584 = arith.constant 3.200000e+01 : f32
    %1314 = vector.broadcast %cst_584 : f32 to vector<16x1xf32>
    %1315 = arith.divf %1313, %1314 : vector<16x1xf32>
    %1316 = vector.broadcast %1315 : vector<16x1xf32> to vector<16x32xf32>
    %1317 = arith.subf %1311, %1316 : vector<16x32xf32>
    %1318 = arith.mulf %1317, %1317 : vector<16x32xf32>
    %cst_585 = arith.constant dense<0.000000e+00> : vector<16xf32>
    %1319 = vector.multi_reduction <add>, %1318, %cst_585 [1] : vector<16x32xf32> to vector<16xf32>
    %1320 = vector.shape_cast %1319 : vector<16xf32> to vector<16x1xf32>
    %cst_586 = arith.constant 3.200000e+01 : f32
    %1321 = vector.broadcast %cst_586 : f32 to vector<16x1xf32>
    %1322 = arith.divf %1320, %1321 : vector<16x1xf32>
    %1323 = vector.broadcast %1315 : vector<16x1xf32> to vector<16x32xf32>
    %1324 = arith.subf %1311, %1323 : vector<16x32xf32>
    %cst_587 = arith.constant 9.99999997E-7 : f32
    %1325 = vector.broadcast %cst_587 : f32 to vector<16x1xf32>
    %1326 = arith.addf %1322, %1325 : vector<16x1xf32>
    %1327 = math.rsqrt %1326 : vector<16x1xf32>
    %1328 = vector.broadcast %1327 : vector<16x1xf32> to vector<16x32xf32>
    %1329 = arith.mulf %1324, %1328 : vector<16x32xf32>
    %1330 = vector.broadcast %1298 : vector<1x32xf32> to vector<16x32xf32>
    %1331 = arith.mulf %1329, %1330 : vector<16x32xf32>
    %1332 = vector.broadcast %1300 : vector<1x32xf32> to vector<16x32xf32>
    %1333 = arith.addf %1331, %1332 : vector<16x32xf32>
    %c0_588 = arith.constant 0 : index
    %c0_589 = arith.constant 0 : index
    %1334 = vector.load %arg36[%c0_588, %c0_589] : memref<16x32xf32, #tpu.memory_space<vmem>>, vector<16x32xf32>
    tpu.vector_store %arg36[%c0_588, %c0_589], %1333 {strides = array<i32>} : memref<16x32xf32, #tpu.memory_space<vmem>>, vector<16x32xf32>,
    return
  }
}

</mosaic_0001>

<llo_original>
// kernel: _lambda_.1
$region0: #{_lambda_.1}
  #allocation0 [shape = 'u32[]', space=smem, size = 0x4, offset = 0x4, fixed_abs, tag = 'smem constant byte address 0x4 - core index']
  #allocation1 [shape = 'u32[72,128]{1,0:T(1,128)}', space=vmem, size = 0x9000, scoped, tag = 'internal scratch']
  #allocation2 [shape = 'f32[16,32]{1,0:T(8,128)}', space=vmem, size = 0x2000, scoped, tag = 'scratch operand']
  %s0 = inlined_call_operand.smem [shape: u32[37], index: -1, kind: input, shape index: {}]
  %s1 = sld [smem:[%s0]]
  %s2 = scalar_lea.smem %s0, 1
  %s3 = sld [smem:[%s2]]
  %s4 = scalar_lea.smem %s0, 2
  %s5 = sld [smem:[%s4]]
  %s6 = scalar_lea.smem %s0, 3
  %s7 = sld [smem:[%s6]]
  %s8 = scalar_lea.smem %s0, 4
  %s9 = sld [smem:[%s8]]
  %s10 = scalar_lea.smem %s0, 5
  %s11 = sld [smem:[%s10]]
  %s12 = scalar_lea.smem %s0, 6
  %s13 = sld [smem:[%s12]]
  %s14 = scalar_lea.smem %s0, 7
  %s15 = sld [smem:[%s14]]
  %s16 = scalar_lea.smem %s0, 8
  %s17 = sld [smem:[%s16]]
  %s18 = scalar_lea.smem %s0, 9
  %s19 = sld [smem:[%s18]]
  %s20 = scalar_lea.smem %s0, 10
  %s21 = sld [smem:[%s20]]
  %s22 = scalar_lea.smem %s0, 11
  %s23 = sld [smem:[%s22]]
  %s24 = scalar_lea.smem %s0, 12
  %s25 = sld [smem:[%s24]]
  %s26 = scalar_lea.smem %s0, 13
  %s27 = sld [smem:[%s26]]
  %s28 = scalar_lea.smem %s0, 14
  %s29 = sld [smem:[%s28]]
  %s30 = scalar_lea.smem %s0, 15
  %s31 = sld [smem:[%s30]]
  %s32 = scalar_lea.smem %s0, 16
  %s33 = sld [smem:[%s32]]
  %s34 = scalar_lea.smem %s0, 17
  %s35 = sld [smem:[%s34]]
  %s36 = scalar_lea.smem %s0, 18
  %s37 = sld [smem:[%s36]]
  %s38 = scalar_lea.smem %s0, 19
  %s39 = sld [smem:[%s38]]
  %s40 = scalar_lea.smem %s0, 20
  %s41 = sld [smem:[%s40]]
  %s42 = scalar_lea.smem %s0, 21
  %s43 = sld [smem:[%s42]]
  %s44 = scalar_lea.smem %s0, 22
  %s45 = sld [smem:[%s44]]
  %s46 = scalar_lea.smem %s0, 23
  %s47 = sld [smem:[%s46]]
  %s48 = scalar_lea.smem %s0, 24
  %s49 = sld [smem:[%s48]]
  %s50 = scalar_lea.smem %s0, 25
  %s51 = sld [smem:[%s50]]
  %s52 = scalar_lea.smem %s0, 26
  %s53 = sld [smem:[%s52]]
  %s54 = scalar_lea.smem %s0, 27
  %s55 = sld [smem:[%s54]]
  %s56 = scalar_lea.smem %s0, 28
  %s57 = sld [smem:[%s56]]
  %s58 = scalar_lea.smem %s0, 29
  %s59 = sld [smem:[%s58]]
  %s60 = scalar_lea.smem %s0, 30
  %s61 = sld [smem:[%s60]]
  %s62 = scalar_lea.smem %s0, 31
  %s63 = sld [smem:[%s62]]
  %s64 = scalar_lea.smem %s0, 32
  %s65 = sld [smem:[%s64]]
  %s66 = scalar_lea.smem %s0, 33
  %s67 = sld [smem:[%s66]]
  %s68 = scalar_lea.smem %s0, 34
  %s69 = sld [smem:[%s68]]
  %s70 = scalar_lea.smem %s0, 35
  %s71 = sld [smem:[%s70]]
  %s72 = scalar_lea.smem %s0, 36
  %s73 = sld [smem:[%s72]]
  %s74 = sld [smem:[#allocation0]]
  $region190: #{_lambda_.1} parent=0
    _
  %s76 = ssub.s32 1, %s74
  %s77 = scalar_select 0, %s76, %s74
  $region1: #{_lambda_.1} parent=0
    #allocation3 [shape = 'u8[16384]{0}', space=vmem, size = 0x4000, scoped, tag = 'input window, operand 18, single buffered']
    #allocation4 [shape = 's32[1]{0}', space=sflag, size = 0x4, scoped, tag = 'scoped memory for _lambda_.1']
    #allocation5 [shape = 'u8[16384]{0}', space=vmem, size = 0x4000, scoped, tag = 'input window, operand 19, single buffered']
    #allocation6 [shape = 's32[1]{0}', space=sflag, size = 0x4, scoped, tag = 'scoped memory for _lambda_.1']
    #allocation7 [shape = 'u8[16384]{0}', space=vmem, size = 0x4000, scoped, tag = 'input window, operand 20, single buffered']
    #allocation8 [shape = 'u8[16384]{0}', space=vmem, size = 0x4000, scoped, tag = 'input window, operand 21, single buffered']
    #allocation9 [shape = 's32[1]{0}', space=sflag, size = 0x4, scoped, tag = 'scoped memory for _lambda_.1']
    #allocation10 [shape = 'u8[16384]{0}', space=vmem, size = 0x4000, scoped, tag = 'input window, operand 24, single buffered']
    #allocation11 [shape = 'u8[16384]{0}', space=vmem, size = 0x4000, scoped, tag = 'input window, operand 25, single buffered']
    #allocation12 [shape = 's32[1]{0}', space=sflag, size = 0x4, scoped, tag = 'scoped memory for _lambda_.1']
    #allocation13 [shape = 'u8[16384]{0}', space=vmem, size = 0x4000, scoped, tag = 'input window, operand 26, single buffered']
    #allocation14 [shape = 'u8[16384]{0}', space=vmem, size = 0x4000, scoped, tag = 'input window, operand 27, single buffered']
    #allocation15 [shape = 's32[1]{0}', space=sflag, size = 0x4, scoped, tag = 'scoped memory for _lambda_.1']
    #allocation16 [shape = 'u8[16384]{0}', space=vmem, size = 0x4000, scoped, tag = 'input window, operand 30, single buffered']
    %78 = vsyncpa [#allocation4], 0
    %79 = vsyncpa [#allocation6], 0
    %80 = vsyncpa [#allocation9], 0
    %81 = vsyncpa [#allocation12], 0
    %82 = vsyncpa [#allocation15], 0
    // Predicated region
    $region2: #{_lambda_.1} parent=1 // pred_check
      _
    $region3: #{_lambda_.1} parent=1 // pred_check_branch
      %84 = sbr.rel (0) target = $region5
    $region4: #{_lambda_.1} parent=1 // pred_region
      _
    $region5: #{_lambda_.1} parent=1 // pred_fallthru
      _
    // Predicated region
    $region6: #{_lambda_.1} parent=1 // pred_check
      _
    $region7: #{_lambda_.1} parent=1 // pred_check_branch
      %86 = sbr.rel (0) target = $region9
    $region8: #{_lambda_.1} parent=1 // pred_region
      _
    $region9: #{_lambda_.1} parent=1 // pred_fallthru
      _
    // Predicated region
    $region10: #{_lambda_.1} parent=1 // pred_check
      _
    $region11: #{_lambda_.1} parent=1 // pred_check_branch
      %88 = sbr.rel (0) target = $region13
    $region12: #{_lambda_.1} parent=1 // pred_region
      _
    $region13: #{_lambda_.1} parent=1 // pred_fallthru
      _
    // Predicated region
    $region14: #{_lambda_.1} parent=1 // pred_check
      _
    $region15: #{_lambda_.1} parent=1 // pred_check_branch
      %90 = sbr.rel (0) target = $region17
    $region16: #{_lambda_.1} parent=1 // pred_region
      _
    $region17: #{_lambda_.1} parent=1 // pred_fallthru
      _
    // Predicated region
    $region18: #{_lambda_.1} parent=1 // pred_check
      _
    $region19: #{_lambda_.1} parent=1 // pred_check_branch
      %92 = sbr.rel (0) target = $region21
    $region20: #{_lambda_.1} parent=1 // pred_region
      _
    $region21: #{_lambda_.1} parent=1 // pred_fallthru
      _
    // Predicated region
    $region22: #{_lambda_.1} parent=1 // pred_check
      _
    $region23: #{_lambda_.1} parent=1 // pred_check_branch
      %94 = sbr.rel (0) target = $region25
    $region24: #{_lambda_.1} parent=1 // pred_region
      _
    $region25: #{_lambda_.1} parent=1 // pred_fallthru
      _
    // Predicated region
    $region26: #{_lambda_.1} parent=1 // pred_check
      _
    $region27: #{_lambda_.1} parent=1 // pred_check_branch
      %96 = sbr.rel (0) target = $region29
    $region28: #{_lambda_.1} parent=1 // pred_region
      _
    $region29: #{_lambda_.1} parent=1 // pred_fallthru
      _
    // Predicated region
    $region30: #{_lambda_.1} parent=1 // pred_check
      _
    $region31: #{_lambda_.1} parent=1 // pred_check_branch
      %98 = sbr.rel (0) target = $region33
    $region32: #{_lambda_.1} parent=1 // pred_region
      _
    $region33: #{_lambda_.1} parent=1 // pred_fallthru
      _
    // Predicated region
    $region34: #{_lambda_.1} parent=1 // pred_check
      _
    $region35: #{_lambda_.1} parent=1 // pred_check_branch
      %100 = sbr.rel (0) target = $region37
    $region36: #{_lambda_.1} parent=1 // pred_region
      _
    $region37: #{_lambda_.1} parent=1 // pred_fallthru
      _
    // Predicated region
    $region38: #{_lambda_.1} parent=1 // pred_check
      _
    $region39: #{_lambda_.1} parent=1 // pred_check_branch
      %102 = sbr.rel (0) target = $region41
    $region40: #{_lambda_.1} parent=1 // pred_region
      _
    $region41: #{_lambda_.1} parent=1 // pred_fallthru
      _
    // Predicated region
    $region42: #{_lambda_.1} parent=1 // pred_check
      _
    $region43: #{_lambda_.1} parent=1 // pred_check_branch
      %104 = sbr.rel (0) target = $region45
    $region44: #{_lambda_.1} parent=1 // pred_region
      _
    $region45: #{_lambda_.1} parent=1 // pred_fallthru
      _
    // Predicated region
    $region46: #{_lambda_.1} parent=1 // pred_check
      _
    $region47: #{_lambda_.1} parent=1 // pred_check_branch
      %106 = sbr.rel (0) target = $region49
    $region48: #{_lambda_.1} parent=1 // pred_region
      _
    $region49: #{_lambda_.1} parent=1 // pred_fallthru
      _
    // Predicated region
    $region50: #{_lambda_.1} parent=1 // pred_check
      _
    $region51: #{_lambda_.1} parent=1 // pred_check_branch
      %108 = sbr.rel (0) target = $region53
    $region52: #{_lambda_.1} parent=1 // pred_region
      _
    $region53: #{_lambda_.1} parent=1 // pred_fallthru
      _
    // Predicated region
    $region54: #{_lambda_.1} parent=1 // pred_check
      _
    $region55: #{_lambda_.1} parent=1 // pred_check_branch
      %110 = sbr.rel (0) target = $region57
    $region56: #{_lambda_.1} parent=1 // pred_region
      _
    $region57: #{_lambda_.1} parent=1 // pred_fallthru
      _
    // Predicated region
    $region58: #{_lambda_.1} parent=1 // pred_check
      _
    $region59: #{_lambda_.1} parent=1 // pred_check_branch
      %112 = sbr.rel (0) target = $region61
    $region60: #{_lambda_.1} parent=1 // pred_region
      _
    $region61: #{_lambda_.1} parent=1 // pred_fallthru
      _
    // Predicated region
    $region62: #{_lambda_.1} parent=1 // pred_check
      _
    $region63: #{_lambda_.1} parent=1 // pred_check_branch
      %114 = sbr.rel (0) target = $region65
    $region64: #{_lambda_.1} parent=1 // pred_region
      _
    $region65: #{_lambda_.1} parent=1 // pred_fallthru
      _
    // Predicated region
    $region66: #{_lambda_.1} parent=1 // pred_check
      _
    $region67: #{_lambda_.1} parent=1 // pred_check_branch
      %116 = sbr.rel (0) target = $region69
    $region68: #{_lambda_.1} parent=1 // pred_region
      _
    $region69: #{_lambda_.1} parent=1 // pred_fallthru
      _
    // Predicated region
    $region70: #{_lambda_.1} parent=1 // pred_check
      _
    $region71: #{_lambda_.1} parent=1 // pred_check_branch
      %118 = sbr.rel (0) target = $region73
    $region72: #{_lambda_.1} parent=1 // pred_region
      _
    $region73: #{_lambda_.1} parent=1 // pred_fallthru
      _
    // Predicated region
    $region74: #{_lambda_.1} parent=1 // pred_check
      _
    $region75: #{_lambda_.1} parent=1 // pred_check_branch
      %120 = sbr.rel (0) target = $region77
    $region76: #{_lambda_.1} parent=1 // pred_region
      %122 = vsyncadd [#allocation4], 0
      %s123 = sshll.u32 %s37, 4
      %s124 = int_to_ptr.hbm [resolvable:$true] %s123
      %s125 = sshll.u32 [#allocation3], 4
      %s126 = int_to_ptr.vmem [resolvable:$true] %s125
      %131 = dma.hbm_to_vmem [thread:$0]  %s124, 512, %s126, [#allocation4], 64, 64, 4
    $region77: #{_lambda_.1} parent=1 // pred_fallthru
      _
    // Predicated region
    $region78: #{_lambda_.1} parent=1 // pred_check
      _
    $region79: #{_lambda_.1} parent=1 // pred_check_branch
      %133 = sbr.rel (0) target = $region81
    $region80: #{_lambda_.1} parent=1 // pred_region
      %135 = vsyncadd [#allocation6], 0
      %s136 = sshll.u32 %s39, 4
      %s137 = int_to_ptr.hbm [resolvable:$true] %s136
      %s138 = sshll.u32 [#allocation5], 4
      %s139 = int_to_ptr.vmem [resolvable:$true] %s138
      %144 = dma.hbm_to_vmem [thread:$0]  %s137, 512, %s139, [#allocation6], 64, 64, 4
    $region81: #{_lambda_.1} parent=1 // pred_fallthru
      _
    // Predicated region
    $region82: #{_lambda_.1} parent=1 // pred_check
      _
    $region83: #{_lambda_.1} parent=1 // pred_check_branch
      %146 = sbr.rel (0) target = $region85
    $region84: #{_lambda_.1} parent=1 // pred_region
      %148 = vsyncadd [#allocation6], 0
      %s149 = sshll.u32 %s41, 4
      %s150 = int_to_ptr.hbm [resolvable:$true] %s149
      %s151 = sshll.u32 [#allocation7], 4
      %s152 = int_to_ptr.vmem [resolvable:$true] %s151
      %157 = dma.hbm_to_vmem [thread:$0]  %s150, 512, %s152, [#allocation6], 64, 64, 4
    $region85: #{_lambda_.1} parent=1 // pred_fallthru
      _
    // Predicated region
    $region86: #{_lambda_.1} parent=1 // pred_check
      _
    $region87: #{_lambda_.1} parent=1 // pred_check_branch
      %159 = sbr.rel (0) target = $region89
    $region88: #{_lambda_.1} parent=1 // pred_region
      %161 = vsyncadd [#allocation9], 0
      %s162 = sshll.u32 %s43, 4
      %s163 = int_to_ptr.hbm [resolvable:$true] %s162
      %s164 = sshll.u32 [#allocation8], 4
      %s165 = int_to_ptr.vmem [resolvable:$true] %s164
      %170 = dma.hbm_to_vmem [thread:$0]  %s163, 512, %s165, [#allocation9], 64, 64, 4
    $region89: #{_lambda_.1} parent=1 // pred_fallthru
      _
    // Predicated region
    $region90: #{_lambda_.1} parent=1 // pred_check
      _
    $region91: #{_lambda_.1} parent=1 // pred_check_branch
      %172 = sbr.rel (0) target = $region93
    $region92: #{_lambda_.1} parent=1 // pred_region
      _
    $region93: #{_lambda_.1} parent=1 // pred_fallthru
      _
    // Predicated region
    $region94: #{_lambda_.1} parent=1 // pred_check
      _
    $region95: #{_lambda_.1} parent=1 // pred_check_branch
      %174 = sbr.rel (0) target = $region97
    $region96: #{_lambda_.1} parent=1 // pred_region
      _
    $region97: #{_lambda_.1} parent=1 // pred_fallthru
      _
    // Predicated region
    $region98: #{_lambda_.1} parent=1 // pred_check
      _
    $region99: #{_lambda_.1} parent=1 // pred_check_branch
      %176 = sbr.rel (0) target = $region101
    $region100: #{_lambda_.1} parent=1 // pred_region
      %178 = vsyncadd [#allocation9], 0
      %s179 = sshll.u32 %s49, 4
      %s180 = int_to_ptr.hbm [resolvable:$true] %s179
      %s181 = sshll.u32 [#allocation10], 4
      %s182 = int_to_ptr.vmem [resolvable:$true] %s181
      %187 = dma.hbm_to_vmem [thread:$0]  %s180, 512, %s182, [#allocation9], 64, 64, 4
    $region101: #{_lambda_.1} parent=1 // pred_fallthru
      _
    // Predicated region
    $region102: #{_lambda_.1} parent=1 // pred_check
      _
    $region103: #{_lambda_.1} parent=1 // pred_check_branch
      %189 = sbr.rel (0) target = $region105
    $region104: #{_lambda_.1} parent=1 // pred_region
      %191 = vsyncadd [#allocation12], 0
      %s192 = sshll.u32 %s51, 4
      %s193 = int_to_ptr.hbm [resolvable:$true] %s192
      %s194 = sshll.u32 [#allocation11], 4
      %s195 = int_to_ptr.vmem [resolvable:$true] %s194
      %200 = dma.hbm_to_vmem [thread:$0]  %s193, 512, %s195, [#allocation12], 64, 64, 4
    $region105: #{_lambda_.1} parent=1 // pred_fallthru
      _
    // Predicated region
    $region106: #{_lambda_.1} parent=1 // pred_check
      _
    $region107: #{_lambda_.1} parent=1 // pred_check_branch
      %202 = sbr.rel (0) target = $region109
    $region108: #{_lambda_.1} parent=1 // pred_region
      %204 = vsyncadd [#allocation12], 0
      %s205 = sshll.u32 %s53, 4
      %s206 = int_to_ptr.hbm [resolvable:$true] %s205
      %s207 = sshll.u32 [#allocation13], 4
      %s208 = int_to_ptr.vmem [resolvable:$true] %s207
      %213 = dma.hbm_to_vmem [thread:$0]  %s206, 512, %s208, [#allocation12], 64, 64, 4
    $region109: #{_lambda_.1} parent=1 // pred_fallthru
      _
    // Predicated region
    $region110: #{_lambda_.1} parent=1 // pred_check
      _
    $region111: #{_lambda_.1} parent=1 // pred_check_branch
      %215 = sbr.rel (0) target = $region113
    $region112: #{_lambda_.1} parent=1 // pred_region
      %217 = vsyncadd [#allocation15], 0
      %s218 = sshll.u32 %s55, 4
      %s219 = int_to_ptr.hbm [resolvable:$true] %s218
      %s220 = sshll.u32 [#allocation14], 4
      %s221 = int_to_ptr.vmem [resolvable:$true] %s220
      %226 = dma.hbm_to_vmem [thread:$0]  %s219, 512, %s221, [#allocation15], 64, 64, 4
    $region113: #{_lambda_.1} parent=1 // pred_fallthru
      _
    // Predicated region
    $region114: #{_lambda_.1} parent=1 // pred_check
      _
    $region115: #{_lambda_.1} parent=1 // pred_check_branch
      %228 = sbr.rel (0) target = $region117
    $region116: #{_lambda_.1} parent=1 // pred_region
      _
    $region117: #{_lambda_.1} parent=1 // pred_fallthru
      _
    // Predicated region
    $region118: #{_lambda_.1} parent=1 // pred_check
      _
    $region119: #{_lambda_.1} parent=1 // pred_check_branch
      %230 = sbr.rel (0) target = $region121
    $region120: #{_lambda_.1} parent=1 // pred_region
      _
    $region121: #{_lambda_.1} parent=1 // pred_fallthru
      _
    // Predicated region
    $region122: #{_lambda_.1} parent=1 // pred_check
      _
    $region123: #{_lambda_.1} parent=1 // pred_check_branch
      %232 = sbr.rel (0) target = $region125
    $region124: #{_lambda_.1} parent=1 // pred_region
      %234 = vsyncadd [#allocation15], 0
      %s235 = sshll.u32 %s61, 4
      %s236 = int_to_ptr.hbm [resolvable:$true] %s235
      %s237 = sshll.u32 [#allocation16], 4
      %s238 = int_to_ptr.vmem [resolvable:$true] %s237
      %243 = dma.hbm_to_vmem [thread:$0]  %s236, 512, %s238, [#allocation15], 64, 64, 4
    $region125: #{_lambda_.1} parent=1 // pred_fallthru
      _
    // Predicated region
    $region126: #{_lambda_.1} parent=1 // pred_check
      _
    $region127: #{_lambda_.1} parent=1 // pred_check_branch
      %245 = sbr.rel (0) target = $region129
    $region128: #{_lambda_.1} parent=1 // pred_region
      _
    $region129: #{_lambda_.1} parent=1 // pred_fallthru
      _
    // Predicated region
    $region130: #{_lambda_.1} parent=1 // pred_check
      _
    $region131: #{_lambda_.1} parent=1 // pred_check_branch
      %247 = sbr.rel (0) target = $region133
    $region132: #{_lambda_.1} parent=1 // pred_region
      _
    $region133: #{_lambda_.1} parent=1 // pred_fallthru
      _
    // Predicated region
    $region134: #{_lambda_.1} parent=1 // pred_check
      _
    $region135: #{_lambda_.1} parent=1 // pred_check_branch
      %249 = sbr.rel (0) target = $region137
    $region136: #{_lambda_.1} parent=1 // pred_region
      _
    $region137: #{_lambda_.1} parent=1 // pred_fallthru
      _
    // Predicated region
    $region138: #{_lambda_.1} parent=1 // pred_check
      _
    $region139: #{_lambda_.1} parent=1 // pred_check_branch
      %251 = sbr.rel (0) target = $region141
    $region140: #{_lambda_.1} parent=1 // pred_region
      _
    $region141: #{_lambda_.1} parent=1 // pred_fallthru
      _
    // Predicated region
    $region142: #{_lambda_.1} parent=1 // pred_check
      _
    $region143: #{_lambda_.1} parent=1 // pred_check_branch
      %253 = sbr.rel (0) target = $region145
    $region144: #{_lambda_.1} parent=1 // pred_region
      _
    $region145: #{_lambda_.1} parent=1 // pred_fallthru
      _
    // Predicated region
    $region146: #{_lambda_.1} parent=1 // pred_check
      _
    $region147: #{_lambda_.1} parent=1 // pred_check_branch
      %255 = sbr.rel (0) target = $region149
    $region148: #{_lambda_.1} parent=1 // pred_region
      %257 = dma.done [#allocation4], 512
    $region149: #{_lambda_.1} parent=1 // pred_fallthru
      _
    // Predicated region
    $region150: #{_lambda_.1} parent=1 // pred_check
      _
    $region151: #{_lambda_.1} parent=1 // pred_check_branch
      %259 = sbr.rel (0) target = $region153
    $region152: #{_lambda_.1} parent=1 // pred_region
      %261 = dma.done [#allocation6], 512
    $region153: #{_lambda_.1} parent=1 // pred_fallthru
      _
    // Predicated region
    $region154: #{_lambda_.1} parent=1 // pred_check
      _
    $region155: #{_lambda_.1} parent=1 // pred_check_branch
      %263 = sbr.rel (0) target = $region157
    $region156: #{_lambda_.1} parent=1 // pred_region
      %265 = dma.done [#allocation6], 512
    $region157: #{_lambda_.1} parent=1 // pred_fallthru
      _
    // Predicated region
    $region158: #{_lambda_.1} parent=1 // pred_check
      _
    $region159: #{_lambda_.1} parent=1 // pred_check_branch
      %267 = sbr.rel (0) target = $region161
    $region160: #{_lambda_.1} parent=1 // pred_region
      %269 = dma.done [#allocation9], 512
    $region161: #{_lambda_.1} parent=1 // pred_fallthru
      _
    // Predicated region
    $region162: #{_lambda_.1} parent=1 // pred_check
      _
    $region163: #{_lambda_.1} parent=1 // pred_check_branch
      %271 = sbr.rel (0) target = $region165
    $region164: #{_lambda_.1} parent=1 // pred_region
      %273 = dma.done [#allocation9], 512
    $region165: #{_lambda_.1} parent=1 // pred_fallthru
      _
    // Predicated region
    $region166: #{_lambda_.1} parent=1 // pred_check
      _
    $region167: #{_lambda_.1} parent=1 // pred_check_branch
      %275 = sbr.rel (0) target = $region169
    $region168: #{_lambda_.1} parent=1 // pred_region
      %277 = dma.done [#allocation12], 512
    $region169: #{_lambda_.1} parent=1 // pred_fallthru
      _
    // Predicated region
    $region170: #{_lambda_.1} parent=1 // pred_check
      _
    $region171: #{_lambda_.1} parent=1 // pred_check_branch
      %279 = sbr.rel (0) target = $region173
    $region172: #{_lambda_.1} parent=1 // pred_region
      %281 = dma.done [#allocation12], 512
    $region173: #{_lambda_.1} parent=1 // pred_fallthru
      _
    // Predicated region
    $region174: #{_lambda_.1} parent=1 // pred_check
      _
    $region175: #{_lambda_.1} parent=1 // pred_check_branch
      %283 = sbr.rel (0) target = $region177
    $region176: #{_lambda_.1} parent=1 // pred_region
      %285 = dma.done [#allocation15], 512
    $region177: #{_lambda_.1} parent=1 // pred_fallthru
      _
    // Predicated region
    $region178: #{_lambda_.1} parent=1 // pred_check
      _
    $region179: #{_lambda_.1} parent=1 // pred_check_branch
      %287 = sbr.rel (0) target = $region181
    $region180: #{_lambda_.1} parent=1 // pred_region
      %289 = dma.done [#allocation15], 512
    $region181: #{_lambda_.1} parent=1 // pred_fallthru
      _
    %v291 = vld [vmem:[%s3] sm:$0x1]
    %v292 = vld [vmem:[%s5] sm:$0x1]
    %v293 = vld [vmem:[%s33] sm:$0x1]
    %v294 = vld [vmem:[%s35] sm:$0x1]
    %v295 = vld [vmem:[%s1] sm:$0xff]
    %v296 = vld [vmem:[%s1 + $0x8] sm:$0xff]
    %vm297 = vcmask 261120
    %v298 = vsel %vm297, %v295, 0.0
    %299 = vadd.xlane.f32.xlu0 %v298
    %v300 = vpop.xlane.xlu0 %299
    %v301 = vsel %vm297, %v296, 0.0
    %302 = vadd.xlane.f32.xlu0 %v301
    %v303 = vpop.xlane.xlu0 %302
    %v304 = vrcp.pop 32.0
    %v305 = vmul.f32 32.0, %v304
    %v306 = vsub.f32 1.0, %v305
    %v307 = vmul.f32 %v304, %v306
    %v308 = vadd.f32 %v304, %v307
    %vm309 = vweird.f32 %v304
    %v310 = vsel %vm309, %v304, %v308
    %v311 = vmul.f32 %v300, %v310
    %v312 = vmul.f32 %v303, %v310
    %v313 = vsub.f32 %v295, %v311
    %v314 = vsub.f32 %v296, %v312
    %v315 = vmul.f32 %v313, %v313
    %v316 = vmul.f32 %v314, %v314
    %v317 = vsel %vm297, %v315, 0.0
    %318 = vadd.xlane.f32.xlu0 %v317
    %v319 = vpop.xlane.xlu0 %318
    %v320 = vsel %vm297, %v316, 0.0
    %321 = vadd.xlane.f32.xlu0 %v320
    %v322 = vpop.xlane.xlu0 %321
    %v323 = vmul.f32 %v319, %v310
    %v324 = vmul.f32 %v322, %v310
    %v325 = vadd.f32 %v323, 1e-06
    %v326 = vadd.f32 %v324, 1e-06
    %v327 = vrsqrt.pop %v325
    %v328 = vmul.f32 %v327, %v325
    %v329 = vmul.f32 %v328, %v327
    %v330 = vmul.f32 0.5, %v329
    %v331 = vsub.f32 1.5, %v330
    %v332 = vmul.f32 %v327, %v331
    %vm333 = vweird.f32 %v325
    %vm334 = vweird.f32 %v327
    %vm335 = vmor %vm333, %vm334
    %v336 = vsel %vm335, %v327, %v332
    %v337 = vrsqrt.pop %v326
    %v338 = vmul.f32 %v337, %v326
    %v339 = vmul.f32 %v338, %v337
    %v340 = vmul.f32 0.5, %v339
    %v341 = vsub.f32 1.5, %v340
    %v342 = vmul.f32 %v337, %v341
    %vm343 = vweird.f32 %v326
    %vm344 = vweird.f32 %v337
    %vm345 = vmor %vm343, %vm344
    %v346 = vsel %vm345, %v337, %v342
    %v347 = vmul.f32 %v313, %v336
    %v348 = vmul.f32 %v314, %v346
    %v350 = vperm.slane %v291, 0
    %v352 = vmul.f32 %v347, %v350
    %v353 = vmul.f32 %v348, %v350
    %v355 = vperm.slane %v292, 0
    %v357 = vadd.f32 %v352, %v355
    %v358 = vadd.f32 %v353, %v355
    %v359 = vld [vmem:[%s7] sm:$0xf]
    %v360 = vld [vmem:[%s7 + $0x4] sm:$0xf]
    %v361 = vld [vmem:[%s7 + $0x8] sm:$0xf]
    %v362 = vld [vmem:[%s7 + $0xc] sm:$0xf]
    %v363 = vld [vmem:[%s9] sm:$0xf]
    %v364 = vld [vmem:[%s9 + $0x4] sm:$0xf]
    %v365 = vld [vmem:[%s9 + $0x8] sm:$0xf]
    %v366 = vld [vmem:[%s9 + $0xc] sm:$0xf]
    %v367 = vld [vmem:[%s11] sm:$0xf]
    %v368 = vld [vmem:[%s11 + $0x4] sm:$0xf]
    %v369 = vld [vmem:[%s11 + $0x8] sm:$0xf]
    %v370 = vld [vmem:[%s11 + $0xc] sm:$0xf]
    %v371 = vld [vmem:[%s13] sm:$0xf]
    %v372 = vld [vmem:[%s13 + $0x4] sm:$0xf]
    %v373 = vld [vmem:[%s13 + $0x8] sm:$0xf]
    %v374 = vld [vmem:[%s13 + $0xc] sm:$0xf]
    %v375 = vld [vmem:[%s15] sm:$0x1]
    %v376 = vld [vmem:[%s17] sm:$0x1]
    %v377 = vpack.c.bf16 %v358, %v357
    %v382 = vunpack.c.l.b16 %v359
    %v383 = vunpack.c.l.b16 %v360
    %v384 = vunpack.c.l.b16 %v361
    %v385 = vunpack.c.l.b16 %v362
    %v386 = vpack.c.b16 %v383, %v382
    %v387 = vpack.c.b16 %v385, %v384
    %v391 = vsel %vm297, %v377, 0
    %393 = vmatpush.bf16.msra.mxu0 0
    %394 = vmatpush.bf16.msra.mxu0 0
    %395 = vmatpush.bf16.msra.mxu0 0
    %396 = vmatpush.bf16.msra.mxu0 0
    %397 = vmatpush.bf16.msra.mxu0 0
    %398 = vmatpush.bf16.msra.mxu0 0
    %399 = vmatpush.bf16.msra.mxu0 %v387
    %400 = vmatpush.bf16.msra.mxu0 %v386
    %401 = vmatmul.bf16.gmra.mxu0 %v391
    %v402 = vpop.f32.mrf.mxu0
    %v403 = vadd.f32 0.0, %v402
    %v404 = vpop.f32.mrf.mxu0
    %v405 = vadd.f32 0.0, %v404
    %406 = vdwg.mxu0
    %v407 = vmul.f32 %v403, 0.35355338
    %v408 = vmul.f32 %v405, 0.35355338
    %v409 = vpack.c.bf16 %v407, %v407
    %v410 = vpack.c.bf16 %v408, %v408
    %v415 = vunpack.c.l.b16 %v363
    %v416 = vunpack.c.l.b16 %v364
    %v417 = vunpack.c.l.b16 %v365
    %v418 = vunpack.c.l.b16 %v366
    %v419 = vpack.c.b16 %v416, %v415
    %v420 = vpack.c.b16 %v418, %v417
    %423 = vmatpush.bf16.msra.mxu0 0
    %424 = vmatpush.bf16.msra.mxu0 0
    %425 = vmatpush.bf16.msra.mxu0 0
    %426 = vmatpush.bf16.msra.mxu0 0
    %427 = vmatpush.bf16.msra.mxu0 0
    %428 = vmatpush.bf16.msra.mxu0 0
    %429 = vmatpush.bf16.msra.mxu0 %v420
    %430 = vmatpush.bf16.msra.mxu0 %v419
    %431 = vmatmul.bf16.gmra.mxu0 %v391
    %v432 = vpop.f32.mrf.mxu0
    %v433 = vadd.f32 0.0, %v432
    %v434 = vpop.f32.mrf.mxu0
    %v435 = vadd.f32 0.0, %v434
    %436 = vdwg.mxu0
    %v437 = vpack.c.bf16 %v433, %v433
    %v438 = vpack.c.bf16 %v435, %v435
    %v443 = vunpack.c.l.b16 %v367
    %v444 = vunpack.c.l.b16 %v368
    %v445 = vunpack.c.l.b16 %v369
    %v446 = vunpack.c.l.b16 %v370
    %v447 = vpack.c.b16 %v444, %v443
    %v448 = vpack.c.b16 %v446, %v445
    %451 = vmatpush.bf16.msra.mxu0 0
    %452 = vmatpush.bf16.msra.mxu0 0
    %453 = vmatpush.bf16.msra.mxu0 0
    %454 = vmatpush.bf16.msra.mxu0 0
    %455 = vmatpush.bf16.msra.mxu0 0
    %456 = vmatpush.bf16.msra.mxu0 0
    %457 = vmatpush.bf16.msra.mxu0 %v448
    %458 = vmatpush.bf16.msra.mxu0 %v447
    %459 = vmatmul.bf16.gmra.mxu0 %v391
    %v460 = vpop.f32.mrf.mxu0
    %v461 = vadd.f32 0.0, %v460
    %v462 = vpop.f32.mrf.mxu0
    %v463 = vadd.f32 0.0, %v462
    %464 = vdwg.mxu0
    %v465 = vpack.c.bf16 %v461, %v461
    %v466 = vpack.c.bf16 %v463, %v463
    %vm467 = vcmask 64512
    %v469 = vsel %vm467, %v409, 0
    %v472 = vsel %vm467, %v437, 0
    %474 = vmatpush.bf16.xpose.msra.mxu0 0
    %475 = vmatpush.bf16.xpose.msra.mxu0 0
    %476 = vmatpush.bf16.xpose.msra.mxu0 0
    %477 = vmatpush.bf16.xpose.msra.mxu0 0
    %478 = vmatpush.bf16.xpose.msra.mxu0 0
    %479 = vmatpush.bf16.xpose.msra.mxu0 0
    %480 = vmatpush.bf16.xpose.msra.mxu0 0
    %481 = vmatpush.bf16.xpose.msra.mxu0 %v472
    %482 = vmatmul.bf16.gmra.mxu0 %v469
    %v483 = vpop.f32.mrf.mxu0
    %v484 = vadd.f32 0.0, %v483
    %v485 = vpop.f32.mrf.mxu0
    %486 = vdwg.mxu0
    %v487 = vsel %vm467, %v484, -inf
    %488 = vmax.xlane.f32.xlu0 %v487
    %v489 = vpop.xlane.xlu0 %488
    %v490 = vsub.f32 %v484, %v489
    %v491 = vmul.f32 %v490, 1.442695
    %v492 = vpow.pop %v491
    %v493 = vsel %vm467, %v492, 0.0
    %494 = vadd.xlane.f32.xlu0 %v493
    %v495 = vpop.xlane.xlu0 %494
    %v496 = vrcp.pop %v495
    %v497 = vmul.f32 %v492, %v496
    %v498 = vpack.c.bf16 %v497, %v497
    %v500 = vsel %vm467, %v498, 0
    %vm502 = vcmask 1043456
    %v504 = vsel %vm502, %v465, 0
    %506 = vmatpush.bf16.msra.mxu0 0
    %507 = vmatpush.bf16.msra.mxu0 0
    %508 = vmatpush.bf16.msra.mxu0 0
    %509 = vmatpush.bf16.msra.mxu0 0
    %510 = vmatpush.bf16.msra.mxu0 0
    %511 = vmatpush.bf16.msra.mxu0 0
    %512 = vmatpush.bf16.msra.mxu0 0
    %513 = vmatpush.bf16.msra.mxu0 %v504
    %514 = vmatmul.bf16.gmra.mxu0 %v500
    %v515 = vpop.f32.mrf.mxu0
    %v516 = vadd.f32 0.0, %v515
    %v517 = vpop.f32.mrf.mxu0
    %518 = vdwg.mxu0
    %519 = vst.msk [vmem:[#allocation2] sm:$0xff] %vm467, %v516
    %v521 = vunpack.c.l.b16 %v409
    %v522 = vpack.c.b16 %v521, %v521
    %523 = vrot.lane.b32.xlu0 %v522, 120
    %v524 = vpop.permute.xlu0 %523
    %v526 = vunpack.c.l.b16 %v437
    %v527 = vpack.c.b16 %v526, %v526
    %528 = vrot.lane.b32.xlu0 %v527, 120
    %v529 = vpop.permute.xlu0 %528
    %v531 = vsel %vm467, %v524, 0
    %v534 = vsel %vm467, %v529, 0
    %536 = vmatpush.bf16.xpose.msra.mxu0 0
    %537 = vmatpush.bf16.xpose.msra.mxu0 0
    %538 = vmatpush.bf16.xpose.msra.mxu0 0
    %539 = vmatpush.bf16.xpose.msra.mxu0 0
    %540 = vmatpush.bf16.xpose.msra.mxu0 0
    %541 = vmatpush.bf16.xpose.msra.mxu0 0
    %542 = vmatpush.bf16.xpose.msra.mxu0 0
    %543 = vmatpush.bf16.xpose.msra.mxu0 %v534
    %544 = vmatmul.bf16.gmra.mxu0 %v531
    %v545 = vpop.f32.mrf.mxu0
    %v546 = vadd.f32 0.0, %v545
    %v547 = vpop.f32.mrf.mxu0
    %548 = vdwg.mxu0
    %v549 = vsel %vm467, %v546, -inf
    %550 = vmax.xlane.f32.xlu0 %v549
    %v551 = vpop.xlane.xlu0 %550
    %v552 = vsub.f32 %v546, %v551
    %v553 = vmul.f32 %v552, 1.442695
    %v554 = vpow.pop %v553
    %v555 = vsel %vm467, %v554, 0.0
    %556 = vadd.xlane.f32.xlu0 %v555
    %v557 = vpop.xlane.xlu0 %556
    %v558 = vrcp.pop %v557
    %v559 = vmul.f32 %v554, %v558
    %v560 = vpack.c.bf16 %v559, %v559
    %v562 = vunpack.c.l.b16 %v465
    %v563 = vpack.c.b16 %v562, %v562
    %564 = vrot.lane.b32.xlu0 %v563, 120
    %v565 = vpop.permute.xlu0 %564
    %v567 = vsel %vm467, %v560, 0
    %v570 = vsel %vm502, %v565, 0
    %572 = vmatpush.bf16.msra.mxu0 0
    %573 = vmatpush.bf16.msra.mxu0 0
    %574 = vmatpush.bf16.msra.mxu0 0
    %575 = vmatpush.bf16.msra.mxu0 0
    %576 = vmatpush.bf16.msra.mxu0 0
    %577 = vmatpush.bf16.msra.mxu0 0
    %578 = vmatpush.bf16.msra.mxu0 0
    %579 = vmatpush.bf16.msra.mxu0 %v570
    %580 = vmatmul.bf16.gmra.mxu0 %v567
    %v581 = vpop.f32.mrf.mxu0
    %v582 = vadd.f32 0.0, %v581
    %v583 = vpop.f32.mrf.mxu0
    %584 = vdwg.mxu0
    %586 = vrot.lane.b32.xlu0 %v582, 8
    %v587 = vpop.permute.xlu0 %586
    %vm589 = vcmask 130112
    %590 = vst.msk [vmem:[#allocation2] sm:$0xff] %vm589, %v587
    %591 = vrot.lane.b32.xlu0 %v522, 112
    %v592 = vpop.permute.xlu0 %591
    %593 = vrot.lane.b32.xlu0 %v527, 112
    %v594 = vpop.permute.xlu0 %593
    %v596 = vsel %vm467, %v592, 0
    %v599 = vsel %vm467, %v594, 0
    %601 = vmatpush.bf16.xpose.msra.mxu0 0
    %602 = vmatpush.bf16.xpose.msra.mxu0 0
    %603 = vmatpush.bf16.xpose.msra.mxu0 0
    %604 = vmatpush.bf16.xpose.msra.mxu0 0
    %605 = vmatpush.bf16.xpose.msra.mxu0 0
    %606 = vmatpush.bf16.xpose.msra.mxu0 0
    %607 = vmatpush.bf16.xpose.msra.mxu0 0
    %608 = vmatpush.bf16.xpose.msra.mxu0 %v599
    %609 = vmatmul.bf16.gmra.mxu0 %v596
    %v610 = vpop.f32.mrf.mxu0
    %v611 = vadd.f32 0.0, %v610
    %v612 = vpop.f32.mrf.mxu0
    %613 = vdwg.mxu0
    %v614 = vsel %vm467, %v611, -inf
    %615 = vmax.xlane.f32.xlu0 %v614
    %v616 = vpop.xlane.xlu0 %615
    %v617 = vsub.f32 %v611, %v616
    %v618 = vmul.f32 %v617, 1.442695
    %v619 = vpow.pop %v618
    %v620 = vsel %vm467, %v619, 0.0
    %621 = vadd.xlane.f32.xlu0 %v620
    %v622 = vpop.xlane.xlu0 %621
    %v623 = vrcp.pop %v622
    %v624 = vmul.f32 %v619, %v623
    %v625 = vpack.c.bf16 %v624, %v624
    %626 = vrot.lane.b32.xlu0 %v563, 112
    %v627 = vpop.permute.xlu0 %626
    %v629 = vsel %vm467, %v625, 0
    %v632 = vsel %vm502, %v627, 0
    %634 = vmatpush.bf16.msra.mxu0 0
    %635 = vmatpush.bf16.msra.mxu0 0
    %636 = vmatpush.bf16.msra.mxu0 0
    %637 = vmatpush.bf16.msra.mxu0 0
    %638 = vmatpush.bf16.msra.mxu0 0
    %639 = vmatpush.bf16.msra.mxu0 0
    %640 = vmatpush.bf16.msra.mxu0 0
    %641 = vmatpush.bf16.msra.mxu0 %v632
    %642 = vmatmul.bf16.gmra.mxu0 %v629
    %v643 = vpop.f32.mrf.mxu0
    %v644 = vadd.f32 0.0, %v643
    %v645 = vpop.f32.mrf.mxu0
    %646 = vdwg.mxu0
    %648 = vrot.lane.b32.xlu0 %v644, 16
    %v649 = vpop.permute.xlu0 %648
    %vm651 = vcmask 195712
    %652 = vst.msk [vmem:[#allocation2] sm:$0xff] %vm651, %v649
    %653 = vrot.lane.b32.xlu0 %v522, 104
    %v654 = vpop.permute.xlu0 %653
    %655 = vrot.lane.b32.xlu0 %v527, 104
    %v656 = vpop.permute.xlu0 %655
    %v658 = vsel %vm467, %v654, 0
    %v661 = vsel %vm467, %v656, 0
    %663 = vmatpush.bf16.xpose.msra.mxu0 0
    %664 = vmatpush.bf16.xpose.msra.mxu0 0
    %665 = vmatpush.bf16.xpose.msra.mxu0 0
    %666 = vmatpush.bf16.xpose.msra.mxu0 0
    %667 = vmatpush.bf16.xpose.msra.mxu0 0
    %668 = vmatpush.bf16.xpose.msra.mxu0 0
    %669 = vmatpush.bf16.xpose.msra.mxu0 0
    %670 = vmatpush.bf16.xpose.msra.mxu0 %v661
    %671 = vmatmul.bf16.gmra.mxu0 %v658
    %v672 = vpop.f32.mrf.mxu0
    %v673 = vadd.f32 0.0, %v672
    %v674 = vpop.f32.mrf.mxu0
    %675 = vdwg.mxu0
    %v676 = vsel %vm467, %v673, -inf
    %677 = vmax.xlane.f32.xlu0 %v676
    %v678 = vpop.xlane.xlu0 %677
    %v679 = vsub.f32 %v673, %v678
    %v680 = vmul.f32 %v679, 1.442695
    %v681 = vpow.pop %v680
    %v682 = vsel %vm467, %v681, 0.0
    %683 = vadd.xlane.f32.xlu0 %v682
    %v684 = vpop.xlane.xlu0 %683
    %v685 = vrcp.pop %v684
    %v686 = vmul.f32 %v681, %v685
    %v687 = vpack.c.bf16 %v686, %v686
    %688 = vrot.lane.b32.xlu0 %v563, 104
    %v689 = vpop.permute.xlu0 %688
    %v691 = vsel %vm467, %v687, 0
    %v694 = vsel %vm502, %v689, 0
    %696 = vmatpush.bf16.msra.mxu0 0
    %697 = vmatpush.bf16.msra.mxu0 0
    %698 = vmatpush.bf16.msra.mxu0 0
    %699 = vmatpush.bf16.msra.mxu0 0
    %700 = vmatpush.bf16.msra.mxu0 0
    %701 = vmatpush.bf16.msra.mxu0 0
    %702 = vmatpush.bf16.msra.mxu0 0
    %703 = vmatpush.bf16.msra.mxu0 %v694
    %704 = vmatmul.bf16.gmra.mxu0 %v691
    %v705 = vpop.f32.mrf.mxu0
    %v706 = vadd.f32 0.0, %v705
    %v707 = vpop.f32.mrf.mxu0
    %708 = vdwg.mxu0
    %710 = vrot.lane.b32.xlu0 %v706, 24
    %v711 = vpop.permute.xlu0 %710
    %vm713 = vcmask 261312
    %714 = vst.msk [vmem:[#allocation2] sm:$0xff] %vm713, %v711
    %v716 = vsel %vm467, %v410, 0
    %v719 = vsel %vm467, %v438, 0
    %721 = vmatpush.bf16.xpose.msra.mxu0 0
    %722 = vmatpush.bf16.xpose.msra.mxu0 0
    %723 = vmatpush.bf16.xpose.msra.mxu0 0
    %724 = vmatpush.bf16.xpose.msra.mxu0 0
    %725 = vmatpush.bf16.xpose.msra.mxu0 0
    %726 = vmatpush.bf16.xpose.msra.mxu0 0
    %727 = vmatpush.bf16.xpose.msra.mxu0 0
    %728 = vmatpush.bf16.xpose.msra.mxu0 %v719
    %729 = vmatmul.bf16.gmra.mxu0 %v716
    %v730 = vpop.f32.mrf.mxu0
    %v731 = vadd.f32 0.0, %v730
    %v732 = vpop.f32.mrf.mxu0
    %733 = vdwg.mxu0
    %v734 = vsel %vm467, %v731, -inf
    %735 = vmax.xlane.f32.xlu0 %v734
    %v736 = vpop.xlane.xlu0 %735
    %v737 = vsub.f32 %v731, %v736
    %v738 = vmul.f32 %v737, 1.442695
    %v739 = vpow.pop %v738
    %v740 = vsel %vm467, %v739, 0.0
    %741 = vadd.xlane.f32.xlu0 %v740
    %v742 = vpop.xlane.xlu0 %741
    %v743 = vrcp.pop %v742
    %v744 = vmul.f32 %v739, %v743
    %v745 = vpack.c.bf16 %v744, %v744
    %v747 = vsel %vm467, %v745, 0
    %v750 = vsel %vm502, %v466, 0
    %752 = vmatpush.bf16.msra.mxu0 0
    %753 = vmatpush.bf16.msra.mxu0 0
    %754 = vmatpush.bf16.msra.mxu0 0
    %755 = vmatpush.bf16.msra.mxu0 0
    %756 = vmatpush.bf16.msra.mxu0 0
    %757 = vmatpush.bf16.msra.mxu0 0
    %758 = vmatpush.bf16.msra.mxu0 0
    %759 = vmatpush.bf16.msra.mxu0 %v750
    %760 = vmatmul.bf16.gmra.mxu0 %v747
    %v761 = vpop.f32.mrf.mxu0
    %v762 = vadd.f32 0.0, %v761
    %v763 = vpop.f32.mrf.mxu0
    %764 = vdwg.mxu0
    %765 = vst.msk [vmem:[#allocation2 + $0x8] sm:$0xff] %vm467, %v762
    %v767 = vunpack.c.l.b16 %v410
    %v768 = vpack.c.b16 %v767, %v767
    %769 = vrot.lane.b32.xlu0 %v768, 120
    %v770 = vpop.permute.xlu0 %769
    %v772 = vunpack.c.l.b16 %v438
    %v773 = vpack.c.b16 %v772, %v772
    %774 = vrot.lane.b32.xlu0 %v773, 120
    %v775 = vpop.permute.xlu0 %774
    %v777 = vsel %vm467, %v770, 0
    %v780 = vsel %vm467, %v775, 0
    %782 = vmatpush.bf16.xpose.msra.mxu0 0
    %783 = vmatpush.bf16.xpose.msra.mxu0 0
    %784 = vmatpush.bf16.xpose.msra.mxu0 0
    %785 = vmatpush.bf16.xpose.msra.mxu0 0
    %786 = vmatpush.bf16.xpose.msra.mxu0 0
    %787 = vmatpush.bf16.xpose.msra.mxu0 0
    %788 = vmatpush.bf16.xpose.msra.mxu0 0
    %789 = vmatpush.bf16.xpose.msra.mxu0 %v780
    %790 = vmatmul.bf16.gmra.mxu0 %v777
    %v791 = vpop.f32.mrf.mxu0
    %v792 = vadd.f32 0.0, %v791
    %v793 = vpop.f32.mrf.mxu0
    %794 = vdwg.mxu0
    %v795 = vsel %vm467, %v792, -inf
    %796 = vmax.xlane.f32.xlu0 %v795
    %v797 = vpop.xlane.xlu0 %796
    %v798 = vsub.f32 %v792, %v797
    %v799 = vmul.f32 %v798, 1.442695
    %v800 = vpow.pop %v799
    %v801 = vsel %vm467, %v800, 0.0
    %802 = vadd.xlane.f32.xlu0 %v801
    %v803 = vpop.xlane.xlu0 %802
    %v804 = vrcp.pop %v803
    %v805 = vmul.f32 %v800, %v804
    %v806 = vpack.c.bf16 %v805, %v805
    %v808 = vunpack.c.l.b16 %v466
    %v809 = vpack.c.b16 %v808, %v808
    %810 = vrot.lane.b32.xlu0 %v809, 120
    %v811 = vpop.permute.xlu0 %810
    %v813 = vsel %vm467, %v806, 0
    %v816 = vsel %vm502, %v811, 0
    %818 = vmatpush.bf16.msra.mxu0 0
    %819 = vmatpush.bf16.msra.mxu0 0
    %820 = vmatpush.bf16.msra.mxu0 0
    %821 = vmatpush.bf16.msra.mxu0 0
    %822 = vmatpush.bf16.msra.mxu0 0
    %823 = vmatpush.bf16.msra.mxu0 0
    %824 = vmatpush.bf16.msra.mxu0 0
    %825 = vmatpush.bf16.msra.mxu0 %v816
    %826 = vmatmul.bf16.gmra.mxu0 %v813
    %v827 = vpop.f32.mrf.mxu0
    %v828 = vadd.f32 0.0, %v827
    %v829 = vpop.f32.mrf.mxu0
    %830 = vdwg.mxu0
    %832 = vrot.lane.b32.xlu0 %v828, 8
    %v833 = vpop.permute.xlu0 %832
    %835 = vst.msk [vmem:[#allocation2 + $0x8] sm:$0xff] %vm589, %v833
    %836 = vrot.lane.b32.xlu0 %v768, 112
    %v837 = vpop.permute.xlu0 %836
    %838 = vrot.lane.b32.xlu0 %v773, 112
    %v839 = vpop.permute.xlu0 %838
    %v841 = vsel %vm467, %v837, 0
    %v844 = vsel %vm467, %v839, 0
    %846 = vmatpush.bf16.xpose.msra.mxu0 0
    %847 = vmatpush.bf16.xpose.msra.mxu0 0
    %848 = vmatpush.bf16.xpose.msra.mxu0 0
    %849 = vmatpush.bf16.xpose.msra.mxu0 0
    %850 = vmatpush.bf16.xpose.msra.mxu0 0
    %851 = vmatpush.bf16.xpose.msra.mxu0 0
    %852 = vmatpush.bf16.xpose.msra.mxu0 0
    %853 = vmatpush.bf16.xpose.msra.mxu0 %v844
    %854 = vmatmul.bf16.gmra.mxu0 %v841
    %v855 = vpop.f32.mrf.mxu0
    %v856 = vadd.f32 0.0, %v855
    %v857 = vpop.f32.mrf.mxu0
    %858 = vdwg.mxu0
    %v859 = vsel %vm467, %v856, -inf
    %860 = vmax.xlane.f32.xlu0 %v859
    %v861 = vpop.xlane.xlu0 %860
    %v862 = vsub.f32 %v856, %v861
    %v863 = vmul.f32 %v862, 1.442695
    %v864 = vpow.pop %v863
    %v865 = vsel %vm467, %v864, 0.0
    %866 = vadd.xlane.f32.xlu0 %v865
    %v867 = vpop.xlane.xlu0 %866
    %v868 = vrcp.pop %v867
    %v869 = vmul.f32 %v864, %v868
    %v870 = vpack.c.bf16 %v869, %v869
    %871 = vrot.lane.b32.xlu0 %v809, 112
    %v872 = vpop.permute.xlu0 %871
    %v874 = vsel %vm467, %v870, 0
    %v877 = vsel %vm502, %v872, 0
    %879 = vmatpush.bf16.msra.mxu0 0
    %880 = vmatpush.bf16.msra.mxu0 0
    %881 = vmatpush.bf16.msra.mxu0 0
    %882 = vmatpush.bf16.msra.mxu0 0
    %883 = vmatpush.bf16.msra.mxu0 0
    %884 = vmatpush.bf16.msra.mxu0 0
    %885 = vmatpush.bf16.msra.mxu0 0
    %886 = vmatpush.bf16.msra.mxu0 %v877
    %887 = vmatmul.bf16.gmra.mxu0 %v874
    %v888 = vpop.f32.mrf.mxu0
    %v889 = vadd.f32 0.0, %v888
    %v890 = vpop.f32.mrf.mxu0
    %891 = vdwg.mxu0
    %893 = vrot.lane.b32.xlu0 %v889, 16
    %v894 = vpop.permute.xlu0 %893
    %896 = vst.msk [vmem:[#allocation2 + $0x8] sm:$0xff] %vm651, %v894
    %897 = vrot.lane.b32.xlu0 %v768, 104
    %v898 = vpop.permute.xlu0 %897
    %899 = vrot.lane.b32.xlu0 %v773, 104
    %v900 = vpop.permute.xlu0 %899
    %v902 = vsel %vm467, %v898, 0
    %v905 = vsel %vm467, %v900, 0
    %907 = vmatpush.bf16.xpose.msra.mxu0 0
    %908 = vmatpush.bf16.xpose.msra.mxu0 0
    %909 = vmatpush.bf16.xpose.msra.mxu0 0
    %910 = vmatpush.bf16.xpose.msra.mxu0 0
    %911 = vmatpush.bf16.xpose.msra.mxu0 0
    %912 = vmatpush.bf16.xpose.msra.mxu0 0
    %913 = vmatpush.bf16.xpose.msra.mxu0 0
    %914 = vmatpush.bf16.xpose.msra.mxu0 %v905
    %915 = vmatmul.bf16.gmra.mxu0 %v902
    %v916 = vpop.f32.mrf.mxu0
    %v917 = vadd.f32 0.0, %v916
    %v918 = vpop.f32.mrf.mxu0
    %919 = vdwg.mxu0
    %v920 = vsel %vm467, %v917, -inf
    %921 = vmax.xlane.f32.xlu0 %v920
    %v922 = vpop.xlane.xlu0 %921
    %v923 = vsub.f32 %v917, %v922
    %v924 = vmul.f32 %v923, 1.442695
    %v925 = vpow.pop %v924
    %v926 = vsel %vm467, %v925, 0.0
    %927 = vadd.xlane.f32.xlu0 %v926
    %v928 = vpop.xlane.xlu0 %927
    %v929 = vrcp.pop %v928
    %v930 = vmul.f32 %v925, %v929
    %v931 = vpack.c.bf16 %v930, %v930
    %932 = vrot.lane.b32.xlu0 %v809, 104
    %v933 = vpop.permute.xlu0 %932
    %v935 = vsel %vm467, %v931, 0
    %v938 = vsel %vm502, %v933, 0
    %940 = vmatpush.bf16.msra.mxu0 0
    %941 = vmatpush.bf16.msra.mxu0 0
    %942 = vmatpush.bf16.msra.mxu0 0
    %943 = vmatpush.bf16.msra.mxu0 0
    %944 = vmatpush.bf16.msra.mxu0 0
    %945 = vmatpush.bf16.msra.mxu0 0
    %946 = vmatpush.bf16.msra.mxu0 0
    %947 = vmatpush.bf16.msra.mxu0 %v938
    %948 = vmatmul.bf16.gmra.mxu0 %v935
    %v949 = vpop.f32.mrf.mxu0
    %v950 = vadd.f32 0.0, %v949
    %v951 = vpop.f32.mrf.mxu0
    %952 = vdwg.mxu0
    %954 = vrot.lane.b32.xlu0 %v950, 24
    %v955 = vpop.permute.xlu0 %954
    %957 = vst.msk [vmem:[#allocation2 + $0x8] sm:$0xff] %vm713, %v955
    %v958 = vld [vmem:[#allocation2] sm:$0xff]
    %v959 = vld [vmem:[#allocation2 + $0x8] sm:$0xff]
    %v960 = vpack.c.bf16 %v959, %v958
    %v965 = vunpack.c.l.b16 %v371
    %v966 = vunpack.c.l.b16 %v372
    %v967 = vunpack.c.l.b16 %v373
    %v968 = vunpack.c.l.b16 %v374
    %v969 = vpack.c.b16 %v966, %v965
    %v970 = vpack.c.b16 %v968, %v967
    %v974 = vsel %vm297, %v960, 0
    %976 = vmatpush.bf16.msra.mxu0 0
    %977 = vmatpush.bf16.msra.mxu0 0
    %978 = vmatpush.bf16.msra.mxu0 0
    %979 = vmatpush.bf16.msra.mxu0 0
    %980 = vmatpush.bf16.msra.mxu0 0
    %981 = vmatpush.bf16.msra.mxu0 0
    %982 = vmatpush.bf16.msra.mxu0 %v970
    %983 = vmatpush.bf16.msra.mxu0 %v969
    %984 = vmatmul.bf16.gmra.mxu0 %v974
    %v985 = vpop.f32.mrf.mxu0
    %v986 = vadd.f32 %v357, %v985
    %v987 = vpop.f32.mrf.mxu0
    %v988 = vadd.f32 %v358, %v987
    %989 = vdwg.mxu0
    %v990 = vsel %vm297, %v986, 0.0
    %991 = vadd.xlane.f32.xlu0 %v990
    %v992 = vpop.xlane.xlu0 %991
    %v993 = vsel %vm297, %v988, 0.0
    %994 = vadd.xlane.f32.xlu0 %v993
    %v995 = vpop.xlane.xlu0 %994
    %v996 = vmul.f32 %v992, %v310
    %v997 = vmul.f32 %v995, %v310
    %v998 = vsub.f32 %v986, %v996
    %v999 = vsub.f32 %v988, %v997
    %v1000 = vmul.f32 %v998, %v998
    %v1001 = vmul.f32 %v999, %v999
    %v1002 = vsel %vm297, %v1000, 0.0
    %1003 = vadd.xlane.f32.xlu0 %v1002
    %v1004 = vpop.xlane.xlu0 %1003
    %v1005 = vsel %vm297, %v1001, 0.0
    %1006 = vadd.xlane.f32.xlu0 %v1005
    %v1007 = vpop.xlane.xlu0 %1006
    %v1008 = vmul.f32 %v1004, %v310
    %v1009 = vmul.f32 %v1007, %v310
    %v1010 = vadd.f32 %v1008, 1e-06
    %v1011 = vadd.f32 %v1009, 1e-06
    %v1012 = vrsqrt.pop %v1010
    %v1013 = vmul.f32 %v1012, %v1010
    %v1014 = vmul.f32 %v1013, %v1012
    %v1015 = vmul.f32 0.5, %v1014
    %v1016 = vsub.f32 1.5, %v1015
    %v1017 = vmul.f32 %v1012, %v1016
    %vm1018 = vweird.f32 %v1010
    %vm1019 = vweird.f32 %v1012
    %vm1020 = vmor %vm1018, %vm1019
    %v1021 = vsel %vm1020, %v1012, %v1017
    %v1022 = vrsqrt.pop %v1011
    %v1023 = vmul.f32 %v1022, %v1011
    %v1024 = vmul.f32 %v1023, %v1022
    %v1025 = vmul.f32 0.5, %v1024
    %v1026 = vsub.f32 1.5, %v1025
    %v1027 = vmul.f32 %v1022, %v1026
    %vm1028 = vweird.f32 %v1011
    %vm1029 = vweird.f32 %v1022
    %vm1030 = vmor %vm1028, %vm1029
    %v1031 = vsel %vm1030, %v1022, %v1027
    %v1032 = vmul.f32 %v998, %v1021
    %v1033 = vmul.f32 %v999, %v1031
    %v1035 = vperm.slane %v375, 0
    %v1037 = vmul.f32 %v1032, %v1035
    %v1038 = vmul.f32 %v1033, %v1035
    %v1040 = vperm.slane %v376, 0
    %v1042 = vadd.f32 %v1037, %v1040
    %v1043 = vadd.f32 %v1038, %v1040
    %v1044 = vld [vmem:[%s19] sm:$0xf]
    %v1045 = vld [vmem:[%s19 + $0x4] sm:$0xf]
    %v1046 = vld [vmem:[%s19 + $0x8] sm:$0xf]
    %v1047 = vld [vmem:[%s19 + $0xc] sm:$0xf]
    %v1048 = vld [vmem:[%s21] sm:$0x1]
    %v1049 = vld [vmem:[%s23] sm:$0xf]
    %v1050 = vld [vmem:[%s23 + $0x4] sm:$0xf]
    %v1051 = vld [vmem:[%s23 + $0x8] sm:$0xf]
    %v1052 = vld [vmem:[%s23 + $0xc] sm:$0xf]
    %v1053 = vld [vmem:[%s23 + $0x10] sm:$0xf]
    %v1054 = vld [vmem:[%s23 + $0x14] sm:$0xf]
    %v1055 = vld [vmem:[%s23 + $0x18] sm:$0xf]
    %v1056 = vld [vmem:[%s23 + $0x1c] sm:$0xf]
    %v1057 = vld [vmem:[%s25] sm:$0x1]
    %v1058 = vld [vmem:[%s27] sm:$0x1]
    %v1059 = vld [vmem:[%s29] sm:$0x1]
    %v1060 = vpack.c.bf16 %v1043, %v1042
    %v1062 = vperm.slane %v1048, 0
    %v1068 = vunpack.c.l.b16 %v1044
    %v1069 = vunpack.c.l.b16 %v1045
    %v1070 = vunpack.c.l.b16 %v1046
    %v1071 = vunpack.c.l.b16 %v1047
    %v1072 = vpack.c.b16 %v1069, %v1068
    %v1073 = vpack.c.b16 %v1071, %v1070
    %v1077 = vsel %vm297, %v1060, 0
    %1079 = vmatpush.bf16.msra.mxu0 0
    %1080 = vmatpush.bf16.msra.mxu0 0
    %1081 = vmatpush.bf16.msra.mxu0 0
    %1082 = vmatpush.bf16.msra.mxu0 0
    %1083 = vmatpush.bf16.msra.mxu0 0
    %1084 = vmatpush.bf16.msra.mxu0 0
    %1085 = vmatpush.bf16.msra.mxu0 %v1073
    %1086 = vmatpush.bf16.msra.mxu0 %v1072
    %1087 = vmatmul.bf16.gmra.mxu0 %v1077
    %v1088 = vpop.f32.mrf.mxu0
    %v1089 = vadd.f32 %v1062, %v1088
    %v1090 = vpop.f32.mrf.mxu0
    %v1091 = vadd.f32 %v1062, %v1090
    %1092 = vdwg.mxu0
    %v1093 = vmax.f32 %v1089, 0.0
    %v1094 = vmax.f32 %v1091, 0.0
    %v1095 = vpack.c.bf16 %v1094, %v1093
    %v1097 = vperm.slane %v1057, 0
    %v1107 = vunpack.c.l.b16 %v1049
    %v1108 = vunpack.c.l.b16 %v1050
    %v1109 = vunpack.c.l.b16 %v1051
    %v1110 = vunpack.c.l.b16 %v1052
    %v1111 = vunpack.c.l.b16 %v1053
    %v1112 = vunpack.c.l.b16 %v1054
    %v1113 = vunpack.c.l.b16 %v1055
    %v1114 = vunpack.c.l.b16 %v1056
    %v1115 = vpack.c.b16 %v1108, %v1107
    %v1116 = vpack.c.b16 %v1110, %v1109
    %v1117 = vpack.c.b16 %v1112, %v1111
    %v1118 = vpack.c.b16 %v1114, %v1113
    %vm1123 = vcmask 523264
    %v1125 = vsel %vm1123, %v1095, 0
    %1127 = vmatpush.bf16.msra.mxu0 0
    %1128 = vmatpush.bf16.msra.mxu0 0
    %1129 = vmatpush.bf16.msra.mxu0 0
    %1130 = vmatpush.bf16.msra.mxu0 0
    %1131 = vmatpush.bf16.msra.mxu0 %v1118
    %1132 = vmatpush.bf16.msra.mxu0 %v1117
    %1133 = vmatpush.bf16.msra.mxu0 %v1116
    %1134 = vmatpush.bf16.msra.mxu0 %v1115
    %1135 = vmatmul.bf16.gmra.mxu0 %v1125
    %v1136 = vpop.f32.mrf.mxu0
    %v1137 = vadd.f32 %v1097, %v1136
    %v1138 = vpop.f32.mrf.mxu0
    %v1139 = vadd.f32 %v1097, %v1138
    %1140 = vdwg.mxu0
    %v1141 = vadd.f32 %v1137, %v1042
    %v1142 = vadd.f32 %v1139, %v1043
    %v1143 = vsel %vm297, %v1141, 0.0
    %1144 = vadd.xlane.f32.xlu0 %v1143
    %v1145 = vpop.xlane.xlu0 %1144
    %v1146 = vsel %vm297, %v1142, 0.0
    %1147 = vadd.xlane.f32.xlu0 %v1146
    %v1148 = vpop.xlane.xlu0 %1147
    %v1149 = vmul.f32 %v1145, %v310
    %v1150 = vmul.f32 %v1148, %v310
    %v1151 = vsub.f32 %v1141, %v1149
    %v1152 = vsub.f32 %v1142, %v1150
    %v1153 = vmul.f32 %v1151, %v1151
    %v1154 = vmul.f32 %v1152, %v1152
    %v1155 = vsel %vm297, %v1153, 0.0
    %1156 = vadd.xlane.f32.xlu0 %v1155
    %v1157 = vpop.xlane.xlu0 %1156
    %v1158 = vsel %vm297, %v1154, 0.0
    %1159 = vadd.xlane.f32.xlu0 %v1158
    %v1160 = vpop.xlane.xlu0 %1159
    %v1161 = vmul.f32 %v1157, %v310
    %v1162 = vmul.f32 %v1160, %v310
    %v1163 = vadd.f32 %v1161, 1e-06
    %v1164 = vadd.f32 %v1162, 1e-06
    %v1165 = vrsqrt.pop %v1163
    %v1166 = vmul.f32 %v1165, %v1163
    %v1167 = vmul.f32 %v1166, %v1165
    %v1168 = vmul.f32 0.5, %v1167
    %v1169 = vsub.f32 1.5, %v1168
    %v1170 = vmul.f32 %v1165, %v1169
    %vm1171 = vweird.f32 %v1163
    %vm1172 = vweird.f32 %v1165
    %vm1173 = vmor %vm1171, %vm1172
    %v1174 = vsel %vm1173, %v1165, %v1170
    %v1175 = vrsqrt.pop %v1164
    %v1176 = vmul.f32 %v1175, %v1164
    %v1177 = vmul.f32 %v1176, %v1175
    %v1178 = vmul.f32 0.5, %v1177
    %v1179 = vsub.f32 1.5, %v1178
    %v1180 = vmul.f32 %v1175, %v1179
    %vm1181 = vweird.f32 %v1164
    %vm1182 = vweird.f32 %v1175
    %vm1183 = vmor %vm1181, %vm1182
    %v1184 = vsel %vm1183, %v1175, %v1180
    %v1185 = vmul.f32 %v1151, %v1174
    %v1186 = vmul.f32 %v1152, %v1184
    %v1188 = vperm.slane %v1058, 0
    %v1190 = vmul.f32 %v1185, %v1188
    %v1191 = vmul.f32 %v1186, %v1188
    %v1193 = vperm.slane %v1059, 0
    %v1195 = vadd.f32 %v1190, %v1193
    %v1196 = vadd.f32 %v1191, %v1193
    %s1197 = scalar_lea.vmem %s7, 16
    %v1198 = vld [vmem:[%s1197] sm:$0xf]
    %v1199 = vld [vmem:[%s1197 + $0x4] sm:$0xf]
    %v1200 = vld [vmem:[%s1197 + $0x8] sm:$0xf]
    %v1201 = vld [vmem:[%s1197 + $0xc] sm:$0xf]
    %s1202 = scalar_lea.vmem %s9, 16
    %v1203 = vld [vmem:[%s1202] sm:$0xf]
    %v1204 = vld [vmem:[%s1202 + $0x4] sm:$0xf]
    %v1205 = vld [vmem:[%s1202 + $0x8] sm:$0xf]
    %v1206 = vld [vmem:[%s1202 + $0xc] sm:$0xf]
    %s1207 = scalar_lea.vmem %s11, 16
    %v1208 = vld [vmem:[%s1207] sm:$0xf]
    %v1209 = vld [vmem:[%s1207 + $0x4] sm:$0xf]
    %v1210 = vld [vmem:[%s1207 + $0x8] sm:$0xf]
    %v1211 = vld [vmem:[%s1207 + $0xc] sm:$0xf]
    %s1212 = scalar_lea.vmem %s13, 16
    %v1213 = vld [vmem:[%s1212] sm:$0xf]
    %v1214 = vld [vmem:[%s1212 + $0x4] sm:$0xf]
    %v1215 = vld [vmem:[%s1212 + $0x8] sm:$0xf]
    %v1216 = vld [vmem:[%s1212 + $0xc] sm:$0xf]
    %s1217 = scalar_lea.vmem %s15, 1
    %v1218 = vld [vmem:[%s1217] sm:$0x1]
    %s1219 = scalar_lea.vmem %s17, 1
    %v1220 = vld [vmem:[%s1219] sm:$0x1]
    %v1221 = vpack.c.bf16 %v1196, %v1195
    %v1226 = vunpack.c.l.b16 %v1198
    %v1227 = vunpack.c.l.b16 %v1199
    %v1228 = vunpack.c.l.b16 %v1200
    %v1229 = vunpack.c.l.b16 %v1201
    %v1230 = vpack.c.b16 %v1227, %v1226
    %v1231 = vpack.c.b16 %v1229, %v1228
    %v1235 = vsel %vm297, %v1221, 0
    %1237 = vmatpush.bf16.msra.mxu0 0
    %1238 = vmatpush.bf16.msra.mxu0 0
    %1239 = vmatpush.bf16.msra.mxu0 0
    %1240 = vmatpush.bf16.msra.mxu0 0
    %1241 = vmatpush.bf16.msra.mxu0 0
    %1242 = vmatpush.bf16.msra.mxu0 0
    %1243 = vmatpush.bf16.msra.mxu0 %v1231
    %1244 = vmatpush.bf16.msra.mxu0 %v1230
    %1245 = vmatmul.bf16.gmra.mxu0 %v1235
    %v1246 = vpop.f32.mrf.mxu0
    %v1247 = vadd.f32 0.0, %v1246
    %v1248 = vpop.f32.mrf.mxu0
    %v1249 = vadd.f32 0.0, %v1248
    %1250 = vdwg.mxu0
    %v1251 = vmul.f32 %v1247, 0.35355338
    %v1252 = vmul.f32 %v1249, 0.35355338
    %v1253 = vpack.c.bf16 %v1251, %v1251
    %v1254 = vpack.c.bf16 %v1252, %v1252
    %v1259 = vunpack.c.l.b16 %v1203
    %v1260 = vunpack.c.l.b16 %v1204
    %v1261 = vunpack.c.l.b16 %v1205
    %v1262 = vunpack.c.l.b16 %v1206
    %v1263 = vpack.c.b16 %v1260, %v1259
    %v1264 = vpack.c.b16 %v1262, %v1261
    %1267 = vmatpush.bf16.msra.mxu0 0
    %1268 = vmatpush.bf16.msra.mxu0 0
    %1269 = vmatpush.bf16.msra.mxu0 0
    %1270 = vmatpush.bf16.msra.mxu0 0
    %1271 = vmatpush.bf16.msra.mxu0 0
    %1272 = vmatpush.bf16.msra.mxu0 0
    %1273 = vmatpush.bf16.msra.mxu0 %v1264
    %1274 = vmatpush.bf16.msra.mxu0 %v1263
    %1275 = vmatmul.bf16.gmra.mxu0 %v1235
    %v1276 = vpop.f32.mrf.mxu0
    %v1277 = vadd.f32 0.0, %v1276
    %v1278 = vpop.f32.mrf.mxu0
    %v1279 = vadd.f32 0.0, %v1278
    %1280 = vdwg.mxu0
    %v1281 = vpack.c.bf16 %v1277, %v1277
    %v1282 = vpack.c.bf16 %v1279, %v1279
    %v1287 = vunpack.c.l.b16 %v1208
    %v1288 = vunpack.c.l.b16 %v1209
    %v1289 = vunpack.c.l.b16 %v1210
    %v1290 = vunpack.c.l.b16 %v1211
    %v1291 = vpack.c.b16 %v1288, %v1287
    %v1292 = vpack.c.b16 %v1290, %v1289
    %1295 = vmatpush.bf16.msra.mxu0 0
    %1296 = vmatpush.bf16.msra.mxu0 0
    %1297 = vmatpush.bf16.msra.mxu0 0
    %1298 = vmatpush.bf16.msra.mxu0 0
    %1299 = vmatpush.bf16.msra.mxu0 0
    %1300 = vmatpush.bf16.msra.mxu0 0
    %1301 = vmatpush.bf16.msra.mxu0 %v1292
    %1302 = vmatpush.bf16.msra.mxu0 %v1291
    %1303 = vmatmul.bf16.gmra.mxu0 %v1235
    %v1304 = vpop.f32.mrf.mxu0
    %v1305 = vadd.f32 0.0, %v1304
    %v1306 = vpop.f32.mrf.mxu0
    %v1307 = vadd.f32 0.0, %v1306
    %1308 = vdwg.mxu0
    %v1309 = vpack.c.bf16 %v1305, %v1305
    %v1310 = vpack.c.bf16 %v1307, %v1307
    %v1312 = vsel %vm467, %v1253, 0
    %v1315 = vsel %vm467, %v1281, 0
    %1317 = vmatpush.bf16.xpose.msra.mxu0 0
    %1318 = vmatpush.bf16.xpose.msra.mxu0 0
    %1319 = vmatpush.bf16.xpose.msra.mxu0 0
    %1320 = vmatpush.bf16.xpose.msra.mxu0 0
    %1321 = vmatpush.bf16.xpose.msra.mxu0 0
    %1322 = vmatpush.bf16.xpose.msra.mxu0 0
    %1323 = vmatpush.bf16.xpose.msra.mxu0 0
    %1324 = vmatpush.bf16.xpose.msra.mxu0 %v1315
    %1325 = vmatmul.bf16.gmra.mxu0 %v1312
    %v1326 = vpop.f32.mrf.mxu0
    %v1327 = vadd.f32 0.0, %v1326
    %v1328 = vpop.f32.mrf.mxu0
    %1329 = vdwg.mxu0
    %v1330 = vsel %vm467, %v1327, -inf
    %1331 = vmax.xlane.f32.xlu0 %v1330
    %v1332 = vpop.xlane.xlu0 %1331
    %v1333 = vsub.f32 %v1327, %v1332
    %v1334 = vmul.f32 %v1333, 1.442695
    %v1335 = vpow.pop %v1334
    %v1336 = vsel %vm467, %v1335, 0.0
    %1337 = vadd.xlane.f32.xlu0 %v1336
    %v1338 = vpop.xlane.xlu0 %1337
    %v1339 = vrcp.pop %v1338
    %v1340 = vmul.f32 %v1335, %v1339
    %v1341 = vpack.c.bf16 %v1340, %v1340
    %v1343 = vsel %vm467, %v1341, 0
    %v1346 = vsel %vm502, %v1309, 0
    %1348 = vmatpush.bf16.msra.mxu0 0
    %1349 = vmatpush.bf16.msra.mxu0 0
    %1350 = vmatpush.bf16.msra.mxu0 0
    %1351 = vmatpush.bf16.msra.mxu0 0
    %1352 = vmatpush.bf16.msra.mxu0 0
    %1353 = vmatpush.bf16.msra.mxu0 0
    %1354 = vmatpush.bf16.msra.mxu0 0
    %1355 = vmatpush.bf16.msra.mxu0 %v1346
    %1356 = vmatmul.bf16.gmra.mxu0 %v1343
    %v1357 = vpop.f32.mrf.mxu0
    %v1358 = vadd.f32 0.0, %v1357
    %v1359 = vpop.f32.mrf.mxu0
    %1360 = vdwg.mxu0
    %1361 = vst.msk [vmem:[#allocation2] sm:$0xff] %vm467, %v1358
    %v1363 = vunpack.c.l.b16 %v1253
    %v1364 = vpack.c.b16 %v1363, %v1363
    %1365 = vrot.lane.b32.xlu0 %v1364, 120
    %v1366 = vpop.permute.xlu0 %1365
    %v1368 = vunpack.c.l.b16 %v1281
    %v1369 = vpack.c.b16 %v1368, %v1368
    %1370 = vrot.lane.b32.xlu0 %v1369, 120
    %v1371 = vpop.permute.xlu0 %1370
    %v1373 = vsel %vm467, %v1366, 0
    %v1376 = vsel %vm467, %v1371, 0
    %1378 = vmatpush.bf16.xpose.msra.mxu0 0
    %1379 = vmatpush.bf16.xpose.msra.mxu0 0
    %1380 = vmatpush.bf16.xpose.msra.mxu0 0
    %1381 = vmatpush.bf16.xpose.msra.mxu0 0
    %1382 = vmatpush.bf16.xpose.msra.mxu0 0
    %1383 = vmatpush.bf16.xpose.msra.mxu0 0
    %1384 = vmatpush.bf16.xpose.msra.mxu0 0
    %1385 = vmatpush.bf16.xpose.msra.mxu0 %v1376
    %1386 = vmatmul.bf16.gmra.mxu0 %v1373
    %v1387 = vpop.f32.mrf.mxu0
    %v1388 = vadd.f32 0.0, %v1387
    %v1389 = vpop.f32.mrf.mxu0
    %1390 = vdwg.mxu0
    %v1391 = vsel %vm467, %v1388, -inf
    %1392 = vmax.xlane.f32.xlu0 %v1391
    %v1393 = vpop.xlane.xlu0 %1392
    %v1394 = vsub.f32 %v1388, %v1393
    %v1395 = vmul.f32 %v1394, 1.442695
    %v1396 = vpow.pop %v1395
    %v1397 = vsel %vm467, %v1396, 0.0
    %1398 = vadd.xlane.f32.xlu0 %v1397
    %v1399 = vpop.xlane.xlu0 %1398
    %v1400 = vrcp.pop %v1399
    %v1401 = vmul.f32 %v1396, %v1400
    %v1402 = vpack.c.bf16 %v1401, %v1401
    %v1404 = vunpack.c.l.b16 %v1309
    %v1405 = vpack.c.b16 %v1404, %v1404
    %1406 = vrot.lane.b32.xlu0 %v1405, 120
    %v1407 = vpop.permute.xlu0 %1406
    %v1409 = vsel %vm467, %v1402, 0
    %v1412 = vsel %vm502, %v1407, 0
    %1414 = vmatpush.bf16.msra.mxu0 0
    %1415 = vmatpush.bf16.msra.mxu0 0
    %1416 = vmatpush.bf16.msra.mxu0 0
    %1417 = vmatpush.bf16.msra.mxu0 0
    %1418 = vmatpush.bf16.msra.mxu0 0
    %1419 = vmatpush.bf16.msra.mxu0 0
    %1420 = vmatpush.bf16.msra.mxu0 0
    %1421 = vmatpush.bf16.msra.mxu0 %v1412
    %1422 = vmatmul.bf16.gmra.mxu0 %v1409
    %v1423 = vpop.f32.mrf.mxu0
    %v1424 = vadd.f32 0.0, %v1423
    %v1425 = vpop.f32.mrf.mxu0
    %1426 = vdwg.mxu0
    %1428 = vrot.lane.b32.xlu0 %v1424, 8
    %v1429 = vpop.permute.xlu0 %1428
    %1431 = vst.msk [vmem:[#allocation2] sm:$0xff] %vm589, %v1429
    %1432 = vrot.lane.b32.xlu0 %v1364, 112
    %v1433 = vpop.permute.xlu0 %1432
    %1434 = vrot.lane.b32.xlu0 %v1369, 112
    %v1435 = vpop.permute.xlu0 %1434
    %v1437 = vsel %vm467, %v1433, 0
    %v1440 = vsel %vm467, %v1435, 0
    %1442 = vmatpush.bf16.xpose.msra.mxu0 0
    %1443 = vmatpush.bf16.xpose.msra.mxu0 0
    %1444 = vmatpush.bf16.xpose.msra.mxu0 0
    %1445 = vmatpush.bf16.xpose.msra.mxu0 0
    %1446 = vmatpush.bf16.xpose.msra.mxu0 0
    %1447 = vmatpush.bf16.xpose.msra.mxu0 0
    %1448 = vmatpush.bf16.xpose.msra.mxu0 0
    %1449 = vmatpush.bf16.xpose.msra.mxu0 %v1440
    %1450 = vmatmul.bf16.gmra.mxu0 %v1437
    %v1451 = vpop.f32.mrf.mxu0
    %v1452 = vadd.f32 0.0, %v1451
    %v1453 = vpop.f32.mrf.mxu0
    %1454 = vdwg.mxu0
    %v1455 = vsel %vm467, %v1452, -inf
    %1456 = vmax.xlane.f32.xlu0 %v1455
    %v1457 = vpop.xlane.xlu0 %1456
    %v1458 = vsub.f32 %v1452, %v1457
    %v1459 = vmul.f32 %v1458, 1.442695
    %v1460 = vpow.pop %v1459
    %v1461 = vsel %vm467, %v1460, 0.0
    %1462 = vadd.xlane.f32.xlu0 %v1461
    %v1463 = vpop.xlane.xlu0 %1462
    %v1464 = vrcp.pop %v1463
    %v1465 = vmul.f32 %v1460, %v1464
    %v1466 = vpack.c.bf16 %v1465, %v1465
    %1467 = vrot.lane.b32.xlu0 %v1405, 112
    %v1468 = vpop.permute.xlu0 %1467
    %v1470 = vsel %vm467, %v1466, 0
    %v1473 = vsel %vm502, %v1468, 0
    %1475 = vmatpush.bf16.msra.mxu0 0
    %1476 = vmatpush.bf16.msra.mxu0 0
    %1477 = vmatpush.bf16.msra.mxu0 0
    %1478 = vmatpush.bf16.msra.mxu0 0
    %1479 = vmatpush.bf16.msra.mxu0 0
    %1480 = vmatpush.bf16.msra.mxu0 0
    %1481 = vmatpush.bf16.msra.mxu0 0
    %1482 = vmatpush.bf16.msra.mxu0 %v1473
    %1483 = vmatmul.bf16.gmra.mxu0 %v1470
    %v1484 = vpop.f32.mrf.mxu0
    %v1485 = vadd.f32 0.0, %v1484
    %v1486 = vpop.f32.mrf.mxu0
    %1487 = vdwg.mxu0
    %1489 = vrot.lane.b32.xlu0 %v1485, 16
    %v1490 = vpop.permute.xlu0 %1489
    %1492 = vst.msk [vmem:[#allocation2] sm:$0xff] %vm651, %v1490
    %1493 = vrot.lane.b32.xlu0 %v1364, 104
    %v1494 = vpop.permute.xlu0 %1493
    %1495 = vrot.lane.b32.xlu0 %v1369, 104
    %v1496 = vpop.permute.xlu0 %1495
    %v1498 = vsel %vm467, %v1494, 0
    %v1501 = vsel %vm467, %v1496, 0
    %1503 = vmatpush.bf16.xpose.msra.mxu0 0
    %1504 = vmatpush.bf16.xpose.msra.mxu0 0
    %1505 = vmatpush.bf16.xpose.msra.mxu0 0
    %1506 = vmatpush.bf16.xpose.msra.mxu0 0
    %1507 = vmatpush.bf16.xpose.msra.mxu0 0
    %1508 = vmatpush.bf16.xpose.msra.mxu0 0
    %1509 = vmatpush.bf16.xpose.msra.mxu0 0
    %1510 = vmatpush.bf16.xpose.msra.mxu0 %v1501
    %1511 = vmatmul.bf16.gmra.mxu0 %v1498
    %v1512 = vpop.f32.mrf.mxu0
    %v1513 = vadd.f32 0.0, %v1512
    %v1514 = vpop.f32.mrf.mxu0
    %1515 = vdwg.mxu0
    %v1516 = vsel %vm467, %v1513, -inf
    %1517 = vmax.xlane.f32.xlu0 %v1516
    %v1518 = vpop.xlane.xlu0 %1517
    %v1519 = vsub.f32 %v1513, %v1518
    %v1520 = vmul.f32 %v1519, 1.442695
    %v1521 = vpow.pop %v1520
    %v1522 = vsel %vm467, %v1521, 0.0
    %1523 = vadd.xlane.f32.xlu0 %v1522
    %v1524 = vpop.xlane.xlu0 %1523
    %v1525 = vrcp.pop %v1524
    %v1526 = vmul.f32 %v1521, %v1525
    %v1527 = vpack.c.bf16 %v1526, %v1526
    %1528 = vrot.lane.b32.xlu0 %v1405, 104
    %v1529 = vpop.permute.xlu0 %1528
    %v1531 = vsel %vm467, %v1527, 0
    %v1534 = vsel %vm502, %v1529, 0
    %1536 = vmatpush.bf16.msra.mxu0 0
    %1537 = vmatpush.bf16.msra.mxu0 0
    %1538 = vmatpush.bf16.msra.mxu0 0
    %1539 = vmatpush.bf16.msra.mxu0 0
    %1540 = vmatpush.bf16.msra.mxu0 0
    %1541 = vmatpush.bf16.msra.mxu0 0
    %1542 = vmatpush.bf16.msra.mxu0 0
    %1543 = vmatpush.bf16.msra.mxu0 %v1534
    %1544 = vmatmul.bf16.gmra.mxu0 %v1531
    %v1545 = vpop.f32.mrf.mxu0
    %v1546 = vadd.f32 0.0, %v1545
    %v1547 = vpop.f32.mrf.mxu0
    %1548 = vdwg.mxu0
    %1550 = vrot.lane.b32.xlu0 %v1546, 24
    %v1551 = vpop.permute.xlu0 %1550
    %1553 = vst.msk [vmem:[#allocation2] sm:$0xff] %vm713, %v1551
    %v1555 = vsel %vm467, %v1254, 0
    %v1558 = vsel %vm467, %v1282, 0
    %1560 = vmatpush.bf16.xpose.msra.mxu0 0
    %1561 = vmatpush.bf16.xpose.msra.mxu0 0
    %1562 = vmatpush.bf16.xpose.msra.mxu0 0
    %1563 = vmatpush.bf16.xpose.msra.mxu0 0
    %1564 = vmatpush.bf16.xpose.msra.mxu0 0
    %1565 = vmatpush.bf16.xpose.msra.mxu0 0
    %1566 = vmatpush.bf16.xpose.msra.mxu0 0
    %1567 = vmatpush.bf16.xpose.msra.mxu0 %v1558
    %1568 = vmatmul.bf16.gmra.mxu0 %v1555
    %v1569 = vpop.f32.mrf.mxu0
    %v1570 = vadd.f32 0.0, %v1569
    %v1571 = vpop.f32.mrf.mxu0
    %1572 = vdwg.mxu0
    %v1573 = vsel %vm467, %v1570, -inf
    %1574 = vmax.xlane.f32.xlu0 %v1573
    %v1575 = vpop.xlane.xlu0 %1574
    %v1576 = vsub.f32 %v1570, %v1575
    %v1577 = vmul.f32 %v1576, 1.442695
    %v1578 = vpow.pop %v1577
    %v1579 = vsel %vm467, %v1578, 0.0
    %1580 = vadd.xlane.f32.xlu0 %v1579
    %v1581 = vpop.xlane.xlu0 %1580
    %v1582 = vrcp.pop %v1581
    %v1583 = vmul.f32 %v1578, %v1582
    %v1584 = vpack.c.bf16 %v1583, %v1583
    %v1586 = vsel %vm467, %v1584, 0
    %v1589 = vsel %vm502, %v1310, 0
    %1591 = vmatpush.bf16.msra.mxu0 0
    %1592 = vmatpush.bf16.msra.mxu0 0
    %1593 = vmatpush.bf16.msra.mxu0 0
    %1594 = vmatpush.bf16.msra.mxu0 0
    %1595 = vmatpush.bf16.msra.mxu0 0
    %1596 = vmatpush.bf16.msra.mxu0 0
    %1597 = vmatpush.bf16.msra.mxu0 0
    %1598 = vmatpush.bf16.msra.mxu0 %v1589
    %1599 = vmatmul.bf16.gmra.mxu0 %v1586
    %v1600 = vpop.f32.mrf.mxu0
    %v1601 = vadd.f32 0.0, %v1600
    %v1602 = vpop.f32.mrf.mxu0
    %1603 = vdwg.mxu0
    %1604 = vst.msk [vmem:[#allocation2 + $0x8] sm:$0xff] %vm467, %v1601
    %v1606 = vunpack.c.l.b16 %v1254
    %v1607 = vpack.c.b16 %v1606, %v1606
    %1608 = vrot.lane.b32.xlu0 %v1607, 120
    %v1609 = vpop.permute.xlu0 %1608
    %v1611 = vunpack.c.l.b16 %v1282
    %v1612 = vpack.c.b16 %v1611, %v1611
    %1613 = vrot.lane.b32.xlu0 %v1612, 120
    %v1614 = vpop.permute.xlu0 %1613
    %v1616 = vsel %vm467, %v1609, 0
    %v1619 = vsel %vm467, %v1614, 0
    %1621 = vmatpush.bf16.xpose.msra.mxu0 0
    %1622 = vmatpush.bf16.xpose.msra.mxu0 0
    %1623 = vmatpush.bf16.xpose.msra.mxu0 0
    %1624 = vmatpush.bf16.xpose.msra.mxu0 0
    %1625 = vmatpush.bf16.xpose.msra.mxu0 0
    %1626 = vmatpush.bf16.xpose.msra.mxu0 0
    %1627 = vmatpush.bf16.xpose.msra.mxu0 0
    %1628 = vmatpush.bf16.xpose.msra.mxu0 %v1619
    %1629 = vmatmul.bf16.gmra.mxu0 %v1616
    %v1630 = vpop.f32.mrf.mxu0
    %v1631 = vadd.f32 0.0, %v1630
    %v1632 = vpop.f32.mrf.mxu0
    %1633 = vdwg.mxu0
    %v1634 = vsel %vm467, %v1631, -inf
    %1635 = vmax.xlane.f32.xlu0 %v1634
    %v1636 = vpop.xlane.xlu0 %1635
    %v1637 = vsub.f32 %v1631, %v1636
    %v1638 = vmul.f32 %v1637, 1.442695
    %v1639 = vpow.pop %v1638
    %v1640 = vsel %vm467, %v1639, 0.0
    %1641 = vadd.xlane.f32.xlu0 %v1640
    %v1642 = vpop.xlane.xlu0 %1641
    %v1643 = vrcp.pop %v1642
    %v1644 = vmul.f32 %v1639, %v1643
    %v1645 = vpack.c.bf16 %v1644, %v1644
    %v1647 = vunpack.c.l.b16 %v1310
    %v1648 = vpack.c.b16 %v1647, %v1647
    %1649 = vrot.lane.b32.xlu0 %v1648, 120
    %v1650 = vpop.permute.xlu0 %1649
    %v1652 = vsel %vm467, %v1645, 0
    %v1655 = vsel %vm502, %v1650, 0
    %1657 = vmatpush.bf16.msra.mxu0 0
    %1658 = vmatpush.bf16.msra.mxu0 0
    %1659 = vmatpush.bf16.msra.mxu0 0
    %1660 = vmatpush.bf16.msra.mxu0 0
    %1661 = vmatpush.bf16.msra.mxu0 0
    %1662 = vmatpush.bf16.msra.mxu0 0
    %1663 = vmatpush.bf16.msra.mxu0 0
    %1664 = vmatpush.bf16.msra.mxu0 %v1655
    %1665 = vmatmul.bf16.gmra.mxu0 %v1652
    %v1666 = vpop.f32.mrf.mxu0
    %v1667 = vadd.f32 0.0, %v1666
    %v1668 = vpop.f32.mrf.mxu0
    %1669 = vdwg.mxu0
    %1671 = vrot.lane.b32.xlu0 %v1667, 8
    %v1672 = vpop.permute.xlu0 %1671
    %1674 = vst.msk [vmem:[#allocation2 + $0x8] sm:$0xff] %vm589, %v1672
    %1675 = vrot.lane.b32.xlu0 %v1607, 112
    %v1676 = vpop.permute.xlu0 %1675
    %1677 = vrot.lane.b32.xlu0 %v1612, 112
    %v1678 = vpop.permute.xlu0 %1677
    %v1680 = vsel %vm467, %v1676, 0
    %v1683 = vsel %vm467, %v1678, 0
    %1685 = vmatpush.bf16.xpose.msra.mxu0 0
    %1686 = vmatpush.bf16.xpose.msra.mxu0 0
    %1687 = vmatpush.bf16.xpose.msra.mxu0 0
    %1688 = vmatpush.bf16.xpose.msra.mxu0 0
    %1689 = vmatpush.bf16.xpose.msra.mxu0 0
    %1690 = vmatpush.bf16.xpose.msra.mxu0 0
    %1691 = vmatpush.bf16.xpose.msra.mxu0 0
    %1692 = vmatpush.bf16.xpose.msra.mxu0 %v1683
    %1693 = vmatmul.bf16.gmra.mxu0 %v1680
    %v1694 = vpop.f32.mrf.mxu0
    %v1695 = vadd.f32 0.0, %v1694
    %v1696 = vpop.f32.mrf.mxu0
    %1697 = vdwg.mxu0
    %v1698 = vsel %vm467, %v1695, -inf
    %1699 = vmax.xlane.f32.xlu0 %v1698
    %v1700 = vpop.xlane.xlu0 %1699
    %v1701 = vsub.f32 %v1695, %v1700
    %v1702 = vmul.f32 %v1701, 1.442695
    %v1703 = vpow.pop %v1702
    %v1704 = vsel %vm467, %v1703, 0.0
    %1705 = vadd.xlane.f32.xlu0 %v1704
    %v1706 = vpop.xlane.xlu0 %1705
    %v1707 = vrcp.pop %v1706
    %v1708 = vmul.f32 %v1703, %v1707
    %v1709 = vpack.c.bf16 %v1708, %v1708
    %1710 = vrot.lane.b32.xlu0 %v1648, 112
    %v1711 = vpop.permute.xlu0 %1710
    %v1713 = vsel %vm467, %v1709, 0
    %v1716 = vsel %vm502, %v1711, 0
    %1718 = vmatpush.bf16.msra.mxu0 0
    %1719 = vmatpush.bf16.msra.mxu0 0
    %1720 = vmatpush.bf16.msra.mxu0 0
    %1721 = vmatpush.bf16.msra.mxu0 0
    %1722 = vmatpush.bf16.msra.mxu0 0
    %1723 = vmatpush.bf16.msra.mxu0 0
    %1724 = vmatpush.bf16.msra.mxu0 0
    %1725 = vmatpush.bf16.msra.mxu0 %v1716
    %1726 = vmatmul.bf16.gmra.mxu0 %v1713
    %v1727 = vpop.f32.mrf.mxu0
    %v1728 = vadd.f32 0.0, %v1727
    %v1729 = vpop.f32.mrf.mxu0
    %1730 = vdwg.mxu0
    %1732 = vrot.lane.b32.xlu0 %v1728, 16
    %v1733 = vpop.permute.xlu0 %1732
    %1735 = vst.msk [vmem:[#allocation2 + $0x8] sm:$0xff] %vm651, %v1733
    %1736 = vrot.lane.b32.xlu0 %v1607, 104
    %v1737 = vpop.permute.xlu0 %1736
    %1738 = vrot.lane.b32.xlu0 %v1612, 104
    %v1739 = vpop.permute.xlu0 %1738
    %v1741 = vsel %vm467, %v1737, 0
    %v1744 = vsel %vm467, %v1739, 0
    %1746 = vmatpush.bf16.xpose.msra.mxu0 0
    %1747 = vmatpush.bf16.xpose.msra.mxu0 0
    %1748 = vmatpush.bf16.xpose.msra.mxu0 0
    %1749 = vmatpush.bf16.xpose.msra.mxu0 0
    %1750 = vmatpush.bf16.xpose.msra.mxu0 0
    %1751 = vmatpush.bf16.xpose.msra.mxu0 0
    %1752 = vmatpush.bf16.xpose.msra.mxu0 0
    %1753 = vmatpush.bf16.xpose.msra.mxu0 %v1744
    %1754 = vmatmul.bf16.gmra.mxu0 %v1741
    %v1755 = vpop.f32.mrf.mxu0
    %v1756 = vadd.f32 0.0, %v1755
    %v1757 = vpop.f32.mrf.mxu0
    %1758 = vdwg.mxu0
    %v1759 = vsel %vm467, %v1756, -inf
    %1760 = vmax.xlane.f32.xlu0 %v1759
    %v1761 = vpop.xlane.xlu0 %1760
    %v1762 = vsub.f32 %v1756, %v1761
    %v1763 = vmul.f32 %v1762, 1.442695
    %v1764 = vpow.pop %v1763
    %v1765 = vsel %vm467, %v1764, 0.0
    %1766 = vadd.xlane.f32.xlu0 %v1765
    %v1767 = vpop.xlane.xlu0 %1766
    %v1768 = vrcp.pop %v1767
    %v1769 = vmul.f32 %v1764, %v1768
    %v1770 = vpack.c.bf16 %v1769, %v1769
    %1771 = vrot.lane.b32.xlu0 %v1648, 104
    %v1772 = vpop.permute.xlu0 %1771
    %v1774 = vsel %vm467, %v1770, 0
    %v1777 = vsel %vm502, %v1772, 0
    %1779 = vmatpush.bf16.msra.mxu0 0
    %1780 = vmatpush.bf16.msra.mxu0 0
    %1781 = vmatpush.bf16.msra.mxu0 0
    %1782 = vmatpush.bf16.msra.mxu0 0
    %1783 = vmatpush.bf16.msra.mxu0 0
    %1784 = vmatpush.bf16.msra.mxu0 0
    %1785 = vmatpush.bf16.msra.mxu0 0
    %1786 = vmatpush.bf16.msra.mxu0 %v1777
    %1787 = vmatmul.bf16.gmra.mxu0 %v1774
    %v1788 = vpop.f32.mrf.mxu0
    %v1789 = vadd.f32 0.0, %v1788
    %v1790 = vpop.f32.mrf.mxu0
    %1791 = vdwg.mxu0
    %1793 = vrot.lane.b32.xlu0 %v1789, 24
    %v1794 = vpop.permute.xlu0 %1793
    %1796 = vst.msk [vmem:[#allocation2 + $0x8] sm:$0xff] %vm713, %v1794
    %v1797 = vld [vmem:[#allocation2] sm:$0xff]
    %v1798 = vld [vmem:[#allocation2 + $0x8] sm:$0xff]
    %v1799 = vpack.c.bf16 %v1798, %v1797
    %v1804 = vunpack.c.l.b16 %v1213
    %v1805 = vunpack.c.l.b16 %v1214
    %v1806 = vunpack.c.l.b16 %v1215
    %v1807 = vunpack.c.l.b16 %v1216
    %v1808 = vpack.c.b16 %v1805, %v1804
    %v1809 = vpack.c.b16 %v1807, %v1806
    %v1813 = vsel %vm297, %v1799, 0
    %1815 = vmatpush.bf16.msra.mxu0 0
    %1816 = vmatpush.bf16.msra.mxu0 0
    %1817 = vmatpush.bf16.msra.mxu0 0
    %1818 = vmatpush.bf16.msra.mxu0 0
    %1819 = vmatpush.bf16.msra.mxu0 0
    %1820 = vmatpush.bf16.msra.mxu0 0
    %1821 = vmatpush.bf16.msra.mxu0 %v1809
    %1822 = vmatpush.bf16.msra.mxu0 %v1808
    %1823 = vmatmul.bf16.gmra.mxu0 %v1813
    %v1824 = vpop.f32.mrf.mxu0
    %v1825 = vadd.f32 %v1195, %v1824
    %v1826 = vpop.f32.mrf.mxu0
    %v1827 = vadd.f32 %v1196, %v1826
    %1828 = vdwg.mxu0
    %v1829 = vsel %vm297, %v1825, 0.0
    %1830 = vadd.xlane.f32.xlu0 %v1829
    %v1831 = vpop.xlane.xlu0 %1830
    %v1832 = vsel %vm297, %v1827, 0.0
    %1833 = vadd.xlane.f32.xlu0 %v1832
    %v1834 = vpop.xlane.xlu0 %1833
    %v1835 = vmul.f32 %v1831, %v310
    %v1836 = vmul.f32 %v1834, %v310
    %v1837 = vsub.f32 %v1825, %v1835
    %v1838 = vsub.f32 %v1827, %v1836
    %v1839 = vmul.f32 %v1837, %v1837
    %v1840 = vmul.f32 %v1838, %v1838
    %v1841 = vsel %vm297, %v1839, 0.0
    %1842 = vadd.xlane.f32.xlu0 %v1841
    %v1843 = vpop.xlane.xlu0 %1842
    %v1844 = vsel %vm297, %v1840, 0.0
    %1845 = vadd.xlane.f32.xlu0 %v1844
    %v1846 = vpop.xlane.xlu0 %1845
    %v1847 = vmul.f32 %v1843, %v310
    %v1848 = vmul.f32 %v1846, %v310
    %v1849 = vadd.f32 %v1847, 1e-06
    %v1850 = vadd.f32 %v1848, 1e-06
    %v1851 = vrsqrt.pop %v1849
    %v1852 = vmul.f32 %v1851, %v1849
    %v1853 = vmul.f32 %v1852, %v1851
    %v1854 = vmul.f32 0.5, %v1853
    %v1855 = vsub.f32 1.5, %v1854
    %v1856 = vmul.f32 %v1851, %v1855
    %vm1857 = vweird.f32 %v1849
    %vm1858 = vweird.f32 %v1851
    %vm1859 = vmor %vm1857, %vm1858
    %v1860 = vsel %vm1859, %v1851, %v1856
    %v1861 = vrsqrt.pop %v1850
    %v1862 = vmul.f32 %v1861, %v1850
    %v1863 = vmul.f32 %v1862, %v1861
    %v1864 = vmul.f32 0.5, %v1863
    %v1865 = vsub.f32 1.5, %v1864
    %v1866 = vmul.f32 %v1861, %v1865
    %vm1867 = vweird.f32 %v1850
    %vm1868 = vweird.f32 %v1861
    %vm1869 = vmor %vm1867, %vm1868
    %v1870 = vsel %vm1869, %v1861, %v1866
    %v1871 = vmul.f32 %v1837, %v1860
    %v1872 = vmul.f32 %v1838, %v1870
    %v1874 = vperm.slane %v1218, 0
    %v1876 = vmul.f32 %v1871, %v1874
    %v1877 = vmul.f32 %v1872, %v1874
    %v1879 = vperm.slane %v1220, 0
    %v1881 = vadd.f32 %v1876, %v1879
    %v1882 = vadd.f32 %v1877, %v1879
    %s1883 = scalar_lea.vmem %s19, 16
    %v1884 = vld [vmem:[%s1883] sm:$0xf]
    %v1885 = vld [vmem:[%s1883 + $0x4] sm:$0xf]
    %v1886 = vld [vmem:[%s1883 + $0x8] sm:$0xf]
    %v1887 = vld [vmem:[%s1883 + $0xc] sm:$0xf]
    %s1888 = scalar_lea.vmem %s21, 1
    %v1889 = vld [vmem:[%s1888] sm:$0x1]
    %s1890 = scalar_lea.vmem %s23, 32
    %v1891 = vld [vmem:[%s1890] sm:$0xf]
    %v1892 = vld [vmem:[%s1890 + $0x4] sm:$0xf]
    %v1893 = vld [vmem:[%s1890 + $0x8] sm:$0xf]
    %v1894 = vld [vmem:[%s1890 + $0xc] sm:$0xf]
    %v1895 = vld [vmem:[%s1890 + $0x10] sm:$0xf]
    %v1896 = vld [vmem:[%s1890 + $0x14] sm:$0xf]
    %v1897 = vld [vmem:[%s1890 + $0x18] sm:$0xf]
    %v1898 = vld [vmem:[%s1890 + $0x1c] sm:$0xf]
    %s1899 = scalar_lea.vmem %s25, 1
    %v1900 = vld [vmem:[%s1899] sm:$0x1]
    %s1901 = scalar_lea.vmem %s27, 1
    %v1902 = vld [vmem:[%s1901] sm:$0x1]
    %s1903 = scalar_lea.vmem %s29, 1
    %v1904 = vld [vmem:[%s1903] sm:$0x1]
    %v1905 = vpack.c.bf16 %v1882, %v1881
    %v1907 = vperm.slane %v1889, 0
    %v1913 = vunpack.c.l.b16 %v1884
    %v1914 = vunpack.c.l.b16 %v1885
    %v1915 = vunpack.c.l.b16 %v1886
    %v1916 = vunpack.c.l.b16 %v1887
    %v1917 = vpack.c.b16 %v1914, %v1913
    %v1918 = vpack.c.b16 %v1916, %v1915
    %v1922 = vsel %vm297, %v1905, 0
    %1924 = vmatpush.bf16.msra.mxu0 0
    %1925 = vmatpush.bf16.msra.mxu0 0
    %1926 = vmatpush.bf16.msra.mxu0 0
    %1927 = vmatpush.bf16.msra.mxu0 0
    %1928 = vmatpush.bf16.msra.mxu0 0
    %1929 = vmatpush.bf16.msra.mxu0 0
    %1930 = vmatpush.bf16.msra.mxu0 %v1918
    %1931 = vmatpush.bf16.msra.mxu0 %v1917
    %1932 = vmatmul.bf16.gmra.mxu0 %v1922
    %v1933 = vpop.f32.mrf.mxu0
    %v1934 = vadd.f32 %v1907, %v1933
    %v1935 = vpop.f32.mrf.mxu0
    %v1936 = vadd.f32 %v1907, %v1935
    %1937 = vdwg.mxu0
    %v1938 = vmax.f32 %v1934, 0.0
    %v1939 = vmax.f32 %v1936, 0.0
    %v1940 = vpack.c.bf16 %v1939, %v1938
    %v1942 = vperm.slane %v1900, 0
    %v1952 = vunpack.c.l.b16 %v1891
    %v1953 = vunpack.c.l.b16 %v1892
    %v1954 = vunpack.c.l.b16 %v1893
    %v1955 = vunpack.c.l.b16 %v1894
    %v1956 = vunpack.c.l.b16 %v1895
    %v1957 = vunpack.c.l.b16 %v1896
    %v1958 = vunpack.c.l.b16 %v1897
    %v1959 = vunpack.c.l.b16 %v1898
    %v1960 = vpack.c.b16 %v1953, %v1952
    %v1961 = vpack.c.b16 %v1955, %v1954
    %v1962 = vpack.c.b16 %v1957, %v1956
    %v1963 = vpack.c.b16 %v1959, %v1958
    %v1969 = vsel %vm1123, %v1940, 0
    %1971 = vmatpush.bf16.msra.mxu0 0
    %1972 = vmatpush.bf16.msra.mxu0 0
    %1973 = vmatpush.bf16.msra.mxu0 0
    %1974 = vmatpush.bf16.msra.mxu0 0
    %1975 = vmatpush.bf16.msra.mxu0 %v1963
    %1976 = vmatpush.bf16.msra.mxu0 %v1962
    %1977 = vmatpush.bf16.msra.mxu0 %v1961
    %1978 = vmatpush.bf16.msra.mxu0 %v1960
    %1979 = vmatmul.bf16.gmra.mxu0 %v1969
    %v1980 = vpop.f32.mrf.mxu0
    %v1981 = vadd.f32 %v1942, %v1980
    %v1982 = vpop.f32.mrf.mxu0
    %v1983 = vadd.f32 %v1942, %v1982
    %1984 = vdwg.mxu0
    %v1985 = vadd.f32 %v1981, %v1881
    %v1986 = vadd.f32 %v1983, %v1882
    %v1987 = vsel %vm297, %v1985, 0.0
    %1988 = vadd.xlane.f32.xlu0 %v1987
    %v1989 = vpop.xlane.xlu0 %1988
    %v1990 = vsel %vm297, %v1986, 0.0
    %1991 = vadd.xlane.f32.xlu0 %v1990
    %v1992 = vpop.xlane.xlu0 %1991
    %v1993 = vmul.f32 %v1989, %v310
    %v1994 = vmul.f32 %v1992, %v310
    %v1995 = vsub.f32 %v1985, %v1993
    %v1996 = vsub.f32 %v1986, %v1994
    %v1997 = vmul.f32 %v1995, %v1995
    %v1998 = vmul.f32 %v1996, %v1996
    %v1999 = vsel %vm297, %v1997, 0.0
    %2000 = vadd.xlane.f32.xlu0 %v1999
    %v2001 = vpop.xlane.xlu0 %2000
    %v2002 = vsel %vm297, %v1998, 0.0
    %2003 = vadd.xlane.f32.xlu0 %v2002
    %v2004 = vpop.xlane.xlu0 %2003
    %v2005 = vmul.f32 %v2001, %v310
    %v2006 = vmul.f32 %v2004, %v310
    %v2007 = vadd.f32 %v2005, 1e-06
    %v2008 = vadd.f32 %v2006, 1e-06
    %v2009 = vrsqrt.pop %v2007
    %v2010 = vmul.f32 %v2009, %v2007
    %v2011 = vmul.f32 %v2010, %v2009
    %v2012 = vmul.f32 0.5, %v2011
    %v2013 = vsub.f32 1.5, %v2012
    %v2014 = vmul.f32 %v2009, %v2013
    %vm2015 = vweird.f32 %v2007
    %vm2016 = vweird.f32 %v2009
    %vm2017 = vmor %vm2015, %vm2016
    %v2018 = vsel %vm2017, %v2009, %v2014
    %v2019 = vrsqrt.pop %v2008
    %v2020 = vmul.f32 %v2019, %v2008
    %v2021 = vmul.f32 %v2020, %v2019
    %v2022 = vmul.f32 0.5, %v2021
    %v2023 = vsub.f32 1.5, %v2022
    %v2024 = vmul.f32 %v2019, %v2023
    %vm2025 = vweird.f32 %v2008
    %vm2026 = vweird.f32 %v2019
    %vm2027 = vmor %vm2025, %vm2026
    %v2028 = vsel %vm2027, %v2019, %v2024
    %v2029 = vmul.f32 %v1995, %v2018
    %v2030 = vmul.f32 %v1996, %v2028
    %v2032 = vperm.slane %v1902, 0
    %v2034 = vmul.f32 %v2029, %v2032
    %v2035 = vmul.f32 %v2030, %v2032
    %v2037 = vperm.slane %v1904, 0
    %v2039 = vadd.f32 %v2034, %v2037
    %v2040 = vadd.f32 %v2035, %v2037
    %v2041 = vld [vmem:[%s31] sm:$0xff]
    %v2042 = vld [vmem:[%s31 + $0x8] sm:$0xff]
    %v2043 = vsel %vm297, %v2041, 0.0
    %2044 = vadd.xlane.f32.xlu0 %v2043
    %v2045 = vpop.xlane.xlu0 %2044
    %v2046 = vsel %vm297, %v2042, 0.0
    %2047 = vadd.xlane.f32.xlu0 %v2046
    %v2048 = vpop.xlane.xlu0 %2047
    %v2049 = vmul.f32 %v2045, %v310
    %v2050 = vmul.f32 %v2048, %v310
    %v2051 = vsub.f32 %v2041, %v2049
    %v2052 = vsub.f32 %v2042, %v2050
    %v2053 = vmul.f32 %v2051, %v2051
    %v2054 = vmul.f32 %v2052, %v2052
    %v2055 = vsel %vm297, %v2053, 0.0
    %2056 = vadd.xlane.f32.xlu0 %v2055
    %v2057 = vpop.xlane.xlu0 %2056
    %v2058 = vsel %vm297, %v2054, 0.0
    %2059 = vadd.xlane.f32.xlu0 %v2058
    %v2060 = vpop.xlane.xlu0 %2059
    %v2061 = vmul.f32 %v2057, %v310
    %v2062 = vmul.f32 %v2060, %v310
    %v2063 = vadd.f32 %v2061, 1e-06
    %v2064 = vadd.f32 %v2062, 1e-06
    %v2065 = vrsqrt.pop %v2063
    %v2066 = vmul.f32 %v2065, %v2063
    %v2067 = vmul.f32 %v2066, %v2065
    %v2068 = vmul.f32 0.5, %v2067
    %v2069 = vsub.f32 1.5, %v2068
    %v2070 = vmul.f32 %v2065, %v2069
    %vm2071 = vweird.f32 %v2063
    %vm2072 = vweird.f32 %v2065
    %vm2073 = vmor %vm2071, %vm2072
    %v2074 = vsel %vm2073, %v2065, %v2070
    %v2075 = vrsqrt.pop %v2064
    %v2076 = vmul.f32 %v2075, %v2064
    %v2077 = vmul.f32 %v2076, %v2075
    %v2078 = vmul.f32 0.5, %v2077
    %v2079 = vsub.f32 1.5, %v2078
    %v2080 = vmul.f32 %v2075, %v2079
    %vm2081 = vweird.f32 %v2064
    %vm2082 = vweird.f32 %v2075
    %vm2083 = vmor %vm2081, %vm2082
    %v2084 = vsel %vm2083, %v2075, %v2080
    %v2085 = vmul.f32 %v2051, %v2074
    %v2086 = vmul.f32 %v2052, %v2084
    %v2088 = vperm.slane %v293, 0
    %v2090 = vmul.f32 %v2085, %v2088
    %v2091 = vmul.f32 %v2086, %v2088
    %v2093 = vperm.slane %v294, 0
    %v2095 = vadd.f32 %v2090, %v2093
    %v2096 = vadd.f32 %v2091, %v2093
    %v2097 = vld [vmem:[#allocation3] sm:$0xf]
    %v2098 = vld [vmem:[#allocation3 + $0x4] sm:$0xf]
    %v2099 = vld [vmem:[#allocation3 + $0x8] sm:$0xf]
    %v2100 = vld [vmem:[#allocation3 + $0xc] sm:$0xf]
    %v2101 = vld [vmem:[#allocation5] sm:$0xf]
    %v2102 = vld [vmem:[#allocation5 + $0x4] sm:$0xf]
    %v2103 = vld [vmem:[#allocation5 + $0x8] sm:$0xf]
    %v2104 = vld [vmem:[#allocation5 + $0xc] sm:$0xf]
    %v2105 = vld [vmem:[#allocation7] sm:$0xf]
    %v2106 = vld [vmem:[#allocation7 + $0x4] sm:$0xf]
    %v2107 = vld [vmem:[#allocation7 + $0x8] sm:$0xf]
    %v2108 = vld [vmem:[#allocation7 + $0xc] sm:$0xf]
    %v2109 = vld [vmem:[#allocation8] sm:$0xf]
    %v2110 = vld [vmem:[#allocation8 + $0x4] sm:$0xf]
    %v2111 = vld [vmem:[#allocation8 + $0x8] sm:$0xf]
    %v2112 = vld [vmem:[#allocation8 + $0xc] sm:$0xf]
    %v2113 = vld [vmem:[%s45] sm:$0x1]
    %v2114 = vld [vmem:[%s47] sm:$0x1]
    %v2115 = vpack.c.bf16 %v2096, %v2095
    %v2120 = vunpack.c.l.b16 %v2097
    %v2121 = vunpack.c.l.b16 %v2098
    %v2122 = vunpack.c.l.b16 %v2099
    %v2123 = vunpack.c.l.b16 %v2100
    %v2124 = vpack.c.b16 %v2121, %v2120
    %v2125 = vpack.c.b16 %v2123, %v2122
    %v2129 = vsel %vm297, %v2115, 0
    %2131 = vmatpush.bf16.msra.mxu0 0
    %2132 = vmatpush.bf16.msra.mxu0 0
    %2133 = vmatpush.bf16.msra.mxu0 0
    %2134 = vmatpush.bf16.msra.mxu0 0
    %2135 = vmatpush.bf16.msra.mxu0 0
    %2136 = vmatpush.bf16.msra.mxu0 0
    %2137 = vmatpush.bf16.msra.mxu0 %v2125
    %2138 = vmatpush.bf16.msra.mxu0 %v2124
    %2139 = vmatmul.bf16.gmra.mxu0 %v2129
    %v2140 = vpop.f32.mrf.mxu0
    %v2141 = vadd.f32 0.0, %v2140
    %v2142 = vpop.f32.mrf.mxu0
    %v2143 = vadd.f32 0.0, %v2142
    %2144 = vdwg.mxu0
    %v2145 = vmul.f32 %v2141, 0.35355338
    %v2146 = vmul.f32 %v2143, 0.35355338
    %v2147 = vpack.c.bf16 %v2145, %v2145
    %v2148 = vpack.c.bf16 %v2146, %v2146
    %v2153 = vunpack.c.l.b16 %v2101
    %v2154 = vunpack.c.l.b16 %v2102
    %v2155 = vunpack.c.l.b16 %v2103
    %v2156 = vunpack.c.l.b16 %v2104
    %v2157 = vpack.c.b16 %v2154, %v2153
    %v2158 = vpack.c.b16 %v2156, %v2155
    %2161 = vmatpush.bf16.msra.mxu0 0
    %2162 = vmatpush.bf16.msra.mxu0 0
    %2163 = vmatpush.bf16.msra.mxu0 0
    %2164 = vmatpush.bf16.msra.mxu0 0
    %2165 = vmatpush.bf16.msra.mxu0 0
    %2166 = vmatpush.bf16.msra.mxu0 0
    %2167 = vmatpush.bf16.msra.mxu0 %v2158
    %2168 = vmatpush.bf16.msra.mxu0 %v2157
    %2169 = vmatmul.bf16.gmra.mxu0 %v2129
    %v2170 = vpop.f32.mrf.mxu0
    %v2171 = vadd.f32 0.0, %v2170
    %v2172 = vpop.f32.mrf.mxu0
    %v2173 = vadd.f32 0.0, %v2172
    %2174 = vdwg.mxu0
    %v2175 = vpack.c.bf16 %v2171, %v2171
    %v2176 = vpack.c.bf16 %v2173, %v2173
    %v2181 = vunpack.c.l.b16 %v2105
    %v2182 = vunpack.c.l.b16 %v2106
    %v2183 = vunpack.c.l.b16 %v2107
    %v2184 = vunpack.c.l.b16 %v2108
    %v2185 = vpack.c.b16 %v2182, %v2181
    %v2186 = vpack.c.b16 %v2184, %v2183
    %2189 = vmatpush.bf16.msra.mxu0 0
    %2190 = vmatpush.bf16.msra.mxu0 0
    %2191 = vmatpush.bf16.msra.mxu0 0
    %2192 = vmatpush.bf16.msra.mxu0 0
    %2193 = vmatpush.bf16.msra.mxu0 0
    %2194 = vmatpush.bf16.msra.mxu0 0
    %2195 = vmatpush.bf16.msra.mxu0 %v2186
    %2196 = vmatpush.bf16.msra.mxu0 %v2185
    %2197 = vmatmul.bf16.gmra.mxu0 %v2129
    %v2198 = vpop.f32.mrf.mxu0
    %v2199 = vadd.f32 0.0, %v2198
    %v2200 = vpop.f32.mrf.mxu0
    %v2201 = vadd.f32 0.0, %v2200
    %2202 = vdwg.mxu0
    %v2203 = vpack.c.bf16 %v2199, %v2199
    %v2204 = vpack.c.bf16 %v2201, %v2201
    %v2206 = vsel %vm467, %v2147, 0
    %v2209 = vsel %vm467, %v2175, 0
    %2211 = vmatpush.bf16.xpose.msra.mxu0 0
    %2212 = vmatpush.bf16.xpose.msra.mxu0 0
    %2213 = vmatpush.bf16.xpose.msra.mxu0 0
    %2214 = vmatpush.bf16.xpose.msra.mxu0 0
    %2215 = vmatpush.bf16.xpose.msra.mxu0 0
    %2216 = vmatpush.bf16.xpose.msra.mxu0 0
    %2217 = vmatpush.bf16.xpose.msra.mxu0 0
    %2218 = vmatpush.bf16.xpose.msra.mxu0 %v2209
    %2219 = vmatmul.bf16.gmra.mxu0 %v2206
    %v2220 = vpop.f32.mrf.mxu0
    %v2221 = vadd.f32 0.0, %v2220
    %v2222 = vpop.f32.mrf.mxu0
    %2223 = vdwg.mxu0
    %v2224 = vsel %vm467, %v2221, -inf
    %2225 = vmax.xlane.f32.xlu0 %v2224
    %v2226 = vpop.xlane.xlu0 %2225
    %v2227 = vsub.f32 %v2221, %v2226
    %v2228 = vmul.f32 %v2227, 1.442695
    %v2229 = vpow.pop %v2228
    %v2230 = vsel %vm467, %v2229, 0.0
    %2231 = vadd.xlane.f32.xlu0 %v2230
    %v2232 = vpop.xlane.xlu0 %2231
    %v2233 = vrcp.pop %v2232
    %v2234 = vmul.f32 %v2229, %v2233
    %v2235 = vpack.c.bf16 %v2234, %v2234
    %v2237 = vsel %vm467, %v2235, 0
    %v2240 = vsel %vm502, %v2203, 0
    %2242 = vmatpush.bf16.msra.mxu0 0
    %2243 = vmatpush.bf16.msra.mxu0 0
    %2244 = vmatpush.bf16.msra.mxu0 0
    %2245 = vmatpush.bf16.msra.mxu0 0
    %2246 = vmatpush.bf16.msra.mxu0 0
    %2247 = vmatpush.bf16.msra.mxu0 0
    %2248 = vmatpush.bf16.msra.mxu0 0
    %2249 = vmatpush.bf16.msra.mxu0 %v2240
    %2250 = vmatmul.bf16.gmra.mxu0 %v2237
    %v2251 = vpop.f32.mrf.mxu0
    %v2252 = vadd.f32 0.0, %v2251
    %v2253 = vpop.f32.mrf.mxu0
    %2254 = vdwg.mxu0
    %2255 = vst.msk [vmem:[#allocation2] sm:$0xff] %vm467, %v2252
    %v2257 = vunpack.c.l.b16 %v2147
    %v2258 = vpack.c.b16 %v2257, %v2257
    %2259 = vrot.lane.b32.xlu0 %v2258, 120
    %v2260 = vpop.permute.xlu0 %2259
    %v2262 = vunpack.c.l.b16 %v2175
    %v2263 = vpack.c.b16 %v2262, %v2262
    %2264 = vrot.lane.b32.xlu0 %v2263, 120
    %v2265 = vpop.permute.xlu0 %2264
    %v2267 = vsel %vm467, %v2260, 0
    %v2270 = vsel %vm467, %v2265, 0
    %2272 = vmatpush.bf16.xpose.msra.mxu0 0
    %2273 = vmatpush.bf16.xpose.msra.mxu0 0
    %2274 = vmatpush.bf16.xpose.msra.mxu0 0
    %2275 = vmatpush.bf16.xpose.msra.mxu0 0
    %2276 = vmatpush.bf16.xpose.msra.mxu0 0
    %2277 = vmatpush.bf16.xpose.msra.mxu0 0
    %2278 = vmatpush.bf16.xpose.msra.mxu0 0
    %2279 = vmatpush.bf16.xpose.msra.mxu0 %v2270
    %2280 = vmatmul.bf16.gmra.mxu0 %v2267
    %v2281 = vpop.f32.mrf.mxu0
    %v2282 = vadd.f32 0.0, %v2281
    %v2283 = vpop.f32.mrf.mxu0
    %2284 = vdwg.mxu0
    %v2285 = vsel %vm467, %v2282, -inf
    %2286 = vmax.xlane.f32.xlu0 %v2285
    %v2287 = vpop.xlane.xlu0 %2286
    %v2288 = vsub.f32 %v2282, %v2287
    %v2289 = vmul.f32 %v2288, 1.442695
    %v2290 = vpow.pop %v2289
    %v2291 = vsel %vm467, %v2290, 0.0
    %2292 = vadd.xlane.f32.xlu0 %v2291
    %v2293 = vpop.xlane.xlu0 %2292
    %v2294 = vrcp.pop %v2293
    %v2295 = vmul.f32 %v2290, %v2294
    %v2296 = vpack.c.bf16 %v2295, %v2295
    %v2298 = vunpack.c.l.b16 %v2203
    %v2299 = vpack.c.b16 %v2298, %v2298
    %2300 = vrot.lane.b32.xlu0 %v2299, 120
    %v2301 = vpop.permute.xlu0 %2300
    %v2303 = vsel %vm467, %v2296, 0
    %v2306 = vsel %vm502, %v2301, 0
    %2308 = vmatpush.bf16.msra.mxu0 0
    %2309 = vmatpush.bf16.msra.mxu0 0
    %2310 = vmatpush.bf16.msra.mxu0 0
    %2311 = vmatpush.bf16.msra.mxu0 0
    %2312 = vmatpush.bf16.msra.mxu0 0
    %2313 = vmatpush.bf16.msra.mxu0 0
    %2314 = vmatpush.bf16.msra.mxu0 0
    %2315 = vmatpush.bf16.msra.mxu0 %v2306
    %2316 = vmatmul.bf16.gmra.mxu0 %v2303
    %v2317 = vpop.f32.mrf.mxu0
    %v2318 = vadd.f32 0.0, %v2317
    %v2319 = vpop.f32.mrf.mxu0
    %2320 = vdwg.mxu0
    %2322 = vrot.lane.b32.xlu0 %v2318, 8
    %v2323 = vpop.permute.xlu0 %2322
    %2325 = vst.msk [vmem:[#allocation2] sm:$0xff] %vm589, %v2323
    %2326 = vrot.lane.b32.xlu0 %v2258, 112
    %v2327 = vpop.permute.xlu0 %2326
    %2328 = vrot.lane.b32.xlu0 %v2263, 112
    %v2329 = vpop.permute.xlu0 %2328
    %v2331 = vsel %vm467, %v2327, 0
    %v2334 = vsel %vm467, %v2329, 0
    %2336 = vmatpush.bf16.xpose.msra.mxu0 0
    %2337 = vmatpush.bf16.xpose.msra.mxu0 0
    %2338 = vmatpush.bf16.xpose.msra.mxu0 0
    %2339 = vmatpush.bf16.xpose.msra.mxu0 0
    %2340 = vmatpush.bf16.xpose.msra.mxu0 0
    %2341 = vmatpush.bf16.xpose.msra.mxu0 0
    %2342 = vmatpush.bf16.xpose.msra.mxu0 0
    %2343 = vmatpush.bf16.xpose.msra.mxu0 %v2334
    %2344 = vmatmul.bf16.gmra.mxu0 %v2331
    %v2345 = vpop.f32.mrf.mxu0
    %v2346 = vadd.f32 0.0, %v2345
    %v2347 = vpop.f32.mrf.mxu0
    %2348 = vdwg.mxu0
    %v2349 = vsel %vm467, %v2346, -inf
    %2350 = vmax.xlane.f32.xlu0 %v2349
    %v2351 = vpop.xlane.xlu0 %2350
    %v2352 = vsub.f32 %v2346, %v2351
    %v2353 = vmul.f32 %v2352, 1.442695
    %v2354 = vpow.pop %v2353
    %v2355 = vsel %vm467, %v2354, 0.0
    %2356 = vadd.xlane.f32.xlu0 %v2355
    %v2357 = vpop.xlane.xlu0 %2356
    %v2358 = vrcp.pop %v2357
    %v2359 = vmul.f32 %v2354, %v2358
    %v2360 = vpack.c.bf16 %v2359, %v2359
    %2361 = vrot.lane.b32.xlu0 %v2299, 112
    %v2362 = vpop.permute.xlu0 %2361
    %v2364 = vsel %vm467, %v2360, 0
    %v2367 = vsel %vm502, %v2362, 0
    %2369 = vmatpush.bf16.msra.mxu0 0
    %2370 = vmatpush.bf16.msra.mxu0 0
    %2371 = vmatpush.bf16.msra.mxu0 0
    %2372 = vmatpush.bf16.msra.mxu0 0
    %2373 = vmatpush.bf16.msra.mxu0 0
    %2374 = vmatpush.bf16.msra.mxu0 0
    %2375 = vmatpush.bf16.msra.mxu0 0
    %2376 = vmatpush.bf16.msra.mxu0 %v2367
    %2377 = vmatmul.bf16.gmra.mxu0 %v2364
    %v2378 = vpop.f32.mrf.mxu0
    %v2379 = vadd.f32 0.0, %v2378
    %v2380 = vpop.f32.mrf.mxu0
    %2381 = vdwg.mxu0
    %2383 = vrot.lane.b32.xlu0 %v2379, 16
    %v2384 = vpop.permute.xlu0 %2383
    %2386 = vst.msk [vmem:[#allocation2] sm:$0xff] %vm651, %v2384
    %2387 = vrot.lane.b32.xlu0 %v2258, 104
    %v2388 = vpop.permute.xlu0 %2387
    %2389 = vrot.lane.b32.xlu0 %v2263, 104
    %v2390 = vpop.permute.xlu0 %2389
    %v2392 = vsel %vm467, %v2388, 0
    %v2395 = vsel %vm467, %v2390, 0
    %2397 = vmatpush.bf16.xpose.msra.mxu0 0
    %2398 = vmatpush.bf16.xpose.msra.mxu0 0
    %2399 = vmatpush.bf16.xpose.msra.mxu0 0
    %2400 = vmatpush.bf16.xpose.msra.mxu0 0
    %2401 = vmatpush.bf16.xpose.msra.mxu0 0
    %2402 = vmatpush.bf16.xpose.msra.mxu0 0
    %2403 = vmatpush.bf16.xpose.msra.mxu0 0
    %2404 = vmatpush.bf16.xpose.msra.mxu0 %v2395
    %2405 = vmatmul.bf16.gmra.mxu0 %v2392
    %v2406 = vpop.f32.mrf.mxu0
    %v2407 = vadd.f32 0.0, %v2406
    %v2408 = vpop.f32.mrf.mxu0
    %2409 = vdwg.mxu0
    %v2410 = vsel %vm467, %v2407, -inf
    %2411 = vmax.xlane.f32.xlu0 %v2410
    %v2412 = vpop.xlane.xlu0 %2411
    %v2413 = vsub.f32 %v2407, %v2412
    %v2414 = vmul.f32 %v2413, 1.442695
    %v2415 = vpow.pop %v2414
    %v2416 = vsel %vm467, %v2415, 0.0
    %2417 = vadd.xlane.f32.xlu0 %v2416
    %v2418 = vpop.xlane.xlu0 %2417
    %v2419 = vrcp.pop %v2418
    %v2420 = vmul.f32 %v2415, %v2419
    %v2421 = vpack.c.bf16 %v2420, %v2420
    %2422 = vrot.lane.b32.xlu0 %v2299, 104
    %v2423 = vpop.permute.xlu0 %2422
    %v2425 = vsel %vm467, %v2421, 0
    %v2428 = vsel %vm502, %v2423, 0
    %2430 = vmatpush.bf16.msra.mxu0 0
    %2431 = vmatpush.bf16.msra.mxu0 0
    %2432 = vmatpush.bf16.msra.mxu0 0
    %2433 = vmatpush.bf16.msra.mxu0 0
    %2434 = vmatpush.bf16.msra.mxu0 0
    %2435 = vmatpush.bf16.msra.mxu0 0
    %2436 = vmatpush.bf16.msra.mxu0 0
    %2437 = vmatpush.bf16.msra.mxu0 %v2428
    %2438 = vmatmul.bf16.gmra.mxu0 %v2425
    %v2439 = vpop.f32.mrf.mxu0
    %v2440 = vadd.f32 0.0, %v2439
    %v2441 = vpop.f32.mrf.mxu0
    %2442 = vdwg.mxu0
    %2444 = vrot.lane.b32.xlu0 %v2440, 24
    %v2445 = vpop.permute.xlu0 %2444
    %2447 = vst.msk [vmem:[#allocation2] sm:$0xff] %vm713, %v2445
    %v2449 = vsel %vm467, %v2148, 0
    %v2452 = vsel %vm467, %v2176, 0
    %2454 = vmatpush.bf16.xpose.msra.mxu0 0
    %2455 = vmatpush.bf16.xpose.msra.mxu0 0
    %2456 = vmatpush.bf16.xpose.msra.mxu0 0
    %2457 = vmatpush.bf16.xpose.msra.mxu0 0
    %2458 = vmatpush.bf16.xpose.msra.mxu0 0
    %2459 = vmatpush.bf16.xpose.msra.mxu0 0
    %2460 = vmatpush.bf16.xpose.msra.mxu0 0
    %2461 = vmatpush.bf16.xpose.msra.mxu0 %v2452
    %2462 = vmatmul.bf16.gmra.mxu0 %v2449
    %v2463 = vpop.f32.mrf.mxu0
    %v2464 = vadd.f32 0.0, %v2463
    %v2465 = vpop.f32.mrf.mxu0
    %2466 = vdwg.mxu0
    %v2467 = vsel %vm467, %v2464, -inf
    %2468 = vmax.xlane.f32.xlu0 %v2467
    %v2469 = vpop.xlane.xlu0 %2468
    %v2470 = vsub.f32 %v2464, %v2469
    %v2471 = vmul.f32 %v2470, 1.442695
    %v2472 = vpow.pop %v2471
    %v2473 = vsel %vm467, %v2472, 0.0
    %2474 = vadd.xlane.f32.xlu0 %v2473
    %v2475 = vpop.xlane.xlu0 %2474
    %v2476 = vrcp.pop %v2475
    %v2477 = vmul.f32 %v2472, %v2476
    %v2478 = vpack.c.bf16 %v2477, %v2477
    %v2480 = vsel %vm467, %v2478, 0
    %v2483 = vsel %vm502, %v2204, 0
    %2485 = vmatpush.bf16.msra.mxu0 0
    %2486 = vmatpush.bf16.msra.mxu0 0
    %2487 = vmatpush.bf16.msra.mxu0 0
    %2488 = vmatpush.bf16.msra.mxu0 0
    %2489 = vmatpush.bf16.msra.mxu0 0
    %2490 = vmatpush.bf16.msra.mxu0 0
    %2491 = vmatpush.bf16.msra.mxu0 0
    %2492 = vmatpush.bf16.msra.mxu0 %v2483
    %2493 = vmatmul.bf16.gmra.mxu0 %v2480
    %v2494 = vpop.f32.mrf.mxu0
    %v2495 = vadd.f32 0.0, %v2494
    %v2496 = vpop.f32.mrf.mxu0
    %2497 = vdwg.mxu0
    %2498 = vst.msk [vmem:[#allocation2 + $0x8] sm:$0xff] %vm467, %v2495
    %v2500 = vunpack.c.l.b16 %v2148
    %v2501 = vpack.c.b16 %v2500, %v2500
    %2502 = vrot.lane.b32.xlu0 %v2501, 120
    %v2503 = vpop.permute.xlu0 %2502
    %v2505 = vunpack.c.l.b16 %v2176
    %v2506 = vpack.c.b16 %v2505, %v2505
    %2507 = vrot.lane.b32.xlu0 %v2506, 120
    %v2508 = vpop.permute.xlu0 %2507
    %v2510 = vsel %vm467, %v2503, 0
    %v2513 = vsel %vm467, %v2508, 0
    %2515 = vmatpush.bf16.xpose.msra.mxu0 0
    %2516 = vmatpush.bf16.xpose.msra.mxu0 0
    %2517 = vmatpush.bf16.xpose.msra.mxu0 0
    %2518 = vmatpush.bf16.xpose.msra.mxu0 0
    %2519 = vmatpush.bf16.xpose.msra.mxu0 0
    %2520 = vmatpush.bf16.xpose.msra.mxu0 0
    %2521 = vmatpush.bf16.xpose.msra.mxu0 0
    %2522 = vmatpush.bf16.xpose.msra.mxu0 %v2513
    %2523 = vmatmul.bf16.gmra.mxu0 %v2510
    %v2524 = vpop.f32.mrf.mxu0
    %v2525 = vadd.f32 0.0, %v2524
    %v2526 = vpop.f32.mrf.mxu0
    %2527 = vdwg.mxu0
    %v2528 = vsel %vm467, %v2525, -inf
    %2529 = vmax.xlane.f32.xlu0 %v2528
    %v2530 = vpop.xlane.xlu0 %2529
    %v2531 = vsub.f32 %v2525, %v2530
    %v2532 = vmul.f32 %v2531, 1.442695
    %v2533 = vpow.pop %v2532
    %v2534 = vsel %vm467, %v2533, 0.0
    %2535 = vadd.xlane.f32.xlu0 %v2534
    %v2536 = vpop.xlane.xlu0 %2535
    %v2537 = vrcp.pop %v2536
    %v2538 = vmul.f32 %v2533, %v2537
    %v2539 = vpack.c.bf16 %v2538, %v2538
    %v2541 = vunpack.c.l.b16 %v2204
    %v2542 = vpack.c.b16 %v2541, %v2541
    %2543 = vrot.lane.b32.xlu0 %v2542, 120
    %v2544 = vpop.permute.xlu0 %2543
    %v2546 = vsel %vm467, %v2539, 0
    %v2549 = vsel %vm502, %v2544, 0
    %2551 = vmatpush.bf16.msra.mxu0 0
    %2552 = vmatpush.bf16.msra.mxu0 0
    %2553 = vmatpush.bf16.msra.mxu0 0
    %2554 = vmatpush.bf16.msra.mxu0 0
    %2555 = vmatpush.bf16.msra.mxu0 0
    %2556 = vmatpush.bf16.msra.mxu0 0
    %2557 = vmatpush.bf16.msra.mxu0 0
    %2558 = vmatpush.bf16.msra.mxu0 %v2549
    %2559 = vmatmul.bf16.gmra.mxu0 %v2546
    %v2560 = vpop.f32.mrf.mxu0
    %v2561 = vadd.f32 0.0, %v2560
    %v2562 = vpop.f32.mrf.mxu0
    %2563 = vdwg.mxu0
    %2565 = vrot.lane.b32.xlu0 %v2561, 8
    %v2566 = vpop.permute.xlu0 %2565
    %2568 = vst.msk [vmem:[#allocation2 + $0x8] sm:$0xff] %vm589, %v2566
    %2569 = vrot.lane.b32.xlu0 %v2501, 112
    %v2570 = vpop.permute.xlu0 %2569
    %2571 = vrot.lane.b32.xlu0 %v2506, 112
    %v2572 = vpop.permute.xlu0 %2571
    %v2574 = vsel %vm467, %v2570, 0
    %v2577 = vsel %vm467, %v2572, 0
    %2579 = vmatpush.bf16.xpose.msra.mxu0 0
    %2580 = vmatpush.bf16.xpose.msra.mxu0 0
    %2581 = vmatpush.bf16.xpose.msra.mxu0 0
    %2582 = vmatpush.bf16.xpose.msra.mxu0 0
    %2583 = vmatpush.bf16.xpose.msra.mxu0 0
    %2584 = vmatpush.bf16.xpose.msra.mxu0 0
    %2585 = vmatpush.bf16.xpose.msra.mxu0 0
    %2586 = vmatpush.bf16.xpose.msra.mxu0 %v2577
    %2587 = vmatmul.bf16.gmra.mxu0 %v2574
    %v2588 = vpop.f32.mrf.mxu0
    %v2589 = vadd.f32 0.0, %v2588
    %v2590 = vpop.f32.mrf.mxu0
    %2591 = vdwg.mxu0
    %v2592 = vsel %vm467, %v2589, -inf
    %2593 = vmax.xlane.f32.xlu0 %v2592
    %v2594 = vpop.xlane.xlu0 %2593
    %v2595 = vsub.f32 %v2589, %v2594
    %v2596 = vmul.f32 %v2595, 1.442695
    %v2597 = vpow.pop %v2596
    %v2598 = vsel %vm467, %v2597, 0.0
    %2599 = vadd.xlane.f32.xlu0 %v2598
    %v2600 = vpop.xlane.xlu0 %2599
    %v2601 = vrcp.pop %v2600
    %v2602 = vmul.f32 %v2597, %v2601
    %v2603 = vpack.c.bf16 %v2602, %v2602
    %2604 = vrot.lane.b32.xlu0 %v2542, 112
    %v2605 = vpop.permute.xlu0 %2604
    %v2607 = vsel %vm467, %v2603, 0
    %v2610 = vsel %vm502, %v2605, 0
    %2612 = vmatpush.bf16.msra.mxu0 0
    %2613 = vmatpush.bf16.msra.mxu0 0
    %2614 = vmatpush.bf16.msra.mxu0 0
    %2615 = vmatpush.bf16.msra.mxu0 0
    %2616 = vmatpush.bf16.msra.mxu0 0
    %2617 = vmatpush.bf16.msra.mxu0 0
    %2618 = vmatpush.bf16.msra.mxu0 0
    %2619 = vmatpush.bf16.msra.mxu0 %v2610
    %2620 = vmatmul.bf16.gmra.mxu0 %v2607
    %v2621 = vpop.f32.mrf.mxu0
    %v2622 = vadd.f32 0.0, %v2621
    %v2623 = vpop.f32.mrf.mxu0
    %2624 = vdwg.mxu0
    %2626 = vrot.lane.b32.xlu0 %v2622, 16
    %v2627 = vpop.permute.xlu0 %2626
    %2629 = vst.msk [vmem:[#allocation2 + $0x8] sm:$0xff] %vm651, %v2627
    %2630 = vrot.lane.b32.xlu0 %v2501, 104
    %v2631 = vpop.permute.xlu0 %2630
    %2632 = vrot.lane.b32.xlu0 %v2506, 104
    %v2633 = vpop.permute.xlu0 %2632
    %v2635 = vsel %vm467, %v2631, 0
    %v2638 = vsel %vm467, %v2633, 0
    %2640 = vmatpush.bf16.xpose.msra.mxu0 0
    %2641 = vmatpush.bf16.xpose.msra.mxu0 0
    %2642 = vmatpush.bf16.xpose.msra.mxu0 0
    %2643 = vmatpush.bf16.xpose.msra.mxu0 0
    %2644 = vmatpush.bf16.xpose.msra.mxu0 0
    %2645 = vmatpush.bf16.xpose.msra.mxu0 0
    %2646 = vmatpush.bf16.xpose.msra.mxu0 0
    %2647 = vmatpush.bf16.xpose.msra.mxu0 %v2638
    %2648 = vmatmul.bf16.gmra.mxu0 %v2635
    %v2649 = vpop.f32.mrf.mxu0
    %v2650 = vadd.f32 0.0, %v2649
    %v2651 = vpop.f32.mrf.mxu0
    %2652 = vdwg.mxu0
    %v2653 = vsel %vm467, %v2650, -inf
    %2654 = vmax.xlane.f32.xlu0 %v2653
    %v2655 = vpop.xlane.xlu0 %2654
    %v2656 = vsub.f32 %v2650, %v2655
    %v2657 = vmul.f32 %v2656, 1.442695
    %v2658 = vpow.pop %v2657
    %v2659 = vsel %vm467, %v2658, 0.0
    %2660 = vadd.xlane.f32.xlu0 %v2659
    %v2661 = vpop.xlane.xlu0 %2660
    %v2662 = vrcp.pop %v2661
    %v2663 = vmul.f32 %v2658, %v2662
    %v2664 = vpack.c.bf16 %v2663, %v2663
    %2665 = vrot.lane.b32.xlu0 %v2542, 104
    %v2666 = vpop.permute.xlu0 %2665
    %v2668 = vsel %vm467, %v2664, 0
    %v2671 = vsel %vm502, %v2666, 0
    %2673 = vmatpush.bf16.msra.mxu0 0
    %2674 = vmatpush.bf16.msra.mxu0 0
    %2675 = vmatpush.bf16.msra.mxu0 0
    %2676 = vmatpush.bf16.msra.mxu0 0
    %2677 = vmatpush.bf16.msra.mxu0 0
    %2678 = vmatpush.bf16.msra.mxu0 0
    %2679 = vmatpush.bf16.msra.mxu0 0
    %2680 = vmatpush.bf16.msra.mxu0 %v2671
    %2681 = vmatmul.bf16.gmra.mxu0 %v2668
    %v2682 = vpop.f32.mrf.mxu0
    %v2683 = vadd.f32 0.0, %v2682
    %v2684 = vpop.f32.mrf.mxu0
    %2685 = vdwg.mxu0
    %2687 = vrot.lane.b32.xlu0 %v2683, 24
    %v2688 = vpop.permute.xlu0 %2687
    %2690 = vst.msk [vmem:[#allocation2 + $0x8] sm:$0xff] %vm713, %v2688
    %v2691 = vld [vmem:[#allocation2] sm:$0xff]
    %v2692 = vld [vmem:[#allocation2 + $0x8] sm:$0xff]
    %v2693 = vpack.c.bf16 %v2692, %v2691
    %v2698 = vunpack.c.l.b16 %v2109
    %v2699 = vunpack.c.l.b16 %v2110
    %v2700 = vunpack.c.l.b16 %v2111
    %v2701 = vunpack.c.l.b16 %v2112
    %v2702 = vpack.c.b16 %v2699, %v2698
    %v2703 = vpack.c.b16 %v2701, %v2700
    %v2707 = vsel %vm297, %v2693, 0
    %2709 = vmatpush.bf16.msra.mxu0 0
    %2710 = vmatpush.bf16.msra.mxu0 0
    %2711 = vmatpush.bf16.msra.mxu0 0
    %2712 = vmatpush.bf16.msra.mxu0 0
    %2713 = vmatpush.bf16.msra.mxu0 0
    %2714 = vmatpush.bf16.msra.mxu0 0
    %2715 = vmatpush.bf16.msra.mxu0 %v2703
    %2716 = vmatpush.bf16.msra.mxu0 %v2702
    %2717 = vmatmul.bf16.gmra.mxu0 %v2707
    %v2718 = vpop.f32.mrf.mxu0
    %v2719 = vadd.f32 %v2095, %v2718
    %v2720 = vpop.f32.mrf.mxu0
    %v2721 = vadd.f32 %v2096, %v2720
    %2722 = vdwg.mxu0
    %v2723 = vsel %vm297, %v2719, 0.0
    %2724 = vadd.xlane.f32.xlu0 %v2723
    %v2725 = vpop.xlane.xlu0 %2724
    %v2726 = vsel %vm297, %v2721, 0.0
    %2727 = vadd.xlane.f32.xlu0 %v2726
    %v2728 = vpop.xlane.xlu0 %2727
    %v2729 = vmul.f32 %v2725, %v310
    %v2730 = vmul.f32 %v2728, %v310
    %v2731 = vsub.f32 %v2719, %v2729
    %v2732 = vsub.f32 %v2721, %v2730
    %v2733 = vmul.f32 %v2731, %v2731
    %v2734 = vmul.f32 %v2732, %v2732
    %v2735 = vsel %vm297, %v2733, 0.0
    %2736 = vadd.xlane.f32.xlu0 %v2735
    %v2737 = vpop.xlane.xlu0 %2736
    %v2738 = vsel %vm297, %v2734, 0.0
    %2739 = vadd.xlane.f32.xlu0 %v2738
    %v2740 = vpop.xlane.xlu0 %2739
    %v2741 = vmul.f32 %v2737, %v310
    %v2742 = vmul.f32 %v2740, %v310
    %v2743 = vadd.f32 %v2741, 1e-06
    %v2744 = vadd.f32 %v2742, 1e-06
    %v2745 = vrsqrt.pop %v2743
    %v2746 = vmul.f32 %v2745, %v2743
    %v2747 = vmul.f32 %v2746, %v2745
    %v2748 = vmul.f32 0.5, %v2747
    %v2749 = vsub.f32 1.5, %v2748
    %v2750 = vmul.f32 %v2745, %v2749
    %vm2751 = vweird.f32 %v2743
    %vm2752 = vweird.f32 %v2745
    %vm2753 = vmor %vm2751, %vm2752
    %v2754 = vsel %vm2753, %v2745, %v2750
    %v2755 = vrsqrt.pop %v2744
    %v2756 = vmul.f32 %v2755, %v2744
    %v2757 = vmul.f32 %v2756, %v2755
    %v2758 = vmul.f32 0.5, %v2757
    %v2759 = vsub.f32 1.5, %v2758
    %v2760 = vmul.f32 %v2755, %v2759
    %vm2761 = vweird.f32 %v2744
    %vm2762 = vweird.f32 %v2755
    %vm2763 = vmor %vm2761, %vm2762
    %v2764 = vsel %vm2763, %v2755, %v2760
    %v2765 = vmul.f32 %v2731, %v2754
    %v2766 = vmul.f32 %v2732, %v2764
    %v2768 = vperm.slane %v2113, 0
    %v2770 = vmul.f32 %v2765, %v2768
    %v2771 = vmul.f32 %v2766, %v2768
    %v2773 = vperm.slane %v2114, 0
    %v2775 = vadd.f32 %v2770, %v2773
    %v2776 = vadd.f32 %v2771, %v2773
    %v2777 = vld [vmem:[#allocation10] sm:$0xf]
    %v2778 = vld [vmem:[#allocation10 + $0x4] sm:$0xf]
    %v2779 = vld [vmem:[#allocation10 + $0x8] sm:$0xf]
    %v2780 = vld [vmem:[#allocation10 + $0xc] sm:$0xf]
    %v2781 = vld [vmem:[#allocation11] sm:$0xf]
    %v2782 = vld [vmem:[#allocation11 + $0x4] sm:$0xf]
    %v2783 = vld [vmem:[#allocation11 + $0x8] sm:$0xf]
    %v2784 = vld [vmem:[#allocation11 + $0xc] sm:$0xf]
    %v2785 = vld [vmem:[#allocation13] sm:$0xf]
    %v2786 = vld [vmem:[#allocation13 + $0x4] sm:$0xf]
    %v2787 = vld [vmem:[#allocation13 + $0x8] sm:$0xf]
    %v2788 = vld [vmem:[#allocation13 + $0xc] sm:$0xf]
    %v2789 = vld [vmem:[#allocation14] sm:$0xf]
    %v2790 = vld [vmem:[#allocation14 + $0x4] sm:$0xf]
    %v2791 = vld [vmem:[#allocation14 + $0x8] sm:$0xf]
    %v2792 = vld [vmem:[#allocation14 + $0xc] sm:$0xf]
    %v2793 = vld [vmem:[%s57] sm:$0x1]
    %v2794 = vld [vmem:[%s59] sm:$0x1]
    %v2795 = vpack.c.bf16 %v2776, %v2775
    %v2796 = vpack.c.bf16 %v2040, %v2039
    %v2801 = vunpack.c.l.b16 %v2777
    %v2802 = vunpack.c.l.b16 %v2778
    %v2803 = vunpack.c.l.b16 %v2779
    %v2804 = vunpack.c.l.b16 %v2780
    %v2805 = vpack.c.b16 %v2802, %v2801
    %v2806 = vpack.c.b16 %v2804, %v2803
    %v2810 = vsel %vm297, %v2795, 0
    %2812 = vmatpush.bf16.msra.mxu0 0
    %2813 = vmatpush.bf16.msra.mxu0 0
    %2814 = vmatpush.bf16.msra.mxu0 0
    %2815 = vmatpush.bf16.msra.mxu0 0
    %2816 = vmatpush.bf16.msra.mxu0 0
    %2817 = vmatpush.bf16.msra.mxu0 0
    %2818 = vmatpush.bf16.msra.mxu0 %v2806
    %2819 = vmatpush.bf16.msra.mxu0 %v2805
    %2820 = vmatmul.bf16.gmra.mxu0 %v2810
    %v2821 = vpop.f32.mrf.mxu0
    %v2822 = vadd.f32 0.0, %v2821
    %v2823 = vpop.f32.mrf.mxu0
    %v2824 = vadd.f32 0.0, %v2823
    %2825 = vdwg.mxu0
    %v2826 = vmul.f32 %v2822, 0.35355338
    %v2827 = vmul.f32 %v2824, 0.35355338
    %v2828 = vpack.c.bf16 %v2826, %v2826
    %v2829 = vpack.c.bf16 %v2827, %v2827
    %v2834 = vunpack.c.l.b16 %v2781
    %v2835 = vunpack.c.l.b16 %v2782
    %v2836 = vunpack.c.l.b16 %v2783
    %v2837 = vunpack.c.l.b16 %v2784
    %v2838 = vpack.c.b16 %v2835, %v2834
    %v2839 = vpack.c.b16 %v2837, %v2836
    %v2843 = vsel %vm297, %v2796, 0
    %2845 = vmatpush.bf16.msra.mxu0 0
    %2846 = vmatpush.bf16.msra.mxu0 0
    %2847 = vmatpush.bf16.msra.mxu0 0
    %2848 = vmatpush.bf16.msra.mxu0 0
    %2849 = vmatpush.bf16.msra.mxu0 0
    %2850 = vmatpush.bf16.msra.mxu0 0
    %2851 = vmatpush.bf16.msra.mxu0 %v2839
    %2852 = vmatpush.bf16.msra.mxu0 %v2838
    %2853 = vmatmul.bf16.gmra.mxu0 %v2843
    %v2854 = vpop.f32.mrf.mxu0
    %v2855 = vadd.f32 0.0, %v2854
    %v2856 = vpop.f32.mrf.mxu0
    %v2857 = vadd.f32 0.0, %v2856
    %2858 = vdwg.mxu0
    %v2859 = vpack.c.bf16 %v2855, %v2855
    %v2860 = vpack.c.bf16 %v2857, %v2857
    %v2865 = vunpack.c.l.b16 %v2785
    %v2866 = vunpack.c.l.b16 %v2786
    %v2867 = vunpack.c.l.b16 %v2787
    %v2868 = vunpack.c.l.b16 %v2788
    %v2869 = vpack.c.b16 %v2866, %v2865
    %v2870 = vpack.c.b16 %v2868, %v2867
    %2873 = vmatpush.bf16.msra.mxu0 0
    %2874 = vmatpush.bf16.msra.mxu0 0
    %2875 = vmatpush.bf16.msra.mxu0 0
    %2876 = vmatpush.bf16.msra.mxu0 0
    %2877 = vmatpush.bf16.msra.mxu0 0
    %2878 = vmatpush.bf16.msra.mxu0 0
    %2879 = vmatpush.bf16.msra.mxu0 %v2870
    %2880 = vmatpush.bf16.msra.mxu0 %v2869
    %2881 = vmatmul.bf16.gmra.mxu0 %v2843
    %v2882 = vpop.f32.mrf.mxu0
    %v2883 = vadd.f32 0.0, %v2882
    %v2884 = vpop.f32.mrf.mxu0
    %v2885 = vadd.f32 0.0, %v2884
    %2886 = vdwg.mxu0
    %v2887 = vpack.c.bf16 %v2883, %v2883
    %v2888 = vpack.c.bf16 %v2885, %v2885
    %v2890 = vsel %vm467, %v2828, 0
    %v2893 = vsel %vm467, %v2859, 0
    %2895 = vmatpush.bf16.xpose.msra.mxu0 0
    %2896 = vmatpush.bf16.xpose.msra.mxu0 0
    %2897 = vmatpush.bf16.xpose.msra.mxu0 0
    %2898 = vmatpush.bf16.xpose.msra.mxu0 0
    %2899 = vmatpush.bf16.xpose.msra.mxu0 0
    %2900 = vmatpush.bf16.xpose.msra.mxu0 0
    %2901 = vmatpush.bf16.xpose.msra.mxu0 0
    %2902 = vmatpush.bf16.xpose.msra.mxu0 %v2893
    %2903 = vmatmul.bf16.gmra.mxu0 %v2890
    %v2904 = vpop.f32.mrf.mxu0
    %v2905 = vadd.f32 0.0, %v2904
    %v2906 = vpop.f32.mrf.mxu0
    %2907 = vdwg.mxu0
    %v2908 = vsel %vm467, %v2905, -inf
    %2909 = vmax.xlane.f32.xlu0 %v2908
    %v2910 = vpop.xlane.xlu0 %2909
    %v2911 = vsub.f32 %v2905, %v2910
    %v2912 = vmul.f32 %v2911, 1.442695
    %v2913 = vpow.pop %v2912
    %v2914 = vsel %vm467, %v2913, 0.0
    %2915 = vadd.xlane.f32.xlu0 %v2914
    %v2916 = vpop.xlane.xlu0 %2915
    %v2917 = vrcp.pop %v2916
    %v2918 = vmul.f32 %v2913, %v2917
    %v2919 = vpack.c.bf16 %v2918, %v2918
    %v2921 = vsel %vm467, %v2919, 0
    %v2924 = vsel %vm502, %v2887, 0
    %2926 = vmatpush.bf16.msra.mxu0 0
    %2927 = vmatpush.bf16.msra.mxu0 0
    %2928 = vmatpush.bf16.msra.mxu0 0
    %2929 = vmatpush.bf16.msra.mxu0 0
    %2930 = vmatpush.bf16.msra.mxu0 0
    %2931 = vmatpush.bf16.msra.mxu0 0
    %2932 = vmatpush.bf16.msra.mxu0 0
    %2933 = vmatpush.bf16.msra.mxu0 %v2924
    %2934 = vmatmul.bf16.gmra.mxu0 %v2921
    %v2935 = vpop.f32.mrf.mxu0
    %v2936 = vadd.f32 0.0, %v2935
    %v2937 = vpop.f32.mrf.mxu0
    %2938 = vdwg.mxu0
    %2939 = vst.msk [vmem:[#allocation2] sm:$0xff] %vm467, %v2936
    %v2941 = vunpack.c.l.b16 %v2828
    %v2942 = vpack.c.b16 %v2941, %v2941
    %2943 = vrot.lane.b32.xlu0 %v2942, 120
    %v2944 = vpop.permute.xlu0 %2943
    %v2946 = vunpack.c.l.b16 %v2859
    %v2947 = vpack.c.b16 %v2946, %v2946
    %2948 = vrot.lane.b32.xlu0 %v2947, 120
    %v2949 = vpop.permute.xlu0 %2948
    %v2951 = vsel %vm467, %v2944, 0
    %v2954 = vsel %vm467, %v2949, 0
    %2956 = vmatpush.bf16.xpose.msra.mxu0 0
    %2957 = vmatpush.bf16.xpose.msra.mxu0 0
    %2958 = vmatpush.bf16.xpose.msra.mxu0 0
    %2959 = vmatpush.bf16.xpose.msra.mxu0 0
    %2960 = vmatpush.bf16.xpose.msra.mxu0 0
    %2961 = vmatpush.bf16.xpose.msra.mxu0 0
    %2962 = vmatpush.bf16.xpose.msra.mxu0 0
    %2963 = vmatpush.bf16.xpose.msra.mxu0 %v2954
    %2964 = vmatmul.bf16.gmra.mxu0 %v2951
    %v2965 = vpop.f32.mrf.mxu0
    %v2966 = vadd.f32 0.0, %v2965
    %v2967 = vpop.f32.mrf.mxu0
    %2968 = vdwg.mxu0
    %v2969 = vsel %vm467, %v2966, -inf
    %2970 = vmax.xlane.f32.xlu0 %v2969
    %v2971 = vpop.xlane.xlu0 %2970
    %v2972 = vsub.f32 %v2966, %v2971
    %v2973 = vmul.f32 %v2972, 1.442695
    %v2974 = vpow.pop %v2973
    %v2975 = vsel %vm467, %v2974, 0.0
    %2976 = vadd.xlane.f32.xlu0 %v2975
    %v2977 = vpop.xlane.xlu0 %2976
    %v2978 = vrcp.pop %v2977
    %v2979 = vmul.f32 %v2974, %v2978
    %v2980 = vpack.c.bf16 %v2979, %v2979
    %v2982 = vunpack.c.l.b16 %v2887
    %v2983 = vpack.c.b16 %v2982, %v2982
    %2984 = vrot.lane.b32.xlu0 %v2983, 120
    %v2985 = vpop.permute.xlu0 %2984
    %v2987 = vsel %vm467, %v2980, 0
    %v2990 = vsel %vm502, %v2985, 0
    %2992 = vmatpush.bf16.msra.mxu0 0
    %2993 = vmatpush.bf16.msra.mxu0 0
    %2994 = vmatpush.bf16.msra.mxu0 0
    %2995 = vmatpush.bf16.msra.mxu0 0
    %2996 = vmatpush.bf16.msra.mxu0 0
    %2997 = vmatpush.bf16.msra.mxu0 0
    %2998 = vmatpush.bf16.msra.mxu0 0
    %2999 = vmatpush.bf16.msra.mxu0 %v2990
    %3000 = vmatmul.bf16.gmra.mxu0 %v2987
    %v3001 = vpop.f32.mrf.mxu0
    %v3002 = vadd.f32 0.0, %v3001
    %v3003 = vpop.f32.mrf.mxu0
    %3004 = vdwg.mxu0
    %3006 = vrot.lane.b32.xlu0 %v3002, 8
    %v3007 = vpop.permute.xlu0 %3006
    %3009 = vst.msk [vmem:[#allocation2] sm:$0xff] %vm589, %v3007
    %3010 = vrot.lane.b32.xlu0 %v2942, 112
    %v3011 = vpop.permute.xlu0 %3010
    %3012 = vrot.lane.b32.xlu0 %v2947, 112
    %v3013 = vpop.permute.xlu0 %3012
    %v3015 = vsel %vm467, %v3011, 0
    %v3018 = vsel %vm467, %v3013, 0
    %3020 = vmatpush.bf16.xpose.msra.mxu0 0
    %3021 = vmatpush.bf16.xpose.msra.mxu0 0
    %3022 = vmatpush.bf16.xpose.msra.mxu0 0
    %3023 = vmatpush.bf16.xpose.msra.mxu0 0
    %3024 = vmatpush.bf16.xpose.msra.mxu0 0
    %3025 = vmatpush.bf16.xpose.msra.mxu0 0
    %3026 = vmatpush.bf16.xpose.msra.mxu0 0
    %3027 = vmatpush.bf16.xpose.msra.mxu0 %v3018
    %3028 = vmatmul.bf16.gmra.mxu0 %v3015
    %v3029 = vpop.f32.mrf.mxu0
    %v3030 = vadd.f32 0.0, %v3029
    %v3031 = vpop.f32.mrf.mxu0
    %3032 = vdwg.mxu0
    %v3033 = vsel %vm467, %v3030, -inf
    %3034 = vmax.xlane.f32.xlu0 %v3033
    %v3035 = vpop.xlane.xlu0 %3034
    %v3036 = vsub.f32 %v3030, %v3035
    %v3037 = vmul.f32 %v3036, 1.442695
    %v3038 = vpow.pop %v3037
    %v3039 = vsel %vm467, %v3038, 0.0
    %3040 = vadd.xlane.f32.xlu0 %v3039
    %v3041 = vpop.xlane.xlu0 %3040
    %v3042 = vrcp.pop %v3041
    %v3043 = vmul.f32 %v3038, %v3042
    %v3044 = vpack.c.bf16 %v3043, %v3043
    %3045 = vrot.lane.b32.xlu0 %v2983, 112
    %v3046 = vpop.permute.xlu0 %3045
    %v3048 = vsel %vm467, %v3044, 0
    %v3051 = vsel %vm502, %v3046, 0
    %3053 = vmatpush.bf16.msra.mxu0 0
    %3054 = vmatpush.bf16.msra.mxu0 0
    %3055 = vmatpush.bf16.msra.mxu0 0
    %3056 = vmatpush.bf16.msra.mxu0 0
    %3057 = vmatpush.bf16.msra.mxu0 0
    %3058 = vmatpush.bf16.msra.mxu0 0
    %3059 = vmatpush.bf16.msra.mxu0 0
    %3060 = vmatpush.bf16.msra.mxu0 %v3051
    %3061 = vmatmul.bf16.gmra.mxu0 %v3048
    %v3062 = vpop.f32.mrf.mxu0
    %v3063 = vadd.f32 0.0, %v3062
    %v3064 = vpop.f32.mrf.mxu0
    %3065 = vdwg.mxu0
    %3067 = vrot.lane.b32.xlu0 %v3063, 16
    %v3068 = vpop.permute.xlu0 %3067
    %3070 = vst.msk [vmem:[#allocation2] sm:$0xff] %vm651, %v3068
    %3071 = vrot.lane.b32.xlu0 %v2942, 104
    %v3072 = vpop.permute.xlu0 %3071
    %3073 = vrot.lane.b32.xlu0 %v2947, 104
    %v3074 = vpop.permute.xlu0 %3073
    %v3076 = vsel %vm467, %v3072, 0
    %v3079 = vsel %vm467, %v3074, 0
    %3081 = vmatpush.bf16.xpose.msra.mxu0 0
    %3082 = vmatpush.bf16.xpose.msra.mxu0 0
    %3083 = vmatpush.bf16.xpose.msra.mxu0 0
    %3084 = vmatpush.bf16.xpose.msra.mxu0 0
    %3085 = vmatpush.bf16.xpose.msra.mxu0 0
    %3086 = vmatpush.bf16.xpose.msra.mxu0 0
    %3087 = vmatpush.bf16.xpose.msra.mxu0 0
    %3088 = vmatpush.bf16.xpose.msra.mxu0 %v3079
    %3089 = vmatmul.bf16.gmra.mxu0 %v3076
    %v3090 = vpop.f32.mrf.mxu0
    %v3091 = vadd.f32 0.0, %v3090
    %v3092 = vpop.f32.mrf.mxu0
    %3093 = vdwg.mxu0
    %v3094 = vsel %vm467, %v3091, -inf
    %3095 = vmax.xlane.f32.xlu0 %v3094
    %v3096 = vpop.xlane.xlu0 %3095
    %v3097 = vsub.f32 %v3091, %v3096
    %v3098 = vmul.f32 %v3097, 1.442695
    %v3099 = vpow.pop %v3098
    %v3100 = vsel %vm467, %v3099, 0.0
    %3101 = vadd.xlane.f32.xlu0 %v3100
    %v3102 = vpop.xlane.xlu0 %3101
    %v3103 = vrcp.pop %v3102
    %v3104 = vmul.f32 %v3099, %v3103
    %v3105 = vpack.c.bf16 %v3104, %v3104
    %3106 = vrot.lane.b32.xlu0 %v2983, 104
    %v3107 = vpop.permute.xlu0 %3106
    %v3109 = vsel %vm467, %v3105, 0
    %v3112 = vsel %vm502, %v3107, 0
    %3114 = vmatpush.bf16.msra.mxu0 0
    %3115 = vmatpush.bf16.msra.mxu0 0
    %3116 = vmatpush.bf16.msra.mxu0 0
    %3117 = vmatpush.bf16.msra.mxu0 0
    %3118 = vmatpush.bf16.msra.mxu0 0
    %3119 = vmatpush.bf16.msra.mxu0 0
    %3120 = vmatpush.bf16.msra.mxu0 0
    %3121 = vmatpush.bf16.msra.mxu0 %v3112
    %3122 = vmatmul.bf16.gmra.mxu0 %v3109
    %v3123 = vpop.f32.mrf.mxu0
    %v3124 = vadd.f32 0.0, %v3123
    %v3125 = vpop.f32.mrf.mxu0
    %3126 = vdwg.mxu0
    %3128 = vrot.lane.b32.xlu0 %v3124, 24
    %v3129 = vpop.permute.xlu0 %3128
    %3131 = vst.msk [vmem:[#allocation2] sm:$0xff] %vm713, %v3129
    %v3133 = vsel %vm467, %v2829, 0
    %v3136 = vsel %vm467, %v2860, 0
    %3138 = vmatpush.bf16.xpose.msra.mxu0 0
    %3139 = vmatpush.bf16.xpose.msra.mxu0 0
    %3140 = vmatpush.bf16.xpose.msra.mxu0 0
    %3141 = vmatpush.bf16.xpose.msra.mxu0 0
    %3142 = vmatpush.bf16.xpose.msra.mxu0 0
    %3143 = vmatpush.bf16.xpose.msra.mxu0 0
    %3144 = vmatpush.bf16.xpose.msra.mxu0 0
    %3145 = vmatpush.bf16.xpose.msra.mxu0 %v3136
    %3146 = vmatmul.bf16.gmra.mxu0 %v3133
    %v3147 = vpop.f32.mrf.mxu0
    %v3148 = vadd.f32 0.0, %v3147
    %v3149 = vpop.f32.mrf.mxu0
    %3150 = vdwg.mxu0
    %v3151 = vsel %vm467, %v3148, -inf
    %3152 = vmax.xlane.f32.xlu0 %v3151
    %v3153 = vpop.xlane.xlu0 %3152
    %v3154 = vsub.f32 %v3148, %v3153
    %v3155 = vmul.f32 %v3154, 1.442695
    %v3156 = vpow.pop %v3155
    %v3157 = vsel %vm467, %v3156, 0.0
    %3158 = vadd.xlane.f32.xlu0 %v3157
    %v3159 = vpop.xlane.xlu0 %3158
    %v3160 = vrcp.pop %v3159
    %v3161 = vmul.f32 %v3156, %v3160
    %v3162 = vpack.c.bf16 %v3161, %v3161
    %v3164 = vsel %vm467, %v3162, 0
    %v3167 = vsel %vm502, %v2888, 0
    %3169 = vmatpush.bf16.msra.mxu0 0
    %3170 = vmatpush.bf16.msra.mxu0 0
    %3171 = vmatpush.bf16.msra.mxu0 0
    %3172 = vmatpush.bf16.msra.mxu0 0
    %3173 = vmatpush.bf16.msra.mxu0 0
    %3174 = vmatpush.bf16.msra.mxu0 0
    %3175 = vmatpush.bf16.msra.mxu0 0
    %3176 = vmatpush.bf16.msra.mxu0 %v3167
    %3177 = vmatmul.bf16.gmra.mxu0 %v3164
    %v3178 = vpop.f32.mrf.mxu0
    %v3179 = vadd.f32 0.0, %v3178
    %v3180 = vpop.f32.mrf.mxu0
    %3181 = vdwg.mxu0
    %3182 = vst.msk [vmem:[#allocation2 + $0x8] sm:$0xff] %vm467, %v3179
    %v3184 = vunpack.c.l.b16 %v2829
    %v3185 = vpack.c.b16 %v3184, %v3184
    %3186 = vrot.lane.b32.xlu0 %v3185, 120
    %v3187 = vpop.permute.xlu0 %3186
    %v3189 = vunpack.c.l.b16 %v2860
    %v3190 = vpack.c.b16 %v3189, %v3189
    %3191 = vrot.lane.b32.xlu0 %v3190, 120
    %v3192 = vpop.permute.xlu0 %3191
    %v3194 = vsel %vm467, %v3187, 0
    %v3197 = vsel %vm467, %v3192, 0
    %3199 = vmatpush.bf16.xpose.msra.mxu0 0
    %3200 = vmatpush.bf16.xpose.msra.mxu0 0
    %3201 = vmatpush.bf16.xpose.msra.mxu0 0
    %3202 = vmatpush.bf16.xpose.msra.mxu0 0
    %3203 = vmatpush.bf16.xpose.msra.mxu0 0
    %3204 = vmatpush.bf16.xpose.msra.mxu0 0
    %3205 = vmatpush.bf16.xpose.msra.mxu0 0
    %3206 = vmatpush.bf16.xpose.msra.mxu0 %v3197
    %3207 = vmatmul.bf16.gmra.mxu0 %v3194
    %v3208 = vpop.f32.mrf.mxu0
    %v3209 = vadd.f32 0.0, %v3208
    %v3210 = vpop.f32.mrf.mxu0
    %3211 = vdwg.mxu0
    %v3212 = vsel %vm467, %v3209, -inf
    %3213 = vmax.xlane.f32.xlu0 %v3212
    %v3214 = vpop.xlane.xlu0 %3213
    %v3215 = vsub.f32 %v3209, %v3214
    %v3216 = vmul.f32 %v3215, 1.442695
    %v3217 = vpow.pop %v3216
    %v3218 = vsel %vm467, %v3217, 0.0
    %3219 = vadd.xlane.f32.xlu0 %v3218
    %v3220 = vpop.xlane.xlu0 %3219
    %v3221 = vrcp.pop %v3220
    %v3222 = vmul.f32 %v3217, %v3221
    %v3223 = vpack.c.bf16 %v3222, %v3222
    %v3225 = vunpack.c.l.b16 %v2888
    %v3226 = vpack.c.b16 %v3225, %v3225
    %3227 = vrot.lane.b32.xlu0 %v3226, 120
    %v3228 = vpop.permute.xlu0 %3227
    %v3230 = vsel %vm467, %v3223, 0
    %v3233 = vsel %vm502, %v3228, 0
    %3235 = vmatpush.bf16.msra.mxu0 0
    %3236 = vmatpush.bf16.msra.mxu0 0
    %3237 = vmatpush.bf16.msra.mxu0 0
    %3238 = vmatpush.bf16.msra.mxu0 0
    %3239 = vmatpush.bf16.msra.mxu0 0
    %3240 = vmatpush.bf16.msra.mxu0 0
    %3241 = vmatpush.bf16.msra.mxu0 0
    %3242 = vmatpush.bf16.msra.mxu0 %v3233
    %3243 = vmatmul.bf16.gmra.mxu0 %v3230
    %v3244 = vpop.f32.mrf.mxu0
    %v3245 = vadd.f32 0.0, %v3244
    %v3246 = vpop.f32.mrf.mxu0
    %3247 = vdwg.mxu0
    %3249 = vrot.lane.b32.xlu0 %v3245, 8
    %v3250 = vpop.permute.xlu0 %3249
    %3252 = vst.msk [vmem:[#allocation2 + $0x8] sm:$0xff] %vm589, %v3250
    %3253 = vrot.lane.b32.xlu0 %v3185, 112
    %v3254 = vpop.permute.xlu0 %3253
    %3255 = vrot.lane.b32.xlu0 %v3190, 112
    %v3256 = vpop.permute.xlu0 %3255
    %v3258 = vsel %vm467, %v3254, 0
    %v3261 = vsel %vm467, %v3256, 0
    %3263 = vmatpush.bf16.xpose.msra.mxu0 0
    %3264 = vmatpush.bf16.xpose.msra.mxu0 0
    %3265 = vmatpush.bf16.xpose.msra.mxu0 0
    %3266 = vmatpush.bf16.xpose.msra.mxu0 0
    %3267 = vmatpush.bf16.xpose.msra.mxu0 0
    %3268 = vmatpush.bf16.xpose.msra.mxu0 0
    %3269 = vmatpush.bf16.xpose.msra.mxu0 0
    %3270 = vmatpush.bf16.xpose.msra.mxu0 %v3261
    %3271 = vmatmul.bf16.gmra.mxu0 %v3258
    %v3272 = vpop.f32.mrf.mxu0
    %v3273 = vadd.f32 0.0, %v3272
    %v3274 = vpop.f32.mrf.mxu0
    %3275 = vdwg.mxu0
    %v3276 = vsel %vm467, %v3273, -inf
    %3277 = vmax.xlane.f32.xlu0 %v3276
    %v3278 = vpop.xlane.xlu0 %3277
    %v3279 = vsub.f32 %v3273, %v3278
    %v3280 = vmul.f32 %v3279, 1.442695
    %v3281 = vpow.pop %v3280
    %v3282 = vsel %vm467, %v3281, 0.0
    %3283 = vadd.xlane.f32.xlu0 %v3282
    %v3284 = vpop.xlane.xlu0 %3283
    %v3285 = vrcp.pop %v3284
    %v3286 = vmul.f32 %v3281, %v3285
    %v3287 = vpack.c.bf16 %v3286, %v3286
    %3288 = vrot.lane.b32.xlu0 %v3226, 112
    %v3289 = vpop.permute.xlu0 %3288
    %v3291 = vsel %vm467, %v3287, 0
    %v3294 = vsel %vm502, %v3289, 0
    %3296 = vmatpush.bf16.msra.mxu0 0
    %3297 = vmatpush.bf16.msra.mxu0 0
    %3298 = vmatpush.bf16.msra.mxu0 0
    %3299 = vmatpush.bf16.msra.mxu0 0
    %3300 = vmatpush.bf16.msra.mxu0 0
    %3301 = vmatpush.bf16.msra.mxu0 0
    %3302 = vmatpush.bf16.msra.mxu0 0
    %3303 = vmatpush.bf16.msra.mxu0 %v3294
    %3304 = vmatmul.bf16.gmra.mxu0 %v3291
    %v3305 = vpop.f32.mrf.mxu0
    %v3306 = vadd.f32 0.0, %v3305
    %v3307 = vpop.f32.mrf.mxu0
    %3308 = vdwg.mxu0
    %3310 = vrot.lane.b32.xlu0 %v3306, 16
    %v3311 = vpop.permute.xlu0 %3310
    %3313 = vst.msk [vmem:[#allocation2 + $0x8] sm:$0xff] %vm651, %v3311
    %3314 = vrot.lane.b32.xlu0 %v3185, 104
    %v3315 = vpop.permute.xlu0 %3314
    %3316 = vrot.lane.b32.xlu0 %v3190, 104
    %v3317 = vpop.permute.xlu0 %3316
    %v3319 = vsel %vm467, %v3315, 0
    %v3322 = vsel %vm467, %v3317, 0
    %3324 = vmatpush.bf16.xpose.msra.mxu0 0
    %3325 = vmatpush.bf16.xpose.msra.mxu0 0
    %3326 = vmatpush.bf16.xpose.msra.mxu0 0
    %3327 = vmatpush.bf16.xpose.msra.mxu0 0
    %3328 = vmatpush.bf16.xpose.msra.mxu0 0
    %3329 = vmatpush.bf16.xpose.msra.mxu0 0
    %3330 = vmatpush.bf16.xpose.msra.mxu0 0
    %3331 = vmatpush.bf16.xpose.msra.mxu0 %v3322
    %3332 = vmatmul.bf16.gmra.mxu0 %v3319
    %v3333 = vpop.f32.mrf.mxu0
    %v3334 = vadd.f32 0.0, %v3333
    %v3335 = vpop.f32.mrf.mxu0
    %3336 = vdwg.mxu0
    %v3337 = vsel %vm467, %v3334, -inf
    %3338 = vmax.xlane.f32.xlu0 %v3337
    %v3339 = vpop.xlane.xlu0 %3338
    %v3340 = vsub.f32 %v3334, %v3339
    %v3341 = vmul.f32 %v3340, 1.442695
    %v3342 = vpow.pop %v3341
    %v3343 = vsel %vm467, %v3342, 0.0
    %3344 = vadd.xlane.f32.xlu0 %v3343
    %v3345 = vpop.xlane.xlu0 %3344
    %v3346 = vrcp.pop %v3345
    %v3347 = vmul.f32 %v3342, %v3346
    %v3348 = vpack.c.bf16 %v3347, %v3347
    %3349 = vrot.lane.b32.xlu0 %v3226, 104
    %v3350 = vpop.permute.xlu0 %3349
    %v3352 = vsel %vm467, %v3348, 0
    %v3355 = vsel %vm502, %v3350, 0
    %3357 = vmatpush.bf16.msra.mxu0 0
    %3358 = vmatpush.bf16.msra.mxu0 0
    %3359 = vmatpush.bf16.msra.mxu0 0
    %3360 = vmatpush.bf16.msra.mxu0 0
    %3361 = vmatpush.bf16.msra.mxu0 0
    %3362 = vmatpush.bf16.msra.mxu0 0
    %3363 = vmatpush.bf16.msra.mxu0 0
    %3364 = vmatpush.bf16.msra.mxu0 %v3355
    %3365 = vmatmul.bf16.gmra.mxu0 %v3352
    %v3366 = vpop.f32.mrf.mxu0
    %v3367 = vadd.f32 0.0, %v3366
    %v3368 = vpop.f32.mrf.mxu0
    %3369 = vdwg.mxu0
    %3371 = vrot.lane.b32.xlu0 %v3367, 24
    %v3372 = vpop.permute.xlu0 %3371
    %3374 = vst.msk [vmem:[#allocation2 + $0x8] sm:$0xff] %vm713, %v3372
    %v3375 = vld [vmem:[#allocation2] sm:$0xff]
    %v3376 = vld [vmem:[#allocation2 + $0x8] sm:$0xff]
    %v3377 = vpack.c.bf16 %v3376, %v3375
    %v3382 = vunpack.c.l.b16 %v2789
    %v3383 = vunpack.c.l.b16 %v2790
    %v3384 = vunpack.c.l.b16 %v2791
    %v3385 = vunpack.c.l.b16 %v2792
    %v3386 = vpack.c.b16 %v3383, %v3382
    %v3387 = vpack.c.b16 %v3385, %v3384
    %v3391 = vsel %vm297, %v3377, 0
    %3393 = vmatpush.bf16.msra.mxu0 0
    %3394 = vmatpush.bf16.msra.mxu0 0
    %3395 = vmatpush.bf16.msra.mxu0 0
    %3396 = vmatpush.bf16.msra.mxu0 0
    %3397 = vmatpush.bf16.msra.mxu0 0
    %3398 = vmatpush.bf16.msra.mxu0 0
    %3399 = vmatpush.bf16.msra.mxu0 %v3387
    %3400 = vmatpush.bf16.msra.mxu0 %v3386
    %3401 = vmatmul.bf16.gmra.mxu0 %v3391
    %v3402 = vpop.f32.mrf.mxu0
    %v3403 = vadd.f32 %v2775, %v3402
    %v3404 = vpop.f32.mrf.mxu0
    %v3405 = vadd.f32 %v2776, %v3404
    %3406 = vdwg.mxu0
    %v3407 = vsel %vm297, %v3403, 0.0
    %3408 = vadd.xlane.f32.xlu0 %v3407
    %v3409 = vpop.xlane.xlu0 %3408
    %v3410 = vsel %vm297, %v3405, 0.0
    %3411 = vadd.xlane.f32.xlu0 %v3410
    %v3412 = vpop.xlane.xlu0 %3411
    %v3413 = vmul.f32 %v3409, %v310
    %v3414 = vmul.f32 %v3412, %v310
    %v3415 = vsub.f32 %v3403, %v3413
    %v3416 = vsub.f32 %v3405, %v3414
    %v3417 = vmul.f32 %v3415, %v3415
    %v3418 = vmul.f32 %v3416, %v3416
    %v3419 = vsel %vm297, %v3417, 0.0
    %3420 = vadd.xlane.f32.xlu0 %v3419
    %v3421 = vpop.xlane.xlu0 %3420
    %v3422 = vsel %vm297, %v3418, 0.0
    %3423 = vadd.xlane.f32.xlu0 %v3422
    %v3424 = vpop.xlane.xlu0 %3423
    %v3425 = vmul.f32 %v3421, %v310
    %v3426 = vmul.f32 %v3424, %v310
    %v3427 = vadd.f32 %v3425, 1e-06
    %v3428 = vadd.f32 %v3426, 1e-06
    %v3429 = vrsqrt.pop %v3427
    %v3430 = vmul.f32 %v3429, %v3427
    %v3431 = vmul.f32 %v3430, %v3429
    %v3432 = vmul.f32 0.5, %v3431
    %v3433 = vsub.f32 1.5, %v3432
    %v3434 = vmul.f32 %v3429, %v3433
    %vm3435 = vweird.f32 %v3427
    %vm3436 = vweird.f32 %v3429
    %vm3437 = vmor %vm3435, %vm3436
    %v3438 = vsel %vm3437, %v3429, %v3434
    %v3439 = vrsqrt.pop %v3428
    %v3440 = vmul.f32 %v3439, %v3428
    %v3441 = vmul.f32 %v3440, %v3439
    %v3442 = vmul.f32 0.5, %v3441
    %v3443 = vsub.f32 1.5, %v3442
    %v3444 = vmul.f32 %v3439, %v3443
    %vm3445 = vweird.f32 %v3428
    %vm3446 = vweird.f32 %v3439
    %vm3447 = vmor %vm3445, %vm3446
    %v3448 = vsel %vm3447, %v3439, %v3444
    %v3449 = vmul.f32 %v3415, %v3438
    %v3450 = vmul.f32 %v3416, %v3448
    %v3452 = vperm.slane %v2793, 0
    %v3454 = vmul.f32 %v3449, %v3452
    %v3455 = vmul.f32 %v3450, %v3452
    %v3457 = vperm.slane %v2794, 0
    %v3459 = vadd.f32 %v3454, %v3457
    %v3460 = vadd.f32 %v3455, %v3457
    %v3461 = vld [vmem:[#allocation16] sm:$0xf]
    %v3462 = vld [vmem:[#allocation16 + $0x4] sm:$0xf]
    %v3463 = vld [vmem:[#allocation16 + $0x8] sm:$0xf]
    %v3464 = vld [vmem:[#allocation16 + $0xc] sm:$0xf]
    %v3465 = vld [vmem:[%s63] sm:$0x1]
    %v3466 = vld [vmem:[%s65] sm:$0xf]
    %v3467 = vld [vmem:[%s65 + $0x4] sm:$0xf]
    %v3468 = vld [vmem:[%s65 + $0x8] sm:$0xf]
    %v3469 = vld [vmem:[%s65 + $0xc] sm:$0xf]
    %v3470 = vld [vmem:[%s65 + $0x10] sm:$0xf]
    %v3471 = vld [vmem:[%s65 + $0x14] sm:$0xf]
    %v3472 = vld [vmem:[%s65 + $0x18] sm:$0xf]
    %v3473 = vld [vmem:[%s65 + $0x1c] sm:$0xf]
    %v3474 = vld [vmem:[%s67] sm:$0x1]
    %v3475 = vld [vmem:[%s69] sm:$0x1]
    %v3476 = vld [vmem:[%s71] sm:$0x1]
    %v3477 = vpack.c.bf16 %v3460, %v3459
    %v3479 = vperm.slane %v3465, 0
    %v3485 = vunpack.c.l.b16 %v3461
    %v3486 = vunpack.c.l.b16 %v3462
    %v3487 = vunpack.c.l.b16 %v3463
    %v3488 = vunpack.c.l.b16 %v3464
    %v3489 = vpack.c.b16 %v3486, %v3485
    %v3490 = vpack.c.b16 %v3488, %v3487
    %v3494 = vsel %vm297, %v3477, 0
    %3496 = vmatpush.bf16.msra.mxu0 0
    %3497 = vmatpush.bf16.msra.mxu0 0
    %3498 = vmatpush.bf16.msra.mxu0 0
    %3499 = vmatpush.bf16.msra.mxu0 0
    %3500 = vmatpush.bf16.msra.mxu0 0
    %3501 = vmatpush.bf16.msra.mxu0 0
    %3502 = vmatpush.bf16.msra.mxu0 %v3490
    %3503 = vmatpush.bf16.msra.mxu0 %v3489
    %3504 = vmatmul.bf16.gmra.mxu0 %v3494
    %v3505 = vpop.f32.mrf.mxu0
    %v3506 = vadd.f32 %v3479, %v3505
    %v3507 = vpop.f32.mrf.mxu0
    %v3508 = vadd.f32 %v3479, %v3507
    %3509 = vdwg.mxu0
    %v3510 = vmax.f32 %v3506, 0.0
    %v3511 = vmax.f32 %v3508, 0.0
    %v3512 = vpack.c.bf16 %v3511, %v3510
    %v3514 = vperm.slane %v3474, 0
    %v3524 = vunpack.c.l.b16 %v3466
    %v3525 = vunpack.c.l.b16 %v3467
    %v3526 = vunpack.c.l.b16 %v3468
    %v3527 = vunpack.c.l.b16 %v3469
    %v3528 = vunpack.c.l.b16 %v3470
    %v3529 = vunpack.c.l.b16 %v3471
    %v3530 = vunpack.c.l.b16 %v3472
    %v3531 = vunpack.c.l.b16 %v3473
    %v3532 = vpack.c.b16 %v3525, %v3524
    %v3533 = vpack.c.b16 %v3527, %v3526
    %v3534 = vpack.c.b16 %v3529, %v3528
    %v3535 = vpack.c.b16 %v3531, %v3530
    %v3541 = vsel %vm1123, %v3512, 0
    %3543 = vmatpush.bf16.msra.mxu0 0
    %3544 = vmatpush.bf16.msra.mxu0 0
    %3545 = vmatpush.bf16.msra.mxu0 0
    %3546 = vmatpush.bf16.msra.mxu0 0
    %3547 = vmatpush.bf16.msra.mxu0 %v3535
    %3548 = vmatpush.bf16.msra.mxu0 %v3534
    %3549 = vmatpush.bf16.msra.mxu0 %v3533
    %3550 = vmatpush.bf16.msra.mxu0 %v3532
    %3551 = vmatmul.bf16.gmra.mxu0 %v3541
    %v3552 = vpop.f32.mrf.mxu0
    %v3553 = vadd.f32 %v3514, %v3552
    %v3554 = vpop.f32.mrf.mxu0
    %v3555 = vadd.f32 %v3514, %v3554
    %3556 = vdwg.mxu0
    %v3557 = vadd.f32 %v3553, %v3459
    %v3558 = vadd.f32 %v3555, %v3460
    %v3559 = vsel %vm297, %v3557, 0.0
    %3560 = vadd.xlane.f32.xlu0 %v3559
    %v3561 = vpop.xlane.xlu0 %3560
    %v3562 = vsel %vm297, %v3558, 0.0
    %3563 = vadd.xlane.f32.xlu0 %v3562
    %v3564 = vpop.xlane.xlu0 %3563
    %v3565 = vmul.f32 %v3561, %v310
    %v3566 = vmul.f32 %v3564, %v310
    %v3567 = vsub.f32 %v3557, %v3565
    %v3568 = vsub.f32 %v3558, %v3566
    %v3569 = vmul.f32 %v3567, %v3567
    %v3570 = vmul.f32 %v3568, %v3568
    %v3571 = vsel %vm297, %v3569, 0.0
    %3572 = vadd.xlane.f32.xlu0 %v3571
    %v3573 = vpop.xlane.xlu0 %3572
    %v3574 = vsel %vm297, %v3570, 0.0
    %3575 = vadd.xlane.f32.xlu0 %v3574
    %v3576 = vpop.xlane.xlu0 %3575
    %v3577 = vmul.f32 %v3573, %v310
    %v3578 = vmul.f32 %v3576, %v310
    %v3579 = vadd.f32 %v3577, 1e-06
    %v3580 = vadd.f32 %v3578, 1e-06
    %v3581 = vrsqrt.pop %v3579
    %v3582 = vmul.f32 %v3581, %v3579
    %v3583 = vmul.f32 %v3582, %v3581
    %v3584 = vmul.f32 0.5, %v3583
    %v3585 = vsub.f32 1.5, %v3584
    %v3586 = vmul.f32 %v3581, %v3585
    %vm3587 = vweird.f32 %v3579
    %vm3588 = vweird.f32 %v3581
    %vm3589 = vmor %vm3587, %vm3588
    %v3590 = vsel %vm3589, %v3581, %v3586
    %v3591 = vrsqrt.pop %v3580
    %v3592 = vmul.f32 %v3591, %v3580
    %v3593 = vmul.f32 %v3592, %v3591
    %v3594 = vmul.f32 0.5, %v3593
    %v3595 = vsub.f32 1.5, %v3594
    %v3596 = vmul.f32 %v3591, %v3595
    %vm3597 = vweird.f32 %v3580
    %vm3598 = vweird.f32 %v3591
    %vm3599 = vmor %vm3597, %vm3598
    %v3600 = vsel %vm3599, %v3591, %v3596
    %v3601 = vmul.f32 %v3567, %v3590
    %v3602 = vmul.f32 %v3568, %v3600
    %v3604 = vperm.slane %v3475, 0
    %v3606 = vmul.f32 %v3601, %v3604
    %v3607 = vmul.f32 %v3602, %v3604
    %v3609 = vperm.slane %v3476, 0
    %v3611 = vadd.f32 %v3606, %v3609
    %v3612 = vadd.f32 %v3607, %v3609
    %s3613 = scalar_lea.vmem [#allocation3], 16
    %v3614 = vld [vmem:[%s3613] sm:$0xf]
    %v3615 = vld [vmem:[%s3613 + $0x4] sm:$0xf]
    %v3616 = vld [vmem:[%s3613 + $0x8] sm:$0xf]
    %v3617 = vld [vmem:[%s3613 + $0xc] sm:$0xf]
    %s3618 = scalar_lea.vmem [#allocation5], 16
    %v3619 = vld [vmem:[%s3618] sm:$0xf]
    %v3620 = vld [vmem:[%s3618 + $0x4] sm:$0xf]
    %v3621 = vld [vmem:[%s3618 + $0x8] sm:$0xf]
    %v3622 = vld [vmem:[%s3618 + $0xc] sm:$0xf]
    %s3623 = scalar_lea.vmem [#allocation7], 16
    %v3624 = vld [vmem:[%s3623] sm:$0xf]
    %v3625 = vld [vmem:[%s3623 + $0x4] sm:$0xf]
    %v3626 = vld [vmem:[%s3623 + $0x8] sm:$0xf]
    %v3627 = vld [vmem:[%s3623 + $0xc] sm:$0xf]
    %s3628 = scalar_lea.vmem [#allocation8], 16
    %v3629 = vld [vmem:[%s3628] sm:$0xf]
    %v3630 = vld [vmem:[%s3628 + $0x4] sm:$0xf]
    %v3631 = vld [vmem:[%s3628 + $0x8] sm:$0xf]
    %v3632 = vld [vmem:[%s3628 + $0xc] sm:$0xf]
    %s3633 = scalar_lea.vmem %s45, 1
    %v3634 = vld [vmem:[%s3633] sm:$0x1]
    %s3635 = scalar_lea.vmem %s47, 1
    %v3636 = vld [vmem:[%s3635] sm:$0x1]
    %v3637 = vpack.c.bf16 %v3612, %v3611
    %v3642 = vunpack.c.l.b16 %v3614
    %v3643 = vunpack.c.l.b16 %v3615
    %v3644 = vunpack.c.l.b16 %v3616
    %v3645 = vunpack.c.l.b16 %v3617
    %v3646 = vpack.c.b16 %v3643, %v3642
    %v3647 = vpack.c.b16 %v3645, %v3644
    %v3651 = vsel %vm297, %v3637, 0
    %3653 = vmatpush.bf16.msra.mxu0 0
    %3654 = vmatpush.bf16.msra.mxu0 0
    %3655 = vmatpush.bf16.msra.mxu0 0
    %3656 = vmatpush.bf16.msra.mxu0 0
    %3657 = vmatpush.bf16.msra.mxu0 0
    %3658 = vmatpush.bf16.msra.mxu0 0
    %3659 = vmatpush.bf16.msra.mxu0 %v3647
    %3660 = vmatpush.bf16.msra.mxu0 %v3646
    %3661 = vmatmul.bf16.gmra.mxu0 %v3651
    %v3662 = vpop.f32.mrf.mxu0
    %v3663 = vadd.f32 0.0, %v3662
    %v3664 = vpop.f32.mrf.mxu0
    %v3665 = vadd.f32 0.0, %v3664
    %3666 = vdwg.mxu0
    %v3667 = vmul.f32 %v3663, 0.35355338
    %v3668 = vmul.f32 %v3665, 0.35355338
    %v3669 = vpack.c.bf16 %v3667, %v3667
    %v3670 = vpack.c.bf16 %v3668, %v3668
    %v3675 = vunpack.c.l.b16 %v3619
    %v3676 = vunpack.c.l.b16 %v3620
    %v3677 = vunpack.c.l.b16 %v3621
    %v3678 = vunpack.c.l.b16 %v3622
    %v3679 = vpack.c.b16 %v3676, %v3675
    %v3680 = vpack.c.b16 %v3678, %v3677
    %3683 = vmatpush.bf16.msra.mxu0 0
    %3684 = vmatpush.bf16.msra.mxu0 0
    %3685 = vmatpush.bf16.msra.mxu0 0
    %3686 = vmatpush.bf16.msra.mxu0 0
    %3687 = vmatpush.bf16.msra.mxu0 0
    %3688 = vmatpush.bf16.msra.mxu0 0
    %3689 = vmatpush.bf16.msra.mxu0 %v3680
    %3690 = vmatpush.bf16.msra.mxu0 %v3679
    %3691 = vmatmul.bf16.gmra.mxu0 %v3651
    %v3692 = vpop.f32.mrf.mxu0
    %v3693 = vadd.f32 0.0, %v3692
    %v3694 = vpop.f32.mrf.mxu0
    %v3695 = vadd.f32 0.0, %v3694
    %3696 = vdwg.mxu0
    %v3697 = vpack.c.bf16 %v3693, %v3693
    %v3698 = vpack.c.bf16 %v3695, %v3695
    %v3703 = vunpack.c.l.b16 %v3624
    %v3704 = vunpack.c.l.b16 %v3625
    %v3705 = vunpack.c.l.b16 %v3626
    %v3706 = vunpack.c.l.b16 %v3627
    %v3707 = vpack.c.b16 %v3704, %v3703
    %v3708 = vpack.c.b16 %v3706, %v3705
    %3711 = vmatpush.bf16.msra.mxu0 0
    %3712 = vmatpush.bf16.msra.mxu0 0
    %3713 = vmatpush.bf16.msra.mxu0 0
    %3714 = vmatpush.bf16.msra.mxu0 0
    %3715 = vmatpush.bf16.msra.mxu0 0
    %3716 = vmatpush.bf16.msra.mxu0 0
    %3717 = vmatpush.bf16.msra.mxu0 %v3708
    %3718 = vmatpush.bf16.msra.mxu0 %v3707
    %3719 = vmatmul.bf16.gmra.mxu0 %v3651
    %v3720 = vpop.f32.mrf.mxu0
    %v3721 = vadd.f32 0.0, %v3720
    %v3722 = vpop.f32.mrf.mxu0
    %v3723 = vadd.f32 0.0, %v3722
    %3724 = vdwg.mxu0
    %v3725 = vpack.c.bf16 %v3721, %v3721
    %v3726 = vpack.c.bf16 %v3723, %v3723
    %v3728 = vsel %vm467, %v3669, 0
    %v3731 = vsel %vm467, %v3697, 0
    %3733 = vmatpush.bf16.xpose.msra.mxu0 0
    %3734 = vmatpush.bf16.xpose.msra.mxu0 0
    %3735 = vmatpush.bf16.xpose.msra.mxu0 0
    %3736 = vmatpush.bf16.xpose.msra.mxu0 0
    %3737 = vmatpush.bf16.xpose.msra.mxu0 0
    %3738 = vmatpush.bf16.xpose.msra.mxu0 0
    %3739 = vmatpush.bf16.xpose.msra.mxu0 0
    %3740 = vmatpush.bf16.xpose.msra.mxu0 %v3731
    %3741 = vmatmul.bf16.gmra.mxu0 %v3728
    %v3742 = vpop.f32.mrf.mxu0
    %v3743 = vadd.f32 0.0, %v3742
    %v3744 = vpop.f32.mrf.mxu0
    %3745 = vdwg.mxu0
    %v3746 = vsel %vm467, %v3743, -inf
    %3747 = vmax.xlane.f32.xlu0 %v3746
    %v3748 = vpop.xlane.xlu0 %3747
    %v3749 = vsub.f32 %v3743, %v3748
    %v3750 = vmul.f32 %v3749, 1.442695
    %v3751 = vpow.pop %v3750
    %v3752 = vsel %vm467, %v3751, 0.0
    %3753 = vadd.xlane.f32.xlu0 %v3752
    %v3754 = vpop.xlane.xlu0 %3753
    %v3755 = vrcp.pop %v3754
    %v3756 = vmul.f32 %v3751, %v3755
    %v3757 = vpack.c.bf16 %v3756, %v3756
    %v3759 = vsel %vm467, %v3757, 0
    %v3762 = vsel %vm502, %v3725, 0
    %3764 = vmatpush.bf16.msra.mxu0 0
    %3765 = vmatpush.bf16.msra.mxu0 0
    %3766 = vmatpush.bf16.msra.mxu0 0
    %3767 = vmatpush.bf16.msra.mxu0 0
    %3768 = vmatpush.bf16.msra.mxu0 0
    %3769 = vmatpush.bf16.msra.mxu0 0
    %3770 = vmatpush.bf16.msra.mxu0 0
    %3771 = vmatpush.bf16.msra.mxu0 %v3762
    %3772 = vmatmul.bf16.gmra.mxu0 %v3759
    %v3773 = vpop.f32.mrf.mxu0
    %v3774 = vadd.f32 0.0, %v3773
    %v3775 = vpop.f32.mrf.mxu0
    %3776 = vdwg.mxu0
    %3777 = vst.msk [vmem:[#allocation2] sm:$0xff] %vm467, %v3774
    %v3779 = vunpack.c.l.b16 %v3669
    %v3780 = vpack.c.b16 %v3779, %v3779
    %3781 = vrot.lane.b32.xlu0 %v3780, 120
    %v3782 = vpop.permute.xlu0 %3781
    %v3784 = vunpack.c.l.b16 %v3697
    %v3785 = vpack.c.b16 %v3784, %v3784
    %3786 = vrot.lane.b32.xlu0 %v3785, 120
    %v3787 = vpop.permute.xlu0 %3786
    %v3789 = vsel %vm467, %v3782, 0
    %v3792 = vsel %vm467, %v3787, 0
    %3794 = vmatpush.bf16.xpose.msra.mxu0 0
    %3795 = vmatpush.bf16.xpose.msra.mxu0 0
    %3796 = vmatpush.bf16.xpose.msra.mxu0 0
    %3797 = vmatpush.bf16.xpose.msra.mxu0 0
    %3798 = vmatpush.bf16.xpose.msra.mxu0 0
    %3799 = vmatpush.bf16.xpose.msra.mxu0 0
    %3800 = vmatpush.bf16.xpose.msra.mxu0 0
    %3801 = vmatpush.bf16.xpose.msra.mxu0 %v3792
    %3802 = vmatmul.bf16.gmra.mxu0 %v3789
    %v3803 = vpop.f32.mrf.mxu0
    %v3804 = vadd.f32 0.0, %v3803
    %v3805 = vpop.f32.mrf.mxu0
    %3806 = vdwg.mxu0
    %v3807 = vsel %vm467, %v3804, -inf
    %3808 = vmax.xlane.f32.xlu0 %v3807
    %v3809 = vpop.xlane.xlu0 %3808
    %v3810 = vsub.f32 %v3804, %v3809
    %v3811 = vmul.f32 %v3810, 1.442695
    %v3812 = vpow.pop %v3811
    %v3813 = vsel %vm467, %v3812, 0.0
    %3814 = vadd.xlane.f32.xlu0 %v3813
    %v3815 = vpop.xlane.xlu0 %3814
    %v3816 = vrcp.pop %v3815
    %v3817 = vmul.f32 %v3812, %v3816
    %v3818 = vpack.c.bf16 %v3817, %v3817
    %v3820 = vunpack.c.l.b16 %v3725
    %v3821 = vpack.c.b16 %v3820, %v3820
    %3822 = vrot.lane.b32.xlu0 %v3821, 120
    %v3823 = vpop.permute.xlu0 %3822
    %v3825 = vsel %vm467, %v3818, 0
    %v3828 = vsel %vm502, %v3823, 0
    %3830 = vmatpush.bf16.msra.mxu0 0
    %3831 = vmatpush.bf16.msra.mxu0 0
    %3832 = vmatpush.bf16.msra.mxu0 0
    %3833 = vmatpush.bf16.msra.mxu0 0
    %3834 = vmatpush.bf16.msra.mxu0 0
    %3835 = vmatpush.bf16.msra.mxu0 0
    %3836 = vmatpush.bf16.msra.mxu0 0
    %3837 = vmatpush.bf16.msra.mxu0 %v3828
    %3838 = vmatmul.bf16.gmra.mxu0 %v3825
    %v3839 = vpop.f32.mrf.mxu0
    %v3840 = vadd.f32 0.0, %v3839
    %v3841 = vpop.f32.mrf.mxu0
    %3842 = vdwg.mxu0
    %3844 = vrot.lane.b32.xlu0 %v3840, 8
    %v3845 = vpop.permute.xlu0 %3844
    %3847 = vst.msk [vmem:[#allocation2] sm:$0xff] %vm589, %v3845
    %3848 = vrot.lane.b32.xlu0 %v3780, 112
    %v3849 = vpop.permute.xlu0 %3848
    %3850 = vrot.lane.b32.xlu0 %v3785, 112
    %v3851 = vpop.permute.xlu0 %3850
    %v3853 = vsel %vm467, %v3849, 0
    %v3856 = vsel %vm467, %v3851, 0
    %3858 = vmatpush.bf16.xpose.msra.mxu0 0
    %3859 = vmatpush.bf16.xpose.msra.mxu0 0
    %3860 = vmatpush.bf16.xpose.msra.mxu0 0
    %3861 = vmatpush.bf16.xpose.msra.mxu0 0
    %3862 = vmatpush.bf16.xpose.msra.mxu0 0
    %3863 = vmatpush.bf16.xpose.msra.mxu0 0
    %3864 = vmatpush.bf16.xpose.msra.mxu0 0
    %3865 = vmatpush.bf16.xpose.msra.mxu0 %v3856
    %3866 = vmatmul.bf16.gmra.mxu0 %v3853
    %v3867 = vpop.f32.mrf.mxu0
    %v3868 = vadd.f32 0.0, %v3867
    %v3869 = vpop.f32.mrf.mxu0
    %3870 = vdwg.mxu0
    %v3871 = vsel %vm467, %v3868, -inf
    %3872 = vmax.xlane.f32.xlu0 %v3871
    %v3873 = vpop.xlane.xlu0 %3872
    %v3874 = vsub.f32 %v3868, %v3873
    %v3875 = vmul.f32 %v3874, 1.442695
    %v3876 = vpow.pop %v3875
    %v3877 = vsel %vm467, %v3876, 0.0
    %3878 = vadd.xlane.f32.xlu0 %v3877
    %v3879 = vpop.xlane.xlu0 %3878
    %v3880 = vrcp.pop %v3879
    %v3881 = vmul.f32 %v3876, %v3880
    %v3882 = vpack.c.bf16 %v3881, %v3881
    %3883 = vrot.lane.b32.xlu0 %v3821, 112
    %v3884 = vpop.permute.xlu0 %3883
    %v3886 = vsel %vm467, %v3882, 0
    %v3889 = vsel %vm502, %v3884, 0
    %3891 = vmatpush.bf16.msra.mxu0 0
    %3892 = vmatpush.bf16.msra.mxu0 0
    %3893 = vmatpush.bf16.msra.mxu0 0
    %3894 = vmatpush.bf16.msra.mxu0 0
    %3895 = vmatpush.bf16.msra.mxu0 0
    %3896 = vmatpush.bf16.msra.mxu0 0
    %3897 = vmatpush.bf16.msra.mxu0 0
    %3898 = vmatpush.bf16.msra.mxu0 %v3889
    %3899 = vmatmul.bf16.gmra.mxu0 %v3886
    %v3900 = vpop.f32.mrf.mxu0
    %v3901 = vadd.f32 0.0, %v3900
    %v3902 = vpop.f32.mrf.mxu0
    %3903 = vdwg.mxu0
    %3905 = vrot.lane.b32.xlu0 %v3901, 16
    %v3906 = vpop.permute.xlu0 %3905
    %3908 = vst.msk [vmem:[#allocation2] sm:$0xff] %vm651, %v3906
    %3909 = vrot.lane.b32.xlu0 %v3780, 104
    %v3910 = vpop.permute.xlu0 %3909
    %3911 = vrot.lane.b32.xlu0 %v3785, 104
    %v3912 = vpop.permute.xlu0 %3911
    %v3914 = vsel %vm467, %v3910, 0
    %v3917 = vsel %vm467, %v3912, 0
    %3919 = vmatpush.bf16.xpose.msra.mxu0 0
    %3920 = vmatpush.bf16.xpose.msra.mxu0 0
    %3921 = vmatpush.bf16.xpose.msra.mxu0 0
    %3922 = vmatpush.bf16.xpose.msra.mxu0 0
    %3923 = vmatpush.bf16.xpose.msra.mxu0 0
    %3924 = vmatpush.bf16.xpose.msra.mxu0 0
    %3925 = vmatpush.bf16.xpose.msra.mxu0 0
    %3926 = vmatpush.bf16.xpose.msra.mxu0 %v3917
    %3927 = vmatmul.bf16.gmra.mxu0 %v3914
    %v3928 = vpop.f32.mrf.mxu0
    %v3929 = vadd.f32 0.0, %v3928
    %v3930 = vpop.f32.mrf.mxu0
    %3931 = vdwg.mxu0
    %v3932 = vsel %vm467, %v3929, -inf
    %3933 = vmax.xlane.f32.xlu0 %v3932
    %v3934 = vpop.xlane.xlu0 %3933
    %v3935 = vsub.f32 %v3929, %v3934
    %v3936 = vmul.f32 %v3935, 1.442695
    %v3937 = vpow.pop %v3936
    %v3938 = vsel %vm467, %v3937, 0.0
    %3939 = vadd.xlane.f32.xlu0 %v3938
    %v3940 = vpop.xlane.xlu0 %3939
    %v3941 = vrcp.pop %v3940
    %v3942 = vmul.f32 %v3937, %v3941
    %v3943 = vpack.c.bf16 %v3942, %v3942
    %3944 = vrot.lane.b32.xlu0 %v3821, 104
    %v3945 = vpop.permute.xlu0 %3944
    %v3947 = vsel %vm467, %v3943, 0
    %v3950 = vsel %vm502, %v3945, 0
    %3952 = vmatpush.bf16.msra.mxu0 0
    %3953 = vmatpush.bf16.msra.mxu0 0
    %3954 = vmatpush.bf16.msra.mxu0 0
    %3955 = vmatpush.bf16.msra.mxu0 0
    %3956 = vmatpush.bf16.msra.mxu0 0
    %3957 = vmatpush.bf16.msra.mxu0 0
    %3958 = vmatpush.bf16.msra.mxu0 0
    %3959 = vmatpush.bf16.msra.mxu0 %v3950
    %3960 = vmatmul.bf16.gmra.mxu0 %v3947
    %v3961 = vpop.f32.mrf.mxu0
    %v3962 = vadd.f32 0.0, %v3961
    %v3963 = vpop.f32.mrf.mxu0
    %3964 = vdwg.mxu0
    %3966 = vrot.lane.b32.xlu0 %v3962, 24
    %v3967 = vpop.permute.xlu0 %3966
    %3969 = vst.msk [vmem:[#allocation2] sm:$0xff] %vm713, %v3967
    %v3971 = vsel %vm467, %v3670, 0
    %v3974 = vsel %vm467, %v3698, 0
    %3976 = vmatpush.bf16.xpose.msra.mxu0 0
    %3977 = vmatpush.bf16.xpose.msra.mxu0 0
    %3978 = vmatpush.bf16.xpose.msra.mxu0 0
    %3979 = vmatpush.bf16.xpose.msra.mxu0 0
    %3980 = vmatpush.bf16.xpose.msra.mxu0 0
    %3981 = vmatpush.bf16.xpose.msra.mxu0 0
    %3982 = vmatpush.bf16.xpose.msra.mxu0 0
    %3983 = vmatpush.bf16.xpose.msra.mxu0 %v3974
    %3984 = vmatmul.bf16.gmra.mxu0 %v3971
    %v3985 = vpop.f32.mrf.mxu0
    %v3986 = vadd.f32 0.0, %v3985
    %v3987 = vpop.f32.mrf.mxu0
    %3988 = vdwg.mxu0
    %v3989 = vsel %vm467, %v3986, -inf
    %3990 = vmax.xlane.f32.xlu0 %v3989
    %v3991 = vpop.xlane.xlu0 %3990
    %v3992 = vsub.f32 %v3986, %v3991
    %v3993 = vmul.f32 %v3992, 1.442695
    %v3994 = vpow.pop %v3993
    %v3995 = vsel %vm467, %v3994, 0.0
    %3996 = vadd.xlane.f32.xlu0 %v3995
    %v3997 = vpop.xlane.xlu0 %3996
    %v3998 = vrcp.pop %v3997
    %v3999 = vmul.f32 %v3994, %v3998
    %v4000 = vpack.c.bf16 %v3999, %v3999
    %v4002 = vsel %vm467, %v4000, 0
    %v4005 = vsel %vm502, %v3726, 0
    %4007 = vmatpush.bf16.msra.mxu0 0
    %4008 = vmatpush.bf16.msra.mxu0 0
    %4009 = vmatpush.bf16.msra.mxu0 0
    %4010 = vmatpush.bf16.msra.mxu0 0
    %4011 = vmatpush.bf16.msra.mxu0 0
    %4012 = vmatpush.bf16.msra.mxu0 0
    %4013 = vmatpush.bf16.msra.mxu0 0
    %4014 = vmatpush.bf16.msra.mxu0 %v4005
    %4015 = vmatmul.bf16.gmra.mxu0 %v4002
    %v4016 = vpop.f32.mrf.mxu0
    %v4017 = vadd.f32 0.0, %v4016
    %v4018 = vpop.f32.mrf.mxu0
    %4019 = vdwg.mxu0
    %4020 = vst.msk [vmem:[#allocation2 + $0x8] sm:$0xff] %vm467, %v4017
    %v4022 = vunpack.c.l.b16 %v3670
    %v4023 = vpack.c.b16 %v4022, %v4022
    %4024 = vrot.lane.b32.xlu0 %v4023, 120
    %v4025 = vpop.permute.xlu0 %4024
    %v4027 = vunpack.c.l.b16 %v3698
    %v4028 = vpack.c.b16 %v4027, %v4027
    %4029 = vrot.lane.b32.xlu0 %v4028, 120
    %v4030 = vpop.permute.xlu0 %4029
    %v4032 = vsel %vm467, %v4025, 0
    %v4035 = vsel %vm467, %v4030, 0
    %4037 = vmatpush.bf16.xpose.msra.mxu0 0
    %4038 = vmatpush.bf16.xpose.msra.mxu0 0
    %4039 = vmatpush.bf16.xpose.msra.mxu0 0
    %4040 = vmatpush.bf16.xpose.msra.mxu0 0
    %4041 = vmatpush.bf16.xpose.msra.mxu0 0
    %4042 = vmatpush.bf16.xpose.msra.mxu0 0
    %4043 = vmatpush.bf16.xpose.msra.mxu0 0
    %4044 = vmatpush.bf16.xpose.msra.mxu0 %v4035
    %4045 = vmatmul.bf16.gmra.mxu0 %v4032
    %v4046 = vpop.f32.mrf.mxu0
    %v4047 = vadd.f32 0.0, %v4046
    %v4048 = vpop.f32.mrf.mxu0
    %4049 = vdwg.mxu0
    %v4050 = vsel %vm467, %v4047, -inf
    %4051 = vmax.xlane.f32.xlu0 %v4050
    %v4052 = vpop.xlane.xlu0 %4051
    %v4053 = vsub.f32 %v4047, %v4052
    %v4054 = vmul.f32 %v4053, 1.442695
    %v4055 = vpow.pop %v4054
    %v4056 = vsel %vm467, %v4055, 0.0
    %4057 = vadd.xlane.f32.xlu0 %v4056
    %v4058 = vpop.xlane.xlu0 %4057
    %v4059 = vrcp.pop %v4058
    %v4060 = vmul.f32 %v4055, %v4059
    %v4061 = vpack.c.bf16 %v4060, %v4060
    %v4063 = vunpack.c.l.b16 %v3726
    %v4064 = vpack.c.b16 %v4063, %v4063
    %4065 = vrot.lane.b32.xlu0 %v4064, 120
    %v4066 = vpop.permute.xlu0 %4065
    %v4068 = vsel %vm467, %v4061, 0
    %v4071 = vsel %vm502, %v4066, 0
    %4073 = vmatpush.bf16.msra.mxu0 0
    %4074 = vmatpush.bf16.msra.mxu0 0
    %4075 = vmatpush.bf16.msra.mxu0 0
    %4076 = vmatpush.bf16.msra.mxu0 0
    %4077 = vmatpush.bf16.msra.mxu0 0
    %4078 = vmatpush.bf16.msra.mxu0 0
    %4079 = vmatpush.bf16.msra.mxu0 0
    %4080 = vmatpush.bf16.msra.mxu0 %v4071
    %4081 = vmatmul.bf16.gmra.mxu0 %v4068
    %v4082 = vpop.f32.mrf.mxu0
    %v4083 = vadd.f32 0.0, %v4082
    %v4084 = vpop.f32.mrf.mxu0
    %4085 = vdwg.mxu0
    %4087 = vrot.lane.b32.xlu0 %v4083, 8
    %v4088 = vpop.permute.xlu0 %4087
    %4090 = vst.msk [vmem:[#allocation2 + $0x8] sm:$0xff] %vm589, %v4088
    %4091 = vrot.lane.b32.xlu0 %v4023, 112
    %v4092 = vpop.permute.xlu0 %4091
    %4093 = vrot.lane.b32.xlu0 %v4028, 112
    %v4094 = vpop.permute.xlu0 %4093
    %v4096 = vsel %vm467, %v4092, 0
    %v4099 = vsel %vm467, %v4094, 0
    %4101 = vmatpush.bf16.xpose.msra.mxu0 0
    %4102 = vmatpush.bf16.xpose.msra.mxu0 0
    %4103 = vmatpush.bf16.xpose.msra.mxu0 0
    %4104 = vmatpush.bf16.xpose.msra.mxu0 0
    %4105 = vmatpush.bf16.xpose.msra.mxu0 0
    %4106 = vmatpush.bf16.xpose.msra.mxu0 0
    %4107 = vmatpush.bf16.xpose.msra.mxu0 0
    %4108 = vmatpush.bf16.xpose.msra.mxu0 %v4099
    %4109 = vmatmul.bf16.gmra.mxu0 %v4096
    %v4110 = vpop.f32.mrf.mxu0
    %v4111 = vadd.f32 0.0, %v4110
    %v4112 = vpop.f32.mrf.mxu0
    %4113 = vdwg.mxu0
    %v4114 = vsel %vm467, %v4111, -inf
    %4115 = vmax.xlane.f32.xlu0 %v4114
    %v4116 = vpop.xlane.xlu0 %4115
    %v4117 = vsub.f32 %v4111, %v4116
    %v4118 = vmul.f32 %v4117, 1.442695
    %v4119 = vpow.pop %v4118
    %v4120 = vsel %vm467, %v4119, 0.0
    %4121 = vadd.xlane.f32.xlu0 %v4120
    %v4122 = vpop.xlane.xlu0 %4121
    %v4123 = vrcp.pop %v4122
    %v4124 = vmul.f32 %v4119, %v4123
    %v4125 = vpack.c.bf16 %v4124, %v4124
    %4126 = vrot.lane.b32.xlu0 %v4064, 112
    %v4127 = vpop.permute.xlu0 %4126
    %v4129 = vsel %vm467, %v4125, 0
    %v4132 = vsel %vm502, %v4127, 0
    %4134 = vmatpush.bf16.msra.mxu0 0
    %4135 = vmatpush.bf16.msra.mxu0 0
    %4136 = vmatpush.bf16.msra.mxu0 0
    %4137 = vmatpush.bf16.msra.mxu0 0
    %4138 = vmatpush.bf16.msra.mxu0 0
    %4139 = vmatpush.bf16.msra.mxu0 0
    %4140 = vmatpush.bf16.msra.mxu0 0
    %4141 = vmatpush.bf16.msra.mxu0 %v4132
    %4142 = vmatmul.bf16.gmra.mxu0 %v4129
    %v4143 = vpop.f32.mrf.mxu0
    %v4144 = vadd.f32 0.0, %v4143
    %v4145 = vpop.f32.mrf.mxu0
    %4146 = vdwg.mxu0
    %4148 = vrot.lane.b32.xlu0 %v4144, 16
    %v4149 = vpop.permute.xlu0 %4148
    %4151 = vst.msk [vmem:[#allocation2 + $0x8] sm:$0xff] %vm651, %v4149
    %4152 = vrot.lane.b32.xlu0 %v4023, 104
    %v4153 = vpop.permute.xlu0 %4152
    %4154 = vrot.lane.b32.xlu0 %v4028, 104
    %v4155 = vpop.permute.xlu0 %4154
    %v4157 = vsel %vm467, %v4153, 0
    %v4160 = vsel %vm467, %v4155, 0
    %4162 = vmatpush.bf16.xpose.msra.mxu0 0
    %4163 = vmatpush.bf16.xpose.msra.mxu0 0
    %4164 = vmatpush.bf16.xpose.msra.mxu0 0
    %4165 = vmatpush.bf16.xpose.msra.mxu0 0
    %4166 = vmatpush.bf16.xpose.msra.mxu0 0
    %4167 = vmatpush.bf16.xpose.msra.mxu0 0
    %4168 = vmatpush.bf16.xpose.msra.mxu0 0
    %4169 = vmatpush.bf16.xpose.msra.mxu0 %v4160
    %4170 = vmatmul.bf16.gmra.mxu0 %v4157
    %v4171 = vpop.f32.mrf.mxu0
    %v4172 = vadd.f32 0.0, %v4171
    %v4173 = vpop.f32.mrf.mxu0
    %4174 = vdwg.mxu0
    %v4175 = vsel %vm467, %v4172, -inf
    %4176 = vmax.xlane.f32.xlu0 %v4175
    %v4177 = vpop.xlane.xlu0 %4176
    %v4178 = vsub.f32 %v4172, %v4177
    %v4179 = vmul.f32 %v4178, 1.442695
    %v4180 = vpow.pop %v4179
    %v4181 = vsel %vm467, %v4180, 0.0
    %4182 = vadd.xlane.f32.xlu0 %v4181
    %v4183 = vpop.xlane.xlu0 %4182
    %v4184 = vrcp.pop %v4183
    %v4185 = vmul.f32 %v4180, %v4184
    %v4186 = vpack.c.bf16 %v4185, %v4185
    %4187 = vrot.lane.b32.xlu0 %v4064, 104
    %v4188 = vpop.permute.xlu0 %4187
    %v4190 = vsel %vm467, %v4186, 0
    %v4193 = vsel %vm502, %v4188, 0
    %4195 = vmatpush.bf16.msra.mxu0 0
    %4196 = vmatpush.bf16.msra.mxu0 0
    %4197 = vmatpush.bf16.msra.mxu0 0
    %4198 = vmatpush.bf16.msra.mxu0 0
    %4199 = vmatpush.bf16.msra.mxu0 0
    %4200 = vmatpush.bf16.msra.mxu0 0
    %4201 = vmatpush.bf16.msra.mxu0 0
    %4202 = vmatpush.bf16.msra.mxu0 %v4193
    %4203 = vmatmul.bf16.gmra.mxu0 %v4190
    %v4204 = vpop.f32.mrf.mxu0
    %v4205 = vadd.f32 0.0, %v4204
    %v4206 = vpop.f32.mrf.mxu0
    %4207 = vdwg.mxu0
    %4209 = vrot.lane.b32.xlu0 %v4205, 24
    %v4210 = vpop.permute.xlu0 %4209
    %4212 = vst.msk [vmem:[#allocation2 + $0x8] sm:$0xff] %vm713, %v4210
    %v4213 = vld [vmem:[#allocation2] sm:$0xff]
    %v4214 = vld [vmem:[#allocation2 + $0x8] sm:$0xff]
    %v4215 = vpack.c.bf16 %v4214, %v4213
    %v4220 = vunpack.c.l.b16 %v3629
    %v4221 = vunpack.c.l.b16 %v3630
    %v4222 = vunpack.c.l.b16 %v3631
    %v4223 = vunpack.c.l.b16 %v3632
    %v4224 = vpack.c.b16 %v4221, %v4220
    %v4225 = vpack.c.b16 %v4223, %v4222
    %v4229 = vsel %vm297, %v4215, 0
    %4231 = vmatpush.bf16.msra.mxu0 0
    %4232 = vmatpush.bf16.msra.mxu0 0
    %4233 = vmatpush.bf16.msra.mxu0 0
    %4234 = vmatpush.bf16.msra.mxu0 0
    %4235 = vmatpush.bf16.msra.mxu0 0
    %4236 = vmatpush.bf16.msra.mxu0 0
    %4237 = vmatpush.bf16.msra.mxu0 %v4225
    %4238 = vmatpush.bf16.msra.mxu0 %v4224
    %4239 = vmatmul.bf16.gmra.mxu0 %v4229
    %v4240 = vpop.f32.mrf.mxu0
    %v4241 = vadd.f32 %v3611, %v4240
    %v4242 = vpop.f32.mrf.mxu0
    %v4243 = vadd.f32 %v3612, %v4242
    %4244 = vdwg.mxu0
    %v4245 = vsel %vm297, %v4241, 0.0
    %4246 = vadd.xlane.f32.xlu0 %v4245
    %v4247 = vpop.xlane.xlu0 %4246
    %v4248 = vsel %vm297, %v4243, 0.0
    %4249 = vadd.xlane.f32.xlu0 %v4248
    %v4250 = vpop.xlane.xlu0 %4249
    %v4251 = vmul.f32 %v4247, %v310
    %v4252 = vmul.f32 %v4250, %v310
    %v4253 = vsub.f32 %v4241, %v4251
    %v4254 = vsub.f32 %v4243, %v4252
    %v4255 = vmul.f32 %v4253, %v4253
    %v4256 = vmul.f32 %v4254, %v4254
    %v4257 = vsel %vm297, %v4255, 0.0
    %4258 = vadd.xlane.f32.xlu0 %v4257
    %v4259 = vpop.xlane.xlu0 %4258
    %v4260 = vsel %vm297, %v4256, 0.0
    %4261 = vadd.xlane.f32.xlu0 %v4260
    %v4262 = vpop.xlane.xlu0 %4261
    %v4263 = vmul.f32 %v4259, %v310
    %v4264 = vmul.f32 %v4262, %v310
    %v4265 = vadd.f32 %v4263, 1e-06
    %v4266 = vadd.f32 %v4264, 1e-06
    %v4267 = vrsqrt.pop %v4265
    %v4268 = vmul.f32 %v4267, %v4265
    %v4269 = vmul.f32 %v4268, %v4267
    %v4270 = vmul.f32 0.5, %v4269
    %v4271 = vsub.f32 1.5, %v4270
    %v4272 = vmul.f32 %v4267, %v4271
    %vm4273 = vweird.f32 %v4265
    %vm4274 = vweird.f32 %v4267
    %vm4275 = vmor %vm4273, %vm4274
    %v4276 = vsel %vm4275, %v4267, %v4272
    %v4277 = vrsqrt.pop %v4266
    %v4278 = vmul.f32 %v4277, %v4266
    %v4279 = vmul.f32 %v4278, %v4277
    %v4280 = vmul.f32 0.5, %v4279
    %v4281 = vsub.f32 1.5, %v4280
    %v4282 = vmul.f32 %v4277, %v4281
    %vm4283 = vweird.f32 %v4266
    %vm4284 = vweird.f32 %v4277
    %vm4285 = vmor %vm4283, %vm4284
    %v4286 = vsel %vm4285, %v4277, %v4282
    %v4287 = vmul.f32 %v4253, %v4276
    %v4288 = vmul.f32 %v4254, %v4286
    %v4290 = vperm.slane %v3634, 0
    %v4292 = vmul.f32 %v4287, %v4290
    %v4293 = vmul.f32 %v4288, %v4290
    %v4295 = vperm.slane %v3636, 0
    %v4297 = vadd.f32 %v4292, %v4295
    %v4298 = vadd.f32 %v4293, %v4295
    %s4299 = scalar_lea.vmem [#allocation10], 16
    %v4300 = vld [vmem:[%s4299] sm:$0xf]
    %v4301 = vld [vmem:[%s4299 + $0x4] sm:$0xf]
    %v4302 = vld [vmem:[%s4299 + $0x8] sm:$0xf]
    %v4303 = vld [vmem:[%s4299 + $0xc] sm:$0xf]
    %s4304 = scalar_lea.vmem [#allocation11], 16
    %v4305 = vld [vmem:[%s4304] sm:$0xf]
    %v4306 = vld [vmem:[%s4304 + $0x4] sm:$0xf]
    %v4307 = vld [vmem:[%s4304 + $0x8] sm:$0xf]
    %v4308 = vld [vmem:[%s4304 + $0xc] sm:$0xf]
    %s4309 = scalar_lea.vmem [#allocation13], 16
    %v4310 = vld [vmem:[%s4309] sm:$0xf]
    %v4311 = vld [vmem:[%s4309 + $0x4] sm:$0xf]
    %v4312 = vld [vmem:[%s4309 + $0x8] sm:$0xf]
    %v4313 = vld [vmem:[%s4309 + $0xc] sm:$0xf]
    %s4314 = scalar_lea.vmem [#allocation14], 16
    %v4315 = vld [vmem:[%s4314] sm:$0xf]
    %v4316 = vld [vmem:[%s4314 + $0x4] sm:$0xf]
    %v4317 = vld [vmem:[%s4314 + $0x8] sm:$0xf]
    %v4318 = vld [vmem:[%s4314 + $0xc] sm:$0xf]
    %s4319 = scalar_lea.vmem %s57, 1
    %v4320 = vld [vmem:[%s4319] sm:$0x1]
    %s4321 = scalar_lea.vmem %s59, 1
    %v4322 = vld [vmem:[%s4321] sm:$0x1]
    %v4323 = vpack.c.bf16 %v4298, %v4297
    %v4328 = vunpack.c.l.b16 %v4300
    %v4329 = vunpack.c.l.b16 %v4301
    %v4330 = vunpack.c.l.b16 %v4302
    %v4331 = vunpack.c.l.b16 %v4303
    %v4332 = vpack.c.b16 %v4329, %v4328
    %v4333 = vpack.c.b16 %v4331, %v4330
    %v4337 = vsel %vm297, %v4323, 0
    %4339 = vmatpush.bf16.msra.mxu0 0
    %4340 = vmatpush.bf16.msra.mxu0 0
    %4341 = vmatpush.bf16.msra.mxu0 0
    %4342 = vmatpush.bf16.msra.mxu0 0
    %4343 = vmatpush.bf16.msra.mxu0 0
    %4344 = vmatpush.bf16.msra.mxu0 0
    %4345 = vmatpush.bf16.msra.mxu0 %v4333
    %4346 = vmatpush.bf16.msra.mxu0 %v4332
    %4347 = vmatmul.bf16.gmra.mxu0 %v4337
    %v4348 = vpop.f32.mrf.mxu0
    %v4349 = vadd.f32 0.0, %v4348
    %v4350 = vpop.f32.mrf.mxu0
    %v4351 = vadd.f32 0.0, %v4350
    %4352 = vdwg.mxu0
    %v4353 = vmul.f32 %v4349, 0.35355338
    %v4354 = vmul.f32 %v4351, 0.35355338
    %v4355 = vpack.c.bf16 %v4353, %v4353
    %v4356 = vpack.c.bf16 %v4354, %v4354
    %v4361 = vunpack.c.l.b16 %v4305
    %v4362 = vunpack.c.l.b16 %v4306
    %v4363 = vunpack.c.l.b16 %v4307
    %v4364 = vunpack.c.l.b16 %v4308
    %v4365 = vpack.c.b16 %v4362, %v4361
    %v4366 = vpack.c.b16 %v4364, %v4363
    %4369 = vmatpush.bf16.msra.mxu0 0
    %4370 = vmatpush.bf16.msra.mxu0 0
    %4371 = vmatpush.bf16.msra.mxu0 0
    %4372 = vmatpush.bf16.msra.mxu0 0
    %4373 = vmatpush.bf16.msra.mxu0 0
    %4374 = vmatpush.bf16.msra.mxu0 0
    %4375 = vmatpush.bf16.msra.mxu0 %v4366
    %4376 = vmatpush.bf16.msra.mxu0 %v4365
    %4377 = vmatmul.bf16.gmra.mxu0 %v2843
    %v4378 = vpop.f32.mrf.mxu0
    %v4379 = vadd.f32 0.0, %v4378
    %v4380 = vpop.f32.mrf.mxu0
    %v4381 = vadd.f32 0.0, %v4380
    %4382 = vdwg.mxu0
    %v4383 = vpack.c.bf16 %v4379, %v4379
    %v4384 = vpack.c.bf16 %v4381, %v4381
    %v4389 = vunpack.c.l.b16 %v4310
    %v4390 = vunpack.c.l.b16 %v4311
    %v4391 = vunpack.c.l.b16 %v4312
    %v4392 = vunpack.c.l.b16 %v4313
    %v4393 = vpack.c.b16 %v4390, %v4389
    %v4394 = vpack.c.b16 %v4392, %v4391
    %4397 = vmatpush.bf16.msra.mxu0 0
    %4398 = vmatpush.bf16.msra.mxu0 0
    %4399 = vmatpush.bf16.msra.mxu0 0
    %4400 = vmatpush.bf16.msra.mxu0 0
    %4401 = vmatpush.bf16.msra.mxu0 0
    %4402 = vmatpush.bf16.msra.mxu0 0
    %4403 = vmatpush.bf16.msra.mxu0 %v4394
    %4404 = vmatpush.bf16.msra.mxu0 %v4393
    %4405 = vmatmul.bf16.gmra.mxu0 %v2843
    %v4406 = vpop.f32.mrf.mxu0
    %v4407 = vadd.f32 0.0, %v4406
    %v4408 = vpop.f32.mrf.mxu0
    %v4409 = vadd.f32 0.0, %v4408
    %4410 = vdwg.mxu0
    %v4411 = vpack.c.bf16 %v4407, %v4407
    %v4412 = vpack.c.bf16 %v4409, %v4409
    %v4414 = vsel %vm467, %v4355, 0
    %v4417 = vsel %vm467, %v4383, 0
    %4419 = vmatpush.bf16.xpose.msra.mxu0 0
    %4420 = vmatpush.bf16.xpose.msra.mxu0 0
    %4421 = vmatpush.bf16.xpose.msra.mxu0 0
    %4422 = vmatpush.bf16.xpose.msra.mxu0 0
    %4423 = vmatpush.bf16.xpose.msra.mxu0 0
    %4424 = vmatpush.bf16.xpose.msra.mxu0 0
    %4425 = vmatpush.bf16.xpose.msra.mxu0 0
    %4426 = vmatpush.bf16.xpose.msra.mxu0 %v4417
    %4427 = vmatmul.bf16.gmra.mxu0 %v4414
    %v4428 = vpop.f32.mrf.mxu0
    %v4429 = vadd.f32 0.0, %v4428
    %v4430 = vpop.f32.mrf.mxu0
    %4431 = vdwg.mxu0
    %v4432 = vsel %vm467, %v4429, -inf
    %4433 = vmax.xlane.f32.xlu0 %v4432
    %v4434 = vpop.xlane.xlu0 %4433
    %v4435 = vsub.f32 %v4429, %v4434
    %v4436 = vmul.f32 %v4435, 1.442695
    %v4437 = vpow.pop %v4436
    %v4438 = vsel %vm467, %v4437, 0.0
    %4439 = vadd.xlane.f32.xlu0 %v4438
    %v4440 = vpop.xlane.xlu0 %4439
    %v4441 = vrcp.pop %v4440
    %v4442 = vmul.f32 %v4437, %v4441
    %v4443 = vpack.c.bf16 %v4442, %v4442
    %v4445 = vsel %vm467, %v4443, 0
    %v4448 = vsel %vm502, %v4411, 0
    %4450 = vmatpush.bf16.msra.mxu0 0
    %4451 = vmatpush.bf16.msra.mxu0 0
    %4452 = vmatpush.bf16.msra.mxu0 0
    %4453 = vmatpush.bf16.msra.mxu0 0
    %4454 = vmatpush.bf16.msra.mxu0 0
    %4455 = vmatpush.bf16.msra.mxu0 0
    %4456 = vmatpush.bf16.msra.mxu0 0
    %4457 = vmatpush.bf16.msra.mxu0 %v4448
    %4458 = vmatmul.bf16.gmra.mxu0 %v4445
    %v4459 = vpop.f32.mrf.mxu0
    %v4460 = vadd.f32 0.0, %v4459
    %v4461 = vpop.f32.mrf.mxu0
    %4462 = vdwg.mxu0
    %4463 = vst.msk [vmem:[#allocation2] sm:$0xff] %vm467, %v4460
    %v4465 = vunpack.c.l.b16 %v4355
    %v4466 = vpack.c.b16 %v4465, %v4465
    %4467 = vrot.lane.b32.xlu0 %v4466, 120
    %v4468 = vpop.permute.xlu0 %4467
    %v4470 = vunpack.c.l.b16 %v4383
    %v4471 = vpack.c.b16 %v4470, %v4470
    %4472 = vrot.lane.b32.xlu0 %v4471, 120
    %v4473 = vpop.permute.xlu0 %4472
    %v4475 = vsel %vm467, %v4468, 0
    %v4478 = vsel %vm467, %v4473, 0
    %4480 = vmatpush.bf16.xpose.msra.mxu0 0
    %4481 = vmatpush.bf16.xpose.msra.mxu0 0
    %4482 = vmatpush.bf16.xpose.msra.mxu0 0
    %4483 = vmatpush.bf16.xpose.msra.mxu0 0
    %4484 = vmatpush.bf16.xpose.msra.mxu0 0
    %4485 = vmatpush.bf16.xpose.msra.mxu0 0
    %4486 = vmatpush.bf16.xpose.msra.mxu0 0
    %4487 = vmatpush.bf16.xpose.msra.mxu0 %v4478
    %4488 = vmatmul.bf16.gmra.mxu0 %v4475
    %v4489 = vpop.f32.mrf.mxu0
    %v4490 = vadd.f32 0.0, %v4489
    %v4491 = vpop.f32.mrf.mxu0
    %4492 = vdwg.mxu0
    %v4493 = vsel %vm467, %v4490, -inf
    %4494 = vmax.xlane.f32.xlu0 %v4493
    %v4495 = vpop.xlane.xlu0 %4494
    %v4496 = vsub.f32 %v4490, %v4495
    %v4497 = vmul.f32 %v4496, 1.442695
    %v4498 = vpow.pop %v4497
    %v4499 = vsel %vm467, %v4498, 0.0
    %4500 = vadd.xlane.f32.xlu0 %v4499
    %v4501 = vpop.xlane.xlu0 %4500
    %v4502 = vrcp.pop %v4501
    %v4503 = vmul.f32 %v4498, %v4502
    %v4504 = vpack.c.bf16 %v4503, %v4503
    %v4506 = vunpack.c.l.b16 %v4411
    %v4507 = vpack.c.b16 %v4506, %v4506
    %4508 = vrot.lane.b32.xlu0 %v4507, 120
    %v4509 = vpop.permute.xlu0 %4508
    %v4511 = vsel %vm467, %v4504, 0
    %v4514 = vsel %vm502, %v4509, 0
    %4516 = vmatpush.bf16.msra.mxu0 0
    %4517 = vmatpush.bf16.msra.mxu0 0
    %4518 = vmatpush.bf16.msra.mxu0 0
    %4519 = vmatpush.bf16.msra.mxu0 0
    %4520 = vmatpush.bf16.msra.mxu0 0
    %4521 = vmatpush.bf16.msra.mxu0 0
    %4522 = vmatpush.bf16.msra.mxu0 0
    %4523 = vmatpush.bf16.msra.mxu0 %v4514
    %4524 = vmatmul.bf16.gmra.mxu0 %v4511
    %v4525 = vpop.f32.mrf.mxu0
    %v4526 = vadd.f32 0.0, %v4525
    %v4527 = vpop.f32.mrf.mxu0
    %4528 = vdwg.mxu0
    %4530 = vrot.lane.b32.xlu0 %v4526, 8
    %v4531 = vpop.permute.xlu0 %4530
    %4533 = vst.msk [vmem:[#allocation2] sm:$0xff] %vm589, %v4531
    %4534 = vrot.lane.b32.xlu0 %v4466, 112
    %v4535 = vpop.permute.xlu0 %4534
    %4536 = vrot.lane.b32.xlu0 %v4471, 112
    %v4537 = vpop.permute.xlu0 %4536
    %v4539 = vsel %vm467, %v4535, 0
    %v4542 = vsel %vm467, %v4537, 0
    %4544 = vmatpush.bf16.xpose.msra.mxu0 0
    %4545 = vmatpush.bf16.xpose.msra.mxu0 0
    %4546 = vmatpush.bf16.xpose.msra.mxu0 0
    %4547 = vmatpush.bf16.xpose.msra.mxu0 0
    %4548 = vmatpush.bf16.xpose.msra.mxu0 0
    %4549 = vmatpush.bf16.xpose.msra.mxu0 0
    %4550 = vmatpush.bf16.xpose.msra.mxu0 0
    %4551 = vmatpush.bf16.xpose.msra.mxu0 %v4542
    %4552 = vmatmul.bf16.gmra.mxu0 %v4539
    %v4553 = vpop.f32.mrf.mxu0
    %v4554 = vadd.f32 0.0, %v4553
    %v4555 = vpop.f32.mrf.mxu0
    %4556 = vdwg.mxu0
    %v4557 = vsel %vm467, %v4554, -inf
    %4558 = vmax.xlane.f32.xlu0 %v4557
    %v4559 = vpop.xlane.xlu0 %4558
    %v4560 = vsub.f32 %v4554, %v4559
    %v4561 = vmul.f32 %v4560, 1.442695
    %v4562 = vpow.pop %v4561
    %v4563 = vsel %vm467, %v4562, 0.0
    %4564 = vadd.xlane.f32.xlu0 %v4563
    %v4565 = vpop.xlane.xlu0 %4564
    %v4566 = vrcp.pop %v4565
    %v4567 = vmul.f32 %v4562, %v4566
    %v4568 = vpack.c.bf16 %v4567, %v4567
    %4569 = vrot.lane.b32.xlu0 %v4507, 112
    %v4570 = vpop.permute.xlu0 %4569
    %v4572 = vsel %vm467, %v4568, 0
    %v4575 = vsel %vm502, %v4570, 0
    %4577 = vmatpush.bf16.msra.mxu0 0
    %4578 = vmatpush.bf16.msra.mxu0 0
    %4579 = vmatpush.bf16.msra.mxu0 0
    %4580 = vmatpush.bf16.msra.mxu0 0
    %4581 = vmatpush.bf16.msra.mxu0 0
    %4582 = vmatpush.bf16.msra.mxu0 0
    %4583 = vmatpush.bf16.msra.mxu0 0
    %4584 = vmatpush.bf16.msra.mxu0 %v4575
    %4585 = vmatmul.bf16.gmra.mxu0 %v4572
    %v4586 = vpop.f32.mrf.mxu0
    %v4587 = vadd.f32 0.0, %v4586
    %v4588 = vpop.f32.mrf.mxu0
    %4589 = vdwg.mxu0
    %4591 = vrot.lane.b32.xlu0 %v4587, 16
    %v4592 = vpop.permute.xlu0 %4591
    %4594 = vst.msk [vmem:[#allocation2] sm:$0xff] %vm651, %v4592
    %4595 = vrot.lane.b32.xlu0 %v4466, 104
    %v4596 = vpop.permute.xlu0 %4595
    %4597 = vrot.lane.b32.xlu0 %v4471, 104
    %v4598 = vpop.permute.xlu0 %4597
    %v4600 = vsel %vm467, %v4596, 0
    %v4603 = vsel %vm467, %v4598, 0
    %4605 = vmatpush.bf16.xpose.msra.mxu0 0
    %4606 = vmatpush.bf16.xpose.msra.mxu0 0
    %4607 = vmatpush.bf16.xpose.msra.mxu0 0
    %4608 = vmatpush.bf16.xpose.msra.mxu0 0
    %4609 = vmatpush.bf16.xpose.msra.mxu0 0
    %4610 = vmatpush.bf16.xpose.msra.mxu0 0
    %4611 = vmatpush.bf16.xpose.msra.mxu0 0
    %4612 = vmatpush.bf16.xpose.msra.mxu0 %v4603
    %4613 = vmatmul.bf16.gmra.mxu0 %v4600
    %v4614 = vpop.f32.mrf.mxu0
    %v4615 = vadd.f32 0.0, %v4614
    %v4616 = vpop.f32.mrf.mxu0
    %4617 = vdwg.mxu0
    %v4618 = vsel %vm467, %v4615, -inf
    %4619 = vmax.xlane.f32.xlu0 %v4618
    %v4620 = vpop.xlane.xlu0 %4619
    %v4621 = vsub.f32 %v4615, %v4620
    %v4622 = vmul.f32 %v4621, 1.442695
    %v4623 = vpow.pop %v4622
    %v4624 = vsel %vm467, %v4623, 0.0
    %4625 = vadd.xlane.f32.xlu0 %v4624
    %v4626 = vpop.xlane.xlu0 %4625
    %v4627 = vrcp.pop %v4626
    %v4628 = vmul.f32 %v4623, %v4627
    %v4629 = vpack.c.bf16 %v4628, %v4628
    %4630 = vrot.lane.b32.xlu0 %v4507, 104
    %v4631 = vpop.permute.xlu0 %4630
    %v4633 = vsel %vm467, %v4629, 0
    %v4636 = vsel %vm502, %v4631, 0
    %4638 = vmatpush.bf16.msra.mxu0 0
    %4639 = vmatpush.bf16.msra.mxu0 0
    %4640 = vmatpush.bf16.msra.mxu0 0
    %4641 = vmatpush.bf16.msra.mxu0 0
    %4642 = vmatpush.bf16.msra.mxu0 0
    %4643 = vmatpush.bf16.msra.mxu0 0
    %4644 = vmatpush.bf16.msra.mxu0 0
    %4645 = vmatpush.bf16.msra.mxu0 %v4636
    %4646 = vmatmul.bf16.gmra.mxu0 %v4633
    %v4647 = vpop.f32.mrf.mxu0
    %v4648 = vadd.f32 0.0, %v4647
    %v4649 = vpop.f32.mrf.mxu0
    %4650 = vdwg.mxu0
    %4652 = vrot.lane.b32.xlu0 %v4648, 24
    %v4653 = vpop.permute.xlu0 %4652
    %4655 = vst.msk [vmem:[#allocation2] sm:$0xff] %vm713, %v4653
    %v4657 = vsel %vm467, %v4356, 0
    %v4660 = vsel %vm467, %v4384, 0
    %4662 = vmatpush.bf16.xpose.msra.mxu0 0
    %4663 = vmatpush.bf16.xpose.msra.mxu0 0
    %4664 = vmatpush.bf16.xpose.msra.mxu0 0
    %4665 = vmatpush.bf16.xpose.msra.mxu0 0
    %4666 = vmatpush.bf16.xpose.msra.mxu0 0
    %4667 = vmatpush.bf16.xpose.msra.mxu0 0
    %4668 = vmatpush.bf16.xpose.msra.mxu0 0
    %4669 = vmatpush.bf16.xpose.msra.mxu0 %v4660
    %4670 = vmatmul.bf16.gmra.mxu0 %v4657
    %v4671 = vpop.f32.mrf.mxu0
    %v4672 = vadd.f32 0.0, %v4671
    %v4673 = vpop.f32.mrf.mxu0
    %4674 = vdwg.mxu0
    %v4675 = vsel %vm467, %v4672, -inf
    %4676 = vmax.xlane.f32.xlu0 %v4675
    %v4677 = vpop.xlane.xlu0 %4676
    %v4678 = vsub.f32 %v4672, %v4677
    %v4679 = vmul.f32 %v4678, 1.442695
    %v4680 = vpow.pop %v4679
    %v4681 = vsel %vm467, %v4680, 0.0
    %4682 = vadd.xlane.f32.xlu0 %v4681
    %v4683 = vpop.xlane.xlu0 %4682
    %v4684 = vrcp.pop %v4683
    %v4685 = vmul.f32 %v4680, %v4684
    %v4686 = vpack.c.bf16 %v4685, %v4685
    %v4688 = vsel %vm467, %v4686, 0
    %v4691 = vsel %vm502, %v4412, 0
    %4693 = vmatpush.bf16.msra.mxu0 0
    %4694 = vmatpush.bf16.msra.mxu0 0
    %4695 = vmatpush.bf16.msra.mxu0 0
    %4696 = vmatpush.bf16.msra.mxu0 0
    %4697 = vmatpush.bf16.msra.mxu0 0
    %4698 = vmatpush.bf16.msra.mxu0 0
    %4699 = vmatpush.bf16.msra.mxu0 0
    %4700 = vmatpush.bf16.msra.mxu0 %v4691
    %4701 = vmatmul.bf16.gmra.mxu0 %v4688
    %v4702 = vpop.f32.mrf.mxu0
    %v4703 = vadd.f32 0.0, %v4702
    %v4704 = vpop.f32.mrf.mxu0
    %4705 = vdwg.mxu0
    %4706 = vst.msk [vmem:[#allocation2 + $0x8] sm:$0xff] %vm467, %v4703
    %v4708 = vunpack.c.l.b16 %v4356
    %v4709 = vpack.c.b16 %v4708, %v4708
    %4710 = vrot.lane.b32.xlu0 %v4709, 120
    %v4711 = vpop.permute.xlu0 %4710
    %v4713 = vunpack.c.l.b16 %v4384
    %v4714 = vpack.c.b16 %v4713, %v4713
    %4715 = vrot.lane.b32.xlu0 %v4714, 120
    %v4716 = vpop.permute.xlu0 %4715
    %v4718 = vsel %vm467, %v4711, 0
    %v4721 = vsel %vm467, %v4716, 0
    %4723 = vmatpush.bf16.xpose.msra.mxu0 0
    %4724 = vmatpush.bf16.xpose.msra.mxu0 0
    %4725 = vmatpush.bf16.xpose.msra.mxu0 0
    %4726 = vmatpush.bf16.xpose.msra.mxu0 0
    %4727 = vmatpush.bf16.xpose.msra.mxu0 0
    %4728 = vmatpush.bf16.xpose.msra.mxu0 0
    %4729 = vmatpush.bf16.xpose.msra.mxu0 0
    %4730 = vmatpush.bf16.xpose.msra.mxu0 %v4721
    %4731 = vmatmul.bf16.gmra.mxu0 %v4718
    %v4732 = vpop.f32.mrf.mxu0
    %v4733 = vadd.f32 0.0, %v4732
    %v4734 = vpop.f32.mrf.mxu0
    %4735 = vdwg.mxu0
    %v4736 = vsel %vm467, %v4733, -inf
    %4737 = vmax.xlane.f32.xlu0 %v4736
    %v4738 = vpop.xlane.xlu0 %4737
    %v4739 = vsub.f32 %v4733, %v4738
    %v4740 = vmul.f32 %v4739, 1.442695
    %v4741 = vpow.pop %v4740
    %v4742 = vsel %vm467, %v4741, 0.0
    %4743 = vadd.xlane.f32.xlu0 %v4742
    %v4744 = vpop.xlane.xlu0 %4743
    %v4745 = vrcp.pop %v4744
    %v4746 = vmul.f32 %v4741, %v4745
    %v4747 = vpack.c.bf16 %v4746, %v4746
    %v4749 = vunpack.c.l.b16 %v4412
    %v4750 = vpack.c.b16 %v4749, %v4749
    %4751 = vrot.lane.b32.xlu0 %v4750, 120
    %v4752 = vpop.permute.xlu0 %4751
    %v4754 = vsel %vm467, %v4747, 0
    %v4757 = vsel %vm502, %v4752, 0
    %4759 = vmatpush.bf16.msra.mxu0 0
    %4760 = vmatpush.bf16.msra.mxu0 0
    %4761 = vmatpush.bf16.msra.mxu0 0
    %4762 = vmatpush.bf16.msra.mxu0 0
    %4763 = vmatpush.bf16.msra.mxu0 0
    %4764 = vmatpush.bf16.msra.mxu0 0
    %4765 = vmatpush.bf16.msra.mxu0 0
    %4766 = vmatpush.bf16.msra.mxu0 %v4757
    %4767 = vmatmul.bf16.gmra.mxu0 %v4754
    %v4768 = vpop.f32.mrf.mxu0
    %v4769 = vadd.f32 0.0, %v4768
    %v4770 = vpop.f32.mrf.mxu0
    %4771 = vdwg.mxu0
    %4773 = vrot.lane.b32.xlu0 %v4769, 8
    %v4774 = vpop.permute.xlu0 %4773
    %4776 = vst.msk [vmem:[#allocation2 + $0x8] sm:$0xff] %vm589, %v4774
    %4777 = vrot.lane.b32.xlu0 %v4709, 112
    %v4778 = vpop.permute.xlu0 %4777
    %4779 = vrot.lane.b32.xlu0 %v4714, 112
    %v4780 = vpop.permute.xlu0 %4779
    %v4782 = vsel %vm467, %v4778, 0
    %v4785 = vsel %vm467, %v4780, 0
    %4787 = vmatpush.bf16.xpose.msra.mxu0 0
    %4788 = vmatpush.bf16.xpose.msra.mxu0 0
    %4789 = vmatpush.bf16.xpose.msra.mxu0 0
    %4790 = vmatpush.bf16.xpose.msra.mxu0 0
    %4791 = vmatpush.bf16.xpose.msra.mxu0 0
    %4792 = vmatpush.bf16.xpose.msra.mxu0 0
    %4793 = vmatpush.bf16.xpose.msra.mxu0 0
    %4794 = vmatpush.bf16.xpose.msra.mxu0 %v4785
    %4795 = vmatmul.bf16.gmra.mxu0 %v4782
    %v4796 = vpop.f32.mrf.mxu0
    %v4797 = vadd.f32 0.0, %v4796
    %v4798 = vpop.f32.mrf.mxu0
    %4799 = vdwg.mxu0
    %v4800 = vsel %vm467, %v4797, -inf
    %4801 = vmax.xlane.f32.xlu0 %v4800
    %v4802 = vpop.xlane.xlu0 %4801
    %v4803 = vsub.f32 %v4797, %v4802
    %v4804 = vmul.f32 %v4803, 1.442695
    %v4805 = vpow.pop %v4804
    %v4806 = vsel %vm467, %v4805, 0.0
    %4807 = vadd.xlane.f32.xlu0 %v4806
    %v4808 = vpop.xlane.xlu0 %4807
    %v4809 = vrcp.pop %v4808
    %v4810 = vmul.f32 %v4805, %v4809
    %v4811 = vpack.c.bf16 %v4810, %v4810
    %4812 = vrot.lane.b32.xlu0 %v4750, 112
    %v4813 = vpop.permute.xlu0 %4812
    %v4815 = vsel %vm467, %v4811, 0
    %v4818 = vsel %vm502, %v4813, 0
    %4820 = vmatpush.bf16.msra.mxu0 0
    %4821 = vmatpush.bf16.msra.mxu0 0
    %4822 = vmatpush.bf16.msra.mxu0 0
    %4823 = vmatpush.bf16.msra.mxu0 0
    %4824 = vmatpush.bf16.msra.mxu0 0
    %4825 = vmatpush.bf16.msra.mxu0 0
    %4826 = vmatpush.bf16.msra.mxu0 0
    %4827 = vmatpush.bf16.msra.mxu0 %v4818
    %4828 = vmatmul.bf16.gmra.mxu0 %v4815
    %v4829 = vpop.f32.mrf.mxu0
    %v4830 = vadd.f32 0.0, %v4829
    %v4831 = vpop.f32.mrf.mxu0
    %4832 = vdwg.mxu0
    %4834 = vrot.lane.b32.xlu0 %v4830, 16
    %v4835 = vpop.permute.xlu0 %4834
    %4837 = vst.msk [vmem:[#allocation2 + $0x8] sm:$0xff] %vm651, %v4835
    %4838 = vrot.lane.b32.xlu0 %v4709, 104
    %v4839 = vpop.permute.xlu0 %4838
    %4840 = vrot.lane.b32.xlu0 %v4714, 104
    %v4841 = vpop.permute.xlu0 %4840
    %v4843 = vsel %vm467, %v4839, 0
    %v4846 = vsel %vm467, %v4841, 0
    %4848 = vmatpush.bf16.xpose.msra.mxu0 0
    %4849 = vmatpush.bf16.xpose.msra.mxu0 0
    %4850 = vmatpush.bf16.xpose.msra.mxu0 0
    %4851 = vmatpush.bf16.xpose.msra.mxu0 0
    %4852 = vmatpush.bf16.xpose.msra.mxu0 0
    %4853 = vmatpush.bf16.xpose.msra.mxu0 0
    %4854 = vmatpush.bf16.xpose.msra.mxu0 0
    %4855 = vmatpush.bf16.xpose.msra.mxu0 %v4846
    %4856 = vmatmul.bf16.gmra.mxu0 %v4843
    %v4857 = vpop.f32.mrf.mxu0
    %v4858 = vadd.f32 0.0, %v4857
    %v4859 = vpop.f32.mrf.mxu0
    %4860 = vdwg.mxu0
    %v4861 = vsel %vm467, %v4858, -inf
    %4862 = vmax.xlane.f32.xlu0 %v4861
    %v4863 = vpop.xlane.xlu0 %4862
    %v4864 = vsub.f32 %v4858, %v4863
    %v4865 = vmul.f32 %v4864, 1.442695
    %v4866 = vpow.pop %v4865
    %v4867 = vsel %vm467, %v4866, 0.0
    %4868 = vadd.xlane.f32.xlu0 %v4867
    %v4869 = vpop.xlane.xlu0 %4868
    %v4870 = vrcp.pop %v4869
    %v4871 = vmul.f32 %v4866, %v4870
    %v4872 = vpack.c.bf16 %v4871, %v4871
    %4873 = vrot.lane.b32.xlu0 %v4750, 104
    %v4874 = vpop.permute.xlu0 %4873
    %v4876 = vsel %vm467, %v4872, 0
    %v4879 = vsel %vm502, %v4874, 0
    %4881 = vmatpush.bf16.msra.mxu0 0
    %4882 = vmatpush.bf16.msra.mxu0 0
    %4883 = vmatpush.bf16.msra.mxu0 0
    %4884 = vmatpush.bf16.msra.mxu0 0
    %4885 = vmatpush.bf16.msra.mxu0 0
    %4886 = vmatpush.bf16.msra.mxu0 0
    %4887 = vmatpush.bf16.msra.mxu0 0
    %4888 = vmatpush.bf16.msra.mxu0 %v4879
    %4889 = vmatmul.bf16.gmra.mxu0 %v4876
    %v4890 = vpop.f32.mrf.mxu0
    %v4891 = vadd.f32 0.0, %v4890
    %v4892 = vpop.f32.mrf.mxu0
    %4893 = vdwg.mxu0
    %4895 = vrot.lane.b32.xlu0 %v4891, 24
    %v4896 = vpop.permute.xlu0 %4895
    %4898 = vst.msk [vmem:[#allocation2 + $0x8] sm:$0xff] %vm713, %v4896
    %v4899 = vld [vmem:[#allocation2] sm:$0xff]
    %v4900 = vld [vmem:[#allocation2 + $0x8] sm:$0xff]
    %v4901 = vpack.c.bf16 %v4900, %v4899
    %v4906 = vunpack.c.l.b16 %v4315
    %v4907 = vunpack.c.l.b16 %v4316
    %v4908 = vunpack.c.l.b16 %v4317
    %v4909 = vunpack.c.l.b16 %v4318
    %v4910 = vpack.c.b16 %v4907, %v4906
    %v4911 = vpack.c.b16 %v4909, %v4908
    %v4915 = vsel %vm297, %v4901, 0
    %4917 = vmatpush.bf16.msra.mxu0 0
    %4918 = vmatpush.bf16.msra.mxu0 0
    %4919 = vmatpush.bf16.msra.mxu0 0
    %4920 = vmatpush.bf16.msra.mxu0 0
    %4921 = vmatpush.bf16.msra.mxu0 0
    %4922 = vmatpush.bf16.msra.mxu0 0
    %4923 = vmatpush.bf16.msra.mxu0 %v4911
    %4924 = vmatpush.bf16.msra.mxu0 %v4910
    %4925 = vmatmul.bf16.gmra.mxu0 %v4915
    %v4926 = vpop.f32.mrf.mxu0
    %v4927 = vadd.f32 %v4297, %v4926
    %v4928 = vpop.f32.mrf.mxu0
    %v4929 = vadd.f32 %v4298, %v4928
    %4930 = vdwg.mxu0
    %v4931 = vsel %vm297, %v4927, 0.0
    %4932 = vadd.xlane.f32.xlu0 %v4931
    %v4933 = vpop.xlane.xlu0 %4932
    %v4934 = vsel %vm297, %v4929, 0.0
    %4935 = vadd.xlane.f32.xlu0 %v4934
    %v4936 = vpop.xlane.xlu0 %4935
    %v4937 = vmul.f32 %v4933, %v310
    %v4938 = vmul.f32 %v4936, %v310
    %v4939 = vsub.f32 %v4927, %v4937
    %v4940 = vsub.f32 %v4929, %v4938
    %v4941 = vmul.f32 %v4939, %v4939
    %v4942 = vmul.f32 %v4940, %v4940
    %v4943 = vsel %vm297, %v4941, 0.0
    %4944 = vadd.xlane.f32.xlu0 %v4943
    %v4945 = vpop.xlane.xlu0 %4944
    %v4946 = vsel %vm297, %v4942, 0.0
    %4947 = vadd.xlane.f32.xlu0 %v4946
    %v4948 = vpop.xlane.xlu0 %4947
    %v4949 = vmul.f32 %v4945, %v310
    %v4950 = vmul.f32 %v4948, %v310
    %v4951 = vadd.f32 %v4949, 1e-06
    %v4952 = vadd.f32 %v4950, 1e-06
    %v4953 = vrsqrt.pop %v4951
    %v4954 = vmul.f32 %v4953, %v4951
    %v4955 = vmul.f32 %v4954, %v4953
    %v4956 = vmul.f32 0.5, %v4955
    %v4957 = vsub.f32 1.5, %v4956
    %v4958 = vmul.f32 %v4953, %v4957
    %vm4959 = vweird.f32 %v4951
    %vm4960 = vweird.f32 %v4953
    %vm4961 = vmor %vm4959, %vm4960
    %v4962 = vsel %vm4961, %v4953, %v4958
    %v4963 = vrsqrt.pop %v4952
    %v4964 = vmul.f32 %v4963, %v4952
    %v4965 = vmul.f32 %v4964, %v4963
    %v4966 = vmul.f32 0.5, %v4965
    %v4967 = vsub.f32 1.5, %v4966
    %v4968 = vmul.f32 %v4963, %v4967
    %vm4969 = vweird.f32 %v4952
    %vm4970 = vweird.f32 %v4963
    %vm4971 = vmor %vm4969, %vm4970
    %v4972 = vsel %vm4971, %v4963, %v4968
    %v4973 = vmul.f32 %v4939, %v4962
    %v4974 = vmul.f32 %v4940, %v4972
    %v4976 = vperm.slane %v4320, 0
    %v4978 = vmul.f32 %v4973, %v4976
    %v4979 = vmul.f32 %v4974, %v4976
    %v4981 = vperm.slane %v4322, 0
    %v4983 = vadd.f32 %v4978, %v4981
    %v4984 = vadd.f32 %v4979, %v4981
    %s4985 = scalar_lea.vmem [#allocation16], 16
    %v4986 = vld [vmem:[%s4985] sm:$0xf]
    %v4987 = vld [vmem:[%s4985 + $0x4] sm:$0xf]
    %v4988 = vld [vmem:[%s4985 + $0x8] sm:$0xf]
    %v4989 = vld [vmem:[%s4985 + $0xc] sm:$0xf]
    %s4990 = scalar_lea.vmem %s63, 1
    %v4991 = vld [vmem:[%s4990] sm:$0x1]
    %s4992 = scalar_lea.vmem %s65, 32
    %v4993 = vld [vmem:[%s4992] sm:$0xf]
    %v4994 = vld [vmem:[%s4992 + $0x4] sm:$0xf]
    %v4995 = vld [vmem:[%s4992 + $0x8] sm:$0xf]
    %v4996 = vld [vmem:[%s4992 + $0xc] sm:$0xf]
    %v4997 = vld [vmem:[%s4992 + $0x10] sm:$0xf]
    %v4998 = vld [vmem:[%s4992 + $0x14] sm:$0xf]
    %v4999 = vld [vmem:[%s4992 + $0x18] sm:$0xf]
    %v5000 = vld [vmem:[%s4992 + $0x1c] sm:$0xf]
    %s5001 = scalar_lea.vmem %s67, 1
    %v5002 = vld [vmem:[%s5001] sm:$0x1]
    %s5003 = scalar_lea.vmem %s69, 1
    %v5004 = vld [vmem:[%s5003] sm:$0x1]
    %s5005 = scalar_lea.vmem %s71, 1
    %v5006 = vld [vmem:[%s5005] sm:$0x1]
    %v5007 = vpack.c.bf16 %v4984, %v4983
    %v5009 = vperm.slane %v4991, 0
    %v5015 = vunpack.c.l.b16 %v4986
    %v5016 = vunpack.c.l.b16 %v4987
    %v5017 = vunpack.c.l.b16 %v4988
    %v5018 = vunpack.c.l.b16 %v4989
    %v5019 = vpack.c.b16 %v5016, %v5015
    %v5020 = vpack.c.b16 %v5018, %v5017
    %v5024 = vsel %vm297, %v5007, 0
    %5026 = vmatpush.bf16.msra.mxu0 0
    %5027 = vmatpush.bf16.msra.mxu0 0
    %5028 = vmatpush.bf16.msra.mxu0 0
    %5029 = vmatpush.bf16.msra.mxu0 0
    %5030 = vmatpush.bf16.msra.mxu0 0
    %5031 = vmatpush.bf16.msra.mxu0 0
    %5032 = vmatpush.bf16.msra.mxu0 %v5020
    %5033 = vmatpush.bf16.msra.mxu0 %v5019
    %5034 = vmatmul.bf16.gmra.mxu0 %v5024
    %v5035 = vpop.f32.mrf.mxu0
    %v5036 = vadd.f32 %v5009, %v5035
    %v5037 = vpop.f32.mrf.mxu0
    %v5038 = vadd.f32 %v5009, %v5037
    %5039 = vdwg.mxu0
    %v5040 = vmax.f32 %v5036, 0.0
    %v5041 = vmax.f32 %v5038, 0.0
    %v5042 = vpack.c.bf16 %v5041, %v5040
    %v5044 = vperm.slane %v5002, 0
    %v5054 = vunpack.c.l.b16 %v4993
    %v5055 = vunpack.c.l.b16 %v4994
    %v5056 = vunpack.c.l.b16 %v4995
    %v5057 = vunpack.c.l.b16 %v4996
    %v5058 = vunpack.c.l.b16 %v4997
    %v5059 = vunpack.c.l.b16 %v4998
    %v5060 = vunpack.c.l.b16 %v4999
    %v5061 = vunpack.c.l.b16 %v5000
    %v5062 = vpack.c.b16 %v5055, %v5054
    %v5063 = vpack.c.b16 %v5057, %v5056
    %v5064 = vpack.c.b16 %v5059, %v5058
    %v5065 = vpack.c.b16 %v5061, %v5060
    %v5071 = vsel %vm1123, %v5042, 0
    %5073 = vmatpush.bf16.msra.mxu0 0
    %5074 = vmatpush.bf16.msra.mxu0 0
    %5075 = vmatpush.bf16.msra.mxu0 0
    %5076 = vmatpush.bf16.msra.mxu0 0
    %5077 = vmatpush.bf16.msra.mxu0 %v5065
    %5078 = vmatpush.bf16.msra.mxu0 %v5064
    %5079 = vmatpush.bf16.msra.mxu0 %v5063
    %5080 = vmatpush.bf16.msra.mxu0 %v5062
    %5081 = vmatmul.bf16.gmra.mxu0 %v5071
    %v5082 = vpop.f32.mrf.mxu0
    %v5083 = vadd.f32 %v5044, %v5082
    %v5084 = vpop.f32.mrf.mxu0
    %v5085 = vadd.f32 %v5044, %v5084
    %5086 = vdwg.mxu0
    %v5087 = vadd.f32 %v5083, %v4983
    %v5088 = vadd.f32 %v5085, %v4984
    %v5089 = vsel %vm297, %v5087, 0.0
    %5090 = vadd.xlane.f32.xlu0 %v5089
    %v5091 = vpop.xlane.xlu0 %5090
    %v5092 = vsel %vm297, %v5088, 0.0
    %5093 = vadd.xlane.f32.xlu0 %v5092
    %v5094 = vpop.xlane.xlu0 %5093
    %v5095 = vmul.f32 %v5091, %v310
    %v5096 = vmul.f32 %v5094, %v310
    %v5097 = vsub.f32 %v5087, %v5095
    %v5098 = vsub.f32 %v5088, %v5096
    %v5099 = vmul.f32 %v5097, %v5097
    %v5100 = vmul.f32 %v5098, %v5098
    %v5101 = vsel %vm297, %v5099, 0.0
    %5102 = vadd.xlane.f32.xlu0 %v5101
    %v5103 = vpop.xlane.xlu0 %5102
    %v5104 = vsel %vm297, %v5100, 0.0
    %5105 = vadd.xlane.f32.xlu0 %v5104
    %v5106 = vpop.xlane.xlu0 %5105
    %v5107 = vmul.f32 %v5103, %v310
    %v5108 = vmul.f32 %v5106, %v310
    %v5109 = vadd.f32 %v5107, 1e-06
    %v5110 = vadd.f32 %v5108, 1e-06
    %v5111 = vrsqrt.pop %v5109
    %v5112 = vmul.f32 %v5111, %v5109
    %v5113 = vmul.f32 %v5112, %v5111
    %v5114 = vmul.f32 0.5, %v5113
    %v5115 = vsub.f32 1.5, %v5114
    %v5116 = vmul.f32 %v5111, %v5115
    %vm5117 = vweird.f32 %v5109
    %vm5118 = vweird.f32 %v5111
    %vm5119 = vmor %vm5117, %vm5118
    %v5120 = vsel %vm5119, %v5111, %v5116
    %v5121 = vrsqrt.pop %v5110
    %v5122 = vmul.f32 %v5121, %v5110
    %v5123 = vmul.f32 %v5122, %v5121
    %v5124 = vmul.f32 0.5, %v5123
    %v5125 = vsub.f32 1.5, %v5124
    %v5126 = vmul.f32 %v5121, %v5125
    %vm5127 = vweird.f32 %v5110
    %vm5128 = vweird.f32 %v5121
    %vm5129 = vmor %vm5127, %vm5128
    %v5130 = vsel %vm5129, %v5121, %v5126
    %v5131 = vmul.f32 %v5097, %v5120
    %v5132 = vmul.f32 %v5098, %v5130
    %v5134 = vperm.slane %v5004, 0
    %v5136 = vmul.f32 %v5131, %v5134
    %v5137 = vmul.f32 %v5132, %v5134
    %v5139 = vperm.slane %v5006, 0
    %v5141 = vadd.f32 %v5136, %v5139
    %v5142 = vadd.f32 %v5137, %v5139
    %5143 = vst.msk [vmem:[%s73] sm:$0xff] %vm297, %v5141
    %5144 = vst.msk [vmem:[%s73 + $0x8] sm:$0xff] %vm297, %v5142
    // Predicated region
    $region182: #{_lambda_.1} parent=1 // pred_check
      _
    $region183: #{_lambda_.1} parent=1 // pred_check_branch
      %5146 = sbr.rel (0) target = $region185
    $region184: #{_lambda_.1} parent=1 // pred_region
      _
    $region185: #{_lambda_.1} parent=1 // pred_fallthru
      _
    // Predicated region
    $region186: #{_lambda_.1} parent=1 // pred_check
      _
    $region187: #{_lambda_.1} parent=1 // pred_check_branch
      %5148 = sbr.rel (0) target = $region189
    $region188: #{_lambda_.1} parent=1 // pred_region
      _
    $region189: #{_lambda_.1} parent=1 // pred_fallthru
      _
    %5149 = vsyncpa [#allocation4], 1
    %5150 = vsyncpa [#allocation6], 1
    %5151 = vsyncpa [#allocation9], 1
    %5152 = vsyncpa [#allocation12], 1
    %5153 = vsyncpa [#allocation15], 1

</llo_original>
